<compile_context>
chip_gen: v7x
topology: tpu7x:2x2x1
jax: 0.10.0
libtpu: 0.0.40
codegen_flags: <defaults>
</compile_context>

<pallas_src>
import jax
import jax.numpy as jnp
from jax import lax
from jax.experimental import pallas as pl
from jax.experimental.pallas import tpu as pltpu


# -----------------------------------------------------------------------------
# Fused kernel factory.
#
# Ref layout (all whole-array VMEM; everything is tiny at these shapes):
#   refs[0]              : x2d      (T*Bp, I)   bf16, time-major, batch-padded
#   refs[1 + 3l + 0]     : wih_t_l  (in_l, 4H)  bf16, gate cols [i|f|o|g]
#   refs[1 + 3l + 1]     : whh_t_l  (H, 4H)     bf16, gate cols [i|f|o|g]
#   refs[1 + 3l + 2]     : bias_l   (1, 4H)     f32  (b_ih + b_hh, reordered)
#   refs[1 + 3L + 0]     : w_head   (H, Cp)     bf16 (fc1∘bn1∘fc2 folded, lane-padded)
#   refs[1 + 3L + 1]     : b_head   (1, Cp)     f32
#   refs[1 + 3L + 2]     : out_ref  (Bp, Cp)    f32
#   refs[1 + 3L + 3/4]   : xp_a/xp_b (T*Bp, 4H) f32 scratch (ping-pong)
# -----------------------------------------------------------------------------
def _make_fused_kernel(L, T, Bp, H):
    def kernel(*refs):
        x_ref = refs[0]
        layer_refs = refs[1:1 + 3 * L]
        w_head_ref = refs[1 + 3 * L]
        b_head_ref = refs[1 + 3 * L + 1]
        out_ref = refs[1 + 3 * L + 2]
        xp_scr = (refs[1 + 3 * L + 3], refs[1 + 3 * L + 4])

        def wih(l):
            return layer_refs[3 * l + 0][...]

        def whh(l):
            return layer_refs[3 * l + 1][...]

        def bias(l):
            return layer_refs[3 * l + 2][...]

        # Layer-0 input projection for ALL time steps: one batched MXU matmul.
        xp_scr[0][...] = jnp.dot(x_ref[...], wih(0),
                                 preferred_element_type=jnp.float32) + bias(0)

        hb = None  # bf16 copy of the most recent hidden state
        for l in range(L):
            cur = xp_scr[l % 2]          # pre-activations for this layer
            nxt = xp_scr[(l + 1) % 2]    # pre-activations being built for next
            whh_l = whh(l)
            last_layer = (l + 1 == L)
            if not last_layer:
                wih_n = wih(l + 1)
                b_n = bias(l + 1)

            # Recurrent loop, fully unrolled (T is static); h/c stay in vregs.
            c = jnp.zeros((Bp, H), jnp.float32)
            hb = jnp.zeros((Bp, H), jnp.bfloat16)
            for t in range(T):
                # Static, sublane-aligned (Bp, 4H) slice of the pre-activations.
                g = cur[t * Bp:(t + 1) * Bp, :] + jnp.dot(
                    hb, whh_l, preferred_element_type=jnp.float32)
                # Gate columns are [i | f | o | g]: one sigmoid over 3H lanes,
                # one tanh over H lanes (EUP pushes minimized on the h chain).
                sig = jax.nn.sigmoid(g[:, :3 * H])
                tg = jnp.tanh(g[:, 3 * H:])
                i_g = sig[:, 0 * H:1 * H]
                f_g = sig[:, 1 * H:2 * H]
                o_g = sig[:, 2 * H:3 * H]
                c = f_g * c + i_g * tg
                h = o_g * jnp.tanh(c)
                hb = h.astype(jnp.bfloat16)   # single cast reused for both dots
                if not last_layer:
                    # Next layer's input projection for this time step
                    # (off the h critical path; lane-dense (Bp,4H) store).
                    nxt[t * Bp:(t + 1) * Bp, :] = jnp.dot(
                        hb, wih_n, preferred_element_type=jnp.float32) + b_n
            # Inter-layer dropout (p=0.3) is identity in eval mode.

        # Folded head: fc1 ∘ bn1(eval) ∘ dropout(identity) ∘ fc2 == one linear.
        out_ref[...] = jnp.dot(hb, w_head_ref[...],
                               preferred_element_type=jnp.float32) + b_head_ref[...]

    return kernel


# -----------------------------------------------------------------------------
# Full forward pass (eval mode), single pallas_call.
# Returns PADDED logits (Bp, Cp); the valid region is [:B, :num_classes] and is
# sliced by the caller (outside the jit, per perf feedback).
# -----------------------------------------------------------------------------
@jax.jit
def gemini_lstm_forward(x, params):
    # x: (B, T, input_size), batch_first=True (matches the PyTorch module).
    B, T, I = x.shape
    L = len(params["lstm_layers"])
    H = params["lstm_layers"][0][1].shape[0]       # whh_t is (H, 4H)
    Cp = params["w_head"].shape[1]
    Bp = max(8, ((B + 7) // 8) * 8)                # pad batch to sublane tile

    # One small fused copy: pad batch -> time-major -> flatten -> bf16.
    x_p = jnp.zeros((Bp, T, I), jnp.bfloat16).at[:B].set(x.astype(jnp.bfloat16))
    x2d = jnp.transpose(x_p, (1, 0, 2)).reshape(T * Bp, I)

    flat_layers = []
    for (wih_t, whh_t, b) in params["lstm_layers"]:
        flat_layers += [wih_t, whh_t, b]

    vmem = pl.BlockSpec(memory_space=pltpu.MemorySpace.VMEM)
    n_in = 1 + len(flat_layers) + 2
    return pl.pallas_call(
        _make_fused_kernel(L, T, Bp, H),
        out_shape=jax.ShapeDtypeStruct((Bp, Cp), jnp.float32),
        in_specs=[vmem] * n_in,
        out_specs=vmem,
        scratch_shapes=[pltpu.VMEM((T * Bp, 4 * H), jnp.float32),
                        pltpu.VMEM((T * Bp, 4 * H), jnp.float32)],
    )(x2d, *flat_layers, params["w_head"], params["b_head"])


# -----------------------------------------------------------------------------
# Parameter construction (deterministic, PyTorch-equivalent shapes/semantics).
# Weights stored pre-transposed (in, 4H) with gate columns permuted to
# [i, f, o, g]; bias = b_ih + b_hh; eval-mode bn1 folded into fc1, then
# fc1∘fc2 folded into a single (H, Cp) linear; matmul weights stored as bf16.
# -----------------------------------------------------------------------------
def init_params(key, input_size, hidden_size, num_layers, num_classes):
    H = hidden_size

    def uni(key, shape, bound):
        return jax.random.uniform(key, shape, jnp.float32, -bound, bound)

    def gate_reorder(w):  # columns [i|f|g|o] -> [i|f|o|g]
        i, f, g, o = jnp.split(w, 4, axis=1)
        return jnp.concatenate([i, f, o, g], axis=1)

    bound = 1.0 / float(H) ** 0.5
    params = {"lstm_layers": []}

    # Three stacked nn.LSTM modules, each with `num_layers` internal layers.
    in_sizes = []
    for mod in range(3):
        for layer in range(num_layers):
            in_sizes.append(input_size if (mod == 0 and layer == 0) else H)

    for in_sz in in_sizes:
        key, k1, k2, k3, k4 = jax.random.split(key, 5)
        w_ih_t = uni(k1, (in_sz, 4 * H), bound)           # (in, 4H)
        w_hh_t = uni(k2, (H, 4 * H), bound)               # (H, 4H)
        b = (uni(k3, (4 * H,), bound) + uni(k4, (4 * H,), bound)).reshape(1, 4 * H)
        params["lstm_layers"].append(
            (gate_reorder(w_ih_t).astype(jnp.bfloat16),
             gate_reorder(w_hh_t).astype(jnp.bfloat16),
             gate_reorder(b)))

    # fc1: Linear(H, 256)
    key, k1, k2 = jax.random.split(key, 3)
    b1_bound = 1.0 / float(H) ** 0.5
    w1 = uni(k1, (H, 256), b1_bound)
    b1 = uni(k2, (1, 256), b1_bound)
    # bn1: BatchNorm1d(256) at init (eval): gamma=1, beta=0, mean=0, var=1.
    gamma = jnp.ones((1, 256), jnp.float32)
    beta = jnp.zeros((1, 256), jnp.float32)
    mean = jnp.zeros((1, 256), jnp.float32)
    var = jnp.ones((1, 256), jnp.float32)
    s = gamma * lax.rsqrt(var + 1e-5)
    w1_f = w1 * s
    b1_f = (b1 - mean) * s + beta

    # fc2: Linear(256, num_classes)
    key, k1, k2 = jax.random.split(key, 3)
    b2_bound = 1.0 / float(256.0) ** 0.5
    w2 = uni(k1, (256, num_classes), b2_bound)
    b2 = uni(k2, (1, num_classes), b2_bound)

    # Fold fc1 ∘ bn1(eval) ∘ dropout(identity) ∘ fc2 into one linear.
    w_head = w1_f @ w2                                    # (H, C)
    b_head = b1_f @ w2 + b2                               # (1, C)

    # Pad classes to a lane-dense multiple of 128 (unmasked output store).
    Cp = max(128, ((num_classes + 127) // 128) * 128)
    params["w_head"] = (jnp.zeros((H, Cp), jnp.float32)
                        .at[:, :num_classes].set(w_head)).astype(jnp.bfloat16)
    params["b_head"] = (jnp.zeros((1, Cp), jnp.float32)
                        .at[:, :num_classes].set(b_head))
    return params


if __name__ == "__main__":
    input_size = 16
    hidden_size = 32
    num_layers = 2
    num_classes = 10
    batch = 2
    seq = 8

    key = jax.random.PRNGKey(0)
    key, xkey, pkey = jax.random.split(key, 3)
    x = jax.random.normal(xkey, (batch, seq, input_size), jnp.float32)
    params = init_params(pkey, input_size, hidden_size, num_layers, num_classes)

    out_padded = jax.block_until_ready(gemini_lstm_forward(x, params))
    out = out_padded[:batch, :num_classes]   # slice padding off in the caller

    assert out.shape == (batch, num_classes), out.shape
    assert bool(jnp.all(jnp.isfinite(out)))
    print("KERNEL_OK")
</pallas_src>

<mosaic_0001>
module attributes {stable_mosaic.version = 11 : i64} {
  func.func @kernel(%arg0: memref<64x16xbf16, #tpu.memory_space<vmem>>, %arg1: memref<16x128xbf16, #tpu.memory_space<vmem>>, %arg2: memref<32x128xbf16, #tpu.memory_space<vmem>>, %arg3: memref<1x128xf32, #tpu.memory_space<vmem>>, %arg4: memref<32x128xbf16, #tpu.memory_space<vmem>>, %arg5: memref<32x128xbf16, #tpu.memory_space<vmem>>, %arg6: memref<1x128xf32, #tpu.memory_space<vmem>>, %arg7: memref<32x128xbf16, #tpu.memory_space<vmem>>, %arg8: memref<32x128xbf16, #tpu.memory_space<vmem>>, %arg9: memref<1x128xf32, #tpu.memory_space<vmem>>, %arg10: memref<32x128xbf16, #tpu.memory_space<vmem>>, %arg11: memref<32x128xbf16, #tpu.memory_space<vmem>>, %arg12: memref<1x128xf32, #tpu.memory_space<vmem>>, %arg13: memref<32x128xbf16, #tpu.memory_space<vmem>>, %arg14: memref<32x128xbf16, #tpu.memory_space<vmem>>, %arg15: memref<1x128xf32, #tpu.memory_space<vmem>>, %arg16: memref<32x128xbf16, #tpu.memory_space<vmem>>, %arg17: memref<32x128xbf16, #tpu.memory_space<vmem>>, %arg18: memref<1x128xf32, #tpu.memory_space<vmem>>, %arg19: memref<32x128xbf16, #tpu.memory_space<vmem>>, %arg20: memref<1x128xf32, #tpu.memory_space<vmem>>, %arg21: memref<8x128xf32, #tpu.memory_space<vmem>>, %arg22: memref<64x128xf32, #tpu.memory_space<vmem>>, %arg23: memref<64x128xf32, #tpu.memory_space<vmem>>) attributes {dimension_semantics = [], scalar_prefetch = 0 : i64, scratch_operands = 2 : i64, tpu.core_type = #tpu.core_type<tc>} {
    %c0 = arith.constant 0 : index
    %c0_0 = arith.constant 0 : index
    %0 = vector.load %arg0[%c0, %c0_0] : memref<64x16xbf16, #tpu.memory_space<vmem>>, vector<64x16xbf16>
    %c0_1 = arith.constant 0 : index
    %c0_2 = arith.constant 0 : index
    %1 = vector.load %arg1[%c0_1, %c0_2] : memref<16x128xbf16, #tpu.memory_space<vmem>>, vector<16x128xbf16>
    %cst = arith.constant dense<0.000000e+00> : vector<64x128xf32>
    %2 = tpu.matmul %0, %1, %cst {dimension_numbers = #tpu.dot_dimension_numbers<[1], [0], [0], [1], [0, 0, 1, 1], [], []>} : vector<64x16xbf16>, vector<16x128xbf16>, vector<64x128xf32> -> vector<64x128xf32>
    %c0_3 = arith.constant 0 : index
    %c0_4 = arith.constant 0 : index
    %3 = vector.load %arg3[%c0_3, %c0_4] : memref<1x128xf32, #tpu.memory_space<vmem>>, vector<1x128xf32>
    %4 = vector.broadcast %3 : vector<1x128xf32> to vector<64x128xf32>
    %5 = arith.addf %2, %4 : vector<64x128xf32>
    %c0_5 = arith.constant 0 : index
    %c0_6 = arith.constant 0 : index
    %6 = vector.load %arg22[%c0_5, %c0_6] : memref<64x128xf32, #tpu.memory_space<vmem>>, vector<64x128xf32>
    tpu.vector_store %arg22[%c0_5, %c0_6], %5 {strides = array<i32>} : memref<64x128xf32, #tpu.memory_space<vmem>>, vector<64x128xf32>,
    %c0_7 = arith.constant 0 : index
    %c0_8 = arith.constant 0 : index
    %7 = vector.load %arg2[%c0_7, %c0_8] : memref<32x128xbf16, #tpu.memory_space<vmem>>, vector<32x128xbf16>
    %c0_9 = arith.constant 0 : index
    %c0_10 = arith.constant 0 : index
    %8 = vector.load %arg4[%c0_9, %c0_10] : memref<32x128xbf16, #tpu.memory_space<vmem>>, vector<32x128xbf16>
    %c0_11 = arith.constant 0 : index
    %c0_12 = arith.constant 0 : index
    %9 = vector.load %arg6[%c0_11, %c0_12] : memref<1x128xf32, #tpu.memory_space<vmem>>, vector<1x128xf32>
    %cst_13 = arith.constant 0.000000e+00 : f32
    %10 = vector.broadcast %cst_13 : f32 to vector<8x32xf32>
    %cst_14 = arith.constant 0.000000e+00 : bf16
    %11 = vector.broadcast %cst_14 : bf16 to vector<8x32xbf16>
    %c0_15 = arith.constant 0 : index
    %c0_16 = arith.constant 0 : index
    %12 = vector.load %arg22[%c0_15, %c0_16] : memref<64x128xf32, #tpu.memory_space<vmem>>, vector<8x128xf32>
    %cst_17 = arith.constant dense<0.000000e+00> : vector<8x128xf32>
    %13 = tpu.matmul %11, %7, %cst_17 {dimension_numbers = #tpu.dot_dimension_numbers<[1], [0], [0], [1], [0, 0, 1, 1], [], []>} : vector<8x32xbf16>, vector<32x128xbf16>, vector<8x128xf32> -> vector<8x128xf32>
    %14 = arith.addf %12, %13 : vector<8x128xf32>
    %15 = vector.extract_strided_slice %14 {offsets = [0, 0], sizes = [8, 96], strides = [1, 1]} : vector<8x128xf32> to vector<8x96xf32>
    %16 = arith.negf %15 : vector<8x96xf32>
    %17 = math.exp %16 : vector<8x96xf32>
    %cst_18 = arith.constant 1.000000e+00 : f32
    %18 = vector.broadcast %cst_18 : f32 to vector<8x96xf32>
    %19 = arith.addf %18, %17 : vector<8x96xf32>
    %20 = arith.divf %18, %19 : vector<8x96xf32>
    %21 = vector.extract_strided_slice %14 {offsets = [0, 96], sizes = [8, 32], strides = [1, 1]} : vector<8x128xf32> to vector<8x32xf32>
    %22 = math.tanh %21 : vector<8x32xf32>
    %23 = vector.extract_strided_slice %20 {offsets = [0, 0], sizes = [8, 32], strides = [1, 1]} : vector<8x96xf32> to vector<8x32xf32>
    %24 = vector.extract_strided_slice %20 {offsets = [0, 32], sizes = [8, 32], strides = [1, 1]} : vector<8x96xf32> to vector<8x32xf32>
    %25 = vector.extract_strided_slice %20 {offsets = [0, 64], sizes = [8, 32], strides = [1, 1]} : vector<8x96xf32> to vector<8x32xf32>
    %26 = arith.mulf %24, %10 : vector<8x32xf32>
    %27 = arith.mulf %23, %22 : vector<8x32xf32>
    %28 = arith.addf %26, %27 : vector<8x32xf32>
    %29 = math.tanh %28 : vector<8x32xf32>
    %30 = arith.mulf %25, %29 : vector<8x32xf32>
    %31 = arith.truncf %30 : vector<8x32xf32> to vector<8x32xbf16>
    %cst_19 = arith.constant dense<0.000000e+00> : vector<8x128xf32>
    %32 = tpu.matmul %31, %8, %cst_19 {dimension_numbers = #tpu.dot_dimension_numbers<[1], [0], [0], [1], [0, 0, 1, 1], [], []>} : vector<8x32xbf16>, vector<32x128xbf16>, vector<8x128xf32> -> vector<8x128xf32>
    %33 = vector.broadcast %9 : vector<1x128xf32> to vector<8x128xf32>
    %34 = arith.addf %32, %33 : vector<8x128xf32>
    %c0_20 = arith.constant 0 : index
    %c0_21 = arith.constant 0 : index
    %35 = vector.load %arg23[%c0_20, %c0_21] : memref<64x128xf32, #tpu.memory_space<vmem>>, vector<8x128xf32>
    tpu.vector_store %arg23[%c0_20, %c0_21], %34 {strides = array<i32>} : memref<64x128xf32, #tpu.memory_space<vmem>>, vector<8x128xf32>,
    %c8 = arith.constant 8 : index
    %c0_22 = arith.constant 0 : index
    %36 = vector.load %arg22[%c8, %c0_22] : memref<64x128xf32, #tpu.memory_space<vmem>>, vector<8x128xf32>
    %cst_23 = arith.constant dense<0.000000e+00> : vector<8x128xf32>
    %37 = tpu.matmul %31, %7, %cst_23 {dimension_numbers = #tpu.dot_dimension_numbers<[1], [0], [0], [1], [0, 0, 1, 1], [], []>} : vector<8x32xbf16>, vector<32x128xbf16>, vector<8x128xf32> -> vector<8x128xf32>
    %38 = arith.addf %36, %37 : vector<8x128xf32>
    %39 = vector.extract_strided_slice %38 {offsets = [0, 0], sizes = [8, 96], strides = [1, 1]} : vector<8x128xf32> to vector<8x96xf32>
    %40 = arith.negf %39 : vector<8x96xf32>
    %41 = math.exp %40 : vector<8x96xf32>
    %cst_24 = arith.constant 1.000000e+00 : f32
    %42 = vector.broadcast %cst_24 : f32 to vector<8x96xf32>
    %43 = arith.addf %42, %41 : vector<8x96xf32>
    %44 = arith.divf %42, %43 : vector<8x96xf32>
    %45 = vector.extract_strided_slice %38 {offsets = [0, 96], sizes = [8, 32], strides = [1, 1]} : vector<8x128xf32> to vector<8x32xf32>
    %46 = math.tanh %45 : vector<8x32xf32>
    %47 = vector.extract_strided_slice %44 {offsets = [0, 0], sizes = [8, 32], strides = [1, 1]} : vector<8x96xf32> to vector<8x32xf32>
    %48 = vector.extract_strided_slice %44 {offsets = [0, 32], sizes = [8, 32], strides = [1, 1]} : vector<8x96xf32> to vector<8x32xf32>
    %49 = vector.extract_strided_slice %44 {offsets = [0, 64], sizes = [8, 32], strides = [1, 1]} : vector<8x96xf32> to vector<8x32xf32>
    %50 = arith.mulf %48, %28 : vector<8x32xf32>
    %51 = arith.mulf %47, %46 : vector<8x32xf32>
    %52 = arith.addf %50, %51 : vector<8x32xf32>
    %53 = math.tanh %52 : vector<8x32xf32>
    %54 = arith.mulf %49, %53 : vector<8x32xf32>
    %55 = arith.truncf %54 : vector<8x32xf32> to vector<8x32xbf16>
    %cst_25 = arith.constant dense<0.000000e+00> : vector<8x128xf32>
    %56 = tpu.matmul %55, %8, %cst_25 {dimension_numbers = #tpu.dot_dimension_numbers<[1], [0], [0], [1], [0, 0, 1, 1], [], []>} : vector<8x32xbf16>, vector<32x128xbf16>, vector<8x128xf32> -> vector<8x128xf32>
    %57 = vector.broadcast %9 : vector<1x128xf32> to vector<8x128xf32>
    %58 = arith.addf %56, %57 : vector<8x128xf32>
    %c8_26 = arith.constant 8 : index
    %c0_27 = arith.constant 0 : index
    %59 = vector.load %arg23[%c8_26, %c0_27] : memref<64x128xf32, #tpu.memory_space<vmem>>, vector<8x128xf32>
    tpu.vector_store %arg23[%c8_26, %c0_27], %58 {strides = array<i32>} : memref<64x128xf32, #tpu.memory_space<vmem>>, vector<8x128xf32>,
    %c16 = arith.constant 16 : index
    %c0_28 = arith.constant 0 : index
    %60 = vector.load %arg22[%c16, %c0_28] : memref<64x128xf32, #tpu.memory_space<vmem>>, vector<8x128xf32>
    %cst_29 = arith.constant dense<0.000000e+00> : vector<8x128xf32>
    %61 = tpu.matmul %55, %7, %cst_29 {dimension_numbers = #tpu.dot_dimension_numbers<[1], [0], [0], [1], [0, 0, 1, 1], [], []>} : vector<8x32xbf16>, vector<32x128xbf16>, vector<8x128xf32> -> vector<8x128xf32>
    %62 = arith.addf %60, %61 : vector<8x128xf32>
    %63 = vector.extract_strided_slice %62 {offsets = [0, 0], sizes = [8, 96], strides = [1, 1]} : vector<8x128xf32> to vector<8x96xf32>
    %64 = arith.negf %63 : vector<8x96xf32>
    %65 = math.exp %64 : vector<8x96xf32>
    %cst_30 = arith.constant 1.000000e+00 : f32
    %66 = vector.broadcast %cst_30 : f32 to vector<8x96xf32>
    %67 = arith.addf %66, %65 : vector<8x96xf32>
    %68 = arith.divf %66, %67 : vector<8x96xf32>
    %69 = vector.extract_strided_slice %62 {offsets = [0, 96], sizes = [8, 32], strides = [1, 1]} : vector<8x128xf32> to vector<8x32xf32>
    %70 = math.tanh %69 : vector<8x32xf32>
    %71 = vector.extract_strided_slice %68 {offsets = [0, 0], sizes = [8, 32], strides = [1, 1]} : vector<8x96xf32> to vector<8x32xf32>
    %72 = vector.extract_strided_slice %68 {offsets = [0, 32], sizes = [8, 32], strides = [1, 1]} : vector<8x96xf32> to vector<8x32xf32>
    %73 = vector.extract_strided_slice %68 {offsets = [0, 64], sizes = [8, 32], strides = [1, 1]} : vector<8x96xf32> to vector<8x32xf32>
    %74 = arith.mulf %72, %52 : vector<8x32xf32>
    %75 = arith.mulf %71, %70 : vector<8x32xf32>
    %76 = arith.addf %74, %75 : vector<8x32xf32>
    %77 = math.tanh %76 : vector<8x32xf32>
    %78 = arith.mulf %73, %77 : vector<8x32xf32>
    %79 = arith.truncf %78 : vector<8x32xf32> to vector<8x32xbf16>
    %cst_31 = arith.constant dense<0.000000e+00> : vector<8x128xf32>
    %80 = tpu.matmul %79, %8, %cst_31 {dimension_numbers = #tpu.dot_dimension_numbers<[1], [0], [0], [1], [0, 0, 1, 1], [], []>} : vector<8x32xbf16>, vector<32x128xbf16>, vector<8x128xf32> -> vector<8x128xf32>
    %81 = vector.broadcast %9 : vector<1x128xf32> to vector<8x128xf32>
    %82 = arith.addf %80, %81 : vector<8x128xf32>
    %c16_32 = arith.constant 16 : index
    %c0_33 = arith.constant 0 : index
    %83 = vector.load %arg23[%c16_32, %c0_33] : memref<64x128xf32, #tpu.memory_space<vmem>>, vector<8x128xf32>
    tpu.vector_store %arg23[%c16_32, %c0_33], %82 {strides = array<i32>} : memref<64x128xf32, #tpu.memory_space<vmem>>, vector<8x128xf32>,
    %c24 = arith.constant 24 : index
    %c0_34 = arith.constant 0 : index
    %84 = vector.load %arg22[%c24, %c0_34] : memref<64x128xf32, #tpu.memory_space<vmem>>, vector<8x128xf32>
    %cst_35 = arith.constant dense<0.000000e+00> : vector<8x128xf32>
    %85 = tpu.matmul %79, %7, %cst_35 {dimension_numbers = #tpu.dot_dimension_numbers<[1], [0], [0], [1], [0, 0, 1, 1], [], []>} : vector<8x32xbf16>, vector<32x128xbf16>, vector<8x128xf32> -> vector<8x128xf32>
    %86 = arith.addf %84, %85 : vector<8x128xf32>
    %87 = vector.extract_strided_slice %86 {offsets = [0, 0], sizes = [8, 96], strides = [1, 1]} : vector<8x128xf32> to vector<8x96xf32>
    %88 = arith.negf %87 : vector<8x96xf32>
    %89 = math.exp %88 : vector<8x96xf32>
    %cst_36 = arith.constant 1.000000e+00 : f32
    %90 = vector.broadcast %cst_36 : f32 to vector<8x96xf32>
    %91 = arith.addf %90, %89 : vector<8x96xf32>
    %92 = arith.divf %90, %91 : vector<8x96xf32>
    %93 = vector.extract_strided_slice %86 {offsets = [0, 96], sizes = [8, 32], strides = [1, 1]} : vector<8x128xf32> to vector<8x32xf32>
    %94 = math.tanh %93 : vector<8x32xf32>
    %95 = vector.extract_strided_slice %92 {offsets = [0, 0], sizes = [8, 32], strides = [1, 1]} : vector<8x96xf32> to vector<8x32xf32>
    %96 = vector.extract_strided_slice %92 {offsets = [0, 32], sizes = [8, 32], strides = [1, 1]} : vector<8x96xf32> to vector<8x32xf32>
    %97 = vector.extract_strided_slice %92 {offsets = [0, 64], sizes = [8, 32], strides = [1, 1]} : vector<8x96xf32> to vector<8x32xf32>
    %98 = arith.mulf %96, %76 : vector<8x32xf32>
    %99 = arith.mulf %95, %94 : vector<8x32xf32>
    %100 = arith.addf %98, %99 : vector<8x32xf32>
    %101 = math.tanh %100 : vector<8x32xf32>
    %102 = arith.mulf %97, %101 : vector<8x32xf32>
    %103 = arith.truncf %102 : vector<8x32xf32> to vector<8x32xbf16>
    %cst_37 = arith.constant dense<0.000000e+00> : vector<8x128xf32>
    %104 = tpu.matmul %103, %8, %cst_37 {dimension_numbers = #tpu.dot_dimension_numbers<[1], [0], [0], [1], [0, 0, 1, 1], [], []>} : vector<8x32xbf16>, vector<32x128xbf16>, vector<8x128xf32> -> vector<8x128xf32>
    %105 = vector.broadcast %9 : vector<1x128xf32> to vector<8x128xf32>
    %106 = arith.addf %104, %105 : vector<8x128xf32>
    %c24_38 = arith.constant 24 : index
    %c0_39 = arith.constant 0 : index
    %107 = vector.load %arg23[%c24_38, %c0_39] : memref<64x128xf32, #tpu.memory_space<vmem>>, vector<8x128xf32>
    tpu.vector_store %arg23[%c24_38, %c0_39], %106 {strides = array<i32>} : memref<64x128xf32, #tpu.memory_space<vmem>>, vector<8x128xf32>,
    %c32 = arith.constant 32 : index
    %c0_40 = arith.constant 0 : index
    %108 = vector.load %arg22[%c32, %c0_40] : memref<64x128xf32, #tpu.memory_space<vmem>>, vector<8x128xf32>
    %cst_41 = arith.constant dense<0.000000e+00> : vector<8x128xf32>
    %109 = tpu.matmul %103, %7, %cst_41 {dimension_numbers = #tpu.dot_dimension_numbers<[1], [0], [0], [1], [0, 0, 1, 1], [], []>} : vector<8x32xbf16>, vector<32x128xbf16>, vector<8x128xf32> -> vector<8x128xf32>
    %110 = arith.addf %108, %109 : vector<8x128xf32>
    %111 = vector.extract_strided_slice %110 {offsets = [0, 0], sizes = [8, 96], strides = [1, 1]} : vector<8x128xf32> to vector<8x96xf32>
    %112 = arith.negf %111 : vector<8x96xf32>
    %113 = math.exp %112 : vector<8x96xf32>
    %cst_42 = arith.constant 1.000000e+00 : f32
    %114 = vector.broadcast %cst_42 : f32 to vector<8x96xf32>
    %115 = arith.addf %114, %113 : vector<8x96xf32>
    %116 = arith.divf %114, %115 : vector<8x96xf32>
    %117 = vector.extract_strided_slice %110 {offsets = [0, 96], sizes = [8, 32], strides = [1, 1]} : vector<8x128xf32> to vector<8x32xf32>
    %118 = math.tanh %117 : vector<8x32xf32>
    %119 = vector.extract_strided_slice %116 {offsets = [0, 0], sizes = [8, 32], strides = [1, 1]} : vector<8x96xf32> to vector<8x32xf32>
    %120 = vector.extract_strided_slice %116 {offsets = [0, 32], sizes = [8, 32], strides = [1, 1]} : vector<8x96xf32> to vector<8x32xf32>
    %121 = vector.extract_strided_slice %116 {offsets = [0, 64], sizes = [8, 32], strides = [1, 1]} : vector<8x96xf32> to vector<8x32xf32>
    %122 = arith.mulf %120, %100 : vector<8x32xf32>
    %123 = arith.mulf %119, %118 : vector<8x32xf32>
    %124 = arith.addf %122, %123 : vector<8x32xf32>
    %125 = math.tanh %124 : vector<8x32xf32>
    %126 = arith.mulf %121, %125 : vector<8x32xf32>
    %127 = arith.truncf %126 : vector<8x32xf32> to vector<8x32xbf16>
    %cst_43 = arith.constant dense<0.000000e+00> : vector<8x128xf32>
    %128 = tpu.matmul %127, %8, %cst_43 {dimension_numbers = #tpu.dot_dimension_numbers<[1], [0], [0], [1], [0, 0, 1, 1], [], []>} : vector<8x32xbf16>, vector<32x128xbf16>, vector<8x128xf32> -> vector<8x128xf32>
    %129 = vector.broadcast %9 : vector<1x128xf32> to vector<8x128xf32>
    %130 = arith.addf %128, %129 : vector<8x128xf32>
    %c32_44 = arith.constant 32 : index
    %c0_45 = arith.constant 0 : index
    %131 = vector.load %arg23[%c32_44, %c0_45] : memref<64x128xf32, #tpu.memory_space<vmem>>, vector<8x128xf32>
    tpu.vector_store %arg23[%c32_44, %c0_45], %130 {strides = array<i32>} : memref<64x128xf32, #tpu.memory_space<vmem>>, vector<8x128xf32>,
    %c40 = arith.constant 40 : index
    %c0_46 = arith.constant 0 : index
    %132 = vector.load %arg22[%c40, %c0_46] : memref<64x128xf32, #tpu.memory_space<vmem>>, vector<8x128xf32>
    %cst_47 = arith.constant dense<0.000000e+00> : vector<8x128xf32>
    %133 = tpu.matmul %127, %7, %cst_47 {dimension_numbers = #tpu.dot_dimension_numbers<[1], [0], [0], [1], [0, 0, 1, 1], [], []>} : vector<8x32xbf16>, vector<32x128xbf16>, vector<8x128xf32> -> vector<8x128xf32>
    %134 = arith.addf %132, %133 : vector<8x128xf32>
    %135 = vector.extract_strided_slice %134 {offsets = [0, 0], sizes = [8, 96], strides = [1, 1]} : vector<8x128xf32> to vector<8x96xf32>
    %136 = arith.negf %135 : vector<8x96xf32>
    %137 = math.exp %136 : vector<8x96xf32>
    %cst_48 = arith.constant 1.000000e+00 : f32
    %138 = vector.broadcast %cst_48 : f32 to vector<8x96xf32>
    %139 = arith.addf %138, %137 : vector<8x96xf32>
    %140 = arith.divf %138, %139 : vector<8x96xf32>
    %141 = vector.extract_strided_slice %134 {offsets = [0, 96], sizes = [8, 32], strides = [1, 1]} : vector<8x128xf32> to vector<8x32xf32>
    %142 = math.tanh %141 : vector<8x32xf32>
    %143 = vector.extract_strided_slice %140 {offsets = [0, 0], sizes = [8, 32], strides = [1, 1]} : vector<8x96xf32> to vector<8x32xf32>
    %144 = vector.extract_strided_slice %140 {offsets = [0, 32], sizes = [8, 32], strides = [1, 1]} : vector<8x96xf32> to vector<8x32xf32>
    %145 = vector.extract_strided_slice %140 {offsets = [0, 64], sizes = [8, 32], strides = [1, 1]} : vector<8x96xf32> to vector<8x32xf32>
    %146 = arith.mulf %144, %124 : vector<8x32xf32>
    %147 = arith.mulf %143, %142 : vector<8x32xf32>
    %148 = arith.addf %146, %147 : vector<8x32xf32>
    %149 = math.tanh %148 : vector<8x32xf32>
    %150 = arith.mulf %145, %149 : vector<8x32xf32>
    %151 = arith.truncf %150 : vector<8x32xf32> to vector<8x32xbf16>
    %cst_49 = arith.constant dense<0.000000e+00> : vector<8x128xf32>
    %152 = tpu.matmul %151, %8, %cst_49 {dimension_numbers = #tpu.dot_dimension_numbers<[1], [0], [0], [1], [0, 0, 1, 1], [], []>} : vector<8x32xbf16>, vector<32x128xbf16>, vector<8x128xf32> -> vector<8x128xf32>
    %153 = vector.broadcast %9 : vector<1x128xf32> to vector<8x128xf32>
    %154 = arith.addf %152, %153 : vector<8x128xf32>
    %c40_50 = arith.constant 40 : index
    %c0_51 = arith.constant 0 : index
    %155 = vector.load %arg23[%c40_50, %c0_51] : memref<64x128xf32, #tpu.memory_space<vmem>>, vector<8x128xf32>
    tpu.vector_store %arg23[%c40_50, %c0_51], %154 {strides = array<i32>} : memref<64x128xf32, #tpu.memory_space<vmem>>, vector<8x128xf32>,
    %c48 = arith.constant 48 : index
    %c0_52 = arith.constant 0 : index
    %156 = vector.load %arg22[%c48, %c0_52] : memref<64x128xf32, #tpu.memory_space<vmem>>, vector<8x128xf32>
    %cst_53 = arith.constant dense<0.000000e+00> : vector<8x128xf32>
    %157 = tpu.matmul %151, %7, %cst_53 {dimension_numbers = #tpu.dot_dimension_numbers<[1], [0], [0], [1], [0, 0, 1, 1], [], []>} : vector<8x32xbf16>, vector<32x128xbf16>, vector<8x128xf32> -> vector<8x128xf32>
    %158 = arith.addf %156, %157 : vector<8x128xf32>
    %159 = vector.extract_strided_slice %158 {offsets = [0, 0], sizes = [8, 96], strides = [1, 1]} : vector<8x128xf32> to vector<8x96xf32>
    %160 = arith.negf %159 : vector<8x96xf32>
    %161 = math.exp %160 : vector<8x96xf32>
    %cst_54 = arith.constant 1.000000e+00 : f32
    %162 = vector.broadcast %cst_54 : f32 to vector<8x96xf32>
    %163 = arith.addf %162, %161 : vector<8x96xf32>
    %164 = arith.divf %162, %163 : vector<8x96xf32>
    %165 = vector.extract_strided_slice %158 {offsets = [0, 96], sizes = [8, 32], strides = [1, 1]} : vector<8x128xf32> to vector<8x32xf32>
    %166 = math.tanh %165 : vector<8x32xf32>
    %167 = vector.extract_strided_slice %164 {offsets = [0, 0], sizes = [8, 32], strides = [1, 1]} : vector<8x96xf32> to vector<8x32xf32>
    %168 = vector.extract_strided_slice %164 {offsets = [0, 32], sizes = [8, 32], strides = [1, 1]} : vector<8x96xf32> to vector<8x32xf32>
    %169 = vector.extract_strided_slice %164 {offsets = [0, 64], sizes = [8, 32], strides = [1, 1]} : vector<8x96xf32> to vector<8x32xf32>
    %170 = arith.mulf %168, %148 : vector<8x32xf32>
    %171 = arith.mulf %167, %166 : vector<8x32xf32>
    %172 = arith.addf %170, %171 : vector<8x32xf32>
    %173 = math.tanh %172 : vector<8x32xf32>
    %174 = arith.mulf %169, %173 : vector<8x32xf32>
    %175 = arith.truncf %174 : vector<8x32xf32> to vector<8x32xbf16>
    %cst_55 = arith.constant dense<0.000000e+00> : vector<8x128xf32>
    %176 = tpu.matmul %175, %8, %cst_55 {dimension_numbers = #tpu.dot_dimension_numbers<[1], [0], [0], [1], [0, 0, 1, 1], [], []>} : vector<8x32xbf16>, vector<32x128xbf16>, vector<8x128xf32> -> vector<8x128xf32>
    %177 = vector.broadcast %9 : vector<1x128xf32> to vector<8x128xf32>
    %178 = arith.addf %176, %177 : vector<8x128xf32>
    %c48_56 = arith.constant 48 : index
    %c0_57 = arith.constant 0 : index
    %179 = vector.load %arg23[%c48_56, %c0_57] : memref<64x128xf32, #tpu.memory_space<vmem>>, vector<8x128xf32>
    tpu.vector_store %arg23[%c48_56, %c0_57], %178 {strides = array<i32>} : memref<64x128xf32, #tpu.memory_space<vmem>>, vector<8x128xf32>,
    %c56 = arith.constant 56 : index
    %c0_58 = arith.constant 0 : index
    %180 = vector.load %arg22[%c56, %c0_58] : memref<64x128xf32, #tpu.memory_space<vmem>>, vector<8x128xf32>
    %cst_59 = arith.constant dense<0.000000e+00> : vector<8x128xf32>
    %181 = tpu.matmul %175, %7, %cst_59 {dimension_numbers = #tpu.dot_dimension_numbers<[1], [0], [0], [1], [0, 0, 1, 1], [], []>} : vector<8x32xbf16>, vector<32x128xbf16>, vector<8x128xf32> -> vector<8x128xf32>
    %182 = arith.addf %180, %181 : vector<8x128xf32>
    %183 = vector.extract_strided_slice %182 {offsets = [0, 0], sizes = [8, 96], strides = [1, 1]} : vector<8x128xf32> to vector<8x96xf32>
    %184 = arith.negf %183 : vector<8x96xf32>
    %185 = math.exp %184 : vector<8x96xf32>
    %cst_60 = arith.constant 1.000000e+00 : f32
    %186 = vector.broadcast %cst_60 : f32 to vector<8x96xf32>
    %187 = arith.addf %186, %185 : vector<8x96xf32>
    %188 = arith.divf %186, %187 : vector<8x96xf32>
    %189 = vector.extract_strided_slice %182 {offsets = [0, 96], sizes = [8, 32], strides = [1, 1]} : vector<8x128xf32> to vector<8x32xf32>
    %190 = math.tanh %189 : vector<8x32xf32>
    %191 = vector.extract_strided_slice %188 {offsets = [0, 0], sizes = [8, 32], strides = [1, 1]} : vector<8x96xf32> to vector<8x32xf32>
    %192 = vector.extract_strided_slice %188 {offsets = [0, 32], sizes = [8, 32], strides = [1, 1]} : vector<8x96xf32> to vector<8x32xf32>
    %193 = vector.extract_strided_slice %188 {offsets = [0, 64], sizes = [8, 32], strides = [1, 1]} : vector<8x96xf32> to vector<8x32xf32>
    %194 = arith.mulf %192, %172 : vector<8x32xf32>
    %195 = arith.mulf %191, %190 : vector<8x32xf32>
    %196 = arith.addf %194, %195 : vector<8x32xf32>
    %197 = math.tanh %196 : vector<8x32xf32>
    %198 = arith.mulf %193, %197 : vector<8x32xf32>
    %199 = arith.truncf %198 : vector<8x32xf32> to vector<8x32xbf16>
    %cst_61 = arith.constant dense<0.000000e+00> : vector<8x128xf32>
    %200 = tpu.matmul %199, %8, %cst_61 {dimension_numbers = #tpu.dot_dimension_numbers<[1], [0], [0], [1], [0, 0, 1, 1], [], []>} : vector<8x32xbf16>, vector<32x128xbf16>, vector<8x128xf32> -> vector<8x128xf32>
    %201 = vector.broadcast %9 : vector<1x128xf32> to vector<8x128xf32>
    %202 = arith.addf %200, %201 : vector<8x128xf32>
    %c56_62 = arith.constant 56 : index
    %c0_63 = arith.constant 0 : index
    %203 = vector.load %arg23[%c56_62, %c0_63] : memref<64x128xf32, #tpu.memory_space<vmem>>, vector<8x128xf32>
    tpu.vector_store %arg23[%c56_62, %c0_63], %202 {strides = array<i32>} : memref<64x128xf32, #tpu.memory_space<vmem>>, vector<8x128xf32>,
    %c0_64 = arith.constant 0 : index
    %c0_65 = arith.constant 0 : index
    %204 = vector.load %arg5[%c0_64, %c0_65] : memref<32x128xbf16, #tpu.memory_space<vmem>>, vector<32x128xbf16>
    %c0_66 = arith.constant 0 : index
    %c0_67 = arith.constant 0 : index
    %205 = vector.load %arg7[%c0_66, %c0_67] : memref<32x128xbf16, #tpu.memory_space<vmem>>, vector<32x128xbf16>
    %c0_68 = arith.constant 0 : index
    %c0_69 = arith.constant 0 : index
    %206 = vector.load %arg9[%c0_68, %c0_69] : memref<1x128xf32, #tpu.memory_space<vmem>>, vector<1x128xf32>
    %cst_70 = arith.constant 0.000000e+00 : f32
    %207 = vector.broadcast %cst_70 : f32 to vector<8x32xf32>
    %cst_71 = arith.constant 0.000000e+00 : bf16
    %208 = vector.broadcast %cst_71 : bf16 to vector<8x32xbf16>
    %c0_72 = arith.constant 0 : index
    %c0_73 = arith.constant 0 : index
    %209 = vector.load %arg23[%c0_72, %c0_73] : memref<64x128xf32, #tpu.memory_space<vmem>>, vector<8x128xf32>
    %cst_74 = arith.constant dense<0.000000e+00> : vector<8x128xf32>
    %210 = tpu.matmul %208, %204, %cst_74 {dimension_numbers = #tpu.dot_dimension_numbers<[1], [0], [0], [1], [0, 0, 1, 1], [], []>} : vector<8x32xbf16>, vector<32x128xbf16>, vector<8x128xf32> -> vector<8x128xf32>
    %211 = arith.addf %209, %210 : vector<8x128xf32>
    %212 = vector.extract_strided_slice %211 {offsets = [0, 0], sizes = [8, 96], strides = [1, 1]} : vector<8x128xf32> to vector<8x96xf32>
    %213 = arith.negf %212 : vector<8x96xf32>
    %214 = math.exp %213 : vector<8x96xf32>
    %cst_75 = arith.constant 1.000000e+00 : f32
    %215 = vector.broadcast %cst_75 : f32 to vector<8x96xf32>
    %216 = arith.addf %215, %214 : vector<8x96xf32>
    %217 = arith.divf %215, %216 : vector<8x96xf32>
    %218 = vector.extract_strided_slice %211 {offsets = [0, 96], sizes = [8, 32], strides = [1, 1]} : vector<8x128xf32> to vector<8x32xf32>
    %219 = math.tanh %218 : vector<8x32xf32>
    %220 = vector.extract_strided_slice %217 {offsets = [0, 0], sizes = [8, 32], strides = [1, 1]} : vector<8x96xf32> to vector<8x32xf32>
    %221 = vector.extract_strided_slice %217 {offsets = [0, 32], sizes = [8, 32], strides = [1, 1]} : vector<8x96xf32> to vector<8x32xf32>
    %222 = vector.extract_strided_slice %217 {offsets = [0, 64], sizes = [8, 32], strides = [1, 1]} : vector<8x96xf32> to vector<8x32xf32>
    %223 = arith.mulf %221, %207 : vector<8x32xf32>
    %224 = arith.mulf %220, %219 : vector<8x32xf32>
    %225 = arith.addf %223, %224 : vector<8x32xf32>
    %226 = math.tanh %225 : vector<8x32xf32>
    %227 = arith.mulf %222, %226 : vector<8x32xf32>
    %228 = arith.truncf %227 : vector<8x32xf32> to vector<8x32xbf16>
    %cst_76 = arith.constant dense<0.000000e+00> : vector<8x128xf32>
    %229 = tpu.matmul %228, %205, %cst_76 {dimension_numbers = #tpu.dot_dimension_numbers<[1], [0], [0], [1], [0, 0, 1, 1], [], []>} : vector<8x32xbf16>, vector<32x128xbf16>, vector<8x128xf32> -> vector<8x128xf32>
    %230 = vector.broadcast %206 : vector<1x128xf32> to vector<8x128xf32>
    %231 = arith.addf %229, %230 : vector<8x128xf32>
    %c0_77 = arith.constant 0 : index
    %c0_78 = arith.constant 0 : index
    %232 = vector.load %arg22[%c0_77, %c0_78] : memref<64x128xf32, #tpu.memory_space<vmem>>, vector<8x128xf32>
    tpu.vector_store %arg22[%c0_77, %c0_78], %231 {strides = array<i32>} : memref<64x128xf32, #tpu.memory_space<vmem>>, vector<8x128xf32>,
    %c8_79 = arith.constant 8 : index
    %c0_80 = arith.constant 0 : index
    %233 = vector.load %arg23[%c8_79, %c0_80] : memref<64x128xf32, #tpu.memory_space<vmem>>, vector<8x128xf32>
    %cst_81 = arith.constant dense<0.000000e+00> : vector<8x128xf32>
    %234 = tpu.matmul %228, %204, %cst_81 {dimension_numbers = #tpu.dot_dimension_numbers<[1], [0], [0], [1], [0, 0, 1, 1], [], []>} : vector<8x32xbf16>, vector<32x128xbf16>, vector<8x128xf32> -> vector<8x128xf32>
    %235 = arith.addf %233, %234 : vector<8x128xf32>
    %236 = vector.extract_strided_slice %235 {offsets = [0, 0], sizes = [8, 96], strides = [1, 1]} : vector<8x128xf32> to vector<8x96xf32>
    %237 = arith.negf %236 : vector<8x96xf32>
    %238 = math.exp %237 : vector<8x96xf32>
    %cst_82 = arith.constant 1.000000e+00 : f32
    %239 = vector.broadcast %cst_82 : f32 to vector<8x96xf32>
    %240 = arith.addf %239, %238 : vector<8x96xf32>
    %241 = arith.divf %239, %240 : vector<8x96xf32>
    %242 = vector.extract_strided_slice %235 {offsets = [0, 96], sizes = [8, 32], strides = [1, 1]} : vector<8x128xf32> to vector<8x32xf32>
    %243 = math.tanh %242 : vector<8x32xf32>
    %244 = vector.extract_strided_slice %241 {offsets = [0, 0], sizes = [8, 32], strides = [1, 1]} : vector<8x96xf32> to vector<8x32xf32>
    %245 = vector.extract_strided_slice %241 {offsets = [0, 32], sizes = [8, 32], strides = [1, 1]} : vector<8x96xf32> to vector<8x32xf32>
    %246 = vector.extract_strided_slice %241 {offsets = [0, 64], sizes = [8, 32], strides = [1, 1]} : vector<8x96xf32> to vector<8x32xf32>
    %247 = arith.mulf %245, %225 : vector<8x32xf32>
    %248 = arith.mulf %244, %243 : vector<8x32xf32>
    %249 = arith.addf %247, %248 : vector<8x32xf32>
    %250 = math.tanh %249 : vector<8x32xf32>
    %251 = arith.mulf %246, %250 : vector<8x32xf32>
    %252 = arith.truncf %251 : vector<8x32xf32> to vector<8x32xbf16>
    %cst_83 = arith.constant dense<0.000000e+00> : vector<8x128xf32>
    %253 = tpu.matmul %252, %205, %cst_83 {dimension_numbers = #tpu.dot_dimension_numbers<[1], [0], [0], [1], [0, 0, 1, 1], [], []>} : vector<8x32xbf16>, vector<32x128xbf16>, vector<8x128xf32> -> vector<8x128xf32>
    %254 = vector.broadcast %206 : vector<1x128xf32> to vector<8x128xf32>
    %255 = arith.addf %253, %254 : vector<8x128xf32>
    %c8_84 = arith.constant 8 : index
    %c0_85 = arith.constant 0 : index
    %256 = vector.load %arg22[%c8_84, %c0_85] : memref<64x128xf32, #tpu.memory_space<vmem>>, vector<8x128xf32>
    tpu.vector_store %arg22[%c8_84, %c0_85], %255 {strides = array<i32>} : memref<64x128xf32, #tpu.memory_space<vmem>>, vector<8x128xf32>,
    %c16_86 = arith.constant 16 : index
    %c0_87 = arith.constant 0 : index
    %257 = vector.load %arg23[%c16_86, %c0_87] : memref<64x128xf32, #tpu.memory_space<vmem>>, vector<8x128xf32>
    %cst_88 = arith.constant dense<0.000000e+00> : vector<8x128xf32>
    %258 = tpu.matmul %252, %204, %cst_88 {dimension_numbers = #tpu.dot_dimension_numbers<[1], [0], [0], [1], [0, 0, 1, 1], [], []>} : vector<8x32xbf16>, vector<32x128xbf16>, vector<8x128xf32> -> vector<8x128xf32>
    %259 = arith.addf %257, %258 : vector<8x128xf32>
    %260 = vector.extract_strided_slice %259 {offsets = [0, 0], sizes = [8, 96], strides = [1, 1]} : vector<8x128xf32> to vector<8x96xf32>
    %261 = arith.negf %260 : vector<8x96xf32>
    %262 = math.exp %261 : vector<8x96xf32>
    %cst_89 = arith.constant 1.000000e+00 : f32
    %263 = vector.broadcast %cst_89 : f32 to vector<8x96xf32>
    %264 = arith.addf %263, %262 : vector<8x96xf32>
    %265 = arith.divf %263, %264 : vector<8x96xf32>
    %266 = vector.extract_strided_slice %259 {offsets = [0, 96], sizes = [8, 32], strides = [1, 1]} : vector<8x128xf32> to vector<8x32xf32>
    %267 = math.tanh %266 : vector<8x32xf32>
    %268 = vector.extract_strided_slice %265 {offsets = [0, 0], sizes = [8, 32], strides = [1, 1]} : vector<8x96xf32> to vector<8x32xf32>
    %269 = vector.extract_strided_slice %265 {offsets = [0, 32], sizes = [8, 32], strides = [1, 1]} : vector<8x96xf32> to vector<8x32xf32>
    %270 = vector.extract_strided_slice %265 {offsets = [0, 64], sizes = [8, 32], strides = [1, 1]} : vector<8x96xf32> to vector<8x32xf32>
    %271 = arith.mulf %269, %249 : vector<8x32xf32>
    %272 = arith.mulf %268, %267 : vector<8x32xf32>
    %273 = arith.addf %271, %272 : vector<8x32xf32>
    %274 = math.tanh %273 : vector<8x32xf32>
    %275 = arith.mulf %270, %274 : vector<8x32xf32>
    %276 = arith.truncf %275 : vector<8x32xf32> to vector<8x32xbf16>
    %cst_90 = arith.constant dense<0.000000e+00> : vector<8x128xf32>
    %277 = tpu.matmul %276, %205, %cst_90 {dimension_numbers = #tpu.dot_dimension_numbers<[1], [0], [0], [1], [0, 0, 1, 1], [], []>} : vector<8x32xbf16>, vector<32x128xbf16>, vector<8x128xf32> -> vector<8x128xf32>
    %278 = vector.broadcast %206 : vector<1x128xf32> to vector<8x128xf32>
    %279 = arith.addf %277, %278 : vector<8x128xf32>
    %c16_91 = arith.constant 16 : index
    %c0_92 = arith.constant 0 : index
    %280 = vector.load %arg22[%c16_91, %c0_92] : memref<64x128xf32, #tpu.memory_space<vmem>>, vector<8x128xf32>
    tpu.vector_store %arg22[%c16_91, %c0_92], %279 {strides = array<i32>} : memref<64x128xf32, #tpu.memory_space<vmem>>, vector<8x128xf32>,
    %c24_93 = arith.constant 24 : index
    %c0_94 = arith.constant 0 : index
    %281 = vector.load %arg23[%c24_93, %c0_94] : memref<64x128xf32, #tpu.memory_space<vmem>>, vector<8x128xf32>
    %cst_95 = arith.constant dense<0.000000e+00> : vector<8x128xf32>
    %282 = tpu.matmul %276, %204, %cst_95 {dimension_numbers = #tpu.dot_dimension_numbers<[1], [0], [0], [1], [0, 0, 1, 1], [], []>} : vector<8x32xbf16>, vector<32x128xbf16>, vector<8x128xf32> -> vector<8x128xf32>
    %283 = arith.addf %281, %282 : vector<8x128xf32>
    %284 = vector.extract_strided_slice %283 {offsets = [0, 0], sizes = [8, 96], strides = [1, 1]} : vector<8x128xf32> to vector<8x96xf32>
    %285 = arith.negf %284 : vector<8x96xf32>
    %286 = math.exp %285 : vector<8x96xf32>
    %cst_96 = arith.constant 1.000000e+00 : f32
    %287 = vector.broadcast %cst_96 : f32 to vector<8x96xf32>
    %288 = arith.addf %287, %286 : vector<8x96xf32>
    %289 = arith.divf %287, %288 : vector<8x96xf32>
    %290 = vector.extract_strided_slice %283 {offsets = [0, 96], sizes = [8, 32], strides = [1, 1]} : vector<8x128xf32> to vector<8x32xf32>
    %291 = math.tanh %290 : vector<8x32xf32>
    %292 = vector.extract_strided_slice %289 {offsets = [0, 0], sizes = [8, 32], strides = [1, 1]} : vector<8x96xf32> to vector<8x32xf32>
    %293 = vector.extract_strided_slice %289 {offsets = [0, 32], sizes = [8, 32], strides = [1, 1]} : vector<8x96xf32> to vector<8x32xf32>
    %294 = vector.extract_strided_slice %289 {offsets = [0, 64], sizes = [8, 32], strides = [1, 1]} : vector<8x96xf32> to vector<8x32xf32>
    %295 = arith.mulf %293, %273 : vector<8x32xf32>
    %296 = arith.mulf %292, %291 : vector<8x32xf32>
    %297 = arith.addf %295, %296 : vector<8x32xf32>
    %298 = math.tanh %297 : vector<8x32xf32>
    %299 = arith.mulf %294, %298 : vector<8x32xf32>
    %300 = arith.truncf %299 : vector<8x32xf32> to vector<8x32xbf16>
    %cst_97 = arith.constant dense<0.000000e+00> : vector<8x128xf32>
    %301 = tpu.matmul %300, %205, %cst_97 {dimension_numbers = #tpu.dot_dimension_numbers<[1], [0], [0], [1], [0, 0, 1, 1], [], []>} : vector<8x32xbf16>, vector<32x128xbf16>, vector<8x128xf32> -> vector<8x128xf32>
    %302 = vector.broadcast %206 : vector<1x128xf32> to vector<8x128xf32>
    %303 = arith.addf %301, %302 : vector<8x128xf32>
    %c24_98 = arith.constant 24 : index
    %c0_99 = arith.constant 0 : index
    %304 = vector.load %arg22[%c24_98, %c0_99] : memref<64x128xf32, #tpu.memory_space<vmem>>, vector<8x128xf32>
    tpu.vector_store %arg22[%c24_98, %c0_99], %303 {strides = array<i32>} : memref<64x128xf32, #tpu.memory_space<vmem>>, vector<8x128xf32>,
    %c32_100 = arith.constant 32 : index
    %c0_101 = arith.constant 0 : index
    %305 = vector.load %arg23[%c32_100, %c0_101] : memref<64x128xf32, #tpu.memory_space<vmem>>, vector<8x128xf32>
    %cst_102 = arith.constant dense<0.000000e+00> : vector<8x128xf32>
    %306 = tpu.matmul %300, %204, %cst_102 {dimension_numbers = #tpu.dot_dimension_numbers<[1], [0], [0], [1], [0, 0, 1, 1], [], []>} : vector<8x32xbf16>, vector<32x128xbf16>, vector<8x128xf32> -> vector<8x128xf32>
    %307 = arith.addf %305, %306 : vector<8x128xf32>
    %308 = vector.extract_strided_slice %307 {offsets = [0, 0], sizes = [8, 96], strides = [1, 1]} : vector<8x128xf32> to vector<8x96xf32>
    %309 = arith.negf %308 : vector<8x96xf32>
    %310 = math.exp %309 : vector<8x96xf32>
    %cst_103 = arith.constant 1.000000e+00 : f32
    %311 = vector.broadcast %cst_103 : f32 to vector<8x96xf32>
    %312 = arith.addf %311, %310 : vector<8x96xf32>
    %313 = arith.divf %311, %312 : vector<8x96xf32>
    %314 = vector.extract_strided_slice %307 {offsets = [0, 96], sizes = [8, 32], strides = [1, 1]} : vector<8x128xf32> to vector<8x32xf32>
    %315 = math.tanh %314 : vector<8x32xf32>
    %316 = vector.extract_strided_slice %313 {offsets = [0, 0], sizes = [8, 32], strides = [1, 1]} : vector<8x96xf32> to vector<8x32xf32>
    %317 = vector.extract_strided_slice %313 {offsets = [0, 32], sizes = [8, 32], strides = [1, 1]} : vector<8x96xf32> to vector<8x32xf32>
    %318 = vector.extract_strided_slice %313 {offsets = [0, 64], sizes = [8, 32], strides = [1, 1]} : vector<8x96xf32> to vector<8x32xf32>
    %319 = arith.mulf %317, %297 : vector<8x32xf32>
    %320 = arith.mulf %316, %315 : vector<8x32xf32>
    %321 = arith.addf %319, %320 : vector<8x32xf32>
    %322 = math.tanh %321 : vector<8x32xf32>
    %323 = arith.mulf %318, %322 : vector<8x32xf32>
    %324 = arith.truncf %323 : vector<8x32xf32> to vector<8x32xbf16>
    %cst_104 = arith.constant dense<0.000000e+00> : vector<8x128xf32>
    %325 = tpu.matmul %324, %205, %cst_104 {dimension_numbers = #tpu.dot_dimension_numbers<[1], [0], [0], [1], [0, 0, 1, 1], [], []>} : vector<8x32xbf16>, vector<32x128xbf16>, vector<8x128xf32> -> vector<8x128xf32>
    %326 = vector.broadcast %206 : vector<1x128xf32> to vector<8x128xf32>
    %327 = arith.addf %325, %326 : vector<8x128xf32>
    %c32_105 = arith.constant 32 : index
    %c0_106 = arith.constant 0 : index
    %328 = vector.load %arg22[%c32_105, %c0_106] : memref<64x128xf32, #tpu.memory_space<vmem>>, vector<8x128xf32>
    tpu.vector_store %arg22[%c32_105, %c0_106], %327 {strides = array<i32>} : memref<64x128xf32, #tpu.memory_space<vmem>>, vector<8x128xf32>,
    %c40_107 = arith.constant 40 : index
    %c0_108 = arith.constant 0 : index
    %329 = vector.load %arg23[%c40_107, %c0_108] : memref<64x128xf32, #tpu.memory_space<vmem>>, vector<8x128xf32>
    %cst_109 = arith.constant dense<0.000000e+00> : vector<8x128xf32>
    %330 = tpu.matmul %324, %204, %cst_109 {dimension_numbers = #tpu.dot_dimension_numbers<[1], [0], [0], [1], [0, 0, 1, 1], [], []>} : vector<8x32xbf16>, vector<32x128xbf16>, vector<8x128xf32> -> vector<8x128xf32>
    %331 = arith.addf %329, %330 : vector<8x128xf32>
    %332 = vector.extract_strided_slice %331 {offsets = [0, 0], sizes = [8, 96], strides = [1, 1]} : vector<8x128xf32> to vector<8x96xf32>
    %333 = arith.negf %332 : vector<8x96xf32>
    %334 = math.exp %333 : vector<8x96xf32>
    %cst_110 = arith.constant 1.000000e+00 : f32
    %335 = vector.broadcast %cst_110 : f32 to vector<8x96xf32>
    %336 = arith.addf %335, %334 : vector<8x96xf32>
    %337 = arith.divf %335, %336 : vector<8x96xf32>
    %338 = vector.extract_strided_slice %331 {offsets = [0, 96], sizes = [8, 32], strides = [1, 1]} : vector<8x128xf32> to vector<8x32xf32>
    %339 = math.tanh %338 : vector<8x32xf32>
    %340 = vector.extract_strided_slice %337 {offsets = [0, 0], sizes = [8, 32], strides = [1, 1]} : vector<8x96xf32> to vector<8x32xf32>
    %341 = vector.extract_strided_slice %337 {offsets = [0, 32], sizes = [8, 32], strides = [1, 1]} : vector<8x96xf32> to vector<8x32xf32>
    %342 = vector.extract_strided_slice %337 {offsets = [0, 64], sizes = [8, 32], strides = [1, 1]} : vector<8x96xf32> to vector<8x32xf32>
    %343 = arith.mulf %341, %321 : vector<8x32xf32>
    %344 = arith.mulf %340, %339 : vector<8x32xf32>
    %345 = arith.addf %343, %344 : vector<8x32xf32>
    %346 = math.tanh %345 : vector<8x32xf32>
    %347 = arith.mulf %342, %346 : vector<8x32xf32>
    %348 = arith.truncf %347 : vector<8x32xf32> to vector<8x32xbf16>
    %cst_111 = arith.constant dense<0.000000e+00> : vector<8x128xf32>
    %349 = tpu.matmul %348, %205, %cst_111 {dimension_numbers = #tpu.dot_dimension_numbers<[1], [0], [0], [1], [0, 0, 1, 1], [], []>} : vector<8x32xbf16>, vector<32x128xbf16>, vector<8x128xf32> -> vector<8x128xf32>
    %350 = vector.broadcast %206 : vector<1x128xf32> to vector<8x128xf32>
    %351 = arith.addf %349, %350 : vector<8x128xf32>
    %c40_112 = arith.constant 40 : index
    %c0_113 = arith.constant 0 : index
    %352 = vector.load %arg22[%c40_112, %c0_113] : memref<64x128xf32, #tpu.memory_space<vmem>>, vector<8x128xf32>
    tpu.vector_store %arg22[%c40_112, %c0_113], %351 {strides = array<i32>} : memref<64x128xf32, #tpu.memory_space<vmem>>, vector<8x128xf32>,
    %c48_114 = arith.constant 48 : index
    %c0_115 = arith.constant 0 : index
    %353 = vector.load %arg23[%c48_114, %c0_115] : memref<64x128xf32, #tpu.memory_space<vmem>>, vector<8x128xf32>
    %cst_116 = arith.constant dense<0.000000e+00> : vector<8x128xf32>
    %354 = tpu.matmul %348, %204, %cst_116 {dimension_numbers = #tpu.dot_dimension_numbers<[1], [0], [0], [1], [0, 0, 1, 1], [], []>} : vector<8x32xbf16>, vector<32x128xbf16>, vector<8x128xf32> -> vector<8x128xf32>
    %355 = arith.addf %353, %354 : vector<8x128xf32>
    %356 = vector.extract_strided_slice %355 {offsets = [0, 0], sizes = [8, 96], strides = [1, 1]} : vector<8x128xf32> to vector<8x96xf32>
    %357 = arith.negf %356 : vector<8x96xf32>
    %358 = math.exp %357 : vector<8x96xf32>
    %cst_117 = arith.constant 1.000000e+00 : f32
    %359 = vector.broadcast %cst_117 : f32 to vector<8x96xf32>
    %360 = arith.addf %359, %358 : vector<8x96xf32>
    %361 = arith.divf %359, %360 : vector<8x96xf32>
    %362 = vector.extract_strided_slice %355 {offsets = [0, 96], sizes = [8, 32], strides = [1, 1]} : vector<8x128xf32> to vector<8x32xf32>
    %363 = math.tanh %362 : vector<8x32xf32>
    %364 = vector.extract_strided_slice %361 {offsets = [0, 0], sizes = [8, 32], strides = [1, 1]} : vector<8x96xf32> to vector<8x32xf32>
    %365 = vector.extract_strided_slice %361 {offsets = [0, 32], sizes = [8, 32], strides = [1, 1]} : vector<8x96xf32> to vector<8x32xf32>
    %366 = vector.extract_strided_slice %361 {offsets = [0, 64], sizes = [8, 32], strides = [1, 1]} : vector<8x96xf32> to vector<8x32xf32>
    %367 = arith.mulf %365, %345 : vector<8x32xf32>
    %368 = arith.mulf %364, %363 : vector<8x32xf32>
    %369 = arith.addf %367, %368 : vector<8x32xf32>
    %370 = math.tanh %369 : vector<8x32xf32>
    %371 = arith.mulf %366, %370 : vector<8x32xf32>
    %372 = arith.truncf %371 : vector<8x32xf32> to vector<8x32xbf16>
    %cst_118 = arith.constant dense<0.000000e+00> : vector<8x128xf32>
    %373 = tpu.matmul %372, %205, %cst_118 {dimension_numbers = #tpu.dot_dimension_numbers<[1], [0], [0], [1], [0, 0, 1, 1], [], []>} : vector<8x32xbf16>, vector<32x128xbf16>, vector<8x128xf32> -> vector<8x128xf32>
    %374 = vector.broadcast %206 : vector<1x128xf32> to vector<8x128xf32>
    %375 = arith.addf %373, %374 : vector<8x128xf32>
    %c48_119 = arith.constant 48 : index
    %c0_120 = arith.constant 0 : index
    %376 = vector.load %arg22[%c48_119, %c0_120] : memref<64x128xf32, #tpu.memory_space<vmem>>, vector<8x128xf32>
    tpu.vector_store %arg22[%c48_119, %c0_120], %375 {strides = array<i32>} : memref<64x128xf32, #tpu.memory_space<vmem>>, vector<8x128xf32>,
    %c56_121 = arith.constant 56 : index
    %c0_122 = arith.constant 0 : index
    %377 = vector.load %arg23[%c56_121, %c0_122] : memref<64x128xf32, #tpu.memory_space<vmem>>, vector<8x128xf32>
    %cst_123 = arith.constant dense<0.000000e+00> : vector<8x128xf32>
    %378 = tpu.matmul %372, %204, %cst_123 {dimension_numbers = #tpu.dot_dimension_numbers<[1], [0], [0], [1], [0, 0, 1, 1], [], []>} : vector<8x32xbf16>, vector<32x128xbf16>, vector<8x128xf32> -> vector<8x128xf32>
    %379 = arith.addf %377, %378 : vector<8x128xf32>
    %380 = vector.extract_strided_slice %379 {offsets = [0, 0], sizes = [8, 96], strides = [1, 1]} : vector<8x128xf32> to vector<8x96xf32>
    %381 = arith.negf %380 : vector<8x96xf32>
    %382 = math.exp %381 : vector<8x96xf32>
    %cst_124 = arith.constant 1.000000e+00 : f32
    %383 = vector.broadcast %cst_124 : f32 to vector<8x96xf32>
    %384 = arith.addf %383, %382 : vector<8x96xf32>
    %385 = arith.divf %383, %384 : vector<8x96xf32>
    %386 = vector.extract_strided_slice %379 {offsets = [0, 96], sizes = [8, 32], strides = [1, 1]} : vector<8x128xf32> to vector<8x32xf32>
    %387 = math.tanh %386 : vector<8x32xf32>
    %388 = vector.extract_strided_slice %385 {offsets = [0, 0], sizes = [8, 32], strides = [1, 1]} : vector<8x96xf32> to vector<8x32xf32>
    %389 = vector.extract_strided_slice %385 {offsets = [0, 32], sizes = [8, 32], strides = [1, 1]} : vector<8x96xf32> to vector<8x32xf32>
    %390 = vector.extract_strided_slice %385 {offsets = [0, 64], sizes = [8, 32], strides = [1, 1]} : vector<8x96xf32> to vector<8x32xf32>
    %391 = arith.mulf %389, %369 : vector<8x32xf32>
    %392 = arith.mulf %388, %387 : vector<8x32xf32>
    %393 = arith.addf %391, %392 : vector<8x32xf32>
    %394 = math.tanh %393 : vector<8x32xf32>
    %395 = arith.mulf %390, %394 : vector<8x32xf32>
    %396 = arith.truncf %395 : vector<8x32xf32> to vector<8x32xbf16>
    %cst_125 = arith.constant dense<0.000000e+00> : vector<8x128xf32>
    %397 = tpu.matmul %396, %205, %cst_125 {dimension_numbers = #tpu.dot_dimension_numbers<[1], [0], [0], [1], [0, 0, 1, 1], [], []>} : vector<8x32xbf16>, vector<32x128xbf16>, vector<8x128xf32> -> vector<8x128xf32>
    %398 = vector.broadcast %206 : vector<1x128xf32> to vector<8x128xf32>
    %399 = arith.addf %397, %398 : vector<8x128xf32>
    %c56_126 = arith.constant 56 : index
    %c0_127 = arith.constant 0 : index
    %400 = vector.load %arg22[%c56_126, %c0_127] : memref<64x128xf32, #tpu.memory_space<vmem>>, vector<8x128xf32>
    tpu.vector_store %arg22[%c56_126, %c0_127], %399 {strides = array<i32>} : memref<64x128xf32, #tpu.memory_space<vmem>>, vector<8x128xf32>,
    %c0_128 = arith.constant 0 : index
    %c0_129 = arith.constant 0 : index
    %401 = vector.load %arg8[%c0_128, %c0_129] : memref<32x128xbf16, #tpu.memory_space<vmem>>, vector<32x128xbf16>
    %c0_130 = arith.constant 0 : index
    %c0_131 = arith.constant 0 : index
    %402 = vector.load %arg10[%c0_130, %c0_131] : memref<32x128xbf16, #tpu.memory_space<vmem>>, vector<32x128xbf16>
    %c0_132 = arith.constant 0 : index
    %c0_133 = arith.constant 0 : index
    %403 = vector.load %arg12[%c0_132, %c0_133] : memref<1x128xf32, #tpu.memory_space<vmem>>, vector<1x128xf32>
    %cst_134 = arith.constant 0.000000e+00 : f32
    %404 = vector.broadcast %cst_134 : f32 to vector<8x32xf32>
    %cst_135 = arith.constant 0.000000e+00 : bf16
    %405 = vector.broadcast %cst_135 : bf16 to vector<8x32xbf16>
    %c0_136 = arith.constant 0 : index
    %c0_137 = arith.constant 0 : index
    %406 = vector.load %arg22[%c0_136, %c0_137] : memref<64x128xf32, #tpu.memory_space<vmem>>, vector<8x128xf32>
    %cst_138 = arith.constant dense<0.000000e+00> : vector<8x128xf32>
    %407 = tpu.matmul %405, %401, %cst_138 {dimension_numbers = #tpu.dot_dimension_numbers<[1], [0], [0], [1], [0, 0, 1, 1], [], []>} : vector<8x32xbf16>, vector<32x128xbf16>, vector<8x128xf32> -> vector<8x128xf32>
    %408 = arith.addf %406, %407 : vector<8x128xf32>
    %409 = vector.extract_strided_slice %408 {offsets = [0, 0], sizes = [8, 96], strides = [1, 1]} : vector<8x128xf32> to vector<8x96xf32>
    %410 = arith.negf %409 : vector<8x96xf32>
    %411 = math.exp %410 : vector<8x96xf32>
    %cst_139 = arith.constant 1.000000e+00 : f32
    %412 = vector.broadcast %cst_139 : f32 to vector<8x96xf32>
    %413 = arith.addf %412, %411 : vector<8x96xf32>
    %414 = arith.divf %412, %413 : vector<8x96xf32>
    %415 = vector.extract_strided_slice %408 {offsets = [0, 96], sizes = [8, 32], strides = [1, 1]} : vector<8x128xf32> to vector<8x32xf32>
    %416 = math.tanh %415 : vector<8x32xf32>
    %417 = vector.extract_strided_slice %414 {offsets = [0, 0], sizes = [8, 32], strides = [1, 1]} : vector<8x96xf32> to vector<8x32xf32>
    %418 = vector.extract_strided_slice %414 {offsets = [0, 32], sizes = [8, 32], strides = [1, 1]} : vector<8x96xf32> to vector<8x32xf32>
    %419 = vector.extract_strided_slice %414 {offsets = [0, 64], sizes = [8, 32], strides = [1, 1]} : vector<8x96xf32> to vector<8x32xf32>
    %420 = arith.mulf %418, %404 : vector<8x32xf32>
    %421 = arith.mulf %417, %416 : vector<8x32xf32>
    %422 = arith.addf %420, %421 : vector<8x32xf32>
    %423 = math.tanh %422 : vector<8x32xf32>
    %424 = arith.mulf %419, %423 : vector<8x32xf32>
    %425 = arith.truncf %424 : vector<8x32xf32> to vector<8x32xbf16>
    %cst_140 = arith.constant dense<0.000000e+00> : vector<8x128xf32>
    %426 = tpu.matmul %425, %402, %cst_140 {dimension_numbers = #tpu.dot_dimension_numbers<[1], [0], [0], [1], [0, 0, 1, 1], [], []>} : vector<8x32xbf16>, vector<32x128xbf16>, vector<8x128xf32> -> vector<8x128xf32>
    %427 = vector.broadcast %403 : vector<1x128xf32> to vector<8x128xf32>
    %428 = arith.addf %426, %427 : vector<8x128xf32>
    %c0_141 = arith.constant 0 : index
    %c0_142 = arith.constant 0 : index
    %429 = vector.load %arg23[%c0_141, %c0_142] : memref<64x128xf32, #tpu.memory_space<vmem>>, vector<8x128xf32>
    tpu.vector_store %arg23[%c0_141, %c0_142], %428 {strides = array<i32>} : memref<64x128xf32, #tpu.memory_space<vmem>>, vector<8x128xf32>,
    %c8_143 = arith.constant 8 : index
    %c0_144 = arith.constant 0 : index
    %430 = vector.load %arg22[%c8_143, %c0_144] : memref<64x128xf32, #tpu.memory_space<vmem>>, vector<8x128xf32>
    %cst_145 = arith.constant dense<0.000000e+00> : vector<8x128xf32>
    %431 = tpu.matmul %425, %401, %cst_145 {dimension_numbers = #tpu.dot_dimension_numbers<[1], [0], [0], [1], [0, 0, 1, 1], [], []>} : vector<8x32xbf16>, vector<32x128xbf16>, vector<8x128xf32> -> vector<8x128xf32>
    %432 = arith.addf %430, %431 : vector<8x128xf32>
    %433 = vector.extract_strided_slice %432 {offsets = [0, 0], sizes = [8, 96], strides = [1, 1]} : vector<8x128xf32> to vector<8x96xf32>
    %434 = arith.negf %433 : vector<8x96xf32>
    %435 = math.exp %434 : vector<8x96xf32>
    %cst_146 = arith.constant 1.000000e+00 : f32
    %436 = vector.broadcast %cst_146 : f32 to vector<8x96xf32>
    %437 = arith.addf %436, %435 : vector<8x96xf32>
    %438 = arith.divf %436, %437 : vector<8x96xf32>
    %439 = vector.extract_strided_slice %432 {offsets = [0, 96], sizes = [8, 32], strides = [1, 1]} : vector<8x128xf32> to vector<8x32xf32>
    %440 = math.tanh %439 : vector<8x32xf32>
    %441 = vector.extract_strided_slice %438 {offsets = [0, 0], sizes = [8, 32], strides = [1, 1]} : vector<8x96xf32> to vector<8x32xf32>
    %442 = vector.extract_strided_slice %438 {offsets = [0, 32], sizes = [8, 32], strides = [1, 1]} : vector<8x96xf32> to vector<8x32xf32>
    %443 = vector.extract_strided_slice %438 {offsets = [0, 64], sizes = [8, 32], strides = [1, 1]} : vector<8x96xf32> to vector<8x32xf32>
    %444 = arith.mulf %442, %422 : vector<8x32xf32>
    %445 = arith.mulf %441, %440 : vector<8x32xf32>
    %446 = arith.addf %444, %445 : vector<8x32xf32>
    %447 = math.tanh %446 : vector<8x32xf32>
    %448 = arith.mulf %443, %447 : vector<8x32xf32>
    %449 = arith.truncf %448 : vector<8x32xf32> to vector<8x32xbf16>
    %cst_147 = arith.constant dense<0.000000e+00> : vector<8x128xf32>
    %450 = tpu.matmul %449, %402, %cst_147 {dimension_numbers = #tpu.dot_dimension_numbers<[1], [0], [0], [1], [0, 0, 1, 1], [], []>} : vector<8x32xbf16>, vector<32x128xbf16>, vector<8x128xf32> -> vector<8x128xf32>
    %451 = vector.broadcast %403 : vector<1x128xf32> to vector<8x128xf32>
    %452 = arith.addf %450, %451 : vector<8x128xf32>
    %c8_148 = arith.constant 8 : index
    %c0_149 = arith.constant 0 : index
    %453 = vector.load %arg23[%c8_148, %c0_149] : memref<64x128xf32, #tpu.memory_space<vmem>>, vector<8x128xf32>
    tpu.vector_store %arg23[%c8_148, %c0_149], %452 {strides = array<i32>} : memref<64x128xf32, #tpu.memory_space<vmem>>, vector<8x128xf32>,
    %c16_150 = arith.constant 16 : index
    %c0_151 = arith.constant 0 : index
    %454 = vector.load %arg22[%c16_150, %c0_151] : memref<64x128xf32, #tpu.memory_space<vmem>>, vector<8x128xf32>
    %cst_152 = arith.constant dense<0.000000e+00> : vector<8x128xf32>
    %455 = tpu.matmul %449, %401, %cst_152 {dimension_numbers = #tpu.dot_dimension_numbers<[1], [0], [0], [1], [0, 0, 1, 1], [], []>} : vector<8x32xbf16>, vector<32x128xbf16>, vector<8x128xf32> -> vector<8x128xf32>
    %456 = arith.addf %454, %455 : vector<8x128xf32>
    %457 = vector.extract_strided_slice %456 {offsets = [0, 0], sizes = [8, 96], strides = [1, 1]} : vector<8x128xf32> to vector<8x96xf32>
    %458 = arith.negf %457 : vector<8x96xf32>
    %459 = math.exp %458 : vector<8x96xf32>
    %cst_153 = arith.constant 1.000000e+00 : f32
    %460 = vector.broadcast %cst_153 : f32 to vector<8x96xf32>
    %461 = arith.addf %460, %459 : vector<8x96xf32>
    %462 = arith.divf %460, %461 : vector<8x96xf32>
    %463 = vector.extract_strided_slice %456 {offsets = [0, 96], sizes = [8, 32], strides = [1, 1]} : vector<8x128xf32> to vector<8x32xf32>
    %464 = math.tanh %463 : vector<8x32xf32>
    %465 = vector.extract_strided_slice %462 {offsets = [0, 0], sizes = [8, 32], strides = [1, 1]} : vector<8x96xf32> to vector<8x32xf32>
    %466 = vector.extract_strided_slice %462 {offsets = [0, 32], sizes = [8, 32], strides = [1, 1]} : vector<8x96xf32> to vector<8x32xf32>
    %467 = vector.extract_strided_slice %462 {offsets = [0, 64], sizes = [8, 32], strides = [1, 1]} : vector<8x96xf32> to vector<8x32xf32>
    %468 = arith.mulf %466, %446 : vector<8x32xf32>
    %469 = arith.mulf %465, %464 : vector<8x32xf32>
    %470 = arith.addf %468, %469 : vector<8x32xf32>
    %471 = math.tanh %470 : vector<8x32xf32>
    %472 = arith.mulf %467, %471 : vector<8x32xf32>
    %473 = arith.truncf %472 : vector<8x32xf32> to vector<8x32xbf16>
    %cst_154 = arith.constant dense<0.000000e+00> : vector<8x128xf32>
    %474 = tpu.matmul %473, %402, %cst_154 {dimension_numbers = #tpu.dot_dimension_numbers<[1], [0], [0], [1], [0, 0, 1, 1], [], []>} : vector<8x32xbf16>, vector<32x128xbf16>, vector<8x128xf32> -> vector<8x128xf32>
    %475 = vector.broadcast %403 : vector<1x128xf32> to vector<8x128xf32>
    %476 = arith.addf %474, %475 : vector<8x128xf32>
    %c16_155 = arith.constant 16 : index
    %c0_156 = arith.constant 0 : index
    %477 = vector.load %arg23[%c16_155, %c0_156] : memref<64x128xf32, #tpu.memory_space<vmem>>, vector<8x128xf32>
    tpu.vector_store %arg23[%c16_155, %c0_156], %476 {strides = array<i32>} : memref<64x128xf32, #tpu.memory_space<vmem>>, vector<8x128xf32>,
    %c24_157 = arith.constant 24 : index
    %c0_158 = arith.constant 0 : index
    %478 = vector.load %arg22[%c24_157, %c0_158] : memref<64x128xf32, #tpu.memory_space<vmem>>, vector<8x128xf32>
    %cst_159 = arith.constant dense<0.000000e+00> : vector<8x128xf32>
    %479 = tpu.matmul %473, %401, %cst_159 {dimension_numbers = #tpu.dot_dimension_numbers<[1], [0], [0], [1], [0, 0, 1, 1], [], []>} : vector<8x32xbf16>, vector<32x128xbf16>, vector<8x128xf32> -> vector<8x128xf32>
    %480 = arith.addf %478, %479 : vector<8x128xf32>
    %481 = vector.extract_strided_slice %480 {offsets = [0, 0], sizes = [8, 96], strides = [1, 1]} : vector<8x128xf32> to vector<8x96xf32>
    %482 = arith.negf %481 : vector<8x96xf32>
    %483 = math.exp %482 : vector<8x96xf32>
    %cst_160 = arith.constant 1.000000e+00 : f32
    %484 = vector.broadcast %cst_160 : f32 to vector<8x96xf32>
    %485 = arith.addf %484, %483 : vector<8x96xf32>
    %486 = arith.divf %484, %485 : vector<8x96xf32>
    %487 = vector.extract_strided_slice %480 {offsets = [0, 96], sizes = [8, 32], strides = [1, 1]} : vector<8x128xf32> to vector<8x32xf32>
    %488 = math.tanh %487 : vector<8x32xf32>
    %489 = vector.extract_strided_slice %486 {offsets = [0, 0], sizes = [8, 32], strides = [1, 1]} : vector<8x96xf32> to vector<8x32xf32>
    %490 = vector.extract_strided_slice %486 {offsets = [0, 32], sizes = [8, 32], strides = [1, 1]} : vector<8x96xf32> to vector<8x32xf32>
    %491 = vector.extract_strided_slice %486 {offsets = [0, 64], sizes = [8, 32], strides = [1, 1]} : vector<8x96xf32> to vector<8x32xf32>
    %492 = arith.mulf %490, %470 : vector<8x32xf32>
    %493 = arith.mulf %489, %488 : vector<8x32xf32>
    %494 = arith.addf %492, %493 : vector<8x32xf32>
    %495 = math.tanh %494 : vector<8x32xf32>
    %496 = arith.mulf %491, %495 : vector<8x32xf32>
    %497 = arith.truncf %496 : vector<8x32xf32> to vector<8x32xbf16>
    %cst_161 = arith.constant dense<0.000000e+00> : vector<8x128xf32>
    %498 = tpu.matmul %497, %402, %cst_161 {dimension_numbers = #tpu.dot_dimension_numbers<[1], [0], [0], [1], [0, 0, 1, 1], [], []>} : vector<8x32xbf16>, vector<32x128xbf16>, vector<8x128xf32> -> vector<8x128xf32>
    %499 = vector.broadcast %403 : vector<1x128xf32> to vector<8x128xf32>
    %500 = arith.addf %498, %499 : vector<8x128xf32>
    %c24_162 = arith.constant 24 : index
    %c0_163 = arith.constant 0 : index
    %501 = vector.load %arg23[%c24_162, %c0_163] : memref<64x128xf32, #tpu.memory_space<vmem>>, vector<8x128xf32>
    tpu.vector_store %arg23[%c24_162, %c0_163], %500 {strides = array<i32>} : memref<64x128xf32, #tpu.memory_space<vmem>>, vector<8x128xf32>,
    %c32_164 = arith.constant 32 : index
    %c0_165 = arith.constant 0 : index
    %502 = vector.load %arg22[%c32_164, %c0_165] : memref<64x128xf32, #tpu.memory_space<vmem>>, vector<8x128xf32>
    %cst_166 = arith.constant dense<0.000000e+00> : vector<8x128xf32>
    %503 = tpu.matmul %497, %401, %cst_166 {dimension_numbers = #tpu.dot_dimension_numbers<[1], [0], [0], [1], [0, 0, 1, 1], [], []>} : vector<8x32xbf16>, vector<32x128xbf16>, vector<8x128xf32> -> vector<8x128xf32>
    %504 = arith.addf %502, %503 : vector<8x128xf32>
    %505 = vector.extract_strided_slice %504 {offsets = [0, 0], sizes = [8, 96], strides = [1, 1]} : vector<8x128xf32> to vector<8x96xf32>
    %506 = arith.negf %505 : vector<8x96xf32>
    %507 = math.exp %506 : vector<8x96xf32>
    %cst_167 = arith.constant 1.000000e+00 : f32
    %508 = vector.broadcast %cst_167 : f32 to vector<8x96xf32>
    %509 = arith.addf %508, %507 : vector<8x96xf32>
    %510 = arith.divf %508, %509 : vector<8x96xf32>
    %511 = vector.extract_strided_slice %504 {offsets = [0, 96], sizes = [8, 32], strides = [1, 1]} : vector<8x128xf32> to vector<8x32xf32>
    %512 = math.tanh %511 : vector<8x32xf32>
    %513 = vector.extract_strided_slice %510 {offsets = [0, 0], sizes = [8, 32], strides = [1, 1]} : vector<8x96xf32> to vector<8x32xf32>
    %514 = vector.extract_strided_slice %510 {offsets = [0, 32], sizes = [8, 32], strides = [1, 1]} : vector<8x96xf32> to vector<8x32xf32>
    %515 = vector.extract_strided_slice %510 {offsets = [0, 64], sizes = [8, 32], strides = [1, 1]} : vector<8x96xf32> to vector<8x32xf32>
    %516 = arith.mulf %514, %494 : vector<8x32xf32>
    %517 = arith.mulf %513, %512 : vector<8x32xf32>
    %518 = arith.addf %516, %517 : vector<8x32xf32>
    %519 = math.tanh %518 : vector<8x32xf32>
    %520 = arith.mulf %515, %519 : vector<8x32xf32>
    %521 = arith.truncf %520 : vector<8x32xf32> to vector<8x32xbf16>
    %cst_168 = arith.constant dense<0.000000e+00> : vector<8x128xf32>
    %522 = tpu.matmul %521, %402, %cst_168 {dimension_numbers = #tpu.dot_dimension_numbers<[1], [0], [0], [1], [0, 0, 1, 1], [], []>} : vector<8x32xbf16>, vector<32x128xbf16>, vector<8x128xf32> -> vector<8x128xf32>
    %523 = vector.broadcast %403 : vector<1x128xf32> to vector<8x128xf32>
    %524 = arith.addf %522, %523 : vector<8x128xf32>
    %c32_169 = arith.constant 32 : index
    %c0_170 = arith.constant 0 : index
    %525 = vector.load %arg23[%c32_169, %c0_170] : memref<64x128xf32, #tpu.memory_space<vmem>>, vector<8x128xf32>
    tpu.vector_store %arg23[%c32_169, %c0_170], %524 {strides = array<i32>} : memref<64x128xf32, #tpu.memory_space<vmem>>, vector<8x128xf32>,
    %c40_171 = arith.constant 40 : index
    %c0_172 = arith.constant 0 : index
    %526 = vector.load %arg22[%c40_171, %c0_172] : memref<64x128xf32, #tpu.memory_space<vmem>>, vector<8x128xf32>
    %cst_173 = arith.constant dense<0.000000e+00> : vector<8x128xf32>
    %527 = tpu.matmul %521, %401, %cst_173 {dimension_numbers = #tpu.dot_dimension_numbers<[1], [0], [0], [1], [0, 0, 1, 1], [], []>} : vector<8x32xbf16>, vector<32x128xbf16>, vector<8x128xf32> -> vector<8x128xf32>
    %528 = arith.addf %526, %527 : vector<8x128xf32>
    %529 = vector.extract_strided_slice %528 {offsets = [0, 0], sizes = [8, 96], strides = [1, 1]} : vector<8x128xf32> to vector<8x96xf32>
    %530 = arith.negf %529 : vector<8x96xf32>
    %531 = math.exp %530 : vector<8x96xf32>
    %cst_174 = arith.constant 1.000000e+00 : f32
    %532 = vector.broadcast %cst_174 : f32 to vector<8x96xf32>
    %533 = arith.addf %532, %531 : vector<8x96xf32>
    %534 = arith.divf %532, %533 : vector<8x96xf32>
    %535 = vector.extract_strided_slice %528 {offsets = [0, 96], sizes = [8, 32], strides = [1, 1]} : vector<8x128xf32> to vector<8x32xf32>
    %536 = math.tanh %535 : vector<8x32xf32>
    %537 = vector.extract_strided_slice %534 {offsets = [0, 0], sizes = [8, 32], strides = [1, 1]} : vector<8x96xf32> to vector<8x32xf32>
    %538 = vector.extract_strided_slice %534 {offsets = [0, 32], sizes = [8, 32], strides = [1, 1]} : vector<8x96xf32> to vector<8x32xf32>
    %539 = vector.extract_strided_slice %534 {offsets = [0, 64], sizes = [8, 32], strides = [1, 1]} : vector<8x96xf32> to vector<8x32xf32>
    %540 = arith.mulf %538, %518 : vector<8x32xf32>
    %541 = arith.mulf %537, %536 : vector<8x32xf32>
    %542 = arith.addf %540, %541 : vector<8x32xf32>
    %543 = math.tanh %542 : vector<8x32xf32>
    %544 = arith.mulf %539, %543 : vector<8x32xf32>
    %545 = arith.truncf %544 : vector<8x32xf32> to vector<8x32xbf16>
    %cst_175 = arith.constant dense<0.000000e+00> : vector<8x128xf32>
    %546 = tpu.matmul %545, %402, %cst_175 {dimension_numbers = #tpu.dot_dimension_numbers<[1], [0], [0], [1], [0, 0, 1, 1], [], []>} : vector<8x32xbf16>, vector<32x128xbf16>, vector<8x128xf32> -> vector<8x128xf32>
    %547 = vector.broadcast %403 : vector<1x128xf32> to vector<8x128xf32>
    %548 = arith.addf %546, %547 : vector<8x128xf32>
    %c40_176 = arith.constant 40 : index
    %c0_177 = arith.constant 0 : index
    %549 = vector.load %arg23[%c40_176, %c0_177] : memref<64x128xf32, #tpu.memory_space<vmem>>, vector<8x128xf32>
    tpu.vector_store %arg23[%c40_176, %c0_177], %548 {strides = array<i32>} : memref<64x128xf32, #tpu.memory_space<vmem>>, vector<8x128xf32>,
    %c48_178 = arith.constant 48 : index
    %c0_179 = arith.constant 0 : index
    %550 = vector.load %arg22[%c48_178, %c0_179] : memref<64x128xf32, #tpu.memory_space<vmem>>, vector<8x128xf32>
    %cst_180 = arith.constant dense<0.000000e+00> : vector<8x128xf32>
    %551 = tpu.matmul %545, %401, %cst_180 {dimension_numbers = #tpu.dot_dimension_numbers<[1], [0], [0], [1], [0, 0, 1, 1], [], []>} : vector<8x32xbf16>, vector<32x128xbf16>, vector<8x128xf32> -> vector<8x128xf32>
    %552 = arith.addf %550, %551 : vector<8x128xf32>
    %553 = vector.extract_strided_slice %552 {offsets = [0, 0], sizes = [8, 96], strides = [1, 1]} : vector<8x128xf32> to vector<8x96xf32>
    %554 = arith.negf %553 : vector<8x96xf32>
    %555 = math.exp %554 : vector<8x96xf32>
    %cst_181 = arith.constant 1.000000e+00 : f32
    %556 = vector.broadcast %cst_181 : f32 to vector<8x96xf32>
    %557 = arith.addf %556, %555 : vector<8x96xf32>
    %558 = arith.divf %556, %557 : vector<8x96xf32>
    %559 = vector.extract_strided_slice %552 {offsets = [0, 96], sizes = [8, 32], strides = [1, 1]} : vector<8x128xf32> to vector<8x32xf32>
    %560 = math.tanh %559 : vector<8x32xf32>
    %561 = vector.extract_strided_slice %558 {offsets = [0, 0], sizes = [8, 32], strides = [1, 1]} : vector<8x96xf32> to vector<8x32xf32>
    %562 = vector.extract_strided_slice %558 {offsets = [0, 32], sizes = [8, 32], strides = [1, 1]} : vector<8x96xf32> to vector<8x32xf32>
    %563 = vector.extract_strided_slice %558 {offsets = [0, 64], sizes = [8, 32], strides = [1, 1]} : vector<8x96xf32> to vector<8x32xf32>
    %564 = arith.mulf %562, %542 : vector<8x32xf32>
    %565 = arith.mulf %561, %560 : vector<8x32xf32>
    %566 = arith.addf %564, %565 : vector<8x32xf32>
    %567 = math.tanh %566 : vector<8x32xf32>
    %568 = arith.mulf %563, %567 : vector<8x32xf32>
    %569 = arith.truncf %568 : vector<8x32xf32> to vector<8x32xbf16>
    %cst_182 = arith.constant dense<0.000000e+00> : vector<8x128xf32>
    %570 = tpu.matmul %569, %402, %cst_182 {dimension_numbers = #tpu.dot_dimension_numbers<[1], [0], [0], [1], [0, 0, 1, 1], [], []>} : vector<8x32xbf16>, vector<32x128xbf16>, vector<8x128xf32> -> vector<8x128xf32>
    %571 = vector.broadcast %403 : vector<1x128xf32> to vector<8x128xf32>
    %572 = arith.addf %570, %571 : vector<8x128xf32>
    %c48_183 = arith.constant 48 : index
    %c0_184 = arith.constant 0 : index
    %573 = vector.load %arg23[%c48_183, %c0_184] : memref<64x128xf32, #tpu.memory_space<vmem>>, vector<8x128xf32>
    tpu.vector_store %arg23[%c48_183, %c0_184], %572 {strides = array<i32>} : memref<64x128xf32, #tpu.memory_space<vmem>>, vector<8x128xf32>,
    %c56_185 = arith.constant 56 : index
    %c0_186 = arith.constant 0 : index
    %574 = vector.load %arg22[%c56_185, %c0_186] : memref<64x128xf32, #tpu.memory_space<vmem>>, vector<8x128xf32>
    %cst_187 = arith.constant dense<0.000000e+00> : vector<8x128xf32>
    %575 = tpu.matmul %569, %401, %cst_187 {dimension_numbers = #tpu.dot_dimension_numbers<[1], [0], [0], [1], [0, 0, 1, 1], [], []>} : vector<8x32xbf16>, vector<32x128xbf16>, vector<8x128xf32> -> vector<8x128xf32>
    %576 = arith.addf %574, %575 : vector<8x128xf32>
    %577 = vector.extract_strided_slice %576 {offsets = [0, 0], sizes = [8, 96], strides = [1, 1]} : vector<8x128xf32> to vector<8x96xf32>
    %578 = arith.negf %577 : vector<8x96xf32>
    %579 = math.exp %578 : vector<8x96xf32>
    %cst_188 = arith.constant 1.000000e+00 : f32
    %580 = vector.broadcast %cst_188 : f32 to vector<8x96xf32>
    %581 = arith.addf %580, %579 : vector<8x96xf32>
    %582 = arith.divf %580, %581 : vector<8x96xf32>
    %583 = vector.extract_strided_slice %576 {offsets = [0, 96], sizes = [8, 32], strides = [1, 1]} : vector<8x128xf32> to vector<8x32xf32>
    %584 = math.tanh %583 : vector<8x32xf32>
    %585 = vector.extract_strided_slice %582 {offsets = [0, 0], sizes = [8, 32], strides = [1, 1]} : vector<8x96xf32> to vector<8x32xf32>
    %586 = vector.extract_strided_slice %582 {offsets = [0, 32], sizes = [8, 32], strides = [1, 1]} : vector<8x96xf32> to vector<8x32xf32>
    %587 = vector.extract_strided_slice %582 {offsets = [0, 64], sizes = [8, 32], strides = [1, 1]} : vector<8x96xf32> to vector<8x32xf32>
    %588 = arith.mulf %586, %566 : vector<8x32xf32>
    %589 = arith.mulf %585, %584 : vector<8x32xf32>
    %590 = arith.addf %588, %589 : vector<8x32xf32>
    %591 = math.tanh %590 : vector<8x32xf32>
    %592 = arith.mulf %587, %591 : vector<8x32xf32>
    %593 = arith.truncf %592 : vector<8x32xf32> to vector<8x32xbf16>
    %cst_189 = arith.constant dense<0.000000e+00> : vector<8x128xf32>
    %594 = tpu.matmul %593, %402, %cst_189 {dimension_numbers = #tpu.dot_dimension_numbers<[1], [0], [0], [1], [0, 0, 1, 1], [], []>} : vector<8x32xbf16>, vector<32x128xbf16>, vector<8x128xf32> -> vector<8x128xf32>
    %595 = vector.broadcast %403 : vector<1x128xf32> to vector<8x128xf32>
    %596 = arith.addf %594, %595 : vector<8x128xf32>
    %c56_190 = arith.constant 56 : index
    %c0_191 = arith.constant 0 : index
    %597 = vector.load %arg23[%c56_190, %c0_191] : memref<64x128xf32, #tpu.memory_space<vmem>>, vector<8x128xf32>
    tpu.vector_store %arg23[%c56_190, %c0_191], %596 {strides = array<i32>} : memref<64x128xf32, #tpu.memory_space<vmem>>, vector<8x128xf32>,
    %c0_192 = arith.constant 0 : index
    %c0_193 = arith.constant 0 : index
    %598 = vector.load %arg11[%c0_192, %c0_193] : memref<32x128xbf16, #tpu.memory_space<vmem>>, vector<32x128xbf16>
    %c0_194 = arith.constant 0 : index
    %c0_195 = arith.constant 0 : index
    %599 = vector.load %arg13[%c0_194, %c0_195] : memref<32x128xbf16, #tpu.memory_space<vmem>>, vector<32x128xbf16>
    %c0_196 = arith.constant 0 : index
    %c0_197 = arith.constant 0 : index
    %600 = vector.load %arg15[%c0_196, %c0_197] : memref<1x128xf32, #tpu.memory_space<vmem>>, vector<1x128xf32>
    %cst_198 = arith.constant 0.000000e+00 : f32
    %601 = vector.broadcast %cst_198 : f32 to vector<8x32xf32>
    %cst_199 = arith.constant 0.000000e+00 : bf16
    %602 = vector.broadcast %cst_199 : bf16 to vector<8x32xbf16>
    %c0_200 = arith.constant 0 : index
    %c0_201 = arith.constant 0 : index
    %603 = vector.load %arg23[%c0_200, %c0_201] : memref<64x128xf32, #tpu.memory_space<vmem>>, vector<8x128xf32>
    %cst_202 = arith.constant dense<0.000000e+00> : vector<8x128xf32>
    %604 = tpu.matmul %602, %598, %cst_202 {dimension_numbers = #tpu.dot_dimension_numbers<[1], [0], [0], [1], [0, 0, 1, 1], [], []>} : vector<8x32xbf16>, vector<32x128xbf16>, vector<8x128xf32> -> vector<8x128xf32>
    %605 = arith.addf %603, %604 : vector<8x128xf32>
    %606 = vector.extract_strided_slice %605 {offsets = [0, 0], sizes = [8, 96], strides = [1, 1]} : vector<8x128xf32> to vector<8x96xf32>
    %607 = arith.negf %606 : vector<8x96xf32>
    %608 = math.exp %607 : vector<8x96xf32>
    %cst_203 = arith.constant 1.000000e+00 : f32
    %609 = vector.broadcast %cst_203 : f32 to vector<8x96xf32>
    %610 = arith.addf %609, %608 : vector<8x96xf32>
    %611 = arith.divf %609, %610 : vector<8x96xf32>
    %612 = vector.extract_strided_slice %605 {offsets = [0, 96], sizes = [8, 32], strides = [1, 1]} : vector<8x128xf32> to vector<8x32xf32>
    %613 = math.tanh %612 : vector<8x32xf32>
    %614 = vector.extract_strided_slice %611 {offsets = [0, 0], sizes = [8, 32], strides = [1, 1]} : vector<8x96xf32> to vector<8x32xf32>
    %615 = vector.extract_strided_slice %611 {offsets = [0, 32], sizes = [8, 32], strides = [1, 1]} : vector<8x96xf32> to vector<8x32xf32>
    %616 = vector.extract_strided_slice %611 {offsets = [0, 64], sizes = [8, 32], strides = [1, 1]} : vector<8x96xf32> to vector<8x32xf32>
    %617 = arith.mulf %615, %601 : vector<8x32xf32>
    %618 = arith.mulf %614, %613 : vector<8x32xf32>
    %619 = arith.addf %617, %618 : vector<8x32xf32>
    %620 = math.tanh %619 : vector<8x32xf32>
    %621 = arith.mulf %616, %620 : vector<8x32xf32>
    %622 = arith.truncf %621 : vector<8x32xf32> to vector<8x32xbf16>
    %cst_204 = arith.constant dense<0.000000e+00> : vector<8x128xf32>
    %623 = tpu.matmul %622, %599, %cst_204 {dimension_numbers = #tpu.dot_dimension_numbers<[1], [0], [0], [1], [0, 0, 1, 1], [], []>} : vector<8x32xbf16>, vector<32x128xbf16>, vector<8x128xf32> -> vector<8x128xf32>
    %624 = vector.broadcast %600 : vector<1x128xf32> to vector<8x128xf32>
    %625 = arith.addf %623, %624 : vector<8x128xf32>
    %c0_205 = arith.constant 0 : index
    %c0_206 = arith.constant 0 : index
    %626 = vector.load %arg22[%c0_205, %c0_206] : memref<64x128xf32, #tpu.memory_space<vmem>>, vector<8x128xf32>
    tpu.vector_store %arg22[%c0_205, %c0_206], %625 {strides = array<i32>} : memref<64x128xf32, #tpu.memory_space<vmem>>, vector<8x128xf32>,
    %c8_207 = arith.constant 8 : index
    %c0_208 = arith.constant 0 : index
    %627 = vector.load %arg23[%c8_207, %c0_208] : memref<64x128xf32, #tpu.memory_space<vmem>>, vector<8x128xf32>
    %cst_209 = arith.constant dense<0.000000e+00> : vector<8x128xf32>
    %628 = tpu.matmul %622, %598, %cst_209 {dimension_numbers = #tpu.dot_dimension_numbers<[1], [0], [0], [1], [0, 0, 1, 1], [], []>} : vector<8x32xbf16>, vector<32x128xbf16>, vector<8x128xf32> -> vector<8x128xf32>
    %629 = arith.addf %627, %628 : vector<8x128xf32>
    %630 = vector.extract_strided_slice %629 {offsets = [0, 0], sizes = [8, 96], strides = [1, 1]} : vector<8x128xf32> to vector<8x96xf32>
    %631 = arith.negf %630 : vector<8x96xf32>
    %632 = math.exp %631 : vector<8x96xf32>
    %cst_210 = arith.constant 1.000000e+00 : f32
    %633 = vector.broadcast %cst_210 : f32 to vector<8x96xf32>
    %634 = arith.addf %633, %632 : vector<8x96xf32>
    %635 = arith.divf %633, %634 : vector<8x96xf32>
    %636 = vector.extract_strided_slice %629 {offsets = [0, 96], sizes = [8, 32], strides = [1, 1]} : vector<8x128xf32> to vector<8x32xf32>
    %637 = math.tanh %636 : vector<8x32xf32>
    %638 = vector.extract_strided_slice %635 {offsets = [0, 0], sizes = [8, 32], strides = [1, 1]} : vector<8x96xf32> to vector<8x32xf32>
    %639 = vector.extract_strided_slice %635 {offsets = [0, 32], sizes = [8, 32], strides = [1, 1]} : vector<8x96xf32> to vector<8x32xf32>
    %640 = vector.extract_strided_slice %635 {offsets = [0, 64], sizes = [8, 32], strides = [1, 1]} : vector<8x96xf32> to vector<8x32xf32>
    %641 = arith.mulf %639, %619 : vector<8x32xf32>
    %642 = arith.mulf %638, %637 : vector<8x32xf32>
    %643 = arith.addf %641, %642 : vector<8x32xf32>
    %644 = math.tanh %643 : vector<8x32xf32>
    %645 = arith.mulf %640, %644 : vector<8x32xf32>
    %646 = arith.truncf %645 : vector<8x32xf32> to vector<8x32xbf16>
    %cst_211 = arith.constant dense<0.000000e+00> : vector<8x128xf32>
    %647 = tpu.matmul %646, %599, %cst_211 {dimension_numbers = #tpu.dot_dimension_numbers<[1], [0], [0], [1], [0, 0, 1, 1], [], []>} : vector<8x32xbf16>, vector<32x128xbf16>, vector<8x128xf32> -> vector<8x128xf32>
    %648 = vector.broadcast %600 : vector<1x128xf32> to vector<8x128xf32>
    %649 = arith.addf %647, %648 : vector<8x128xf32>
    %c8_212 = arith.constant 8 : index
    %c0_213 = arith.constant 0 : index
    %650 = vector.load %arg22[%c8_212, %c0_213] : memref<64x128xf32, #tpu.memory_space<vmem>>, vector<8x128xf32>
    tpu.vector_store %arg22[%c8_212, %c0_213], %649 {strides = array<i32>} : memref<64x128xf32, #tpu.memory_space<vmem>>, vector<8x128xf32>,
    %c16_214 = arith.constant 16 : index
    %c0_215 = arith.constant 0 : index
    %651 = vector.load %arg23[%c16_214, %c0_215] : memref<64x128xf32, #tpu.memory_space<vmem>>, vector<8x128xf32>
    %cst_216 = arith.constant dense<0.000000e+00> : vector<8x128xf32>
    %652 = tpu.matmul %646, %598, %cst_216 {dimension_numbers = #tpu.dot_dimension_numbers<[1], [0], [0], [1], [0, 0, 1, 1], [], []>} : vector<8x32xbf16>, vector<32x128xbf16>, vector<8x128xf32> -> vector<8x128xf32>
    %653 = arith.addf %651, %652 : vector<8x128xf32>
    %654 = vector.extract_strided_slice %653 {offsets = [0, 0], sizes = [8, 96], strides = [1, 1]} : vector<8x128xf32> to vector<8x96xf32>
    %655 = arith.negf %654 : vector<8x96xf32>
    %656 = math.exp %655 : vector<8x96xf32>
    %cst_217 = arith.constant 1.000000e+00 : f32
    %657 = vector.broadcast %cst_217 : f32 to vector<8x96xf32>
    %658 = arith.addf %657, %656 : vector<8x96xf32>
    %659 = arith.divf %657, %658 : vector<8x96xf32>
    %660 = vector.extract_strided_slice %653 {offsets = [0, 96], sizes = [8, 32], strides = [1, 1]} : vector<8x128xf32> to vector<8x32xf32>
    %661 = math.tanh %660 : vector<8x32xf32>
    %662 = vector.extract_strided_slice %659 {offsets = [0, 0], sizes = [8, 32], strides = [1, 1]} : vector<8x96xf32> to vector<8x32xf32>
    %663 = vector.extract_strided_slice %659 {offsets = [0, 32], sizes = [8, 32], strides = [1, 1]} : vector<8x96xf32> to vector<8x32xf32>
    %664 = vector.extract_strided_slice %659 {offsets = [0, 64], sizes = [8, 32], strides = [1, 1]} : vector<8x96xf32> to vector<8x32xf32>
    %665 = arith.mulf %663, %643 : vector<8x32xf32>
    %666 = arith.mulf %662, %661 : vector<8x32xf32>
    %667 = arith.addf %665, %666 : vector<8x32xf32>
    %668 = math.tanh %667 : vector<8x32xf32>
    %669 = arith.mulf %664, %668 : vector<8x32xf32>
    %670 = arith.truncf %669 : vector<8x32xf32> to vector<8x32xbf16>
    %cst_218 = arith.constant dense<0.000000e+00> : vector<8x128xf32>
    %671 = tpu.matmul %670, %599, %cst_218 {dimension_numbers = #tpu.dot_dimension_numbers<[1], [0], [0], [1], [0, 0, 1, 1], [], []>} : vector<8x32xbf16>, vector<32x128xbf16>, vector<8x128xf32> -> vector<8x128xf32>
    %672 = vector.broadcast %600 : vector<1x128xf32> to vector<8x128xf32>
    %673 = arith.addf %671, %672 : vector<8x128xf32>
    %c16_219 = arith.constant 16 : index
    %c0_220 = arith.constant 0 : index
    %674 = vector.load %arg22[%c16_219, %c0_220] : memref<64x128xf32, #tpu.memory_space<vmem>>, vector<8x128xf32>
    tpu.vector_store %arg22[%c16_219, %c0_220], %673 {strides = array<i32>} : memref<64x128xf32, #tpu.memory_space<vmem>>, vector<8x128xf32>,
    %c24_221 = arith.constant 24 : index
    %c0_222 = arith.constant 0 : index
    %675 = vector.load %arg23[%c24_221, %c0_222] : memref<64x128xf32, #tpu.memory_space<vmem>>, vector<8x128xf32>
    %cst_223 = arith.constant dense<0.000000e+00> : vector<8x128xf32>
    %676 = tpu.matmul %670, %598, %cst_223 {dimension_numbers = #tpu.dot_dimension_numbers<[1], [0], [0], [1], [0, 0, 1, 1], [], []>} : vector<8x32xbf16>, vector<32x128xbf16>, vector<8x128xf32> -> vector<8x128xf32>
    %677 = arith.addf %675, %676 : vector<8x128xf32>
    %678 = vector.extract_strided_slice %677 {offsets = [0, 0], sizes = [8, 96], strides = [1, 1]} : vector<8x128xf32> to vector<8x96xf32>
    %679 = arith.negf %678 : vector<8x96xf32>
    %680 = math.exp %679 : vector<8x96xf32>
    %cst_224 = arith.constant 1.000000e+00 : f32
    %681 = vector.broadcast %cst_224 : f32 to vector<8x96xf32>
    %682 = arith.addf %681, %680 : vector<8x96xf32>
    %683 = arith.divf %681, %682 : vector<8x96xf32>
    %684 = vector.extract_strided_slice %677 {offsets = [0, 96], sizes = [8, 32], strides = [1, 1]} : vector<8x128xf32> to vector<8x32xf32>
    %685 = math.tanh %684 : vector<8x32xf32>
    %686 = vector.extract_strided_slice %683 {offsets = [0, 0], sizes = [8, 32], strides = [1, 1]} : vector<8x96xf32> to vector<8x32xf32>
    %687 = vector.extract_strided_slice %683 {offsets = [0, 32], sizes = [8, 32], strides = [1, 1]} : vector<8x96xf32> to vector<8x32xf32>
    %688 = vector.extract_strided_slice %683 {offsets = [0, 64], sizes = [8, 32], strides = [1, 1]} : vector<8x96xf32> to vector<8x32xf32>
    %689 = arith.mulf %687, %667 : vector<8x32xf32>
    %690 = arith.mulf %686, %685 : vector<8x32xf32>
    %691 = arith.addf %689, %690 : vector<8x32xf32>
    %692 = math.tanh %691 : vector<8x32xf32>
    %693 = arith.mulf %688, %692 : vector<8x32xf32>
    %694 = arith.truncf %693 : vector<8x32xf32> to vector<8x32xbf16>
    %cst_225 = arith.constant dense<0.000000e+00> : vector<8x128xf32>
    %695 = tpu.matmul %694, %599, %cst_225 {dimension_numbers = #tpu.dot_dimension_numbers<[1], [0], [0], [1], [0, 0, 1, 1], [], []>} : vector<8x32xbf16>, vector<32x128xbf16>, vector<8x128xf32> -> vector<8x128xf32>
    %696 = vector.broadcast %600 : vector<1x128xf32> to vector<8x128xf32>
    %697 = arith.addf %695, %696 : vector<8x128xf32>
    %c24_226 = arith.constant 24 : index
    %c0_227 = arith.constant 0 : index
    %698 = vector.load %arg22[%c24_226, %c0_227] : memref<64x128xf32, #tpu.memory_space<vmem>>, vector<8x128xf32>
    tpu.vector_store %arg22[%c24_226, %c0_227], %697 {strides = array<i32>} : memref<64x128xf32, #tpu.memory_space<vmem>>, vector<8x128xf32>,
    %c32_228 = arith.constant 32 : index
    %c0_229 = arith.constant 0 : index
    %699 = vector.load %arg23[%c32_228, %c0_229] : memref<64x128xf32, #tpu.memory_space<vmem>>, vector<8x128xf32>
    %cst_230 = arith.constant dense<0.000000e+00> : vector<8x128xf32>
    %700 = tpu.matmul %694, %598, %cst_230 {dimension_numbers = #tpu.dot_dimension_numbers<[1], [0], [0], [1], [0, 0, 1, 1], [], []>} : vector<8x32xbf16>, vector<32x128xbf16>, vector<8x128xf32> -> vector<8x128xf32>
    %701 = arith.addf %699, %700 : vector<8x128xf32>
    %702 = vector.extract_strided_slice %701 {offsets = [0, 0], sizes = [8, 96], strides = [1, 1]} : vector<8x128xf32> to vector<8x96xf32>
    %703 = arith.negf %702 : vector<8x96xf32>
    %704 = math.exp %703 : vector<8x96xf32>
    %cst_231 = arith.constant 1.000000e+00 : f32
    %705 = vector.broadcast %cst_231 : f32 to vector<8x96xf32>
    %706 = arith.addf %705, %704 : vector<8x96xf32>
    %707 = arith.divf %705, %706 : vector<8x96xf32>
    %708 = vector.extract_strided_slice %701 {offsets = [0, 96], sizes = [8, 32], strides = [1, 1]} : vector<8x128xf32> to vector<8x32xf32>
    %709 = math.tanh %708 : vector<8x32xf32>
    %710 = vector.extract_strided_slice %707 {offsets = [0, 0], sizes = [8, 32], strides = [1, 1]} : vector<8x96xf32> to vector<8x32xf32>
    %711 = vector.extract_strided_slice %707 {offsets = [0, 32], sizes = [8, 32], strides = [1, 1]} : vector<8x96xf32> to vector<8x32xf32>
    %712 = vector.extract_strided_slice %707 {offsets = [0, 64], sizes = [8, 32], strides = [1, 1]} : vector<8x96xf32> to vector<8x32xf32>
    %713 = arith.mulf %711, %691 : vector<8x32xf32>
    %714 = arith.mulf %710, %709 : vector<8x32xf32>
    %715 = arith.addf %713, %714 : vector<8x32xf32>
    %716 = math.tanh %715 : vector<8x32xf32>
    %717 = arith.mulf %712, %716 : vector<8x32xf32>
    %718 = arith.truncf %717 : vector<8x32xf32> to vector<8x32xbf16>
    %cst_232 = arith.constant dense<0.000000e+00> : vector<8x128xf32>
    %719 = tpu.matmul %718, %599, %cst_232 {dimension_numbers = #tpu.dot_dimension_numbers<[1], [0], [0], [1], [0, 0, 1, 1], [], []>} : vector<8x32xbf16>, vector<32x128xbf16>, vector<8x128xf32> -> vector<8x128xf32>
    %720 = vector.broadcast %600 : vector<1x128xf32> to vector<8x128xf32>
    %721 = arith.addf %719, %720 : vector<8x128xf32>
    %c32_233 = arith.constant 32 : index
    %c0_234 = arith.constant 0 : index
    %722 = vector.load %arg22[%c32_233, %c0_234] : memref<64x128xf32, #tpu.memory_space<vmem>>, vector<8x128xf32>
    tpu.vector_store %arg22[%c32_233, %c0_234], %721 {strides = array<i32>} : memref<64x128xf32, #tpu.memory_space<vmem>>, vector<8x128xf32>,
    %c40_235 = arith.constant 40 : index
    %c0_236 = arith.constant 0 : index
    %723 = vector.load %arg23[%c40_235, %c0_236] : memref<64x128xf32, #tpu.memory_space<vmem>>, vector<8x128xf32>
    %cst_237 = arith.constant dense<0.000000e+00> : vector<8x128xf32>
    %724 = tpu.matmul %718, %598, %cst_237 {dimension_numbers = #tpu.dot_dimension_numbers<[1], [0], [0], [1], [0, 0, 1, 1], [], []>} : vector<8x32xbf16>, vector<32x128xbf16>, vector<8x128xf32> -> vector<8x128xf32>
    %725 = arith.addf %723, %724 : vector<8x128xf32>
    %726 = vector.extract_strided_slice %725 {offsets = [0, 0], sizes = [8, 96], strides = [1, 1]} : vector<8x128xf32> to vector<8x96xf32>
    %727 = arith.negf %726 : vector<8x96xf32>
    %728 = math.exp %727 : vector<8x96xf32>
    %cst_238 = arith.constant 1.000000e+00 : f32
    %729 = vector.broadcast %cst_238 : f32 to vector<8x96xf32>
    %730 = arith.addf %729, %728 : vector<8x96xf32>
    %731 = arith.divf %729, %730 : vector<8x96xf32>
    %732 = vector.extract_strided_slice %725 {offsets = [0, 96], sizes = [8, 32], strides = [1, 1]} : vector<8x128xf32> to vector<8x32xf32>
    %733 = math.tanh %732 : vector<8x32xf32>
    %734 = vector.extract_strided_slice %731 {offsets = [0, 0], sizes = [8, 32], strides = [1, 1]} : vector<8x96xf32> to vector<8x32xf32>
    %735 = vector.extract_strided_slice %731 {offsets = [0, 32], sizes = [8, 32], strides = [1, 1]} : vector<8x96xf32> to vector<8x32xf32>
    %736 = vector.extract_strided_slice %731 {offsets = [0, 64], sizes = [8, 32], strides = [1, 1]} : vector<8x96xf32> to vector<8x32xf32>
    %737 = arith.mulf %735, %715 : vector<8x32xf32>
    %738 = arith.mulf %734, %733 : vector<8x32xf32>
    %739 = arith.addf %737, %738 : vector<8x32xf32>
    %740 = math.tanh %739 : vector<8x32xf32>
    %741 = arith.mulf %736, %740 : vector<8x32xf32>
    %742 = arith.truncf %741 : vector<8x32xf32> to vector<8x32xbf16>
    %cst_239 = arith.constant dense<0.000000e+00> : vector<8x128xf32>
    %743 = tpu.matmul %742, %599, %cst_239 {dimension_numbers = #tpu.dot_dimension_numbers<[1], [0], [0], [1], [0, 0, 1, 1], [], []>} : vector<8x32xbf16>, vector<32x128xbf16>, vector<8x128xf32> -> vector<8x128xf32>
    %744 = vector.broadcast %600 : vector<1x128xf32> to vector<8x128xf32>
    %745 = arith.addf %743, %744 : vector<8x128xf32>
    %c40_240 = arith.constant 40 : index
    %c0_241 = arith.constant 0 : index
    %746 = vector.load %arg22[%c40_240, %c0_241] : memref<64x128xf32, #tpu.memory_space<vmem>>, vector<8x128xf32>
    tpu.vector_store %arg22[%c40_240, %c0_241], %745 {strides = array<i32>} : memref<64x128xf32, #tpu.memory_space<vmem>>, vector<8x128xf32>,
    %c48_242 = arith.constant 48 : index
    %c0_243 = arith.constant 0 : index
    %747 = vector.load %arg23[%c48_242, %c0_243] : memref<64x128xf32, #tpu.memory_space<vmem>>, vector<8x128xf32>
    %cst_244 = arith.constant dense<0.000000e+00> : vector<8x128xf32>
    %748 = tpu.matmul %742, %598, %cst_244 {dimension_numbers = #tpu.dot_dimension_numbers<[1], [0], [0], [1], [0, 0, 1, 1], [], []>} : vector<8x32xbf16>, vector<32x128xbf16>, vector<8x128xf32> -> vector<8x128xf32>
    %749 = arith.addf %747, %748 : vector<8x128xf32>
    %750 = vector.extract_strided_slice %749 {offsets = [0, 0], sizes = [8, 96], strides = [1, 1]} : vector<8x128xf32> to vector<8x96xf32>
    %751 = arith.negf %750 : vector<8x96xf32>
    %752 = math.exp %751 : vector<8x96xf32>
    %cst_245 = arith.constant 1.000000e+00 : f32
    %753 = vector.broadcast %cst_245 : f32 to vector<8x96xf32>
    %754 = arith.addf %753, %752 : vector<8x96xf32>
    %755 = arith.divf %753, %754 : vector<8x96xf32>
    %756 = vector.extract_strided_slice %749 {offsets = [0, 96], sizes = [8, 32], strides = [1, 1]} : vector<8x128xf32> to vector<8x32xf32>
    %757 = math.tanh %756 : vector<8x32xf32>
    %758 = vector.extract_strided_slice %755 {offsets = [0, 0], sizes = [8, 32], strides = [1, 1]} : vector<8x96xf32> to vector<8x32xf32>
    %759 = vector.extract_strided_slice %755 {offsets = [0, 32], sizes = [8, 32], strides = [1, 1]} : vector<8x96xf32> to vector<8x32xf32>
    %760 = vector.extract_strided_slice %755 {offsets = [0, 64], sizes = [8, 32], strides = [1, 1]} : vector<8x96xf32> to vector<8x32xf32>
    %761 = arith.mulf %759, %739 : vector<8x32xf32>
    %762 = arith.mulf %758, %757 : vector<8x32xf32>
    %763 = arith.addf %761, %762 : vector<8x32xf32>
    %764 = math.tanh %763 : vector<8x32xf32>
    %765 = arith.mulf %760, %764 : vector<8x32xf32>
    %766 = arith.truncf %765 : vector<8x32xf32> to vector<8x32xbf16>
    %cst_246 = arith.constant dense<0.000000e+00> : vector<8x128xf32>
    %767 = tpu.matmul %766, %599, %cst_246 {dimension_numbers = #tpu.dot_dimension_numbers<[1], [0], [0], [1], [0, 0, 1, 1], [], []>} : vector<8x32xbf16>, vector<32x128xbf16>, vector<8x128xf32> -> vector<8x128xf32>
    %768 = vector.broadcast %600 : vector<1x128xf32> to vector<8x128xf32>
    %769 = arith.addf %767, %768 : vector<8x128xf32>
    %c48_247 = arith.constant 48 : index
    %c0_248 = arith.constant 0 : index
    %770 = vector.load %arg22[%c48_247, %c0_248] : memref<64x128xf32, #tpu.memory_space<vmem>>, vector<8x128xf32>
    tpu.vector_store %arg22[%c48_247, %c0_248], %769 {strides = array<i32>} : memref<64x128xf32, #tpu.memory_space<vmem>>, vector<8x128xf32>,
    %c56_249 = arith.constant 56 : index
    %c0_250 = arith.constant 0 : index
    %771 = vector.load %arg23[%c56_249, %c0_250] : memref<64x128xf32, #tpu.memory_space<vmem>>, vector<8x128xf32>
    %cst_251 = arith.constant dense<0.000000e+00> : vector<8x128xf32>
    %772 = tpu.matmul %766, %598, %cst_251 {dimension_numbers = #tpu.dot_dimension_numbers<[1], [0], [0], [1], [0, 0, 1, 1], [], []>} : vector<8x32xbf16>, vector<32x128xbf16>, vector<8x128xf32> -> vector<8x128xf32>
    %773 = arith.addf %771, %772 : vector<8x128xf32>
    %774 = vector.extract_strided_slice %773 {offsets = [0, 0], sizes = [8, 96], strides = [1, 1]} : vector<8x128xf32> to vector<8x96xf32>
    %775 = arith.negf %774 : vector<8x96xf32>
    %776 = math.exp %775 : vector<8x96xf32>
    %cst_252 = arith.constant 1.000000e+00 : f32
    %777 = vector.broadcast %cst_252 : f32 to vector<8x96xf32>
    %778 = arith.addf %777, %776 : vector<8x96xf32>
    %779 = arith.divf %777, %778 : vector<8x96xf32>
    %780 = vector.extract_strided_slice %773 {offsets = [0, 96], sizes = [8, 32], strides = [1, 1]} : vector<8x128xf32> to vector<8x32xf32>
    %781 = math.tanh %780 : vector<8x32xf32>
    %782 = vector.extract_strided_slice %779 {offsets = [0, 0], sizes = [8, 32], strides = [1, 1]} : vector<8x96xf32> to vector<8x32xf32>
    %783 = vector.extract_strided_slice %779 {offsets = [0, 32], sizes = [8, 32], strides = [1, 1]} : vector<8x96xf32> to vector<8x32xf32>
    %784 = vector.extract_strided_slice %779 {offsets = [0, 64], sizes = [8, 32], strides = [1, 1]} : vector<8x96xf32> to vector<8x32xf32>
    %785 = arith.mulf %783, %763 : vector<8x32xf32>
    %786 = arith.mulf %782, %781 : vector<8x32xf32>
    %787 = arith.addf %785, %786 : vector<8x32xf32>
    %788 = math.tanh %787 : vector<8x32xf32>
    %789 = arith.mulf %784, %788 : vector<8x32xf32>
    %790 = arith.truncf %789 : vector<8x32xf32> to vector<8x32xbf16>
    %cst_253 = arith.constant dense<0.000000e+00> : vector<8x128xf32>
    %791 = tpu.matmul %790, %599, %cst_253 {dimension_numbers = #tpu.dot_dimension_numbers<[1], [0], [0], [1], [0, 0, 1, 1], [], []>} : vector<8x32xbf16>, vector<32x128xbf16>, vector<8x128xf32> -> vector<8x128xf32>
    %792 = vector.broadcast %600 : vector<1x128xf32> to vector<8x128xf32>
    %793 = arith.addf %791, %792 : vector<8x128xf32>
    %c56_254 = arith.constant 56 : index
    %c0_255 = arith.constant 0 : index
    %794 = vector.load %arg22[%c56_254, %c0_255] : memref<64x128xf32, #tpu.memory_space<vmem>>, vector<8x128xf32>
    tpu.vector_store %arg22[%c56_254, %c0_255], %793 {strides = array<i32>} : memref<64x128xf32, #tpu.memory_space<vmem>>, vector<8x128xf32>,
    %c0_256 = arith.constant 0 : index
    %c0_257 = arith.constant 0 : index
    %795 = vector.load %arg14[%c0_256, %c0_257] : memref<32x128xbf16, #tpu.memory_space<vmem>>, vector<32x128xbf16>
    %c0_258 = arith.constant 0 : index
    %c0_259 = arith.constant 0 : index
    %796 = vector.load %arg16[%c0_258, %c0_259] : memref<32x128xbf16, #tpu.memory_space<vmem>>, vector<32x128xbf16>
    %c0_260 = arith.constant 0 : index
    %c0_261 = arith.constant 0 : index
    %797 = vector.load %arg18[%c0_260, %c0_261] : memref<1x128xf32, #tpu.memory_space<vmem>>, vector<1x128xf32>
    %cst_262 = arith.constant 0.000000e+00 : f32
    %798 = vector.broadcast %cst_262 : f32 to vector<8x32xf32>
    %cst_263 = arith.constant 0.000000e+00 : bf16
    %799 = vector.broadcast %cst_263 : bf16 to vector<8x32xbf16>
    %c0_264 = arith.constant 0 : index
    %c0_265 = arith.constant 0 : index
    %800 = vector.load %arg22[%c0_264, %c0_265] : memref<64x128xf32, #tpu.memory_space<vmem>>, vector<8x128xf32>
    %cst_266 = arith.constant dense<0.000000e+00> : vector<8x128xf32>
    %801 = tpu.matmul %799, %795, %cst_266 {dimension_numbers = #tpu.dot_dimension_numbers<[1], [0], [0], [1], [0, 0, 1, 1], [], []>} : vector<8x32xbf16>, vector<32x128xbf16>, vector<8x128xf32> -> vector<8x128xf32>
    %802 = arith.addf %800, %801 : vector<8x128xf32>
    %803 = vector.extract_strided_slice %802 {offsets = [0, 0], sizes = [8, 96], strides = [1, 1]} : vector<8x128xf32> to vector<8x96xf32>
    %804 = arith.negf %803 : vector<8x96xf32>
    %805 = math.exp %804 : vector<8x96xf32>
    %cst_267 = arith.constant 1.000000e+00 : f32
    %806 = vector.broadcast %cst_267 : f32 to vector<8x96xf32>
    %807 = arith.addf %806, %805 : vector<8x96xf32>
    %808 = arith.divf %806, %807 : vector<8x96xf32>
    %809 = vector.extract_strided_slice %802 {offsets = [0, 96], sizes = [8, 32], strides = [1, 1]} : vector<8x128xf32> to vector<8x32xf32>
    %810 = math.tanh %809 : vector<8x32xf32>
    %811 = vector.extract_strided_slice %808 {offsets = [0, 0], sizes = [8, 32], strides = [1, 1]} : vector<8x96xf32> to vector<8x32xf32>
    %812 = vector.extract_strided_slice %808 {offsets = [0, 32], sizes = [8, 32], strides = [1, 1]} : vector<8x96xf32> to vector<8x32xf32>
    %813 = vector.extract_strided_slice %808 {offsets = [0, 64], sizes = [8, 32], strides = [1, 1]} : vector<8x96xf32> to vector<8x32xf32>
    %814 = arith.mulf %812, %798 : vector<8x32xf32>
    %815 = arith.mulf %811, %810 : vector<8x32xf32>
    %816 = arith.addf %814, %815 : vector<8x32xf32>
    %817 = math.tanh %816 : vector<8x32xf32>
    %818 = arith.mulf %813, %817 : vector<8x32xf32>
    %819 = arith.truncf %818 : vector<8x32xf32> to vector<8x32xbf16>
    %cst_268 = arith.constant dense<0.000000e+00> : vector<8x128xf32>
    %820 = tpu.matmul %819, %796, %cst_268 {dimension_numbers = #tpu.dot_dimension_numbers<[1], [0], [0], [1], [0, 0, 1, 1], [], []>} : vector<8x32xbf16>, vector<32x128xbf16>, vector<8x128xf32> -> vector<8x128xf32>
    %821 = vector.broadcast %797 : vector<1x128xf32> to vector<8x128xf32>
    %822 = arith.addf %820, %821 : vector<8x128xf32>
    %c0_269 = arith.constant 0 : index
    %c0_270 = arith.constant 0 : index
    %823 = vector.load %arg23[%c0_269, %c0_270] : memref<64x128xf32, #tpu.memory_space<vmem>>, vector<8x128xf32>
    tpu.vector_store %arg23[%c0_269, %c0_270], %822 {strides = array<i32>} : memref<64x128xf32, #tpu.memory_space<vmem>>, vector<8x128xf32>,
    %c8_271 = arith.constant 8 : index
    %c0_272 = arith.constant 0 : index
    %824 = vector.load %arg22[%c8_271, %c0_272] : memref<64x128xf32, #tpu.memory_space<vmem>>, vector<8x128xf32>
    %cst_273 = arith.constant dense<0.000000e+00> : vector<8x128xf32>
    %825 = tpu.matmul %819, %795, %cst_273 {dimension_numbers = #tpu.dot_dimension_numbers<[1], [0], [0], [1], [0, 0, 1, 1], [], []>} : vector<8x32xbf16>, vector<32x128xbf16>, vector<8x128xf32> -> vector<8x128xf32>
    %826 = arith.addf %824, %825 : vector<8x128xf32>
    %827 = vector.extract_strided_slice %826 {offsets = [0, 0], sizes = [8, 96], strides = [1, 1]} : vector<8x128xf32> to vector<8x96xf32>
    %828 = arith.negf %827 : vector<8x96xf32>
    %829 = math.exp %828 : vector<8x96xf32>
    %cst_274 = arith.constant 1.000000e+00 : f32
    %830 = vector.broadcast %cst_274 : f32 to vector<8x96xf32>
    %831 = arith.addf %830, %829 : vector<8x96xf32>
    %832 = arith.divf %830, %831 : vector<8x96xf32>
    %833 = vector.extract_strided_slice %826 {offsets = [0, 96], sizes = [8, 32], strides = [1, 1]} : vector<8x128xf32> to vector<8x32xf32>
    %834 = math.tanh %833 : vector<8x32xf32>
    %835 = vector.extract_strided_slice %832 {offsets = [0, 0], sizes = [8, 32], strides = [1, 1]} : vector<8x96xf32> to vector<8x32xf32>
    %836 = vector.extract_strided_slice %832 {offsets = [0, 32], sizes = [8, 32], strides = [1, 1]} : vector<8x96xf32> to vector<8x32xf32>
    %837 = vector.extract_strided_slice %832 {offsets = [0, 64], sizes = [8, 32], strides = [1, 1]} : vector<8x96xf32> to vector<8x32xf32>
    %838 = arith.mulf %836, %816 : vector<8x32xf32>
    %839 = arith.mulf %835, %834 : vector<8x32xf32>
    %840 = arith.addf %838, %839 : vector<8x32xf32>
    %841 = math.tanh %840 : vector<8x32xf32>
    %842 = arith.mulf %837, %841 : vector<8x32xf32>
    %843 = arith.truncf %842 : vector<8x32xf32> to vector<8x32xbf16>
    %cst_275 = arith.constant dense<0.000000e+00> : vector<8x128xf32>
    %844 = tpu.matmul %843, %796, %cst_275 {dimension_numbers = #tpu.dot_dimension_numbers<[1], [0], [0], [1], [0, 0, 1, 1], [], []>} : vector<8x32xbf16>, vector<32x128xbf16>, vector<8x128xf32> -> vector<8x128xf32>
    %845 = vector.broadcast %797 : vector<1x128xf32> to vector<8x128xf32>
    %846 = arith.addf %844, %845 : vector<8x128xf32>
    %c8_276 = arith.constant 8 : index
    %c0_277 = arith.constant 0 : index
    %847 = vector.load %arg23[%c8_276, %c0_277] : memref<64x128xf32, #tpu.memory_space<vmem>>, vector<8x128xf32>
    tpu.vector_store %arg23[%c8_276, %c0_277], %846 {strides = array<i32>} : memref<64x128xf32, #tpu.memory_space<vmem>>, vector<8x128xf32>,
    %c16_278 = arith.constant 16 : index
    %c0_279 = arith.constant 0 : index
    %848 = vector.load %arg22[%c16_278, %c0_279] : memref<64x128xf32, #tpu.memory_space<vmem>>, vector<8x128xf32>
    %cst_280 = arith.constant dense<0.000000e+00> : vector<8x128xf32>
    %849 = tpu.matmul %843, %795, %cst_280 {dimension_numbers = #tpu.dot_dimension_numbers<[1], [0], [0], [1], [0, 0, 1, 1], [], []>} : vector<8x32xbf16>, vector<32x128xbf16>, vector<8x128xf32> -> vector<8x128xf32>
    %850 = arith.addf %848, %849 : vector<8x128xf32>
    %851 = vector.extract_strided_slice %850 {offsets = [0, 0], sizes = [8, 96], strides = [1, 1]} : vector<8x128xf32> to vector<8x96xf32>
    %852 = arith.negf %851 : vector<8x96xf32>
    %853 = math.exp %852 : vector<8x96xf32>
    %cst_281 = arith.constant 1.000000e+00 : f32
    %854 = vector.broadcast %cst_281 : f32 to vector<8x96xf32>
    %855 = arith.addf %854, %853 : vector<8x96xf32>
    %856 = arith.divf %854, %855 : vector<8x96xf32>
    %857 = vector.extract_strided_slice %850 {offsets = [0, 96], sizes = [8, 32], strides = [1, 1]} : vector<8x128xf32> to vector<8x32xf32>
    %858 = math.tanh %857 : vector<8x32xf32>
    %859 = vector.extract_strided_slice %856 {offsets = [0, 0], sizes = [8, 32], strides = [1, 1]} : vector<8x96xf32> to vector<8x32xf32>
    %860 = vector.extract_strided_slice %856 {offsets = [0, 32], sizes = [8, 32], strides = [1, 1]} : vector<8x96xf32> to vector<8x32xf32>
    %861 = vector.extract_strided_slice %856 {offsets = [0, 64], sizes = [8, 32], strides = [1, 1]} : vector<8x96xf32> to vector<8x32xf32>
    %862 = arith.mulf %860, %840 : vector<8x32xf32>
    %863 = arith.mulf %859, %858 : vector<8x32xf32>
    %864 = arith.addf %862, %863 : vector<8x32xf32>
    %865 = math.tanh %864 : vector<8x32xf32>
    %866 = arith.mulf %861, %865 : vector<8x32xf32>
    %867 = arith.truncf %866 : vector<8x32xf32> to vector<8x32xbf16>
    %cst_282 = arith.constant dense<0.000000e+00> : vector<8x128xf32>
    %868 = tpu.matmul %867, %796, %cst_282 {dimension_numbers = #tpu.dot_dimension_numbers<[1], [0], [0], [1], [0, 0, 1, 1], [], []>} : vector<8x32xbf16>, vector<32x128xbf16>, vector<8x128xf32> -> vector<8x128xf32>
    %869 = vector.broadcast %797 : vector<1x128xf32> to vector<8x128xf32>
    %870 = arith.addf %868, %869 : vector<8x128xf32>
    %c16_283 = arith.constant 16 : index
    %c0_284 = arith.constant 0 : index
    %871 = vector.load %arg23[%c16_283, %c0_284] : memref<64x128xf32, #tpu.memory_space<vmem>>, vector<8x128xf32>
    tpu.vector_store %arg23[%c16_283, %c0_284], %870 {strides = array<i32>} : memref<64x128xf32, #tpu.memory_space<vmem>>, vector<8x128xf32>,
    %c24_285 = arith.constant 24 : index
    %c0_286 = arith.constant 0 : index
    %872 = vector.load %arg22[%c24_285, %c0_286] : memref<64x128xf32, #tpu.memory_space<vmem>>, vector<8x128xf32>
    %cst_287 = arith.constant dense<0.000000e+00> : vector<8x128xf32>
    %873 = tpu.matmul %867, %795, %cst_287 {dimension_numbers = #tpu.dot_dimension_numbers<[1], [0], [0], [1], [0, 0, 1, 1], [], []>} : vector<8x32xbf16>, vector<32x128xbf16>, vector<8x128xf32> -> vector<8x128xf32>
    %874 = arith.addf %872, %873 : vector<8x128xf32>
    %875 = vector.extract_strided_slice %874 {offsets = [0, 0], sizes = [8, 96], strides = [1, 1]} : vector<8x128xf32> to vector<8x96xf32>
    %876 = arith.negf %875 : vector<8x96xf32>
    %877 = math.exp %876 : vector<8x96xf32>
    %cst_288 = arith.constant 1.000000e+00 : f32
    %878 = vector.broadcast %cst_288 : f32 to vector<8x96xf32>
    %879 = arith.addf %878, %877 : vector<8x96xf32>
    %880 = arith.divf %878, %879 : vector<8x96xf32>
    %881 = vector.extract_strided_slice %874 {offsets = [0, 96], sizes = [8, 32], strides = [1, 1]} : vector<8x128xf32> to vector<8x32xf32>
    %882 = math.tanh %881 : vector<8x32xf32>
    %883 = vector.extract_strided_slice %880 {offsets = [0, 0], sizes = [8, 32], strides = [1, 1]} : vector<8x96xf32> to vector<8x32xf32>
    %884 = vector.extract_strided_slice %880 {offsets = [0, 32], sizes = [8, 32], strides = [1, 1]} : vector<8x96xf32> to vector<8x32xf32>
    %885 = vector.extract_strided_slice %880 {offsets = [0, 64], sizes = [8, 32], strides = [1, 1]} : vector<8x96xf32> to vector<8x32xf32>
    %886 = arith.mulf %884, %864 : vector<8x32xf32>
    %887 = arith.mulf %883, %882 : vector<8x32xf32>
    %888 = arith.addf %886, %887 : vector<8x32xf32>
    %889 = math.tanh %888 : vector<8x32xf32>
    %890 = arith.mulf %885, %889 : vector<8x32xf32>
    %891 = arith.truncf %890 : vector<8x32xf32> to vector<8x32xbf16>
    %cst_289 = arith.constant dense<0.000000e+00> : vector<8x128xf32>
    %892 = tpu.matmul %891, %796, %cst_289 {dimension_numbers = #tpu.dot_dimension_numbers<[1], [0], [0], [1], [0, 0, 1, 1], [], []>} : vector<8x32xbf16>, vector<32x128xbf16>, vector<8x128xf32> -> vector<8x128xf32>
    %893 = vector.broadcast %797 : vector<1x128xf32> to vector<8x128xf32>
    %894 = arith.addf %892, %893 : vector<8x128xf32>
    %c24_290 = arith.constant 24 : index
    %c0_291 = arith.constant 0 : index
    %895 = vector.load %arg23[%c24_290, %c0_291] : memref<64x128xf32, #tpu.memory_space<vmem>>, vector<8x128xf32>
    tpu.vector_store %arg23[%c24_290, %c0_291], %894 {strides = array<i32>} : memref<64x128xf32, #tpu.memory_space<vmem>>, vector<8x128xf32>,
    %c32_292 = arith.constant 32 : index
    %c0_293 = arith.constant 0 : index
    %896 = vector.load %arg22[%c32_292, %c0_293] : memref<64x128xf32, #tpu.memory_space<vmem>>, vector<8x128xf32>
    %cst_294 = arith.constant dense<0.000000e+00> : vector<8x128xf32>
    %897 = tpu.matmul %891, %795, %cst_294 {dimension_numbers = #tpu.dot_dimension_numbers<[1], [0], [0], [1], [0, 0, 1, 1], [], []>} : vector<8x32xbf16>, vector<32x128xbf16>, vector<8x128xf32> -> vector<8x128xf32>
    %898 = arith.addf %896, %897 : vector<8x128xf32>
    %899 = vector.extract_strided_slice %898 {offsets = [0, 0], sizes = [8, 96], strides = [1, 1]} : vector<8x128xf32> to vector<8x96xf32>
    %900 = arith.negf %899 : vector<8x96xf32>
    %901 = math.exp %900 : vector<8x96xf32>
    %cst_295 = arith.constant 1.000000e+00 : f32
    %902 = vector.broadcast %cst_295 : f32 to vector<8x96xf32>
    %903 = arith.addf %902, %901 : vector<8x96xf32>
    %904 = arith.divf %902, %903 : vector<8x96xf32>
    %905 = vector.extract_strided_slice %898 {offsets = [0, 96], sizes = [8, 32], strides = [1, 1]} : vector<8x128xf32> to vector<8x32xf32>
    %906 = math.tanh %905 : vector<8x32xf32>
    %907 = vector.extract_strided_slice %904 {offsets = [0, 0], sizes = [8, 32], strides = [1, 1]} : vector<8x96xf32> to vector<8x32xf32>
    %908 = vector.extract_strided_slice %904 {offsets = [0, 32], sizes = [8, 32], strides = [1, 1]} : vector<8x96xf32> to vector<8x32xf32>
    %909 = vector.extract_strided_slice %904 {offsets = [0, 64], sizes = [8, 32], strides = [1, 1]} : vector<8x96xf32> to vector<8x32xf32>
    %910 = arith.mulf %908, %888 : vector<8x32xf32>
    %911 = arith.mulf %907, %906 : vector<8x32xf32>
    %912 = arith.addf %910, %911 : vector<8x32xf32>
    %913 = math.tanh %912 : vector<8x32xf32>
    %914 = arith.mulf %909, %913 : vector<8x32xf32>
    %915 = arith.truncf %914 : vector<8x32xf32> to vector<8x32xbf16>
    %cst_296 = arith.constant dense<0.000000e+00> : vector<8x128xf32>
    %916 = tpu.matmul %915, %796, %cst_296 {dimension_numbers = #tpu.dot_dimension_numbers<[1], [0], [0], [1], [0, 0, 1, 1], [], []>} : vector<8x32xbf16>, vector<32x128xbf16>, vector<8x128xf32> -> vector<8x128xf32>
    %917 = vector.broadcast %797 : vector<1x128xf32> to vector<8x128xf32>
    %918 = arith.addf %916, %917 : vector<8x128xf32>
    %c32_297 = arith.constant 32 : index
    %c0_298 = arith.constant 0 : index
    %919 = vector.load %arg23[%c32_297, %c0_298] : memref<64x128xf32, #tpu.memory_space<vmem>>, vector<8x128xf32>
    tpu.vector_store %arg23[%c32_297, %c0_298], %918 {strides = array<i32>} : memref<64x128xf32, #tpu.memory_space<vmem>>, vector<8x128xf32>,
    %c40_299 = arith.constant 40 : index
    %c0_300 = arith.constant 0 : index
    %920 = vector.load %arg22[%c40_299, %c0_300] : memref<64x128xf32, #tpu.memory_space<vmem>>, vector<8x128xf32>
    %cst_301 = arith.constant dense<0.000000e+00> : vector<8x128xf32>
    %921 = tpu.matmul %915, %795, %cst_301 {dimension_numbers = #tpu.dot_dimension_numbers<[1], [0], [0], [1], [0, 0, 1, 1], [], []>} : vector<8x32xbf16>, vector<32x128xbf16>, vector<8x128xf32> -> vector<8x128xf32>
    %922 = arith.addf %920, %921 : vector<8x128xf32>
    %923 = vector.extract_strided_slice %922 {offsets = [0, 0], sizes = [8, 96], strides = [1, 1]} : vector<8x128xf32> to vector<8x96xf32>
    %924 = arith.negf %923 : vector<8x96xf32>
    %925 = math.exp %924 : vector<8x96xf32>
    %cst_302 = arith.constant 1.000000e+00 : f32
    %926 = vector.broadcast %cst_302 : f32 to vector<8x96xf32>
    %927 = arith.addf %926, %925 : vector<8x96xf32>
    %928 = arith.divf %926, %927 : vector<8x96xf32>
    %929 = vector.extract_strided_slice %922 {offsets = [0, 96], sizes = [8, 32], strides = [1, 1]} : vector<8x128xf32> to vector<8x32xf32>
    %930 = math.tanh %929 : vector<8x32xf32>
    %931 = vector.extract_strided_slice %928 {offsets = [0, 0], sizes = [8, 32], strides = [1, 1]} : vector<8x96xf32> to vector<8x32xf32>
    %932 = vector.extract_strided_slice %928 {offsets = [0, 32], sizes = [8, 32], strides = [1, 1]} : vector<8x96xf32> to vector<8x32xf32>
    %933 = vector.extract_strided_slice %928 {offsets = [0, 64], sizes = [8, 32], strides = [1, 1]} : vector<8x96xf32> to vector<8x32xf32>
    %934 = arith.mulf %932, %912 : vector<8x32xf32>
    %935 = arith.mulf %931, %930 : vector<8x32xf32>
    %936 = arith.addf %934, %935 : vector<8x32xf32>
    %937 = math.tanh %936 : vector<8x32xf32>
    %938 = arith.mulf %933, %937 : vector<8x32xf32>
    %939 = arith.truncf %938 : vector<8x32xf32> to vector<8x32xbf16>
    %cst_303 = arith.constant dense<0.000000e+00> : vector<8x128xf32>
    %940 = tpu.matmul %939, %796, %cst_303 {dimension_numbers = #tpu.dot_dimension_numbers<[1], [0], [0], [1], [0, 0, 1, 1], [], []>} : vector<8x32xbf16>, vector<32x128xbf16>, vector<8x128xf32> -> vector<8x128xf32>
    %941 = vector.broadcast %797 : vector<1x128xf32> to vector<8x128xf32>
    %942 = arith.addf %940, %941 : vector<8x128xf32>
    %c40_304 = arith.constant 40 : index
    %c0_305 = arith.constant 0 : index
    %943 = vector.load %arg23[%c40_304, %c0_305] : memref<64x128xf32, #tpu.memory_space<vmem>>, vector<8x128xf32>
    tpu.vector_store %arg23[%c40_304, %c0_305], %942 {strides = array<i32>} : memref<64x128xf32, #tpu.memory_space<vmem>>, vector<8x128xf32>,
    %c48_306 = arith.constant 48 : index
    %c0_307 = arith.constant 0 : index
    %944 = vector.load %arg22[%c48_306, %c0_307] : memref<64x128xf32, #tpu.memory_space<vmem>>, vector<8x128xf32>
    %cst_308 = arith.constant dense<0.000000e+00> : vector<8x128xf32>
    %945 = tpu.matmul %939, %795, %cst_308 {dimension_numbers = #tpu.dot_dimension_numbers<[1], [0], [0], [1], [0, 0, 1, 1], [], []>} : vector<8x32xbf16>, vector<32x128xbf16>, vector<8x128xf32> -> vector<8x128xf32>
    %946 = arith.addf %944, %945 : vector<8x128xf32>
    %947 = vector.extract_strided_slice %946 {offsets = [0, 0], sizes = [8, 96], strides = [1, 1]} : vector<8x128xf32> to vector<8x96xf32>
    %948 = arith.negf %947 : vector<8x96xf32>
    %949 = math.exp %948 : vector<8x96xf32>
    %cst_309 = arith.constant 1.000000e+00 : f32
    %950 = vector.broadcast %cst_309 : f32 to vector<8x96xf32>
    %951 = arith.addf %950, %949 : vector<8x96xf32>
    %952 = arith.divf %950, %951 : vector<8x96xf32>
    %953 = vector.extract_strided_slice %946 {offsets = [0, 96], sizes = [8, 32], strides = [1, 1]} : vector<8x128xf32> to vector<8x32xf32>
    %954 = math.tanh %953 : vector<8x32xf32>
    %955 = vector.extract_strided_slice %952 {offsets = [0, 0], sizes = [8, 32], strides = [1, 1]} : vector<8x96xf32> to vector<8x32xf32>
    %956 = vector.extract_strided_slice %952 {offsets = [0, 32], sizes = [8, 32], strides = [1, 1]} : vector<8x96xf32> to vector<8x32xf32>
    %957 = vector.extract_strided_slice %952 {offsets = [0, 64], sizes = [8, 32], strides = [1, 1]} : vector<8x96xf32> to vector<8x32xf32>
    %958 = arith.mulf %956, %936 : vector<8x32xf32>
    %959 = arith.mulf %955, %954 : vector<8x32xf32>
    %960 = arith.addf %958, %959 : vector<8x32xf32>
    %961 = math.tanh %960 : vector<8x32xf32>
    %962 = arith.mulf %957, %961 : vector<8x32xf32>
    %963 = arith.truncf %962 : vector<8x32xf32> to vector<8x32xbf16>
    %cst_310 = arith.constant dense<0.000000e+00> : vector<8x128xf32>
    %964 = tpu.matmul %963, %796, %cst_310 {dimension_numbers = #tpu.dot_dimension_numbers<[1], [0], [0], [1], [0, 0, 1, 1], [], []>} : vector<8x32xbf16>, vector<32x128xbf16>, vector<8x128xf32> -> vector<8x128xf32>
    %965 = vector.broadcast %797 : vector<1x128xf32> to vector<8x128xf32>
    %966 = arith.addf %964, %965 : vector<8x128xf32>
    %c48_311 = arith.constant 48 : index
    %c0_312 = arith.constant 0 : index
    %967 = vector.load %arg23[%c48_311, %c0_312] : memref<64x128xf32, #tpu.memory_space<vmem>>, vector<8x128xf32>
    tpu.vector_store %arg23[%c48_311, %c0_312], %966 {strides = array<i32>} : memref<64x128xf32, #tpu.memory_space<vmem>>, vector<8x128xf32>,
    %c56_313 = arith.constant 56 : index
    %c0_314 = arith.constant 0 : index
    %968 = vector.load %arg22[%c56_313, %c0_314] : memref<64x128xf32, #tpu.memory_space<vmem>>, vector<8x128xf32>
    %cst_315 = arith.constant dense<0.000000e+00> : vector<8x128xf32>
    %969 = tpu.matmul %963, %795, %cst_315 {dimension_numbers = #tpu.dot_dimension_numbers<[1], [0], [0], [1], [0, 0, 1, 1], [], []>} : vector<8x32xbf16>, vector<32x128xbf16>, vector<8x128xf32> -> vector<8x128xf32>
    %970 = arith.addf %968, %969 : vector<8x128xf32>
    %971 = vector.extract_strided_slice %970 {offsets = [0, 0], sizes = [8, 96], strides = [1, 1]} : vector<8x128xf32> to vector<8x96xf32>
    %972 = arith.negf %971 : vector<8x96xf32>
    %973 = math.exp %972 : vector<8x96xf32>
    %cst_316 = arith.constant 1.000000e+00 : f32
    %974 = vector.broadcast %cst_316 : f32 to vector<8x96xf32>
    %975 = arith.addf %974, %973 : vector<8x96xf32>
    %976 = arith.divf %974, %975 : vector<8x96xf32>
    %977 = vector.extract_strided_slice %970 {offsets = [0, 96], sizes = [8, 32], strides = [1, 1]} : vector<8x128xf32> to vector<8x32xf32>
    %978 = math.tanh %977 : vector<8x32xf32>
    %979 = vector.extract_strided_slice %976 {offsets = [0, 0], sizes = [8, 32], strides = [1, 1]} : vector<8x96xf32> to vector<8x32xf32>
    %980 = vector.extract_strided_slice %976 {offsets = [0, 32], sizes = [8, 32], strides = [1, 1]} : vector<8x96xf32> to vector<8x32xf32>
    %981 = vector.extract_strided_slice %976 {offsets = [0, 64], sizes = [8, 32], strides = [1, 1]} : vector<8x96xf32> to vector<8x32xf32>
    %982 = arith.mulf %980, %960 : vector<8x32xf32>
    %983 = arith.mulf %979, %978 : vector<8x32xf32>
    %984 = arith.addf %982, %983 : vector<8x32xf32>
    %985 = math.tanh %984 : vector<8x32xf32>
    %986 = arith.mulf %981, %985 : vector<8x32xf32>
    %987 = arith.truncf %986 : vector<8x32xf32> to vector<8x32xbf16>
    %cst_317 = arith.constant dense<0.000000e+00> : vector<8x128xf32>
    %988 = tpu.matmul %987, %796, %cst_317 {dimension_numbers = #tpu.dot_dimension_numbers<[1], [0], [0], [1], [0, 0, 1, 1], [], []>} : vector<8x32xbf16>, vector<32x128xbf16>, vector<8x128xf32> -> vector<8x128xf32>
    %989 = vector.broadcast %797 : vector<1x128xf32> to vector<8x128xf32>
    %990 = arith.addf %988, %989 : vector<8x128xf32>
    %c56_318 = arith.constant 56 : index
    %c0_319 = arith.constant 0 : index
    %991 = vector.load %arg23[%c56_318, %c0_319] : memref<64x128xf32, #tpu.memory_space<vmem>>, vector<8x128xf32>
    tpu.vector_store %arg23[%c56_318, %c0_319], %990 {strides = array<i32>} : memref<64x128xf32, #tpu.memory_space<vmem>>, vector<8x128xf32>,
    %c0_320 = arith.constant 0 : index
    %c0_321 = arith.constant 0 : index
    %992 = vector.load %arg17[%c0_320, %c0_321] : memref<32x128xbf16, #tpu.memory_space<vmem>>, vector<32x128xbf16>
    %cst_322 = arith.constant 0.000000e+00 : f32
    %993 = vector.broadcast %cst_322 : f32 to vector<8x32xf32>
    %cst_323 = arith.constant 0.000000e+00 : bf16
    %994 = vector.broadcast %cst_323 : bf16 to vector<8x32xbf16>
    %c0_324 = arith.constant 0 : index
    %c0_325 = arith.constant 0 : index
    %995 = vector.load %arg23[%c0_324, %c0_325] : memref<64x128xf32, #tpu.memory_space<vmem>>, vector<8x128xf32>
    %cst_326 = arith.constant dense<0.000000e+00> : vector<8x128xf32>
    %996 = tpu.matmul %994, %992, %cst_326 {dimension_numbers = #tpu.dot_dimension_numbers<[1], [0], [0], [1], [0, 0, 1, 1], [], []>} : vector<8x32xbf16>, vector<32x128xbf16>, vector<8x128xf32> -> vector<8x128xf32>
    %997 = arith.addf %995, %996 : vector<8x128xf32>
    %998 = vector.extract_strided_slice %997 {offsets = [0, 0], sizes = [8, 96], strides = [1, 1]} : vector<8x128xf32> to vector<8x96xf32>
    %999 = arith.negf %998 : vector<8x96xf32>
    %1000 = math.exp %999 : vector<8x96xf32>
    %cst_327 = arith.constant 1.000000e+00 : f32
    %1001 = vector.broadcast %cst_327 : f32 to vector<8x96xf32>
    %1002 = arith.addf %1001, %1000 : vector<8x96xf32>
    %1003 = arith.divf %1001, %1002 : vector<8x96xf32>
    %1004 = vector.extract_strided_slice %997 {offsets = [0, 96], sizes = [8, 32], strides = [1, 1]} : vector<8x128xf32> to vector<8x32xf32>
    %1005 = math.tanh %1004 : vector<8x32xf32>
    %1006 = vector.extract_strided_slice %1003 {offsets = [0, 0], sizes = [8, 32], strides = [1, 1]} : vector<8x96xf32> to vector<8x32xf32>
    %1007 = vector.extract_strided_slice %1003 {offsets = [0, 32], sizes = [8, 32], strides = [1, 1]} : vector<8x96xf32> to vector<8x32xf32>
    %1008 = vector.extract_strided_slice %1003 {offsets = [0, 64], sizes = [8, 32], strides = [1, 1]} : vector<8x96xf32> to vector<8x32xf32>
    %1009 = arith.mulf %1007, %993 : vector<8x32xf32>
    %1010 = arith.mulf %1006, %1005 : vector<8x32xf32>
    %1011 = arith.addf %1009, %1010 : vector<8x32xf32>
    %1012 = math.tanh %1011 : vector<8x32xf32>
    %1013 = arith.mulf %1008, %1012 : vector<8x32xf32>
    %1014 = arith.truncf %1013 : vector<8x32xf32> to vector<8x32xbf16>
    %c8_328 = arith.constant 8 : index
    %c0_329 = arith.constant 0 : index
    %1015 = vector.load %arg23[%c8_328, %c0_329] : memref<64x128xf32, #tpu.memory_space<vmem>>, vector<8x128xf32>
    %cst_330 = arith.constant dense<0.000000e+00> : vector<8x128xf32>
    %1016 = tpu.matmul %1014, %992, %cst_330 {dimension_numbers = #tpu.dot_dimension_numbers<[1], [0], [0], [1], [0, 0, 1, 1], [], []>} : vector<8x32xbf16>, vector<32x128xbf16>, vector<8x128xf32> -> vector<8x128xf32>
    %1017 = arith.addf %1015, %1016 : vector<8x128xf32>
    %1018 = vector.extract_strided_slice %1017 {offsets = [0, 0], sizes = [8, 96], strides = [1, 1]} : vector<8x128xf32> to vector<8x96xf32>
    %1019 = arith.negf %1018 : vector<8x96xf32>
    %1020 = math.exp %1019 : vector<8x96xf32>
    %cst_331 = arith.constant 1.000000e+00 : f32
    %1021 = vector.broadcast %cst_331 : f32 to vector<8x96xf32>
    %1022 = arith.addf %1021, %1020 : vector<8x96xf32>
    %1023 = arith.divf %1021, %1022 : vector<8x96xf32>
    %1024 = vector.extract_strided_slice %1017 {offsets = [0, 96], sizes = [8, 32], strides = [1, 1]} : vector<8x128xf32> to vector<8x32xf32>
    %1025 = math.tanh %1024 : vector<8x32xf32>
    %1026 = vector.extract_strided_slice %1023 {offsets = [0, 0], sizes = [8, 32], strides = [1, 1]} : vector<8x96xf32> to vector<8x32xf32>
    %1027 = vector.extract_strided_slice %1023 {offsets = [0, 32], sizes = [8, 32], strides = [1, 1]} : vector<8x96xf32> to vector<8x32xf32>
    %1028 = vector.extract_strided_slice %1023 {offsets = [0, 64], sizes = [8, 32], strides = [1, 1]} : vector<8x96xf32> to vector<8x32xf32>
    %1029 = arith.mulf %1027, %1011 : vector<8x32xf32>
    %1030 = arith.mulf %1026, %1025 : vector<8x32xf32>
    %1031 = arith.addf %1029, %1030 : vector<8x32xf32>
    %1032 = math.tanh %1031 : vector<8x32xf32>
    %1033 = arith.mulf %1028, %1032 : vector<8x32xf32>
    %1034 = arith.truncf %1033 : vector<8x32xf32> to vector<8x32xbf16>
    %c16_332 = arith.constant 16 : index
    %c0_333 = arith.constant 0 : index
    %1035 = vector.load %arg23[%c16_332, %c0_333] : memref<64x128xf32, #tpu.memory_space<vmem>>, vector<8x128xf32>
    %cst_334 = arith.constant dense<0.000000e+00> : vector<8x128xf32>
    %1036 = tpu.matmul %1034, %992, %cst_334 {dimension_numbers = #tpu.dot_dimension_numbers<[1], [0], [0], [1], [0, 0, 1, 1], [], []>} : vector<8x32xbf16>, vector<32x128xbf16>, vector<8x128xf32> -> vector<8x128xf32>
    %1037 = arith.addf %1035, %1036 : vector<8x128xf32>
    %1038 = vector.extract_strided_slice %1037 {offsets = [0, 0], sizes = [8, 96], strides = [1, 1]} : vector<8x128xf32> to vector<8x96xf32>
    %1039 = arith.negf %1038 : vector<8x96xf32>
    %1040 = math.exp %1039 : vector<8x96xf32>
    %cst_335 = arith.constant 1.000000e+00 : f32
    %1041 = vector.broadcast %cst_335 : f32 to vector<8x96xf32>
    %1042 = arith.addf %1041, %1040 : vector<8x96xf32>
    %1043 = arith.divf %1041, %1042 : vector<8x96xf32>
    %1044 = vector.extract_strided_slice %1037 {offsets = [0, 96], sizes = [8, 32], strides = [1, 1]} : vector<8x128xf32> to vector<8x32xf32>
    %1045 = math.tanh %1044 : vector<8x32xf32>
    %1046 = vector.extract_strided_slice %1043 {offsets = [0, 0], sizes = [8, 32], strides = [1, 1]} : vector<8x96xf32> to vector<8x32xf32>
    %1047 = vector.extract_strided_slice %1043 {offsets = [0, 32], sizes = [8, 32], strides = [1, 1]} : vector<8x96xf32> to vector<8x32xf32>
    %1048 = vector.extract_strided_slice %1043 {offsets = [0, 64], sizes = [8, 32], strides = [1, 1]} : vector<8x96xf32> to vector<8x32xf32>
    %1049 = arith.mulf %1047, %1031 : vector<8x32xf32>
    %1050 = arith.mulf %1046, %1045 : vector<8x32xf32>
    %1051 = arith.addf %1049, %1050 : vector<8x32xf32>
    %1052 = math.tanh %1051 : vector<8x32xf32>
    %1053 = arith.mulf %1048, %1052 : vector<8x32xf32>
    %1054 = arith.truncf %1053 : vector<8x32xf32> to vector<8x32xbf16>
    %c24_336 = arith.constant 24 : index
    %c0_337 = arith.constant 0 : index
    %1055 = vector.load %arg23[%c24_336, %c0_337] : memref<64x128xf32, #tpu.memory_space<vmem>>, vector<8x128xf32>
    %cst_338 = arith.constant dense<0.000000e+00> : vector<8x128xf32>
    %1056 = tpu.matmul %1054, %992, %cst_338 {dimension_numbers = #tpu.dot_dimension_numbers<[1], [0], [0], [1], [0, 0, 1, 1], [], []>} : vector<8x32xbf16>, vector<32x128xbf16>, vector<8x128xf32> -> vector<8x128xf32>
    %1057 = arith.addf %1055, %1056 : vector<8x128xf32>
    %1058 = vector.extract_strided_slice %1057 {offsets = [0, 0], sizes = [8, 96], strides = [1, 1]} : vector<8x128xf32> to vector<8x96xf32>
    %1059 = arith.negf %1058 : vector<8x96xf32>
    %1060 = math.exp %1059 : vector<8x96xf32>
    %cst_339 = arith.constant 1.000000e+00 : f32
    %1061 = vector.broadcast %cst_339 : f32 to vector<8x96xf32>
    %1062 = arith.addf %1061, %1060 : vector<8x96xf32>
    %1063 = arith.divf %1061, %1062 : vector<8x96xf32>
    %1064 = vector.extract_strided_slice %1057 {offsets = [0, 96], sizes = [8, 32], strides = [1, 1]} : vector<8x128xf32> to vector<8x32xf32>
    %1065 = math.tanh %1064 : vector<8x32xf32>
    %1066 = vector.extract_strided_slice %1063 {offsets = [0, 0], sizes = [8, 32], strides = [1, 1]} : vector<8x96xf32> to vector<8x32xf32>
    %1067 = vector.extract_strided_slice %1063 {offsets = [0, 32], sizes = [8, 32], strides = [1, 1]} : vector<8x96xf32> to vector<8x32xf32>
    %1068 = vector.extract_strided_slice %1063 {offsets = [0, 64], sizes = [8, 32], strides = [1, 1]} : vector<8x96xf32> to vector<8x32xf32>
    %1069 = arith.mulf %1067, %1051 : vector<8x32xf32>
    %1070 = arith.mulf %1066, %1065 : vector<8x32xf32>
    %1071 = arith.addf %1069, %1070 : vector<8x32xf32>
    %1072 = math.tanh %1071 : vector<8x32xf32>
    %1073 = arith.mulf %1068, %1072 : vector<8x32xf32>
    %1074 = arith.truncf %1073 : vector<8x32xf32> to vector<8x32xbf16>
    %c32_340 = arith.constant 32 : index
    %c0_341 = arith.constant 0 : index
    %1075 = vector.load %arg23[%c32_340, %c0_341] : memref<64x128xf32, #tpu.memory_space<vmem>>, vector<8x128xf32>
    %cst_342 = arith.constant dense<0.000000e+00> : vector<8x128xf32>
    %1076 = tpu.matmul %1074, %992, %cst_342 {dimension_numbers = #tpu.dot_dimension_numbers<[1], [0], [0], [1], [0, 0, 1, 1], [], []>} : vector<8x32xbf16>, vector<32x128xbf16>, vector<8x128xf32> -> vector<8x128xf32>
    %1077 = arith.addf %1075, %1076 : vector<8x128xf32>
    %1078 = vector.extract_strided_slice %1077 {offsets = [0, 0], sizes = [8, 96], strides = [1, 1]} : vector<8x128xf32> to vector<8x96xf32>
    %1079 = arith.negf %1078 : vector<8x96xf32>
    %1080 = math.exp %1079 : vector<8x96xf32>
    %cst_343 = arith.constant 1.000000e+00 : f32
    %1081 = vector.broadcast %cst_343 : f32 to vector<8x96xf32>
    %1082 = arith.addf %1081, %1080 : vector<8x96xf32>
    %1083 = arith.divf %1081, %1082 : vector<8x96xf32>
    %1084 = vector.extract_strided_slice %1077 {offsets = [0, 96], sizes = [8, 32], strides = [1, 1]} : vector<8x128xf32> to vector<8x32xf32>
    %1085 = math.tanh %1084 : vector<8x32xf32>
    %1086 = vector.extract_strided_slice %1083 {offsets = [0, 0], sizes = [8, 32], strides = [1, 1]} : vector<8x96xf32> to vector<8x32xf32>
    %1087 = vector.extract_strided_slice %1083 {offsets = [0, 32], sizes = [8, 32], strides = [1, 1]} : vector<8x96xf32> to vector<8x32xf32>
    %1088 = vector.extract_strided_slice %1083 {offsets = [0, 64], sizes = [8, 32], strides = [1, 1]} : vector<8x96xf32> to vector<8x32xf32>
    %1089 = arith.mulf %1087, %1071 : vector<8x32xf32>
    %1090 = arith.mulf %1086, %1085 : vector<8x32xf32>
    %1091 = arith.addf %1089, %1090 : vector<8x32xf32>
    %1092 = math.tanh %1091 : vector<8x32xf32>
    %1093 = arith.mulf %1088, %1092 : vector<8x32xf32>
    %1094 = arith.truncf %1093 : vector<8x32xf32> to vector<8x32xbf16>
    %c40_344 = arith.constant 40 : index
    %c0_345 = arith.constant 0 : index
    %1095 = vector.load %arg23[%c40_344, %c0_345] : memref<64x128xf32, #tpu.memory_space<vmem>>, vector<8x128xf32>
    %cst_346 = arith.constant dense<0.000000e+00> : vector<8x128xf32>
    %1096 = tpu.matmul %1094, %992, %cst_346 {dimension_numbers = #tpu.dot_dimension_numbers<[1], [0], [0], [1], [0, 0, 1, 1], [], []>} : vector<8x32xbf16>, vector<32x128xbf16>, vector<8x128xf32> -> vector<8x128xf32>
    %1097 = arith.addf %1095, %1096 : vector<8x128xf32>
    %1098 = vector.extract_strided_slice %1097 {offsets = [0, 0], sizes = [8, 96], strides = [1, 1]} : vector<8x128xf32> to vector<8x96xf32>
    %1099 = arith.negf %1098 : vector<8x96xf32>
    %1100 = math.exp %1099 : vector<8x96xf32>
    %cst_347 = arith.constant 1.000000e+00 : f32
    %1101 = vector.broadcast %cst_347 : f32 to vector<8x96xf32>
    %1102 = arith.addf %1101, %1100 : vector<8x96xf32>
    %1103 = arith.divf %1101, %1102 : vector<8x96xf32>
    %1104 = vector.extract_strided_slice %1097 {offsets = [0, 96], sizes = [8, 32], strides = [1, 1]} : vector<8x128xf32> to vector<8x32xf32>
    %1105 = math.tanh %1104 : vector<8x32xf32>
    %1106 = vector.extract_strided_slice %1103 {offsets = [0, 0], sizes = [8, 32], strides = [1, 1]} : vector<8x96xf32> to vector<8x32xf32>
    %1107 = vector.extract_strided_slice %1103 {offsets = [0, 32], sizes = [8, 32], strides = [1, 1]} : vector<8x96xf32> to vector<8x32xf32>
    %1108 = vector.extract_strided_slice %1103 {offsets = [0, 64], sizes = [8, 32], strides = [1, 1]} : vector<8x96xf32> to vector<8x32xf32>
    %1109 = arith.mulf %1107, %1091 : vector<8x32xf32>
    %1110 = arith.mulf %1106, %1105 : vector<8x32xf32>
    %1111 = arith.addf %1109, %1110 : vector<8x32xf32>
    %1112 = math.tanh %1111 : vector<8x32xf32>
    %1113 = arith.mulf %1108, %1112 : vector<8x32xf32>
    %1114 = arith.truncf %1113 : vector<8x32xf32> to vector<8x32xbf16>
    %c48_348 = arith.constant 48 : index
    %c0_349 = arith.constant 0 : index
    %1115 = vector.load %arg23[%c48_348, %c0_349] : memref<64x128xf32, #tpu.memory_space<vmem>>, vector<8x128xf32>
    %cst_350 = arith.constant dense<0.000000e+00> : vector<8x128xf32>
    %1116 = tpu.matmul %1114, %992, %cst_350 {dimension_numbers = #tpu.dot_dimension_numbers<[1], [0], [0], [1], [0, 0, 1, 1], [], []>} : vector<8x32xbf16>, vector<32x128xbf16>, vector<8x128xf32> -> vector<8x128xf32>
    %1117 = arith.addf %1115, %1116 : vector<8x128xf32>
    %1118 = vector.extract_strided_slice %1117 {offsets = [0, 0], sizes = [8, 96], strides = [1, 1]} : vector<8x128xf32> to vector<8x96xf32>
    %1119 = arith.negf %1118 : vector<8x96xf32>
    %1120 = math.exp %1119 : vector<8x96xf32>
    %cst_351 = arith.constant 1.000000e+00 : f32
    %1121 = vector.broadcast %cst_351 : f32 to vector<8x96xf32>
    %1122 = arith.addf %1121, %1120 : vector<8x96xf32>
    %1123 = arith.divf %1121, %1122 : vector<8x96xf32>
    %1124 = vector.extract_strided_slice %1117 {offsets = [0, 96], sizes = [8, 32], strides = [1, 1]} : vector<8x128xf32> to vector<8x32xf32>
    %1125 = math.tanh %1124 : vector<8x32xf32>
    %1126 = vector.extract_strided_slice %1123 {offsets = [0, 0], sizes = [8, 32], strides = [1, 1]} : vector<8x96xf32> to vector<8x32xf32>
    %1127 = vector.extract_strided_slice %1123 {offsets = [0, 32], sizes = [8, 32], strides = [1, 1]} : vector<8x96xf32> to vector<8x32xf32>
    %1128 = vector.extract_strided_slice %1123 {offsets = [0, 64], sizes = [8, 32], strides = [1, 1]} : vector<8x96xf32> to vector<8x32xf32>
    %1129 = arith.mulf %1127, %1111 : vector<8x32xf32>
    %1130 = arith.mulf %1126, %1125 : vector<8x32xf32>
    %1131 = arith.addf %1129, %1130 : vector<8x32xf32>
    %1132 = math.tanh %1131 : vector<8x32xf32>
    %1133 = arith.mulf %1128, %1132 : vector<8x32xf32>
    %1134 = arith.truncf %1133 : vector<8x32xf32> to vector<8x32xbf16>
    %c56_352 = arith.constant 56 : index
    %c0_353 = arith.constant 0 : index
    %1135 = vector.load %arg23[%c56_352, %c0_353] : memref<64x128xf32, #tpu.memory_space<vmem>>, vector<8x128xf32>
    %cst_354 = arith.constant dense<0.000000e+00> : vector<8x128xf32>
    %1136 = tpu.matmul %1134, %992, %cst_354 {dimension_numbers = #tpu.dot_dimension_numbers<[1], [0], [0], [1], [0, 0, 1, 1], [], []>} : vector<8x32xbf16>, vector<32x128xbf16>, vector<8x128xf32> -> vector<8x128xf32>
    %1137 = arith.addf %1135, %1136 : vector<8x128xf32>
    %1138 = vector.extract_strided_slice %1137 {offsets = [0, 0], sizes = [8, 96], strides = [1, 1]} : vector<8x128xf32> to vector<8x96xf32>
    %1139 = arith.negf %1138 : vector<8x96xf32>
    %1140 = math.exp %1139 : vector<8x96xf32>
    %cst_355 = arith.constant 1.000000e+00 : f32
    %1141 = vector.broadcast %cst_355 : f32 to vector<8x96xf32>
    %1142 = arith.addf %1141, %1140 : vector<8x96xf32>
    %1143 = arith.divf %1141, %1142 : vector<8x96xf32>
    %1144 = vector.extract_strided_slice %1137 {offsets = [0, 96], sizes = [8, 32], strides = [1, 1]} : vector<8x128xf32> to vector<8x32xf32>
    %1145 = math.tanh %1144 : vector<8x32xf32>
    %1146 = vector.extract_strided_slice %1143 {offsets = [0, 0], sizes = [8, 32], strides = [1, 1]} : vector<8x96xf32> to vector<8x32xf32>
    %1147 = vector.extract_strided_slice %1143 {offsets = [0, 32], sizes = [8, 32], strides = [1, 1]} : vector<8x96xf32> to vector<8x32xf32>
    %1148 = vector.extract_strided_slice %1143 {offsets = [0, 64], sizes = [8, 32], strides = [1, 1]} : vector<8x96xf32> to vector<8x32xf32>
    %1149 = arith.mulf %1147, %1131 : vector<8x32xf32>
    %1150 = arith.mulf %1146, %1145 : vector<8x32xf32>
    %1151 = arith.addf %1149, %1150 : vector<8x32xf32>
    %1152 = math.tanh %1151 : vector<8x32xf32>
    %1153 = arith.mulf %1148, %1152 : vector<8x32xf32>
    %1154 = arith.truncf %1153 : vector<8x32xf32> to vector<8x32xbf16>
    %c0_356 = arith.constant 0 : index
    %c0_357 = arith.constant 0 : index
    %1155 = vector.load %arg19[%c0_356, %c0_357] : memref<32x128xbf16, #tpu.memory_space<vmem>>, vector<32x128xbf16>
    %cst_358 = arith.constant dense<0.000000e+00> : vector<8x128xf32>
    %1156 = tpu.matmul %1154, %1155, %cst_358 {dimension_numbers = #tpu.dot_dimension_numbers<[1], [0], [0], [1], [0, 0, 1, 1], [], []>} : vector<8x32xbf16>, vector<32x128xbf16>, vector<8x128xf32> -> vector<8x128xf32>
    %c0_359 = arith.constant 0 : index
    %c0_360 = arith.constant 0 : index
    %1157 = vector.load %arg20[%c0_359, %c0_360] : memref<1x128xf32, #tpu.memory_space<vmem>>, vector<1x128xf32>
    %1158 = vector.broadcast %1157 : vector<1x128xf32> to vector<8x128xf32>
    %1159 = arith.addf %1156, %1158 : vector<8x128xf32>
    %c0_361 = arith.constant 0 : index
    %c0_362 = arith.constant 0 : index
    %1160 = vector.load %arg21[%c0_361, %c0_362] : memref<8x128xf32, #tpu.memory_space<vmem>>, vector<8x128xf32>
    tpu.vector_store %arg21[%c0_361, %c0_362], %1159 {strides = array<i32>} : memref<8x128xf32, #tpu.memory_space<vmem>>, vector<8x128xf32>,
    return
  }
}

</mosaic_0001>

<llo_original>
// kernel: gemini_lstm_forward.1
$region0: #{gemini_lstm_forward.1}
  #allocation0 [shape = 'u32[]', space=smem, size = 0x4, offset = 0x4, fixed_abs, tag = 'smem constant byte address 0x4 - core index']
  #allocation1 [shape = 'u32[144,128]{1,0:T(1,128)}', space=vmem, size = 0x12000, scoped, tag = 'internal scratch']
  #allocation2 [shape = 'f32[64,128]{1,0:T(8,128)}', space=vmem, size = 0x8000, scoped, tag = 'scratch operand']
  #allocation3 [shape = 'f32[64,128]{1,0:T(8,128)}', space=vmem, size = 0x8000, scoped, tag = 'scratch operand']
  %s0 = inlined_call_operand.vmem [shape: bf16[64,16], index: 0, kind: input, shape index: {}]
  %s1 = inlined_call_operand.hbm [shape: bf16[16,128], index: 1, kind: input, shape index: {}]
  %s2 = inlined_call_operand.vmem [shape: bf16[32,128], index: 2, kind: input, shape index: {}]
  %s3 = inlined_call_operand.hbm [shape: f32[1,128], index: 3, kind: input, shape index: {}]
  %s4 = inlined_call_operand.vmem [shape: bf16[32,128], index: 4, kind: input, shape index: {}]
  %s5 = inlined_call_operand.vmem [shape: bf16[32,128], index: 5, kind: input, shape index: {}]
  %s6 = inlined_call_operand.hbm [shape: f32[1,128], index: 6, kind: input, shape index: {}]
  %s7 = inlined_call_operand.vmem [shape: bf16[32,128], index: 7, kind: input, shape index: {}]
  %s8 = inlined_call_operand.vmem [shape: bf16[32,128], index: 8, kind: input, shape index: {}]
  %s9 = inlined_call_operand.hbm [shape: f32[1,128], index: 9, kind: input, shape index: {}]
  %s10 = inlined_call_operand.vmem [shape: bf16[32,128], index: 10, kind: input, shape index: {}]
  %s11 = inlined_call_operand.vmem [shape: bf16[32,128], index: 11, kind: input, shape index: {}]
  %s12 = inlined_call_operand.hbm [shape: f32[1,128], index: 12, kind: input, shape index: {}]
  %s13 = inlined_call_operand.vmem [shape: bf16[32,128], index: 13, kind: input, shape index: {}]
  %s14 = inlined_call_operand.vmem [shape: bf16[32,128], index: 14, kind: input, shape index: {}]
  %s15 = inlined_call_operand.hbm [shape: f32[1,128], index: 15, kind: input, shape index: {}]
  %s16 = inlined_call_operand.vmem [shape: bf16[32,128], index: 16, kind: input, shape index: {}]
  %s17 = inlined_call_operand.vmem [shape: bf16[32,128], index: 17, kind: input, shape index: {}]
  %s18 = inlined_call_operand.vmem [shape: f32[1,128], index: 18, kind: input, shape index: {}]
  %s19 = inlined_call_operand.vmem [shape: bf16[32,128], index: 19, kind: input, shape index: {}]
  %s20 = inlined_call_operand.hbm [shape: f32[1,128], index: 20, kind: input, shape index: {}]
  %s21 = inlined_call_operand.hbm [shape: f32[8,128], index: 21, kind: output, shape index: {}]
  %s22 = sld [smem:[#allocation0]]
  $region122: #{gemini_lstm_forward.1} parent=0
    _
  %s24 = ssub.s32 1, %s22
  %s25 = scalar_select 0, %s24, %s22
  $region1: #{gemini_lstm_forward.1} parent=0
    #allocation4 [shape = 'u8[4096]{0}', space=vmem, size = 0x1000, scoped, tag = 'input window, operand 1, single buffered']
    #allocation5 [shape = 's32[1]{0}', space=sflag, size = 0x4, scoped, tag = 'scoped memory for gemini_lstm_forward.1']
    #allocation6 [shape = 's32[1]{0}', space=sflag, size = 0x4, scoped, tag = 'scoped memory for gemini_lstm_forward.1']
    #allocation7 [shape = 'u8[512]{0}', space=vmem, size = 0x400, scoped, tag = 'input window, operand 3, single buffered']
    #allocation8 [shape = 's32[1]{0}', space=sflag, size = 0x4, scoped, tag = 'scoped memory for gemini_lstm_forward.1']
    #allocation9 [shape = 'u8[512]{0}', space=vmem, size = 0x400, scoped, tag = 'input window, operand 6, single buffered']
    #allocation10 [shape = 'u8[512]{0}', space=vmem, size = 0x400, scoped, tag = 'input window, operand 9, single buffered']
    #allocation11 [shape = 's32[1]{0}', space=sflag, size = 0x4, scoped, tag = 'scoped memory for gemini_lstm_forward.1']
    #allocation12 [shape = 'u8[512]{0}', space=vmem, size = 0x400, scoped, tag = 'input window, operand 12, single buffered']
    #allocation13 [shape = 'u8[512]{0}', space=vmem, size = 0x400, scoped, tag = 'input window, operand 15, single buffered']
    #allocation14 [shape = 's32[1]{0}', space=sflag, size = 0x4, scoped, tag = 'scoped memory for gemini_lstm_forward.1']
    #allocation15 [shape = 'u8[512]{0}', space=vmem, size = 0x400, scoped, tag = 'input window, operand 20, single buffered']
    #allocation16 [shape = 'u8[4096]{0}', space=vmem, size = 0x1000, scoped, tag = 'output window, operand 0, single buffered']
    %26 = vsyncpa [#allocation5], 0
    %27 = vsyncpa [#allocation8], 0
    %28 = vsyncpa [#allocation11], 0
    %29 = vsyncpa [#allocation14], 0
    %30 = vsyncpa [#allocation6], 0
    // Predicated region
    $region2: #{gemini_lstm_forward.1} parent=1 // pred_check
      _
    $region3: #{gemini_lstm_forward.1} parent=1 // pred_check_branch
      %32 = sbr.rel (0) target = $region5
    $region4: #{gemini_lstm_forward.1} parent=1 // pred_region
      _
    $region5: #{gemini_lstm_forward.1} parent=1 // pred_fallthru
      _
    // Predicated region
    $region6: #{gemini_lstm_forward.1} parent=1 // pred_check
      _
    $region7: #{gemini_lstm_forward.1} parent=1 // pred_check_branch
      %34 = sbr.rel (0) target = $region9
    $region8: #{gemini_lstm_forward.1} parent=1 // pred_region
      %s36 = ssub.s32 128, 128
      %37 = vsyncadd [#allocation5], %s36
      %s38 = sshll.u32 [#allocation4], 4
      %s39 = int_to_ptr.vmem [resolvable:$true] %s38
      %44 = dma.hbm_to_vmem [thread:$0]  %s1, 128, %s39, [#allocation5], 64, 64, 4
    $region9: #{gemini_lstm_forward.1} parent=1 // pred_fallthru
      _
    // Predicated region
    $region10: #{gemini_lstm_forward.1} parent=1 // pred_check
      _
    $region11: #{gemini_lstm_forward.1} parent=1 // pred_check_branch
      %46 = sbr.rel (0) target = $region13
    $region12: #{gemini_lstm_forward.1} parent=1 // pred_region
      _
    $region13: #{gemini_lstm_forward.1} parent=1 // pred_fallthru
      _
    // Predicated region
    $region14: #{gemini_lstm_forward.1} parent=1 // pred_check
      _
    $region15: #{gemini_lstm_forward.1} parent=1 // pred_check_branch
      %48 = sbr.rel (0) target = $region17
    $region16: #{gemini_lstm_forward.1} parent=1 // pred_region
      %s50 = ssub.s32 16, 16
      %51 = vsyncadd [#allocation8], %s50
      %s53 = sshll.u32 [#allocation7], 4
      %s54 = int_to_ptr.vmem [resolvable:$true] %s53
      %56 = dma.hbm_to_vmem [thread:$0]  %s3, 16, %s54, [#allocation8]
    $region17: #{gemini_lstm_forward.1} parent=1 // pred_fallthru
      _
    // Predicated region
    $region18: #{gemini_lstm_forward.1} parent=1 // pred_check
      _
    $region19: #{gemini_lstm_forward.1} parent=1 // pred_check_branch
      %58 = sbr.rel (0) target = $region21
    $region20: #{gemini_lstm_forward.1} parent=1 // pred_region
      _
    $region21: #{gemini_lstm_forward.1} parent=1 // pred_fallthru
      _
    // Predicated region
    $region22: #{gemini_lstm_forward.1} parent=1 // pred_check
      _
    $region23: #{gemini_lstm_forward.1} parent=1 // pred_check_branch
      %60 = sbr.rel (0) target = $region25
    $region24: #{gemini_lstm_forward.1} parent=1 // pred_region
      _
    $region25: #{gemini_lstm_forward.1} parent=1 // pred_fallthru
      _
    // Predicated region
    $region26: #{gemini_lstm_forward.1} parent=1 // pred_check
      _
    $region27: #{gemini_lstm_forward.1} parent=1 // pred_check_branch
      %62 = sbr.rel (0) target = $region29
    $region28: #{gemini_lstm_forward.1} parent=1 // pred_region
      %s64 = ssub.s32 16, 16
      %65 = vsyncadd [#allocation8], %s64
      %s67 = sshll.u32 [#allocation9], 4
      %s68 = int_to_ptr.vmem [resolvable:$true] %s67
      %70 = dma.hbm_to_vmem [thread:$0]  %s6, 16, %s68, [#allocation8]
    $region29: #{gemini_lstm_forward.1} parent=1 // pred_fallthru
      _
    // Predicated region
    $region30: #{gemini_lstm_forward.1} parent=1 // pred_check
      _
    $region31: #{gemini_lstm_forward.1} parent=1 // pred_check_branch
      %72 = sbr.rel (0) target = $region33
    $region32: #{gemini_lstm_forward.1} parent=1 // pred_region
      _
    $region33: #{gemini_lstm_forward.1} parent=1 // pred_fallthru
      _
    // Predicated region
    $region34: #{gemini_lstm_forward.1} parent=1 // pred_check
      _
    $region35: #{gemini_lstm_forward.1} parent=1 // pred_check_branch
      %74 = sbr.rel (0) target = $region37
    $region36: #{gemini_lstm_forward.1} parent=1 // pred_region
      _
    $region37: #{gemini_lstm_forward.1} parent=1 // pred_fallthru
      _
    // Predicated region
    $region38: #{gemini_lstm_forward.1} parent=1 // pred_check
      _
    $region39: #{gemini_lstm_forward.1} parent=1 // pred_check_branch
      %76 = sbr.rel (0) target = $region41
    $region40: #{gemini_lstm_forward.1} parent=1 // pred_region
      %s78 = ssub.s32 16, 16
      %79 = vsyncadd [#allocation11], %s78
      %s81 = sshll.u32 [#allocation10], 4
      %s82 = int_to_ptr.vmem [resolvable:$true] %s81
      %84 = dma.hbm_to_vmem [thread:$0]  %s9, 16, %s82, [#allocation11]
    $region41: #{gemini_lstm_forward.1} parent=1 // pred_fallthru
      _
    // Predicated region
    $region42: #{gemini_lstm_forward.1} parent=1 // pred_check
      _
    $region43: #{gemini_lstm_forward.1} parent=1 // pred_check_branch
      %86 = sbr.rel (0) target = $region45
    $region44: #{gemini_lstm_forward.1} parent=1 // pred_region
      _
    $region45: #{gemini_lstm_forward.1} parent=1 // pred_fallthru
      _
    // Predicated region
    $region46: #{gemini_lstm_forward.1} parent=1 // pred_check
      _
    $region47: #{gemini_lstm_forward.1} parent=1 // pred_check_branch
      %88 = sbr.rel (0) target = $region49
    $region48: #{gemini_lstm_forward.1} parent=1 // pred_region
      _
    $region49: #{gemini_lstm_forward.1} parent=1 // pred_fallthru
      _
    // Predicated region
    $region50: #{gemini_lstm_forward.1} parent=1 // pred_check
      _
    $region51: #{gemini_lstm_forward.1} parent=1 // pred_check_branch
      %90 = sbr.rel (0) target = $region53
    $region52: #{gemini_lstm_forward.1} parent=1 // pred_region
      %s92 = ssub.s32 16, 16
      %93 = vsyncadd [#allocation11], %s92
      %s95 = sshll.u32 [#allocation12], 4
      %s96 = int_to_ptr.vmem [resolvable:$true] %s95
      %98 = dma.hbm_to_vmem [thread:$0]  %s12, 16, %s96, [#allocation11]
    $region53: #{gemini_lstm_forward.1} parent=1 // pred_fallthru
      _
    // Predicated region
    $region54: #{gemini_lstm_forward.1} parent=1 // pred_check
      _
    $region55: #{gemini_lstm_forward.1} parent=1 // pred_check_branch
      %100 = sbr.rel (0) target = $region57
    $region56: #{gemini_lstm_forward.1} parent=1 // pred_region
      _
    $region57: #{gemini_lstm_forward.1} parent=1 // pred_fallthru
      _
    // Predicated region
    $region58: #{gemini_lstm_forward.1} parent=1 // pred_check
      _
    $region59: #{gemini_lstm_forward.1} parent=1 // pred_check_branch
      %102 = sbr.rel (0) target = $region61
    $region60: #{gemini_lstm_forward.1} parent=1 // pred_region
      _
    $region61: #{gemini_lstm_forward.1} parent=1 // pred_fallthru
      _
    // Predicated region
    $region62: #{gemini_lstm_forward.1} parent=1 // pred_check
      _
    $region63: #{gemini_lstm_forward.1} parent=1 // pred_check_branch
      %104 = sbr.rel (0) target = $region65
    $region64: #{gemini_lstm_forward.1} parent=1 // pred_region
      %s106 = ssub.s32 16, 16
      %107 = vsyncadd [#allocation14], %s106
      %s109 = sshll.u32 [#allocation13], 4
      %s110 = int_to_ptr.vmem [resolvable:$true] %s109
      %112 = dma.hbm_to_vmem [thread:$0]  %s15, 16, %s110, [#allocation14]
    $region65: #{gemini_lstm_forward.1} parent=1 // pred_fallthru
      _
    // Predicated region
    $region66: #{gemini_lstm_forward.1} parent=1 // pred_check
      _
    $region67: #{gemini_lstm_forward.1} parent=1 // pred_check_branch
      %114 = sbr.rel (0) target = $region69
    $region68: #{gemini_lstm_forward.1} parent=1 // pred_region
      _
    $region69: #{gemini_lstm_forward.1} parent=1 // pred_fallthru
      _
    // Predicated region
    $region70: #{gemini_lstm_forward.1} parent=1 // pred_check
      _
    $region71: #{gemini_lstm_forward.1} parent=1 // pred_check_branch
      %116 = sbr.rel (0) target = $region73
    $region72: #{gemini_lstm_forward.1} parent=1 // pred_region
      _
    $region73: #{gemini_lstm_forward.1} parent=1 // pred_fallthru
      _
    // Predicated region
    $region74: #{gemini_lstm_forward.1} parent=1 // pred_check
      _
    $region75: #{gemini_lstm_forward.1} parent=1 // pred_check_branch
      %118 = sbr.rel (0) target = $region77
    $region76: #{gemini_lstm_forward.1} parent=1 // pred_region
      _
    $region77: #{gemini_lstm_forward.1} parent=1 // pred_fallthru
      _
    // Predicated region
    $region78: #{gemini_lstm_forward.1} parent=1 // pred_check
      _
    $region79: #{gemini_lstm_forward.1} parent=1 // pred_check_branch
      %120 = sbr.rel (0) target = $region81
    $region80: #{gemini_lstm_forward.1} parent=1 // pred_region
      _
    $region81: #{gemini_lstm_forward.1} parent=1 // pred_fallthru
      _
    // Predicated region
    $region82: #{gemini_lstm_forward.1} parent=1 // pred_check
      _
    $region83: #{gemini_lstm_forward.1} parent=1 // pred_check_branch
      %122 = sbr.rel (0) target = $region85
    $region84: #{gemini_lstm_forward.1} parent=1 // pred_region
      %s124 = ssub.s32 16, 16
      %125 = vsyncadd [#allocation14], %s124
      %s127 = sshll.u32 [#allocation15], 4
      %s128 = int_to_ptr.vmem [resolvable:$true] %s127
      %130 = dma.hbm_to_vmem [thread:$0]  %s20, 16, %s128, [#allocation14]
    $region85: #{gemini_lstm_forward.1} parent=1 // pred_fallthru
      _
    // Predicated region
    $region86: #{gemini_lstm_forward.1} parent=1 // pred_check
      _
    $region87: #{gemini_lstm_forward.1} parent=1 // pred_check_branch
      %132 = sbr.rel (0) target = $region89
    $region88: #{gemini_lstm_forward.1} parent=1 // pred_region
      %133 = dma.done [#allocation5], 128
    $region89: #{gemini_lstm_forward.1} parent=1 // pred_fallthru
      _
    // Predicated region
    $region90: #{gemini_lstm_forward.1} parent=1 // pred_check
      _
    $region91: #{gemini_lstm_forward.1} parent=1 // pred_check_branch
      %135 = sbr.rel (0) target = $region93
    $region92: #{gemini_lstm_forward.1} parent=1 // pred_region
      %136 = dma.done [#allocation8], 16
    $region93: #{gemini_lstm_forward.1} parent=1 // pred_fallthru
      _
    // Predicated region
    $region94: #{gemini_lstm_forward.1} parent=1 // pred_check
      _
    $region95: #{gemini_lstm_forward.1} parent=1 // pred_check_branch
      %138 = sbr.rel (0) target = $region97
    $region96: #{gemini_lstm_forward.1} parent=1 // pred_region
      %139 = dma.done [#allocation8], 16
    $region97: #{gemini_lstm_forward.1} parent=1 // pred_fallthru
      _
    // Predicated region
    $region98: #{gemini_lstm_forward.1} parent=1 // pred_check
      _
    $region99: #{gemini_lstm_forward.1} parent=1 // pred_check_branch
      %141 = sbr.rel (0) target = $region101
    $region100: #{gemini_lstm_forward.1} parent=1 // pred_region
      %142 = dma.done [#allocation11], 16
    $region101: #{gemini_lstm_forward.1} parent=1 // pred_fallthru
      _
    // Predicated region
    $region102: #{gemini_lstm_forward.1} parent=1 // pred_check
      _
    $region103: #{gemini_lstm_forward.1} parent=1 // pred_check_branch
      %144 = sbr.rel (0) target = $region105
    $region104: #{gemini_lstm_forward.1} parent=1 // pred_region
      %145 = dma.done [#allocation11], 16
    $region105: #{gemini_lstm_forward.1} parent=1 // pred_fallthru
      _
    // Predicated region
    $region106: #{gemini_lstm_forward.1} parent=1 // pred_check
      _
    $region107: #{gemini_lstm_forward.1} parent=1 // pred_check_branch
      %147 = sbr.rel (0) target = $region109
    $region108: #{gemini_lstm_forward.1} parent=1 // pred_region
      %148 = dma.done [#allocation14], 16
    $region109: #{gemini_lstm_forward.1} parent=1 // pred_fallthru
      _
    // Predicated region
    $region110: #{gemini_lstm_forward.1} parent=1 // pred_check
      _
    $region111: #{gemini_lstm_forward.1} parent=1 // pred_check_branch
      %150 = sbr.rel (0) target = $region113
    $region112: #{gemini_lstm_forward.1} parent=1 // pred_region
      %151 = dma.done [#allocation14], 16
    $region113: #{gemini_lstm_forward.1} parent=1 // pred_fallthru
      _
    %v153 = vld [vmem:[%s0] sm:$0xf]
    %v154 = vld [vmem:[%s0 + $0x4] sm:$0xf]
    %v155 = vld [vmem:[%s0 + $0x8] sm:$0xf]
    %v156 = vld [vmem:[%s0 + $0xc] sm:$0xf]
    %v157 = vld [vmem:[%s0 + $0x10] sm:$0xf]
    %v158 = vld [vmem:[%s0 + $0x14] sm:$0xf]
    %v159 = vld [vmem:[%s0 + $0x18] sm:$0xf]
    %v160 = vld [vmem:[%s0 + $0x1c] sm:$0xf]
    %v161 = vld [vmem:[#allocation4] sm:$0xf]
    %v162 = vld [vmem:[#allocation4 + $0x4] sm:$0xf]
    %v163 = vld [vmem:[#allocation7] sm:$0x1]
    %v165 = vlaneseq
    %v166 = vshrl.u32 %v165, 7
    %v167 = vsub.s32 0, %v166
    %v168 = vrot.slane %v163, %v167
    %v178 = vunpack.c.l.b16 %v153
    %v179 = vunpack.c.l.b16 %v154
    %v180 = vunpack.c.l.b16 %v155
    %v181 = vunpack.c.l.b16 %v156
    %v182 = vunpack.c.l.b16 %v157
    %v183 = vunpack.c.l.b16 %v158
    %v184 = vunpack.c.l.b16 %v159
    %v185 = vunpack.c.l.b16 %v160
    %v186 = vpack.c.b16 %v179, %v178
    %v187 = vpack.c.b16 %v181, %v180
    %v188 = vpack.c.b16 %v183, %v182
    %v189 = vpack.c.b16 %v185, %v184
    %v192 = vunpack.c.l.b16 %v161
    %v193 = vunpack.c.l.b16 %v162
    %v194 = vpack.c.b16 %v193, %v192
    %vm196 = vcmask 130048
    %v198 = vsel %vm196, %v186, 0
    %v201 = vsel %vm196, %v187, 0
    %v204 = vsel %vm196, %v188, 0
    %v207 = vsel %vm196, %v189, 0
    %209 = vmatprep.subr.bf16.mxu0 0
    %210 = vmatpush1.bf16.msra.mxu0 %v194
    %211 = vmatprep.subr.bf16.mxu0 0
    %212 = vmatpush1.bf16.msra.mxu0 0
    %213 = vmatprep.subr.bf16.mxu0 0
    %214 = vmatpush1.bf16.msra.mxu0 0
    %215 = vmatprep.subr.bf16.mxu0 0
    %216 = vmatpush1.bf16.msra.mxu0 0
    %217 = vmatprep.subr.bf16.mxu0 0
    %218 = vmatpush1.bf16.msra.mxu0 0
    %219 = vmatprep.subr.bf16.mxu0 0
    %220 = vmatpush1.bf16.msra.mxu0 0
    %221 = vmatprep.subr.bf16.mxu0 0
    %222 = vmatpush1.bf16.msra.mxu0 0
    %223 = vmatprep.subr.bf16.mxu0 0
    %224 = vmatpush1.bf16.msra.mxu0 0
    %225 = vmatprep.subr.bf16.mxu0 0
    %226 = vmatpush1.bf16.msra.mxu0 0
    %227 = vmatprep.subr.bf16.mxu0 0
    %228 = vmatpush1.bf16.msra.mxu0 0
    %229 = vmatprep.subr.bf16.mxu0 0
    %230 = vmatpush1.bf16.msra.mxu0 0
    %231 = vmatprep.subr.bf16.mxu0 0
    %232 = vmatpush1.bf16.msra.mxu0 0
    %233 = vmatprep.subr.bf16.mxu0 0
    %234 = vmatpush1.bf16.msra.mxu0 0
    %235 = vmatprep.subr.bf16.mxu0 0
    %236 = vmatpush1.bf16.msra.mxu0 0
    %237 = vmatprep.subr.bf16.mxu0 0
    %238 = vmatpush1.bf16.msra.mxu0 0
    %239 = vmatprep.subr.bf16.mxu0 0
    %240 = vmatpush1.bf16.msra.mxu0 0
    %241 = vmatprep.mubr.bf16.mxu0 0
    %242 = vmatmul.mubr.bf16.gmra.mrb[0].mxu0 %v198
    %v243 = vpop.f32.mrb[0].mxu0
    %v244 = vadd.f32 %v168, %v243
    %v245 = vpop.f32.mrb[0].mxu0
    %v246 = vpop.f32.mrb[0].mxu0
    %v247 = vadd.f32 %v168, %v246
    %v248 = vpop.f32.mrb[0].mxu0
    %249 = vmatprep.mubr.bf16.mxu0 0
    %250 = vmatmul.mubr.bf16.gmra.mrb[0].mxu0 %v201
    %v251 = vpop.f32.mrb[0].mxu0
    %v252 = vadd.f32 %v168, %v251
    %v253 = vpop.f32.mrb[0].mxu0
    %v254 = vpop.f32.mrb[0].mxu0
    %v255 = vadd.f32 %v168, %v254
    %v256 = vpop.f32.mrb[0].mxu0
    %257 = vmatprep.mubr.bf16.mxu0 0
    %258 = vmatmul.mubr.bf16.gmra.mrb[0].mxu0 %v204
    %v259 = vpop.f32.mrb[0].mxu0
    %v260 = vadd.f32 %v168, %v259
    %v261 = vpop.f32.mrb[0].mxu0
    %v262 = vpop.f32.mrb[0].mxu0
    %v263 = vadd.f32 %v168, %v262
    %v264 = vpop.f32.mrb[0].mxu0
    %265 = vmatprep.mubr.bf16.mxu0 0
    %266 = vmatmul.mubr.bf16.gmra.mrb[0].mxu0 %v207
    %v267 = vpop.f32.mrb[0].mxu0
    %v268 = vadd.f32 %v168, %v267
    %v269 = vpop.f32.mrb[0].mxu0
    %v270 = vpop.f32.mrb[0].mxu0
    %v271 = vadd.f32 %v168, %v270
    %v272 = vpop.f32.mrb[0].mxu0
    %273 = vdwg.mxu0
    %274 = vst [vmem:[#allocation2] sm:$0xff] %v244
    %275 = vst [vmem:[#allocation2 + $0x8] sm:$0xff] %v247
    %276 = vst [vmem:[#allocation2 + $0x10] sm:$0xff] %v252
    %277 = vst [vmem:[#allocation2 + $0x18] sm:$0xff] %v255
    %278 = vst [vmem:[#allocation2 + $0x20] sm:$0xff] %v260
    %279 = vst [vmem:[#allocation2 + $0x28] sm:$0xff] %v263
    %280 = vst [vmem:[#allocation2 + $0x30] sm:$0xff] %v268
    %281 = vst [vmem:[#allocation2 + $0x38] sm:$0xff] %v271
    %v282 = vld [vmem:[%s2] sm:$0xf]
    %v283 = vld [vmem:[%s2 + $0x4] sm:$0xf]
    %v284 = vld [vmem:[%s2 + $0x8] sm:$0xf]
    %v285 = vld [vmem:[%s2 + $0xc] sm:$0xf]
    %v286 = vld [vmem:[%s4] sm:$0xf]
    %v287 = vld [vmem:[%s4 + $0x4] sm:$0xf]
    %v288 = vld [vmem:[%s4 + $0x8] sm:$0xf]
    %v289 = vld [vmem:[%s4 + $0xc] sm:$0xf]
    %v290 = vld [vmem:[#allocation9] sm:$0x1]
    %v291 = vld [vmem:[#allocation2] sm:$0xff]
    %v296 = vunpack.c.l.b16 %v282
    %v297 = vunpack.c.l.b16 %v283
    %v298 = vunpack.c.l.b16 %v284
    %v299 = vunpack.c.l.b16 %v285
    %v300 = vpack.c.b16 %v297, %v296
    %v301 = vpack.c.b16 %v299, %v298
    %vm304 = vcmask 261120
    %v306 = vsel %vm304, 0, 0
    %308 = vmatprep.subr.bf16.mxu0 0
    %309 = vmatpush1.bf16.msra.mxu0 %v300
    %310 = vmatprep.subr.bf16.mxu0 0
    %311 = vmatpush1.bf16.msra.mxu0 %v301
    %312 = vmatprep.subr.bf16.mxu0 0
    %313 = vmatpush1.bf16.msra.mxu0 0
    %314 = vmatprep.subr.bf16.mxu0 0
    %315 = vmatpush1.bf16.msra.mxu0 0
    %316 = vmatprep.subr.bf16.mxu0 0
    %317 = vmatpush1.bf16.msra.mxu0 0
    %318 = vmatprep.subr.bf16.mxu0 0
    %319 = vmatpush1.bf16.msra.mxu0 0
    %320 = vmatprep.subr.bf16.mxu0 0
    %321 = vmatpush1.bf16.msra.mxu0 0
    %322 = vmatprep.subr.bf16.mxu0 0
    %323 = vmatpush1.bf16.msra.mxu0 0
    %324 = vmatprep.subr.bf16.mxu0 0
    %325 = vmatpush1.bf16.msra.mxu0 0
    %326 = vmatprep.subr.bf16.mxu0 0
    %327 = vmatpush1.bf16.msra.mxu0 0
    %328 = vmatprep.subr.bf16.mxu0 0
    %329 = vmatpush1.bf16.msra.mxu0 0
    %330 = vmatprep.subr.bf16.mxu0 0
    %331 = vmatpush1.bf16.msra.mxu0 0
    %332 = vmatprep.subr.bf16.mxu0 0
    %333 = vmatpush1.bf16.msra.mxu0 0
    %334 = vmatprep.subr.bf16.mxu0 0
    %335 = vmatpush1.bf16.msra.mxu0 0
    %336 = vmatprep.subr.bf16.mxu0 0
    %337 = vmatpush1.bf16.msra.mxu0 0
    %338 = vmatprep.subr.bf16.mxu0 0
    %339 = vmatpush1.bf16.msra.mxu0 0
    %340 = vmatprep.mubr.bf16.mxu0 0
    %341 = vmatmul.mubr.bf16.gmra.mrb[0].mxu0 %v306
    %v342 = vpop.f32.mrb[0].mxu0
    %v343 = vadd.f32 0.0, %v342
    %v344 = vpop.f32.mrb[0].mxu0
    %v345 = vpop.f32.mrb[0].mxu0
    %v346 = vpop.f32.mrb[0].mxu0
    %347 = vdwg.mxu0
    %v348 = vadd.f32 %v291, %v343
    %v349 = vxor.u32 %v348, 2147483648
    %v350 = vmul.f32 %v349, 1.442695
    %v351 = vpow.pop %v350
    %v352 = vadd.f32 %v351, 1.0
    %v353 = vrcp.pop %v352
    %v354 = vmul.f32 1.0, %v353
    %v355 = vtanh.pop %v348
    %v356 = vmul.f32 %v354, 0.0
    %358 = vrot.lane.b32.xlu0 %v355, 32
    %v359 = vpop.permute.xlu0 %358
    %v361 = vmul.f32 %v354, %v359
    %363 = vrot.lane.b32.xlu0 %v361, 32
    %v364 = vpop.permute.xlu0 %363
    %v366 = vadd.f32 %v356, %v364
    %v367 = vtanh.pop %v366
    %369 = vrot.lane.b32.xlu0 %v367, 32
    %v370 = vpop.permute.xlu0 %369
    %v372 = vmul.f32 %v354, %v370
    %v373 = vpack.c.bf16 %v372, %v372
    %v375 = vlaneseq
    %v376 = vshrl.u32 %v375, 7
    %v377 = vsub.s32 0, %v376
    %v378 = vrot.slane %v290, %v377
    %381 = vrot.lane.b32.xlu0 %v373, 64
    %v382 = vpop.permute.xlu0 %381
    %v387 = vunpack.c.l.b16 %v286
    %v388 = vunpack.c.l.b16 %v287
    %v389 = vunpack.c.l.b16 %v288
    %v390 = vunpack.c.l.b16 %v289
    %v391 = vpack.c.b16 %v388, %v387
    %v392 = vpack.c.b16 %v390, %v389
    %v396 = vsel %vm304, %v382, 0
    %398 = vmatprep.subr.bf16.mxu0 0
    %399 = vmatpush1.bf16.msra.mxu0 %v391
    %400 = vmatprep.subr.bf16.mxu0 0
    %401 = vmatpush1.bf16.msra.mxu0 %v392
    %402 = vmatprep.subr.bf16.mxu0 0
    %403 = vmatpush1.bf16.msra.mxu0 0
    %404 = vmatprep.subr.bf16.mxu0 0
    %405 = vmatpush1.bf16.msra.mxu0 0
    %406 = vmatprep.subr.bf16.mxu0 0
    %407 = vmatpush1.bf16.msra.mxu0 0
    %408 = vmatprep.subr.bf16.mxu0 0
    %409 = vmatpush1.bf16.msra.mxu0 0
    %410 = vmatprep.subr.bf16.mxu0 0
    %411 = vmatpush1.bf16.msra.mxu0 0
    %412 = vmatprep.subr.bf16.mxu0 0
    %413 = vmatpush1.bf16.msra.mxu0 0
    %414 = vmatprep.subr.bf16.mxu0 0
    %415 = vmatpush1.bf16.msra.mxu0 0
    %416 = vmatprep.subr.bf16.mxu0 0
    %417 = vmatpush1.bf16.msra.mxu0 0
    %418 = vmatprep.subr.bf16.mxu0 0
    %419 = vmatpush1.bf16.msra.mxu0 0
    %420 = vmatprep.subr.bf16.mxu0 0
    %421 = vmatpush1.bf16.msra.mxu0 0
    %422 = vmatprep.subr.bf16.mxu0 0
    %423 = vmatpush1.bf16.msra.mxu0 0
    %424 = vmatprep.subr.bf16.mxu0 0
    %425 = vmatpush1.bf16.msra.mxu0 0
    %426 = vmatprep.subr.bf16.mxu0 0
    %427 = vmatpush1.bf16.msra.mxu0 0
    %428 = vmatprep.subr.bf16.mxu0 0
    %429 = vmatpush1.bf16.msra.mxu0 0
    %430 = vmatprep.mubr.bf16.mxu0 0
    %431 = vmatmul.mubr.bf16.gmra.mrb[0].mxu0 %v396
    %v432 = vpop.f32.mrb[0].mxu0
    %v433 = vadd.f32 %v378, %v432
    %v434 = vpop.f32.mrb[0].mxu0
    %v435 = vpop.f32.mrb[0].mxu0
    %v436 = vpop.f32.mrb[0].mxu0
    %437 = vdwg.mxu0
    %438 = vst [vmem:[#allocation3] sm:$0xff] %v433
    %v439 = vld [vmem:[#allocation2 + $0x8] sm:$0xff]
    %440 = vmatprep.subr.bf16.mxu0 0
    %441 = vmatpush1.bf16.msra.mxu0 %v300
    %442 = vmatprep.subr.bf16.mxu0 0
    %443 = vmatpush1.bf16.msra.mxu0 %v301
    %444 = vmatprep.subr.bf16.mxu0 0
    %445 = vmatpush1.bf16.msra.mxu0 0
    %446 = vmatprep.subr.bf16.mxu0 0
    %447 = vmatpush1.bf16.msra.mxu0 0
    %448 = vmatprep.subr.bf16.mxu0 0
    %449 = vmatpush1.bf16.msra.mxu0 0
    %450 = vmatprep.subr.bf16.mxu0 0
    %451 = vmatpush1.bf16.msra.mxu0 0
    %452 = vmatprep.subr.bf16.mxu0 0
    %453 = vmatpush1.bf16.msra.mxu0 0
    %454 = vmatprep.subr.bf16.mxu0 0
    %455 = vmatpush1.bf16.msra.mxu0 0
    %456 = vmatprep.subr.bf16.mxu0 0
    %457 = vmatpush1.bf16.msra.mxu0 0
    %458 = vmatprep.subr.bf16.mxu0 0
    %459 = vmatpush1.bf16.msra.mxu0 0
    %460 = vmatprep.subr.bf16.mxu0 0
    %461 = vmatpush1.bf16.msra.mxu0 0
    %462 = vmatprep.subr.bf16.mxu0 0
    %463 = vmatpush1.bf16.msra.mxu0 0
    %464 = vmatprep.subr.bf16.mxu0 0
    %465 = vmatpush1.bf16.msra.mxu0 0
    %466 = vmatprep.subr.bf16.mxu0 0
    %467 = vmatpush1.bf16.msra.mxu0 0
    %468 = vmatprep.subr.bf16.mxu0 0
    %469 = vmatpush1.bf16.msra.mxu0 0
    %470 = vmatprep.subr.bf16.mxu0 0
    %471 = vmatpush1.bf16.msra.mxu0 0
    %472 = vmatprep.mubr.bf16.mxu0 0
    %473 = vmatmul.mubr.bf16.gmra.mrb[0].mxu0 %v396
    %v474 = vpop.f32.mrb[0].mxu0
    %v475 = vadd.f32 0.0, %v474
    %v476 = vpop.f32.mrb[0].mxu0
    %v477 = vpop.f32.mrb[0].mxu0
    %v478 = vpop.f32.mrb[0].mxu0
    %479 = vdwg.mxu0
    %v480 = vadd.f32 %v439, %v475
    %v481 = vxor.u32 %v480, 2147483648
    %v482 = vmul.f32 %v481, 1.442695
    %v483 = vpow.pop %v482
    %v484 = vadd.f32 %v483, 1.0
    %v485 = vrcp.pop %v484
    %v486 = vmul.f32 1.0, %v485
    %v487 = vtanh.pop %v480
    %v488 = vmul.f32 %v486, %v366
    %490 = vrot.lane.b32.xlu0 %v487, 32
    %v491 = vpop.permute.xlu0 %490
    %v493 = vmul.f32 %v486, %v491
    %495 = vrot.lane.b32.xlu0 %v493, 32
    %v496 = vpop.permute.xlu0 %495
    %v498 = vadd.f32 %v488, %v496
    %v499 = vtanh.pop %v498
    %501 = vrot.lane.b32.xlu0 %v499, 32
    %v502 = vpop.permute.xlu0 %501
    %v504 = vmul.f32 %v486, %v502
    %v505 = vpack.c.bf16 %v504, %v504
    %507 = vrot.lane.b32.xlu0 %v505, 64
    %v508 = vpop.permute.xlu0 %507
    %v510 = vsel %vm304, %v508, 0
    %512 = vmatprep.subr.bf16.mxu0 0
    %513 = vmatpush1.bf16.msra.mxu0 %v391
    %514 = vmatprep.subr.bf16.mxu0 0
    %515 = vmatpush1.bf16.msra.mxu0 %v392
    %516 = vmatprep.subr.bf16.mxu0 0
    %517 = vmatpush1.bf16.msra.mxu0 0
    %518 = vmatprep.subr.bf16.mxu0 0
    %519 = vmatpush1.bf16.msra.mxu0 0
    %520 = vmatprep.subr.bf16.mxu0 0
    %521 = vmatpush1.bf16.msra.mxu0 0
    %522 = vmatprep.subr.bf16.mxu0 0
    %523 = vmatpush1.bf16.msra.mxu0 0
    %524 = vmatprep.subr.bf16.mxu0 0
    %525 = vmatpush1.bf16.msra.mxu0 0
    %526 = vmatprep.subr.bf16.mxu0 0
    %527 = vmatpush1.bf16.msra.mxu0 0
    %528 = vmatprep.subr.bf16.mxu0 0
    %529 = vmatpush1.bf16.msra.mxu0 0
    %530 = vmatprep.subr.bf16.mxu0 0
    %531 = vmatpush1.bf16.msra.mxu0 0
    %532 = vmatprep.subr.bf16.mxu0 0
    %533 = vmatpush1.bf16.msra.mxu0 0
    %534 = vmatprep.subr.bf16.mxu0 0
    %535 = vmatpush1.bf16.msra.mxu0 0
    %536 = vmatprep.subr.bf16.mxu0 0
    %537 = vmatpush1.bf16.msra.mxu0 0
    %538 = vmatprep.subr.bf16.mxu0 0
    %539 = vmatpush1.bf16.msra.mxu0 0
    %540 = vmatprep.subr.bf16.mxu0 0
    %541 = vmatpush1.bf16.msra.mxu0 0
    %542 = vmatprep.subr.bf16.mxu0 0
    %543 = vmatpush1.bf16.msra.mxu0 0
    %544 = vmatprep.mubr.bf16.mxu0 0
    %545 = vmatmul.mubr.bf16.gmra.mrb[0].mxu0 %v510
    %v546 = vpop.f32.mrb[0].mxu0
    %v547 = vadd.f32 %v378, %v546
    %v548 = vpop.f32.mrb[0].mxu0
    %v549 = vpop.f32.mrb[0].mxu0
    %v550 = vpop.f32.mrb[0].mxu0
    %551 = vdwg.mxu0
    %552 = vst [vmem:[#allocation3 + $0x8] sm:$0xff] %v547
    %v553 = vld [vmem:[#allocation2 + $0x10] sm:$0xff]
    %554 = vmatprep.subr.bf16.mxu0 0
    %555 = vmatpush1.bf16.msra.mxu0 %v300
    %556 = vmatprep.subr.bf16.mxu0 0
    %557 = vmatpush1.bf16.msra.mxu0 %v301
    %558 = vmatprep.subr.bf16.mxu0 0
    %559 = vmatpush1.bf16.msra.mxu0 0
    %560 = vmatprep.subr.bf16.mxu0 0
    %561 = vmatpush1.bf16.msra.mxu0 0
    %562 = vmatprep.subr.bf16.mxu0 0
    %563 = vmatpush1.bf16.msra.mxu0 0
    %564 = vmatprep.subr.bf16.mxu0 0
    %565 = vmatpush1.bf16.msra.mxu0 0
    %566 = vmatprep.subr.bf16.mxu0 0
    %567 = vmatpush1.bf16.msra.mxu0 0
    %568 = vmatprep.subr.bf16.mxu0 0
    %569 = vmatpush1.bf16.msra.mxu0 0
    %570 = vmatprep.subr.bf16.mxu0 0
    %571 = vmatpush1.bf16.msra.mxu0 0
    %572 = vmatprep.subr.bf16.mxu0 0
    %573 = vmatpush1.bf16.msra.mxu0 0
    %574 = vmatprep.subr.bf16.mxu0 0
    %575 = vmatpush1.bf16.msra.mxu0 0
    %576 = vmatprep.subr.bf16.mxu0 0
    %577 = vmatpush1.bf16.msra.mxu0 0
    %578 = vmatprep.subr.bf16.mxu0 0
    %579 = vmatpush1.bf16.msra.mxu0 0
    %580 = vmatprep.subr.bf16.mxu0 0
    %581 = vmatpush1.bf16.msra.mxu0 0
    %582 = vmatprep.subr.bf16.mxu0 0
    %583 = vmatpush1.bf16.msra.mxu0 0
    %584 = vmatprep.subr.bf16.mxu0 0
    %585 = vmatpush1.bf16.msra.mxu0 0
    %586 = vmatprep.mubr.bf16.mxu0 0
    %587 = vmatmul.mubr.bf16.gmra.mrb[0].mxu0 %v510
    %v588 = vpop.f32.mrb[0].mxu0
    %v589 = vadd.f32 0.0, %v588
    %v590 = vpop.f32.mrb[0].mxu0
    %v591 = vpop.f32.mrb[0].mxu0
    %v592 = vpop.f32.mrb[0].mxu0
    %593 = vdwg.mxu0
    %v594 = vadd.f32 %v553, %v589
    %v595 = vxor.u32 %v594, 2147483648
    %v596 = vmul.f32 %v595, 1.442695
    %v597 = vpow.pop %v596
    %v598 = vadd.f32 %v597, 1.0
    %v599 = vrcp.pop %v598
    %v600 = vmul.f32 1.0, %v599
    %v601 = vtanh.pop %v594
    %v602 = vmul.f32 %v600, %v498
    %604 = vrot.lane.b32.xlu0 %v601, 32
    %v605 = vpop.permute.xlu0 %604
    %v607 = vmul.f32 %v600, %v605
    %609 = vrot.lane.b32.xlu0 %v607, 32
    %v610 = vpop.permute.xlu0 %609
    %v612 = vadd.f32 %v602, %v610
    %v613 = vtanh.pop %v612
    %615 = vrot.lane.b32.xlu0 %v613, 32
    %v616 = vpop.permute.xlu0 %615
    %v618 = vmul.f32 %v600, %v616
    %v619 = vpack.c.bf16 %v618, %v618
    %621 = vrot.lane.b32.xlu0 %v619, 64
    %v622 = vpop.permute.xlu0 %621
    %v624 = vsel %vm304, %v622, 0
    %626 = vmatprep.subr.bf16.mxu0 0
    %627 = vmatpush1.bf16.msra.mxu0 %v391
    %628 = vmatprep.subr.bf16.mxu0 0
    %629 = vmatpush1.bf16.msra.mxu0 %v392
    %630 = vmatprep.subr.bf16.mxu0 0
    %631 = vmatpush1.bf16.msra.mxu0 0
    %632 = vmatprep.subr.bf16.mxu0 0
    %633 = vmatpush1.bf16.msra.mxu0 0
    %634 = vmatprep.subr.bf16.mxu0 0
    %635 = vmatpush1.bf16.msra.mxu0 0
    %636 = vmatprep.subr.bf16.mxu0 0
    %637 = vmatpush1.bf16.msra.mxu0 0
    %638 = vmatprep.subr.bf16.mxu0 0
    %639 = vmatpush1.bf16.msra.mxu0 0
    %640 = vmatprep.subr.bf16.mxu0 0
    %641 = vmatpush1.bf16.msra.mxu0 0
    %642 = vmatprep.subr.bf16.mxu0 0
    %643 = vmatpush1.bf16.msra.mxu0 0
    %644 = vmatprep.subr.bf16.mxu0 0
    %645 = vmatpush1.bf16.msra.mxu0 0
    %646 = vmatprep.subr.bf16.mxu0 0
    %647 = vmatpush1.bf16.msra.mxu0 0
    %648 = vmatprep.subr.bf16.mxu0 0
    %649 = vmatpush1.bf16.msra.mxu0 0
    %650 = vmatprep.subr.bf16.mxu0 0
    %651 = vmatpush1.bf16.msra.mxu0 0
    %652 = vmatprep.subr.bf16.mxu0 0
    %653 = vmatpush1.bf16.msra.mxu0 0
    %654 = vmatprep.subr.bf16.mxu0 0
    %655 = vmatpush1.bf16.msra.mxu0 0
    %656 = vmatprep.subr.bf16.mxu0 0
    %657 = vmatpush1.bf16.msra.mxu0 0
    %658 = vmatprep.mubr.bf16.mxu0 0
    %659 = vmatmul.mubr.bf16.gmra.mrb[0].mxu0 %v624
    %v660 = vpop.f32.mrb[0].mxu0
    %v661 = vadd.f32 %v378, %v660
    %v662 = vpop.f32.mrb[0].mxu0
    %v663 = vpop.f32.mrb[0].mxu0
    %v664 = vpop.f32.mrb[0].mxu0
    %665 = vdwg.mxu0
    %666 = vst [vmem:[#allocation3 + $0x10] sm:$0xff] %v661
    %v667 = vld [vmem:[#allocation2 + $0x18] sm:$0xff]
    %668 = vmatprep.subr.bf16.mxu0 0
    %669 = vmatpush1.bf16.msra.mxu0 %v300
    %670 = vmatprep.subr.bf16.mxu0 0
    %671 = vmatpush1.bf16.msra.mxu0 %v301
    %672 = vmatprep.subr.bf16.mxu0 0
    %673 = vmatpush1.bf16.msra.mxu0 0
    %674 = vmatprep.subr.bf16.mxu0 0
    %675 = vmatpush1.bf16.msra.mxu0 0
    %676 = vmatprep.subr.bf16.mxu0 0
    %677 = vmatpush1.bf16.msra.mxu0 0
    %678 = vmatprep.subr.bf16.mxu0 0
    %679 = vmatpush1.bf16.msra.mxu0 0
    %680 = vmatprep.subr.bf16.mxu0 0
    %681 = vmatpush1.bf16.msra.mxu0 0
    %682 = vmatprep.subr.bf16.mxu0 0
    %683 = vmatpush1.bf16.msra.mxu0 0
    %684 = vmatprep.subr.bf16.mxu0 0
    %685 = vmatpush1.bf16.msra.mxu0 0
    %686 = vmatprep.subr.bf16.mxu0 0
    %687 = vmatpush1.bf16.msra.mxu0 0
    %688 = vmatprep.subr.bf16.mxu0 0
    %689 = vmatpush1.bf16.msra.mxu0 0
    %690 = vmatprep.subr.bf16.mxu0 0
    %691 = vmatpush1.bf16.msra.mxu0 0
    %692 = vmatprep.subr.bf16.mxu0 0
    %693 = vmatpush1.bf16.msra.mxu0 0
    %694 = vmatprep.subr.bf16.mxu0 0
    %695 = vmatpush1.bf16.msra.mxu0 0
    %696 = vmatprep.subr.bf16.mxu0 0
    %697 = vmatpush1.bf16.msra.mxu0 0
    %698 = vmatprep.subr.bf16.mxu0 0
    %699 = vmatpush1.bf16.msra.mxu0 0
    %700 = vmatprep.mubr.bf16.mxu0 0
    %701 = vmatmul.mubr.bf16.gmra.mrb[0].mxu0 %v624
    %v702 = vpop.f32.mrb[0].mxu0
    %v703 = vadd.f32 0.0, %v702
    %v704 = vpop.f32.mrb[0].mxu0
    %v705 = vpop.f32.mrb[0].mxu0
    %v706 = vpop.f32.mrb[0].mxu0
    %707 = vdwg.mxu0
    %v708 = vadd.f32 %v667, %v703
    %v709 = vxor.u32 %v708, 2147483648
    %v710 = vmul.f32 %v709, 1.442695
    %v711 = vpow.pop %v710
    %v712 = vadd.f32 %v711, 1.0
    %v713 = vrcp.pop %v712
    %v714 = vmul.f32 1.0, %v713
    %v715 = vtanh.pop %v708
    %v716 = vmul.f32 %v714, %v612
    %718 = vrot.lane.b32.xlu0 %v715, 32
    %v719 = vpop.permute.xlu0 %718
    %v721 = vmul.f32 %v714, %v719
    %723 = vrot.lane.b32.xlu0 %v721, 32
    %v724 = vpop.permute.xlu0 %723
    %v726 = vadd.f32 %v716, %v724
    %v727 = vtanh.pop %v726
    %729 = vrot.lane.b32.xlu0 %v727, 32
    %v730 = vpop.permute.xlu0 %729
    %v732 = vmul.f32 %v714, %v730
    %v733 = vpack.c.bf16 %v732, %v732
    %735 = vrot.lane.b32.xlu0 %v733, 64
    %v736 = vpop.permute.xlu0 %735
    %v738 = vsel %vm304, %v736, 0
    %740 = vmatprep.subr.bf16.mxu0 0
    %741 = vmatpush1.bf16.msra.mxu0 %v391
    %742 = vmatprep.subr.bf16.mxu0 0
    %743 = vmatpush1.bf16.msra.mxu0 %v392
    %744 = vmatprep.subr.bf16.mxu0 0
    %745 = vmatpush1.bf16.msra.mxu0 0
    %746 = vmatprep.subr.bf16.mxu0 0
    %747 = vmatpush1.bf16.msra.mxu0 0
    %748 = vmatprep.subr.bf16.mxu0 0
    %749 = vmatpush1.bf16.msra.mxu0 0
    %750 = vmatprep.subr.bf16.mxu0 0
    %751 = vmatpush1.bf16.msra.mxu0 0
    %752 = vmatprep.subr.bf16.mxu0 0
    %753 = vmatpush1.bf16.msra.mxu0 0
    %754 = vmatprep.subr.bf16.mxu0 0
    %755 = vmatpush1.bf16.msra.mxu0 0
    %756 = vmatprep.subr.bf16.mxu0 0
    %757 = vmatpush1.bf16.msra.mxu0 0
    %758 = vmatprep.subr.bf16.mxu0 0
    %759 = vmatpush1.bf16.msra.mxu0 0
    %760 = vmatprep.subr.bf16.mxu0 0
    %761 = vmatpush1.bf16.msra.mxu0 0
    %762 = vmatprep.subr.bf16.mxu0 0
    %763 = vmatpush1.bf16.msra.mxu0 0
    %764 = vmatprep.subr.bf16.mxu0 0
    %765 = vmatpush1.bf16.msra.mxu0 0
    %766 = vmatprep.subr.bf16.mxu0 0
    %767 = vmatpush1.bf16.msra.mxu0 0
    %768 = vmatprep.subr.bf16.mxu0 0
    %769 = vmatpush1.bf16.msra.mxu0 0
    %770 = vmatprep.subr.bf16.mxu0 0
    %771 = vmatpush1.bf16.msra.mxu0 0
    %772 = vmatprep.mubr.bf16.mxu0 0
    %773 = vmatmul.mubr.bf16.gmra.mrb[0].mxu0 %v738
    %v774 = vpop.f32.mrb[0].mxu0
    %v775 = vadd.f32 %v378, %v774
    %v776 = vpop.f32.mrb[0].mxu0
    %v777 = vpop.f32.mrb[0].mxu0
    %v778 = vpop.f32.mrb[0].mxu0
    %779 = vdwg.mxu0
    %780 = vst [vmem:[#allocation3 + $0x18] sm:$0xff] %v775
    %v781 = vld [vmem:[#allocation2 + $0x20] sm:$0xff]
    %782 = vmatprep.subr.bf16.mxu0 0
    %783 = vmatpush1.bf16.msra.mxu0 %v300
    %784 = vmatprep.subr.bf16.mxu0 0
    %785 = vmatpush1.bf16.msra.mxu0 %v301
    %786 = vmatprep.subr.bf16.mxu0 0
    %787 = vmatpush1.bf16.msra.mxu0 0
    %788 = vmatprep.subr.bf16.mxu0 0
    %789 = vmatpush1.bf16.msra.mxu0 0
    %790 = vmatprep.subr.bf16.mxu0 0
    %791 = vmatpush1.bf16.msra.mxu0 0
    %792 = vmatprep.subr.bf16.mxu0 0
    %793 = vmatpush1.bf16.msra.mxu0 0
    %794 = vmatprep.subr.bf16.mxu0 0
    %795 = vmatpush1.bf16.msra.mxu0 0
    %796 = vmatprep.subr.bf16.mxu0 0
    %797 = vmatpush1.bf16.msra.mxu0 0
    %798 = vmatprep.subr.bf16.mxu0 0
    %799 = vmatpush1.bf16.msra.mxu0 0
    %800 = vmatprep.subr.bf16.mxu0 0
    %801 = vmatpush1.bf16.msra.mxu0 0
    %802 = vmatprep.subr.bf16.mxu0 0
    %803 = vmatpush1.bf16.msra.mxu0 0
    %804 = vmatprep.subr.bf16.mxu0 0
    %805 = vmatpush1.bf16.msra.mxu0 0
    %806 = vmatprep.subr.bf16.mxu0 0
    %807 = vmatpush1.bf16.msra.mxu0 0
    %808 = vmatprep.subr.bf16.mxu0 0
    %809 = vmatpush1.bf16.msra.mxu0 0
    %810 = vmatprep.subr.bf16.mxu0 0
    %811 = vmatpush1.bf16.msra.mxu0 0
    %812 = vmatprep.subr.bf16.mxu0 0
    %813 = vmatpush1.bf16.msra.mxu0 0
    %814 = vmatprep.mubr.bf16.mxu0 0
    %815 = vmatmul.mubr.bf16.gmra.mrb[0].mxu0 %v738
    %v816 = vpop.f32.mrb[0].mxu0
    %v817 = vadd.f32 0.0, %v816
    %v818 = vpop.f32.mrb[0].mxu0
    %v819 = vpop.f32.mrb[0].mxu0
    %v820 = vpop.f32.mrb[0].mxu0
    %821 = vdwg.mxu0
    %v822 = vadd.f32 %v781, %v817
    %v823 = vxor.u32 %v822, 2147483648
    %v824 = vmul.f32 %v823, 1.442695
    %v825 = vpow.pop %v824
    %v826 = vadd.f32 %v825, 1.0
    %v827 = vrcp.pop %v826
    %v828 = vmul.f32 1.0, %v827
    %v829 = vtanh.pop %v822
    %v830 = vmul.f32 %v828, %v726
    %832 = vrot.lane.b32.xlu0 %v829, 32
    %v833 = vpop.permute.xlu0 %832
    %v835 = vmul.f32 %v828, %v833
    %837 = vrot.lane.b32.xlu0 %v835, 32
    %v838 = vpop.permute.xlu0 %837
    %v840 = vadd.f32 %v830, %v838
    %v841 = vtanh.pop %v840
    %843 = vrot.lane.b32.xlu0 %v841, 32
    %v844 = vpop.permute.xlu0 %843
    %v846 = vmul.f32 %v828, %v844
    %v847 = vpack.c.bf16 %v846, %v846
    %849 = vrot.lane.b32.xlu0 %v847, 64
    %v850 = vpop.permute.xlu0 %849
    %v852 = vsel %vm304, %v850, 0
    %854 = vmatprep.subr.bf16.mxu0 0
    %855 = vmatpush1.bf16.msra.mxu0 %v391
    %856 = vmatprep.subr.bf16.mxu0 0
    %857 = vmatpush1.bf16.msra.mxu0 %v392
    %858 = vmatprep.subr.bf16.mxu0 0
    %859 = vmatpush1.bf16.msra.mxu0 0
    %860 = vmatprep.subr.bf16.mxu0 0
    %861 = vmatpush1.bf16.msra.mxu0 0
    %862 = vmatprep.subr.bf16.mxu0 0
    %863 = vmatpush1.bf16.msra.mxu0 0
    %864 = vmatprep.subr.bf16.mxu0 0
    %865 = vmatpush1.bf16.msra.mxu0 0
    %866 = vmatprep.subr.bf16.mxu0 0
    %867 = vmatpush1.bf16.msra.mxu0 0
    %868 = vmatprep.subr.bf16.mxu0 0
    %869 = vmatpush1.bf16.msra.mxu0 0
    %870 = vmatprep.subr.bf16.mxu0 0
    %871 = vmatpush1.bf16.msra.mxu0 0
    %872 = vmatprep.subr.bf16.mxu0 0
    %873 = vmatpush1.bf16.msra.mxu0 0
    %874 = vmatprep.subr.bf16.mxu0 0
    %875 = vmatpush1.bf16.msra.mxu0 0
    %876 = vmatprep.subr.bf16.mxu0 0
    %877 = vmatpush1.bf16.msra.mxu0 0
    %878 = vmatprep.subr.bf16.mxu0 0
    %879 = vmatpush1.bf16.msra.mxu0 0
    %880 = vmatprep.subr.bf16.mxu0 0
    %881 = vmatpush1.bf16.msra.mxu0 0
    %882 = vmatprep.subr.bf16.mxu0 0
    %883 = vmatpush1.bf16.msra.mxu0 0
    %884 = vmatprep.subr.bf16.mxu0 0
    %885 = vmatpush1.bf16.msra.mxu0 0
    %886 = vmatprep.mubr.bf16.mxu0 0
    %887 = vmatmul.mubr.bf16.gmra.mrb[0].mxu0 %v852
    %v888 = vpop.f32.mrb[0].mxu0
    %v889 = vadd.f32 %v378, %v888
    %v890 = vpop.f32.mrb[0].mxu0
    %v891 = vpop.f32.mrb[0].mxu0
    %v892 = vpop.f32.mrb[0].mxu0
    %893 = vdwg.mxu0
    %894 = vst [vmem:[#allocation3 + $0x20] sm:$0xff] %v889
    %v895 = vld [vmem:[#allocation2 + $0x28] sm:$0xff]
    %896 = vmatprep.subr.bf16.mxu0 0
    %897 = vmatpush1.bf16.msra.mxu0 %v300
    %898 = vmatprep.subr.bf16.mxu0 0
    %899 = vmatpush1.bf16.msra.mxu0 %v301
    %900 = vmatprep.subr.bf16.mxu0 0
    %901 = vmatpush1.bf16.msra.mxu0 0
    %902 = vmatprep.subr.bf16.mxu0 0
    %903 = vmatpush1.bf16.msra.mxu0 0
    %904 = vmatprep.subr.bf16.mxu0 0
    %905 = vmatpush1.bf16.msra.mxu0 0
    %906 = vmatprep.subr.bf16.mxu0 0
    %907 = vmatpush1.bf16.msra.mxu0 0
    %908 = vmatprep.subr.bf16.mxu0 0
    %909 = vmatpush1.bf16.msra.mxu0 0
    %910 = vmatprep.subr.bf16.mxu0 0
    %911 = vmatpush1.bf16.msra.mxu0 0
    %912 = vmatprep.subr.bf16.mxu0 0
    %913 = vmatpush1.bf16.msra.mxu0 0
    %914 = vmatprep.subr.bf16.mxu0 0
    %915 = vmatpush1.bf16.msra.mxu0 0
    %916 = vmatprep.subr.bf16.mxu0 0
    %917 = vmatpush1.bf16.msra.mxu0 0
    %918 = vmatprep.subr.bf16.mxu0 0
    %919 = vmatpush1.bf16.msra.mxu0 0
    %920 = vmatprep.subr.bf16.mxu0 0
    %921 = vmatpush1.bf16.msra.mxu0 0
    %922 = vmatprep.subr.bf16.mxu0 0
    %923 = vmatpush1.bf16.msra.mxu0 0
    %924 = vmatprep.subr.bf16.mxu0 0
    %925 = vmatpush1.bf16.msra.mxu0 0
    %926 = vmatprep.subr.bf16.mxu0 0
    %927 = vmatpush1.bf16.msra.mxu0 0
    %928 = vmatprep.mubr.bf16.mxu0 0
    %929 = vmatmul.mubr.bf16.gmra.mrb[0].mxu0 %v852
    %v930 = vpop.f32.mrb[0].mxu0
    %v931 = vadd.f32 0.0, %v930
    %v932 = vpop.f32.mrb[0].mxu0
    %v933 = vpop.f32.mrb[0].mxu0
    %v934 = vpop.f32.mrb[0].mxu0
    %935 = vdwg.mxu0
    %v936 = vadd.f32 %v895, %v931
    %v937 = vxor.u32 %v936, 2147483648
    %v938 = vmul.f32 %v937, 1.442695
    %v939 = vpow.pop %v938
    %v940 = vadd.f32 %v939, 1.0
    %v941 = vrcp.pop %v940
    %v942 = vmul.f32 1.0, %v941
    %v943 = vtanh.pop %v936
    %v944 = vmul.f32 %v942, %v840
    %946 = vrot.lane.b32.xlu0 %v943, 32
    %v947 = vpop.permute.xlu0 %946
    %v949 = vmul.f32 %v942, %v947
    %951 = vrot.lane.b32.xlu0 %v949, 32
    %v952 = vpop.permute.xlu0 %951
    %v954 = vadd.f32 %v944, %v952
    %v955 = vtanh.pop %v954
    %957 = vrot.lane.b32.xlu0 %v955, 32
    %v958 = vpop.permute.xlu0 %957
    %v960 = vmul.f32 %v942, %v958
    %v961 = vpack.c.bf16 %v960, %v960
    %963 = vrot.lane.b32.xlu0 %v961, 64
    %v964 = vpop.permute.xlu0 %963
    %v966 = vsel %vm304, %v964, 0
    %968 = vmatprep.subr.bf16.mxu0 0
    %969 = vmatpush1.bf16.msra.mxu0 %v391
    %970 = vmatprep.subr.bf16.mxu0 0
    %971 = vmatpush1.bf16.msra.mxu0 %v392
    %972 = vmatprep.subr.bf16.mxu0 0
    %973 = vmatpush1.bf16.msra.mxu0 0
    %974 = vmatprep.subr.bf16.mxu0 0
    %975 = vmatpush1.bf16.msra.mxu0 0
    %976 = vmatprep.subr.bf16.mxu0 0
    %977 = vmatpush1.bf16.msra.mxu0 0
    %978 = vmatprep.subr.bf16.mxu0 0
    %979 = vmatpush1.bf16.msra.mxu0 0
    %980 = vmatprep.subr.bf16.mxu0 0
    %981 = vmatpush1.bf16.msra.mxu0 0
    %982 = vmatprep.subr.bf16.mxu0 0
    %983 = vmatpush1.bf16.msra.mxu0 0
    %984 = vmatprep.subr.bf16.mxu0 0
    %985 = vmatpush1.bf16.msra.mxu0 0
    %986 = vmatprep.subr.bf16.mxu0 0
    %987 = vmatpush1.bf16.msra.mxu0 0
    %988 = vmatprep.subr.bf16.mxu0 0
    %989 = vmatpush1.bf16.msra.mxu0 0
    %990 = vmatprep.subr.bf16.mxu0 0
    %991 = vmatpush1.bf16.msra.mxu0 0
    %992 = vmatprep.subr.bf16.mxu0 0
    %993 = vmatpush1.bf16.msra.mxu0 0
    %994 = vmatprep.subr.bf16.mxu0 0
    %995 = vmatpush1.bf16.msra.mxu0 0
    %996 = vmatprep.subr.bf16.mxu0 0
    %997 = vmatpush1.bf16.msra.mxu0 0
    %998 = vmatprep.subr.bf16.mxu0 0
    %999 = vmatpush1.bf16.msra.mxu0 0
    %1000 = vmatprep.mubr.bf16.mxu0 0
    %1001 = vmatmul.mubr.bf16.gmra.mrb[0].mxu0 %v966
    %v1002 = vpop.f32.mrb[0].mxu0
    %v1003 = vadd.f32 %v378, %v1002
    %v1004 = vpop.f32.mrb[0].mxu0
    %v1005 = vpop.f32.mrb[0].mxu0
    %v1006 = vpop.f32.mrb[0].mxu0
    %1007 = vdwg.mxu0
    %1008 = vst [vmem:[#allocation3 + $0x28] sm:$0xff] %v1003
    %v1009 = vld [vmem:[#allocation2 + $0x30] sm:$0xff]
    %1010 = vmatprep.subr.bf16.mxu0 0
    %1011 = vmatpush1.bf16.msra.mxu0 %v300
    %1012 = vmatprep.subr.bf16.mxu0 0
    %1013 = vmatpush1.bf16.msra.mxu0 %v301
    %1014 = vmatprep.subr.bf16.mxu0 0
    %1015 = vmatpush1.bf16.msra.mxu0 0
    %1016 = vmatprep.subr.bf16.mxu0 0
    %1017 = vmatpush1.bf16.msra.mxu0 0
    %1018 = vmatprep.subr.bf16.mxu0 0
    %1019 = vmatpush1.bf16.msra.mxu0 0
    %1020 = vmatprep.subr.bf16.mxu0 0
    %1021 = vmatpush1.bf16.msra.mxu0 0
    %1022 = vmatprep.subr.bf16.mxu0 0
    %1023 = vmatpush1.bf16.msra.mxu0 0
    %1024 = vmatprep.subr.bf16.mxu0 0
    %1025 = vmatpush1.bf16.msra.mxu0 0
    %1026 = vmatprep.subr.bf16.mxu0 0
    %1027 = vmatpush1.bf16.msra.mxu0 0
    %1028 = vmatprep.subr.bf16.mxu0 0
    %1029 = vmatpush1.bf16.msra.mxu0 0
    %1030 = vmatprep.subr.bf16.mxu0 0
    %1031 = vmatpush1.bf16.msra.mxu0 0
    %1032 = vmatprep.subr.bf16.mxu0 0
    %1033 = vmatpush1.bf16.msra.mxu0 0
    %1034 = vmatprep.subr.bf16.mxu0 0
    %1035 = vmatpush1.bf16.msra.mxu0 0
    %1036 = vmatprep.subr.bf16.mxu0 0
    %1037 = vmatpush1.bf16.msra.mxu0 0
    %1038 = vmatprep.subr.bf16.mxu0 0
    %1039 = vmatpush1.bf16.msra.mxu0 0
    %1040 = vmatprep.subr.bf16.mxu0 0
    %1041 = vmatpush1.bf16.msra.mxu0 0
    %1042 = vmatprep.mubr.bf16.mxu0 0
    %1043 = vmatmul.mubr.bf16.gmra.mrb[0].mxu0 %v966
    %v1044 = vpop.f32.mrb[0].mxu0
    %v1045 = vadd.f32 0.0, %v1044
    %v1046 = vpop.f32.mrb[0].mxu0
    %v1047 = vpop.f32.mrb[0].mxu0
    %v1048 = vpop.f32.mrb[0].mxu0
    %1049 = vdwg.mxu0
    %v1050 = vadd.f32 %v1009, %v1045
    %v1051 = vxor.u32 %v1050, 2147483648
    %v1052 = vmul.f32 %v1051, 1.442695
    %v1053 = vpow.pop %v1052
    %v1054 = vadd.f32 %v1053, 1.0
    %v1055 = vrcp.pop %v1054
    %v1056 = vmul.f32 1.0, %v1055
    %v1057 = vtanh.pop %v1050
    %v1058 = vmul.f32 %v1056, %v954
    %1060 = vrot.lane.b32.xlu0 %v1057, 32
    %v1061 = vpop.permute.xlu0 %1060
    %v1063 = vmul.f32 %v1056, %v1061
    %1065 = vrot.lane.b32.xlu0 %v1063, 32
    %v1066 = vpop.permute.xlu0 %1065
    %v1068 = vadd.f32 %v1058, %v1066
    %v1069 = vtanh.pop %v1068
    %1071 = vrot.lane.b32.xlu0 %v1069, 32
    %v1072 = vpop.permute.xlu0 %1071
    %v1074 = vmul.f32 %v1056, %v1072
    %v1075 = vpack.c.bf16 %v1074, %v1074
    %1077 = vrot.lane.b32.xlu0 %v1075, 64
    %v1078 = vpop.permute.xlu0 %1077
    %v1080 = vsel %vm304, %v1078, 0
    %1082 = vmatprep.subr.bf16.mxu0 0
    %1083 = vmatpush1.bf16.msra.mxu0 %v391
    %1084 = vmatprep.subr.bf16.mxu0 0
    %1085 = vmatpush1.bf16.msra.mxu0 %v392
    %1086 = vmatprep.subr.bf16.mxu0 0
    %1087 = vmatpush1.bf16.msra.mxu0 0
    %1088 = vmatprep.subr.bf16.mxu0 0
    %1089 = vmatpush1.bf16.msra.mxu0 0
    %1090 = vmatprep.subr.bf16.mxu0 0
    %1091 = vmatpush1.bf16.msra.mxu0 0
    %1092 = vmatprep.subr.bf16.mxu0 0
    %1093 = vmatpush1.bf16.msra.mxu0 0
    %1094 = vmatprep.subr.bf16.mxu0 0
    %1095 = vmatpush1.bf16.msra.mxu0 0
    %1096 = vmatprep.subr.bf16.mxu0 0
    %1097 = vmatpush1.bf16.msra.mxu0 0
    %1098 = vmatprep.subr.bf16.mxu0 0
    %1099 = vmatpush1.bf16.msra.mxu0 0
    %1100 = vmatprep.subr.bf16.mxu0 0
    %1101 = vmatpush1.bf16.msra.mxu0 0
    %1102 = vmatprep.subr.bf16.mxu0 0
    %1103 = vmatpush1.bf16.msra.mxu0 0
    %1104 = vmatprep.subr.bf16.mxu0 0
    %1105 = vmatpush1.bf16.msra.mxu0 0
    %1106 = vmatprep.subr.bf16.mxu0 0
    %1107 = vmatpush1.bf16.msra.mxu0 0
    %1108 = vmatprep.subr.bf16.mxu0 0
    %1109 = vmatpush1.bf16.msra.mxu0 0
    %1110 = vmatprep.subr.bf16.mxu0 0
    %1111 = vmatpush1.bf16.msra.mxu0 0
    %1112 = vmatprep.subr.bf16.mxu0 0
    %1113 = vmatpush1.bf16.msra.mxu0 0
    %1114 = vmatprep.mubr.bf16.mxu0 0
    %1115 = vmatmul.mubr.bf16.gmra.mrb[0].mxu0 %v1080
    %v1116 = vpop.f32.mrb[0].mxu0
    %v1117 = vadd.f32 %v378, %v1116
    %v1118 = vpop.f32.mrb[0].mxu0
    %v1119 = vpop.f32.mrb[0].mxu0
    %v1120 = vpop.f32.mrb[0].mxu0
    %1121 = vdwg.mxu0
    %1122 = vst [vmem:[#allocation3 + $0x30] sm:$0xff] %v1117
    %v1123 = vld [vmem:[#allocation2 + $0x38] sm:$0xff]
    %1124 = vmatprep.subr.bf16.mxu0 0
    %1125 = vmatpush1.bf16.msra.mxu0 %v300
    %1126 = vmatprep.subr.bf16.mxu0 0
    %1127 = vmatpush1.bf16.msra.mxu0 %v301
    %1128 = vmatprep.subr.bf16.mxu0 0
    %1129 = vmatpush1.bf16.msra.mxu0 0
    %1130 = vmatprep.subr.bf16.mxu0 0
    %1131 = vmatpush1.bf16.msra.mxu0 0
    %1132 = vmatprep.subr.bf16.mxu0 0
    %1133 = vmatpush1.bf16.msra.mxu0 0
    %1134 = vmatprep.subr.bf16.mxu0 0
    %1135 = vmatpush1.bf16.msra.mxu0 0
    %1136 = vmatprep.subr.bf16.mxu0 0
    %1137 = vmatpush1.bf16.msra.mxu0 0
    %1138 = vmatprep.subr.bf16.mxu0 0
    %1139 = vmatpush1.bf16.msra.mxu0 0
    %1140 = vmatprep.subr.bf16.mxu0 0
    %1141 = vmatpush1.bf16.msra.mxu0 0
    %1142 = vmatprep.subr.bf16.mxu0 0
    %1143 = vmatpush1.bf16.msra.mxu0 0
    %1144 = vmatprep.subr.bf16.mxu0 0
    %1145 = vmatpush1.bf16.msra.mxu0 0
    %1146 = vmatprep.subr.bf16.mxu0 0
    %1147 = vmatpush1.bf16.msra.mxu0 0
    %1148 = vmatprep.subr.bf16.mxu0 0
    %1149 = vmatpush1.bf16.msra.mxu0 0
    %1150 = vmatprep.subr.bf16.mxu0 0
    %1151 = vmatpush1.bf16.msra.mxu0 0
    %1152 = vmatprep.subr.bf16.mxu0 0
    %1153 = vmatpush1.bf16.msra.mxu0 0
    %1154 = vmatprep.subr.bf16.mxu0 0
    %1155 = vmatpush1.bf16.msra.mxu0 0
    %1156 = vmatprep.mubr.bf16.mxu0 0
    %1157 = vmatmul.mubr.bf16.gmra.mrb[0].mxu0 %v1080
    %v1158 = vpop.f32.mrb[0].mxu0
    %v1159 = vadd.f32 0.0, %v1158
    %v1160 = vpop.f32.mrb[0].mxu0
    %v1161 = vpop.f32.mrb[0].mxu0
    %v1162 = vpop.f32.mrb[0].mxu0
    %1163 = vdwg.mxu0
    %v1164 = vadd.f32 %v1123, %v1159
    %v1165 = vxor.u32 %v1164, 2147483648
    %v1166 = vmul.f32 %v1165, 1.442695
    %v1167 = vpow.pop %v1166
    %v1168 = vadd.f32 %v1167, 1.0
    %v1169 = vrcp.pop %v1168
    %v1170 = vmul.f32 1.0, %v1169
    %v1171 = vtanh.pop %v1164
    %v1172 = vmul.f32 %v1170, %v1068
    %1174 = vrot.lane.b32.xlu0 %v1171, 32
    %v1175 = vpop.permute.xlu0 %1174
    %v1177 = vmul.f32 %v1170, %v1175
    %1179 = vrot.lane.b32.xlu0 %v1177, 32
    %v1180 = vpop.permute.xlu0 %1179
    %v1182 = vadd.f32 %v1172, %v1180
    %v1183 = vtanh.pop %v1182
    %1185 = vrot.lane.b32.xlu0 %v1183, 32
    %v1186 = vpop.permute.xlu0 %1185
    %v1188 = vmul.f32 %v1170, %v1186
    %v1189 = vpack.c.bf16 %v1188, %v1188
    %1191 = vrot.lane.b32.xlu0 %v1189, 64
    %v1192 = vpop.permute.xlu0 %1191
    %v1194 = vsel %vm304, %v1192, 0
    %1196 = vmatprep.subr.bf16.mxu0 0
    %1197 = vmatpush1.bf16.msra.mxu0 %v391
    %1198 = vmatprep.subr.bf16.mxu0 0
    %1199 = vmatpush1.bf16.msra.mxu0 %v392
    %1200 = vmatprep.subr.bf16.mxu0 0
    %1201 = vmatpush1.bf16.msra.mxu0 0
    %1202 = vmatprep.subr.bf16.mxu0 0
    %1203 = vmatpush1.bf16.msra.mxu0 0
    %1204 = vmatprep.subr.bf16.mxu0 0
    %1205 = vmatpush1.bf16.msra.mxu0 0
    %1206 = vmatprep.subr.bf16.mxu0 0
    %1207 = vmatpush1.bf16.msra.mxu0 0
    %1208 = vmatprep.subr.bf16.mxu0 0
    %1209 = vmatpush1.bf16.msra.mxu0 0
    %1210 = vmatprep.subr.bf16.mxu0 0
    %1211 = vmatpush1.bf16.msra.mxu0 0
    %1212 = vmatprep.subr.bf16.mxu0 0
    %1213 = vmatpush1.bf16.msra.mxu0 0
    %1214 = vmatprep.subr.bf16.mxu0 0
    %1215 = vmatpush1.bf16.msra.mxu0 0
    %1216 = vmatprep.subr.bf16.mxu0 0
    %1217 = vmatpush1.bf16.msra.mxu0 0
    %1218 = vmatprep.subr.bf16.mxu0 0
    %1219 = vmatpush1.bf16.msra.mxu0 0
    %1220 = vmatprep.subr.bf16.mxu0 0
    %1221 = vmatpush1.bf16.msra.mxu0 0
    %1222 = vmatprep.subr.bf16.mxu0 0
    %1223 = vmatpush1.bf16.msra.mxu0 0
    %1224 = vmatprep.subr.bf16.mxu0 0
    %1225 = vmatpush1.bf16.msra.mxu0 0
    %1226 = vmatprep.subr.bf16.mxu0 0
    %1227 = vmatpush1.bf16.msra.mxu0 0
    %1228 = vmatprep.mubr.bf16.mxu0 0
    %1229 = vmatmul.mubr.bf16.gmra.mrb[0].mxu0 %v1194
    %v1230 = vpop.f32.mrb[0].mxu0
    %v1231 = vadd.f32 %v378, %v1230
    %v1232 = vpop.f32.mrb[0].mxu0
    %v1233 = vpop.f32.mrb[0].mxu0
    %v1234 = vpop.f32.mrb[0].mxu0
    %1235 = vdwg.mxu0
    %1236 = vst [vmem:[#allocation3 + $0x38] sm:$0xff] %v1231
    %v1237 = vld [vmem:[%s5] sm:$0xf]
    %v1238 = vld [vmem:[%s5 + $0x4] sm:$0xf]
    %v1239 = vld [vmem:[%s5 + $0x8] sm:$0xf]
    %v1240 = vld [vmem:[%s5 + $0xc] sm:$0xf]
    %v1241 = vld [vmem:[%s7] sm:$0xf]
    %v1242 = vld [vmem:[%s7 + $0x4] sm:$0xf]
    %v1243 = vld [vmem:[%s7 + $0x8] sm:$0xf]
    %v1244 = vld [vmem:[%s7 + $0xc] sm:$0xf]
    %v1245 = vld [vmem:[#allocation10] sm:$0x1]
    %v1246 = vld [vmem:[#allocation3] sm:$0xff]
    %v1251 = vunpack.c.l.b16 %v1237
    %v1252 = vunpack.c.l.b16 %v1238
    %v1253 = vunpack.c.l.b16 %v1239
    %v1254 = vunpack.c.l.b16 %v1240
    %v1255 = vpack.c.b16 %v1252, %v1251
    %v1256 = vpack.c.b16 %v1254, %v1253
    %1259 = vmatprep.subr.bf16.mxu0 0
    %1260 = vmatpush1.bf16.msra.mxu0 %v1255
    %1261 = vmatprep.subr.bf16.mxu0 0
    %1262 = vmatpush1.bf16.msra.mxu0 %v1256
    %1263 = vmatprep.subr.bf16.mxu0 0
    %1264 = vmatpush1.bf16.msra.mxu0 0
    %1265 = vmatprep.subr.bf16.mxu0 0
    %1266 = vmatpush1.bf16.msra.mxu0 0
    %1267 = vmatprep.subr.bf16.mxu0 0
    %1268 = vmatpush1.bf16.msra.mxu0 0
    %1269 = vmatprep.subr.bf16.mxu0 0
    %1270 = vmatpush1.bf16.msra.mxu0 0
    %1271 = vmatprep.subr.bf16.mxu0 0
    %1272 = vmatpush1.bf16.msra.mxu0 0
    %1273 = vmatprep.subr.bf16.mxu0 0
    %1274 = vmatpush1.bf16.msra.mxu0 0
    %1275 = vmatprep.subr.bf16.mxu0 0
    %1276 = vmatpush1.bf16.msra.mxu0 0
    %1277 = vmatprep.subr.bf16.mxu0 0
    %1278 = vmatpush1.bf16.msra.mxu0 0
    %1279 = vmatprep.subr.bf16.mxu0 0
    %1280 = vmatpush1.bf16.msra.mxu0 0
    %1281 = vmatprep.subr.bf16.mxu0 0
    %1282 = vmatpush1.bf16.msra.mxu0 0
    %1283 = vmatprep.subr.bf16.mxu0 0
    %1284 = vmatpush1.bf16.msra.mxu0 0
    %1285 = vmatprep.subr.bf16.mxu0 0
    %1286 = vmatpush1.bf16.msra.mxu0 0
    %1287 = vmatprep.subr.bf16.mxu0 0
    %1288 = vmatpush1.bf16.msra.mxu0 0
    %1289 = vmatprep.subr.bf16.mxu0 0
    %1290 = vmatpush1.bf16.msra.mxu0 0
    %1291 = vmatprep.mubr.bf16.mxu0 0
    %1292 = vmatmul.mubr.bf16.gmra.mrb[0].mxu0 %v306
    %v1293 = vpop.f32.mrb[0].mxu0
    %v1294 = vadd.f32 0.0, %v1293
    %v1295 = vpop.f32.mrb[0].mxu0
    %v1296 = vpop.f32.mrb[0].mxu0
    %v1297 = vpop.f32.mrb[0].mxu0
    %1298 = vdwg.mxu0
    %v1299 = vadd.f32 %v1246, %v1294
    %v1300 = vxor.u32 %v1299, 2147483648
    %v1301 = vmul.f32 %v1300, 1.442695
    %v1302 = vpow.pop %v1301
    %v1303 = vadd.f32 %v1302, 1.0
    %v1304 = vrcp.pop %v1303
    %v1305 = vmul.f32 1.0, %v1304
    %v1306 = vtanh.pop %v1299
    %v1307 = vmul.f32 %v1305, 0.0
    %1309 = vrot.lane.b32.xlu0 %v1306, 32
    %v1310 = vpop.permute.xlu0 %1309
    %v1312 = vmul.f32 %v1305, %v1310
    %1314 = vrot.lane.b32.xlu0 %v1312, 32
    %v1315 = vpop.permute.xlu0 %1314
    %v1317 = vadd.f32 %v1307, %v1315
    %v1318 = vtanh.pop %v1317
    %1320 = vrot.lane.b32.xlu0 %v1318, 32
    %v1321 = vpop.permute.xlu0 %1320
    %v1323 = vmul.f32 %v1305, %v1321
    %v1324 = vpack.c.bf16 %v1323, %v1323
    %v1326 = vlaneseq
    %v1327 = vshrl.u32 %v1326, 7
    %v1328 = vsub.s32 0, %v1327
    %v1329 = vrot.slane %v1245, %v1328
    %1332 = vrot.lane.b32.xlu0 %v1324, 64
    %v1333 = vpop.permute.xlu0 %1332
    %v1338 = vunpack.c.l.b16 %v1241
    %v1339 = vunpack.c.l.b16 %v1242
    %v1340 = vunpack.c.l.b16 %v1243
    %v1341 = vunpack.c.l.b16 %v1244
    %v1342 = vpack.c.b16 %v1339, %v1338
    %v1343 = vpack.c.b16 %v1341, %v1340
    %v1347 = vsel %vm304, %v1333, 0
    %1349 = vmatprep.subr.bf16.mxu0 0
    %1350 = vmatpush1.bf16.msra.mxu0 %v1342
    %1351 = vmatprep.subr.bf16.mxu0 0
    %1352 = vmatpush1.bf16.msra.mxu0 %v1343
    %1353 = vmatprep.subr.bf16.mxu0 0
    %1354 = vmatpush1.bf16.msra.mxu0 0
    %1355 = vmatprep.subr.bf16.mxu0 0
    %1356 = vmatpush1.bf16.msra.mxu0 0
    %1357 = vmatprep.subr.bf16.mxu0 0
    %1358 = vmatpush1.bf16.msra.mxu0 0
    %1359 = vmatprep.subr.bf16.mxu0 0
    %1360 = vmatpush1.bf16.msra.mxu0 0
    %1361 = vmatprep.subr.bf16.mxu0 0
    %1362 = vmatpush1.bf16.msra.mxu0 0
    %1363 = vmatprep.subr.bf16.mxu0 0
    %1364 = vmatpush1.bf16.msra.mxu0 0
    %1365 = vmatprep.subr.bf16.mxu0 0
    %1366 = vmatpush1.bf16.msra.mxu0 0
    %1367 = vmatprep.subr.bf16.mxu0 0
    %1368 = vmatpush1.bf16.msra.mxu0 0
    %1369 = vmatprep.subr.bf16.mxu0 0
    %1370 = vmatpush1.bf16.msra.mxu0 0
    %1371 = vmatprep.subr.bf16.mxu0 0
    %1372 = vmatpush1.bf16.msra.mxu0 0
    %1373 = vmatprep.subr.bf16.mxu0 0
    %1374 = vmatpush1.bf16.msra.mxu0 0
    %1375 = vmatprep.subr.bf16.mxu0 0
    %1376 = vmatpush1.bf16.msra.mxu0 0
    %1377 = vmatprep.subr.bf16.mxu0 0
    %1378 = vmatpush1.bf16.msra.mxu0 0
    %1379 = vmatprep.subr.bf16.mxu0 0
    %1380 = vmatpush1.bf16.msra.mxu0 0
    %1381 = vmatprep.mubr.bf16.mxu0 0
    %1382 = vmatmul.mubr.bf16.gmra.mrb[0].mxu0 %v1347
    %v1383 = vpop.f32.mrb[0].mxu0
    %v1384 = vadd.f32 %v1329, %v1383
    %v1385 = vpop.f32.mrb[0].mxu0
    %v1386 = vpop.f32.mrb[0].mxu0
    %v1387 = vpop.f32.mrb[0].mxu0
    %1388 = vdwg.mxu0
    %1389 = vst [vmem:[#allocation2] sm:$0xff] %v1384
    %v1390 = vld [vmem:[#allocation3 + $0x8] sm:$0xff]
    %1391 = vmatprep.subr.bf16.mxu0 0
    %1392 = vmatpush1.bf16.msra.mxu0 %v1255
    %1393 = vmatprep.subr.bf16.mxu0 0
    %1394 = vmatpush1.bf16.msra.mxu0 %v1256
    %1395 = vmatprep.subr.bf16.mxu0 0
    %1396 = vmatpush1.bf16.msra.mxu0 0
    %1397 = vmatprep.subr.bf16.mxu0 0
    %1398 = vmatpush1.bf16.msra.mxu0 0
    %1399 = vmatprep.subr.bf16.mxu0 0
    %1400 = vmatpush1.bf16.msra.mxu0 0
    %1401 = vmatprep.subr.bf16.mxu0 0
    %1402 = vmatpush1.bf16.msra.mxu0 0
    %1403 = vmatprep.subr.bf16.mxu0 0
    %1404 = vmatpush1.bf16.msra.mxu0 0
    %1405 = vmatprep.subr.bf16.mxu0 0
    %1406 = vmatpush1.bf16.msra.mxu0 0
    %1407 = vmatprep.subr.bf16.mxu0 0
    %1408 = vmatpush1.bf16.msra.mxu0 0
    %1409 = vmatprep.subr.bf16.mxu0 0
    %1410 = vmatpush1.bf16.msra.mxu0 0
    %1411 = vmatprep.subr.bf16.mxu0 0
    %1412 = vmatpush1.bf16.msra.mxu0 0
    %1413 = vmatprep.subr.bf16.mxu0 0
    %1414 = vmatpush1.bf16.msra.mxu0 0
    %1415 = vmatprep.subr.bf16.mxu0 0
    %1416 = vmatpush1.bf16.msra.mxu0 0
    %1417 = vmatprep.subr.bf16.mxu0 0
    %1418 = vmatpush1.bf16.msra.mxu0 0
    %1419 = vmatprep.subr.bf16.mxu0 0
    %1420 = vmatpush1.bf16.msra.mxu0 0
    %1421 = vmatprep.subr.bf16.mxu0 0
    %1422 = vmatpush1.bf16.msra.mxu0 0
    %1423 = vmatprep.mubr.bf16.mxu0 0
    %1424 = vmatmul.mubr.bf16.gmra.mrb[0].mxu0 %v1347
    %v1425 = vpop.f32.mrb[0].mxu0
    %v1426 = vadd.f32 0.0, %v1425
    %v1427 = vpop.f32.mrb[0].mxu0
    %v1428 = vpop.f32.mrb[0].mxu0
    %v1429 = vpop.f32.mrb[0].mxu0
    %1430 = vdwg.mxu0
    %v1431 = vadd.f32 %v1390, %v1426
    %v1432 = vxor.u32 %v1431, 2147483648
    %v1433 = vmul.f32 %v1432, 1.442695
    %v1434 = vpow.pop %v1433
    %v1435 = vadd.f32 %v1434, 1.0
    %v1436 = vrcp.pop %v1435
    %v1437 = vmul.f32 1.0, %v1436
    %v1438 = vtanh.pop %v1431
    %v1439 = vmul.f32 %v1437, %v1317
    %1441 = vrot.lane.b32.xlu0 %v1438, 32
    %v1442 = vpop.permute.xlu0 %1441
    %v1444 = vmul.f32 %v1437, %v1442
    %1446 = vrot.lane.b32.xlu0 %v1444, 32
    %v1447 = vpop.permute.xlu0 %1446
    %v1449 = vadd.f32 %v1439, %v1447
    %v1450 = vtanh.pop %v1449
    %1452 = vrot.lane.b32.xlu0 %v1450, 32
    %v1453 = vpop.permute.xlu0 %1452
    %v1455 = vmul.f32 %v1437, %v1453
    %v1456 = vpack.c.bf16 %v1455, %v1455
    %1458 = vrot.lane.b32.xlu0 %v1456, 64
    %v1459 = vpop.permute.xlu0 %1458
    %v1461 = vsel %vm304, %v1459, 0
    %1463 = vmatprep.subr.bf16.mxu0 0
    %1464 = vmatpush1.bf16.msra.mxu0 %v1342
    %1465 = vmatprep.subr.bf16.mxu0 0
    %1466 = vmatpush1.bf16.msra.mxu0 %v1343
    %1467 = vmatprep.subr.bf16.mxu0 0
    %1468 = vmatpush1.bf16.msra.mxu0 0
    %1469 = vmatprep.subr.bf16.mxu0 0
    %1470 = vmatpush1.bf16.msra.mxu0 0
    %1471 = vmatprep.subr.bf16.mxu0 0
    %1472 = vmatpush1.bf16.msra.mxu0 0
    %1473 = vmatprep.subr.bf16.mxu0 0
    %1474 = vmatpush1.bf16.msra.mxu0 0
    %1475 = vmatprep.subr.bf16.mxu0 0
    %1476 = vmatpush1.bf16.msra.mxu0 0
    %1477 = vmatprep.subr.bf16.mxu0 0
    %1478 = vmatpush1.bf16.msra.mxu0 0
    %1479 = vmatprep.subr.bf16.mxu0 0
    %1480 = vmatpush1.bf16.msra.mxu0 0
    %1481 = vmatprep.subr.bf16.mxu0 0
    %1482 = vmatpush1.bf16.msra.mxu0 0
    %1483 = vmatprep.subr.bf16.mxu0 0
    %1484 = vmatpush1.bf16.msra.mxu0 0
    %1485 = vmatprep.subr.bf16.mxu0 0
    %1486 = vmatpush1.bf16.msra.mxu0 0
    %1487 = vmatprep.subr.bf16.mxu0 0
    %1488 = vmatpush1.bf16.msra.mxu0 0
    %1489 = vmatprep.subr.bf16.mxu0 0
    %1490 = vmatpush1.bf16.msra.mxu0 0
    %1491 = vmatprep.subr.bf16.mxu0 0
    %1492 = vmatpush1.bf16.msra.mxu0 0
    %1493 = vmatprep.subr.bf16.mxu0 0
    %1494 = vmatpush1.bf16.msra.mxu0 0
    %1495 = vmatprep.mubr.bf16.mxu0 0
    %1496 = vmatmul.mubr.bf16.gmra.mrb[0].mxu0 %v1461
    %v1497 = vpop.f32.mrb[0].mxu0
    %v1498 = vadd.f32 %v1329, %v1497
    %v1499 = vpop.f32.mrb[0].mxu0
    %v1500 = vpop.f32.mrb[0].mxu0
    %v1501 = vpop.f32.mrb[0].mxu0
    %1502 = vdwg.mxu0
    %1503 = vst [vmem:[#allocation2 + $0x8] sm:$0xff] %v1498
    %v1504 = vld [vmem:[#allocation3 + $0x10] sm:$0xff]
    %1505 = vmatprep.subr.bf16.mxu0 0
    %1506 = vmatpush1.bf16.msra.mxu0 %v1255
    %1507 = vmatprep.subr.bf16.mxu0 0
    %1508 = vmatpush1.bf16.msra.mxu0 %v1256
    %1509 = vmatprep.subr.bf16.mxu0 0
    %1510 = vmatpush1.bf16.msra.mxu0 0
    %1511 = vmatprep.subr.bf16.mxu0 0
    %1512 = vmatpush1.bf16.msra.mxu0 0
    %1513 = vmatprep.subr.bf16.mxu0 0
    %1514 = vmatpush1.bf16.msra.mxu0 0
    %1515 = vmatprep.subr.bf16.mxu0 0
    %1516 = vmatpush1.bf16.msra.mxu0 0
    %1517 = vmatprep.subr.bf16.mxu0 0
    %1518 = vmatpush1.bf16.msra.mxu0 0
    %1519 = vmatprep.subr.bf16.mxu0 0
    %1520 = vmatpush1.bf16.msra.mxu0 0
    %1521 = vmatprep.subr.bf16.mxu0 0
    %1522 = vmatpush1.bf16.msra.mxu0 0
    %1523 = vmatprep.subr.bf16.mxu0 0
    %1524 = vmatpush1.bf16.msra.mxu0 0
    %1525 = vmatprep.subr.bf16.mxu0 0
    %1526 = vmatpush1.bf16.msra.mxu0 0
    %1527 = vmatprep.subr.bf16.mxu0 0
    %1528 = vmatpush1.bf16.msra.mxu0 0
    %1529 = vmatprep.subr.bf16.mxu0 0
    %1530 = vmatpush1.bf16.msra.mxu0 0
    %1531 = vmatprep.subr.bf16.mxu0 0
    %1532 = vmatpush1.bf16.msra.mxu0 0
    %1533 = vmatprep.subr.bf16.mxu0 0
    %1534 = vmatpush1.bf16.msra.mxu0 0
    %1535 = vmatprep.subr.bf16.mxu0 0
    %1536 = vmatpush1.bf16.msra.mxu0 0
    %1537 = vmatprep.mubr.bf16.mxu0 0
    %1538 = vmatmul.mubr.bf16.gmra.mrb[0].mxu0 %v1461
    %v1539 = vpop.f32.mrb[0].mxu0
    %v1540 = vadd.f32 0.0, %v1539
    %v1541 = vpop.f32.mrb[0].mxu0
    %v1542 = vpop.f32.mrb[0].mxu0
    %v1543 = vpop.f32.mrb[0].mxu0
    %1544 = vdwg.mxu0
    %v1545 = vadd.f32 %v1504, %v1540
    %v1546 = vxor.u32 %v1545, 2147483648
    %v1547 = vmul.f32 %v1546, 1.442695
    %v1548 = vpow.pop %v1547
    %v1549 = vadd.f32 %v1548, 1.0
    %v1550 = vrcp.pop %v1549
    %v1551 = vmul.f32 1.0, %v1550
    %v1552 = vtanh.pop %v1545
    %v1553 = vmul.f32 %v1551, %v1449
    %1555 = vrot.lane.b32.xlu0 %v1552, 32
    %v1556 = vpop.permute.xlu0 %1555
    %v1558 = vmul.f32 %v1551, %v1556
    %1560 = vrot.lane.b32.xlu0 %v1558, 32
    %v1561 = vpop.permute.xlu0 %1560
    %v1563 = vadd.f32 %v1553, %v1561
    %v1564 = vtanh.pop %v1563
    %1566 = vrot.lane.b32.xlu0 %v1564, 32
    %v1567 = vpop.permute.xlu0 %1566
    %v1569 = vmul.f32 %v1551, %v1567
    %v1570 = vpack.c.bf16 %v1569, %v1569
    %1572 = vrot.lane.b32.xlu0 %v1570, 64
    %v1573 = vpop.permute.xlu0 %1572
    %v1575 = vsel %vm304, %v1573, 0
    %1577 = vmatprep.subr.bf16.mxu0 0
    %1578 = vmatpush1.bf16.msra.mxu0 %v1342
    %1579 = vmatprep.subr.bf16.mxu0 0
    %1580 = vmatpush1.bf16.msra.mxu0 %v1343
    %1581 = vmatprep.subr.bf16.mxu0 0
    %1582 = vmatpush1.bf16.msra.mxu0 0
    %1583 = vmatprep.subr.bf16.mxu0 0
    %1584 = vmatpush1.bf16.msra.mxu0 0
    %1585 = vmatprep.subr.bf16.mxu0 0
    %1586 = vmatpush1.bf16.msra.mxu0 0
    %1587 = vmatprep.subr.bf16.mxu0 0
    %1588 = vmatpush1.bf16.msra.mxu0 0
    %1589 = vmatprep.subr.bf16.mxu0 0
    %1590 = vmatpush1.bf16.msra.mxu0 0
    %1591 = vmatprep.subr.bf16.mxu0 0
    %1592 = vmatpush1.bf16.msra.mxu0 0
    %1593 = vmatprep.subr.bf16.mxu0 0
    %1594 = vmatpush1.bf16.msra.mxu0 0
    %1595 = vmatprep.subr.bf16.mxu0 0
    %1596 = vmatpush1.bf16.msra.mxu0 0
    %1597 = vmatprep.subr.bf16.mxu0 0
    %1598 = vmatpush1.bf16.msra.mxu0 0
    %1599 = vmatprep.subr.bf16.mxu0 0
    %1600 = vmatpush1.bf16.msra.mxu0 0
    %1601 = vmatprep.subr.bf16.mxu0 0
    %1602 = vmatpush1.bf16.msra.mxu0 0
    %1603 = vmatprep.subr.bf16.mxu0 0
    %1604 = vmatpush1.bf16.msra.mxu0 0
    %1605 = vmatprep.subr.bf16.mxu0 0
    %1606 = vmatpush1.bf16.msra.mxu0 0
    %1607 = vmatprep.subr.bf16.mxu0 0
    %1608 = vmatpush1.bf16.msra.mxu0 0
    %1609 = vmatprep.mubr.bf16.mxu0 0
    %1610 = vmatmul.mubr.bf16.gmra.mrb[0].mxu0 %v1575
    %v1611 = vpop.f32.mrb[0].mxu0
    %v1612 = vadd.f32 %v1329, %v1611
    %v1613 = vpop.f32.mrb[0].mxu0
    %v1614 = vpop.f32.mrb[0].mxu0
    %v1615 = vpop.f32.mrb[0].mxu0
    %1616 = vdwg.mxu0
    %1617 = vst [vmem:[#allocation2 + $0x10] sm:$0xff] %v1612
    %v1618 = vld [vmem:[#allocation3 + $0x18] sm:$0xff]
    %1619 = vmatprep.subr.bf16.mxu0 0
    %1620 = vmatpush1.bf16.msra.mxu0 %v1255
    %1621 = vmatprep.subr.bf16.mxu0 0
    %1622 = vmatpush1.bf16.msra.mxu0 %v1256
    %1623 = vmatprep.subr.bf16.mxu0 0
    %1624 = vmatpush1.bf16.msra.mxu0 0
    %1625 = vmatprep.subr.bf16.mxu0 0
    %1626 = vmatpush1.bf16.msra.mxu0 0
    %1627 = vmatprep.subr.bf16.mxu0 0
    %1628 = vmatpush1.bf16.msra.mxu0 0
    %1629 = vmatprep.subr.bf16.mxu0 0
    %1630 = vmatpush1.bf16.msra.mxu0 0
    %1631 = vmatprep.subr.bf16.mxu0 0
    %1632 = vmatpush1.bf16.msra.mxu0 0
    %1633 = vmatprep.subr.bf16.mxu0 0
    %1634 = vmatpush1.bf16.msra.mxu0 0
    %1635 = vmatprep.subr.bf16.mxu0 0
    %1636 = vmatpush1.bf16.msra.mxu0 0
    %1637 = vmatprep.subr.bf16.mxu0 0
    %1638 = vmatpush1.bf16.msra.mxu0 0
    %1639 = vmatprep.subr.bf16.mxu0 0
    %1640 = vmatpush1.bf16.msra.mxu0 0
    %1641 = vmatprep.subr.bf16.mxu0 0
    %1642 = vmatpush1.bf16.msra.mxu0 0
    %1643 = vmatprep.subr.bf16.mxu0 0
    %1644 = vmatpush1.bf16.msra.mxu0 0
    %1645 = vmatprep.subr.bf16.mxu0 0
    %1646 = vmatpush1.bf16.msra.mxu0 0
    %1647 = vmatprep.subr.bf16.mxu0 0
    %1648 = vmatpush1.bf16.msra.mxu0 0
    %1649 = vmatprep.subr.bf16.mxu0 0
    %1650 = vmatpush1.bf16.msra.mxu0 0
    %1651 = vmatprep.mubr.bf16.mxu0 0
    %1652 = vmatmul.mubr.bf16.gmra.mrb[0].mxu0 %v1575
    %v1653 = vpop.f32.mrb[0].mxu0
    %v1654 = vadd.f32 0.0, %v1653
    %v1655 = vpop.f32.mrb[0].mxu0
    %v1656 = vpop.f32.mrb[0].mxu0
    %v1657 = vpop.f32.mrb[0].mxu0
    %1658 = vdwg.mxu0
    %v1659 = vadd.f32 %v1618, %v1654
    %v1660 = vxor.u32 %v1659, 2147483648
    %v1661 = vmul.f32 %v1660, 1.442695
    %v1662 = vpow.pop %v1661
    %v1663 = vadd.f32 %v1662, 1.0
    %v1664 = vrcp.pop %v1663
    %v1665 = vmul.f32 1.0, %v1664
    %v1666 = vtanh.pop %v1659
    %v1667 = vmul.f32 %v1665, %v1563
    %1669 = vrot.lane.b32.xlu0 %v1666, 32
    %v1670 = vpop.permute.xlu0 %1669
    %v1672 = vmul.f32 %v1665, %v1670
    %1674 = vrot.lane.b32.xlu0 %v1672, 32
    %v1675 = vpop.permute.xlu0 %1674
    %v1677 = vadd.f32 %v1667, %v1675
    %v1678 = vtanh.pop %v1677
    %1680 = vrot.lane.b32.xlu0 %v1678, 32
    %v1681 = vpop.permute.xlu0 %1680
    %v1683 = vmul.f32 %v1665, %v1681
    %v1684 = vpack.c.bf16 %v1683, %v1683
    %1686 = vrot.lane.b32.xlu0 %v1684, 64
    %v1687 = vpop.permute.xlu0 %1686
    %v1689 = vsel %vm304, %v1687, 0
    %1691 = vmatprep.subr.bf16.mxu0 0
    %1692 = vmatpush1.bf16.msra.mxu0 %v1342
    %1693 = vmatprep.subr.bf16.mxu0 0
    %1694 = vmatpush1.bf16.msra.mxu0 %v1343
    %1695 = vmatprep.subr.bf16.mxu0 0
    %1696 = vmatpush1.bf16.msra.mxu0 0
    %1697 = vmatprep.subr.bf16.mxu0 0
    %1698 = vmatpush1.bf16.msra.mxu0 0
    %1699 = vmatprep.subr.bf16.mxu0 0
    %1700 = vmatpush1.bf16.msra.mxu0 0
    %1701 = vmatprep.subr.bf16.mxu0 0
    %1702 = vmatpush1.bf16.msra.mxu0 0
    %1703 = vmatprep.subr.bf16.mxu0 0
    %1704 = vmatpush1.bf16.msra.mxu0 0
    %1705 = vmatprep.subr.bf16.mxu0 0
    %1706 = vmatpush1.bf16.msra.mxu0 0
    %1707 = vmatprep.subr.bf16.mxu0 0
    %1708 = vmatpush1.bf16.msra.mxu0 0
    %1709 = vmatprep.subr.bf16.mxu0 0
    %1710 = vmatpush1.bf16.msra.mxu0 0
    %1711 = vmatprep.subr.bf16.mxu0 0
    %1712 = vmatpush1.bf16.msra.mxu0 0
    %1713 = vmatprep.subr.bf16.mxu0 0
    %1714 = vmatpush1.bf16.msra.mxu0 0
    %1715 = vmatprep.subr.bf16.mxu0 0
    %1716 = vmatpush1.bf16.msra.mxu0 0
    %1717 = vmatprep.subr.bf16.mxu0 0
    %1718 = vmatpush1.bf16.msra.mxu0 0
    %1719 = vmatprep.subr.bf16.mxu0 0
    %1720 = vmatpush1.bf16.msra.mxu0 0
    %1721 = vmatprep.subr.bf16.mxu0 0
    %1722 = vmatpush1.bf16.msra.mxu0 0
    %1723 = vmatprep.mubr.bf16.mxu0 0
    %1724 = vmatmul.mubr.bf16.gmra.mrb[0].mxu0 %v1689
    %v1725 = vpop.f32.mrb[0].mxu0
    %v1726 = vadd.f32 %v1329, %v1725
    %v1727 = vpop.f32.mrb[0].mxu0
    %v1728 = vpop.f32.mrb[0].mxu0
    %v1729 = vpop.f32.mrb[0].mxu0
    %1730 = vdwg.mxu0
    %1731 = vst [vmem:[#allocation2 + $0x18] sm:$0xff] %v1726
    %v1732 = vld [vmem:[#allocation3 + $0x20] sm:$0xff]
    %1733 = vmatprep.subr.bf16.mxu0 0
    %1734 = vmatpush1.bf16.msra.mxu0 %v1255
    %1735 = vmatprep.subr.bf16.mxu0 0
    %1736 = vmatpush1.bf16.msra.mxu0 %v1256
    %1737 = vmatprep.subr.bf16.mxu0 0
    %1738 = vmatpush1.bf16.msra.mxu0 0
    %1739 = vmatprep.subr.bf16.mxu0 0
    %1740 = vmatpush1.bf16.msra.mxu0 0
    %1741 = vmatprep.subr.bf16.mxu0 0
    %1742 = vmatpush1.bf16.msra.mxu0 0
    %1743 = vmatprep.subr.bf16.mxu0 0
    %1744 = vmatpush1.bf16.msra.mxu0 0
    %1745 = vmatprep.subr.bf16.mxu0 0
    %1746 = vmatpush1.bf16.msra.mxu0 0
    %1747 = vmatprep.subr.bf16.mxu0 0
    %1748 = vmatpush1.bf16.msra.mxu0 0
    %1749 = vmatprep.subr.bf16.mxu0 0
    %1750 = vmatpush1.bf16.msra.mxu0 0
    %1751 = vmatprep.subr.bf16.mxu0 0
    %1752 = vmatpush1.bf16.msra.mxu0 0
    %1753 = vmatprep.subr.bf16.mxu0 0
    %1754 = vmatpush1.bf16.msra.mxu0 0
    %1755 = vmatprep.subr.bf16.mxu0 0
    %1756 = vmatpush1.bf16.msra.mxu0 0
    %1757 = vmatprep.subr.bf16.mxu0 0
    %1758 = vmatpush1.bf16.msra.mxu0 0
    %1759 = vmatprep.subr.bf16.mxu0 0
    %1760 = vmatpush1.bf16.msra.mxu0 0
    %1761 = vmatprep.subr.bf16.mxu0 0
    %1762 = vmatpush1.bf16.msra.mxu0 0
    %1763 = vmatprep.subr.bf16.mxu0 0
    %1764 = vmatpush1.bf16.msra.mxu0 0
    %1765 = vmatprep.mubr.bf16.mxu0 0
    %1766 = vmatmul.mubr.bf16.gmra.mrb[0].mxu0 %v1689
    %v1767 = vpop.f32.mrb[0].mxu0
    %v1768 = vadd.f32 0.0, %v1767
    %v1769 = vpop.f32.mrb[0].mxu0
    %v1770 = vpop.f32.mrb[0].mxu0
    %v1771 = vpop.f32.mrb[0].mxu0
    %1772 = vdwg.mxu0
    %v1773 = vadd.f32 %v1732, %v1768
    %v1774 = vxor.u32 %v1773, 2147483648
    %v1775 = vmul.f32 %v1774, 1.442695
    %v1776 = vpow.pop %v1775
    %v1777 = vadd.f32 %v1776, 1.0
    %v1778 = vrcp.pop %v1777
    %v1779 = vmul.f32 1.0, %v1778
    %v1780 = vtanh.pop %v1773
    %v1781 = vmul.f32 %v1779, %v1677
    %1783 = vrot.lane.b32.xlu0 %v1780, 32
    %v1784 = vpop.permute.xlu0 %1783
    %v1786 = vmul.f32 %v1779, %v1784
    %1788 = vrot.lane.b32.xlu0 %v1786, 32
    %v1789 = vpop.permute.xlu0 %1788
    %v1791 = vadd.f32 %v1781, %v1789
    %v1792 = vtanh.pop %v1791
    %1794 = vrot.lane.b32.xlu0 %v1792, 32
    %v1795 = vpop.permute.xlu0 %1794
    %v1797 = vmul.f32 %v1779, %v1795
    %v1798 = vpack.c.bf16 %v1797, %v1797
    %1800 = vrot.lane.b32.xlu0 %v1798, 64
    %v1801 = vpop.permute.xlu0 %1800
    %v1803 = vsel %vm304, %v1801, 0
    %1805 = vmatprep.subr.bf16.mxu0 0
    %1806 = vmatpush1.bf16.msra.mxu0 %v1342
    %1807 = vmatprep.subr.bf16.mxu0 0
    %1808 = vmatpush1.bf16.msra.mxu0 %v1343
    %1809 = vmatprep.subr.bf16.mxu0 0
    %1810 = vmatpush1.bf16.msra.mxu0 0
    %1811 = vmatprep.subr.bf16.mxu0 0
    %1812 = vmatpush1.bf16.msra.mxu0 0
    %1813 = vmatprep.subr.bf16.mxu0 0
    %1814 = vmatpush1.bf16.msra.mxu0 0
    %1815 = vmatprep.subr.bf16.mxu0 0
    %1816 = vmatpush1.bf16.msra.mxu0 0
    %1817 = vmatprep.subr.bf16.mxu0 0
    %1818 = vmatpush1.bf16.msra.mxu0 0
    %1819 = vmatprep.subr.bf16.mxu0 0
    %1820 = vmatpush1.bf16.msra.mxu0 0
    %1821 = vmatprep.subr.bf16.mxu0 0
    %1822 = vmatpush1.bf16.msra.mxu0 0
    %1823 = vmatprep.subr.bf16.mxu0 0
    %1824 = vmatpush1.bf16.msra.mxu0 0
    %1825 = vmatprep.subr.bf16.mxu0 0
    %1826 = vmatpush1.bf16.msra.mxu0 0
    %1827 = vmatprep.subr.bf16.mxu0 0
    %1828 = vmatpush1.bf16.msra.mxu0 0
    %1829 = vmatprep.subr.bf16.mxu0 0
    %1830 = vmatpush1.bf16.msra.mxu0 0
    %1831 = vmatprep.subr.bf16.mxu0 0
    %1832 = vmatpush1.bf16.msra.mxu0 0
    %1833 = vmatprep.subr.bf16.mxu0 0
    %1834 = vmatpush1.bf16.msra.mxu0 0
    %1835 = vmatprep.subr.bf16.mxu0 0
    %1836 = vmatpush1.bf16.msra.mxu0 0
    %1837 = vmatprep.mubr.bf16.mxu0 0
    %1838 = vmatmul.mubr.bf16.gmra.mrb[0].mxu0 %v1803
    %v1839 = vpop.f32.mrb[0].mxu0
    %v1840 = vadd.f32 %v1329, %v1839
    %v1841 = vpop.f32.mrb[0].mxu0
    %v1842 = vpop.f32.mrb[0].mxu0
    %v1843 = vpop.f32.mrb[0].mxu0
    %1844 = vdwg.mxu0
    %1845 = vst [vmem:[#allocation2 + $0x20] sm:$0xff] %v1840
    %v1846 = vld [vmem:[#allocation3 + $0x28] sm:$0xff]
    %1847 = vmatprep.subr.bf16.mxu0 0
    %1848 = vmatpush1.bf16.msra.mxu0 %v1255
    %1849 = vmatprep.subr.bf16.mxu0 0
    %1850 = vmatpush1.bf16.msra.mxu0 %v1256
    %1851 = vmatprep.subr.bf16.mxu0 0
    %1852 = vmatpush1.bf16.msra.mxu0 0
    %1853 = vmatprep.subr.bf16.mxu0 0
    %1854 = vmatpush1.bf16.msra.mxu0 0
    %1855 = vmatprep.subr.bf16.mxu0 0
    %1856 = vmatpush1.bf16.msra.mxu0 0
    %1857 = vmatprep.subr.bf16.mxu0 0
    %1858 = vmatpush1.bf16.msra.mxu0 0
    %1859 = vmatprep.subr.bf16.mxu0 0
    %1860 = vmatpush1.bf16.msra.mxu0 0
    %1861 = vmatprep.subr.bf16.mxu0 0
    %1862 = vmatpush1.bf16.msra.mxu0 0
    %1863 = vmatprep.subr.bf16.mxu0 0
    %1864 = vmatpush1.bf16.msra.mxu0 0
    %1865 = vmatprep.subr.bf16.mxu0 0
    %1866 = vmatpush1.bf16.msra.mxu0 0
    %1867 = vmatprep.subr.bf16.mxu0 0
    %1868 = vmatpush1.bf16.msra.mxu0 0
    %1869 = vmatprep.subr.bf16.mxu0 0
    %1870 = vmatpush1.bf16.msra.mxu0 0
    %1871 = vmatprep.subr.bf16.mxu0 0
    %1872 = vmatpush1.bf16.msra.mxu0 0
    %1873 = vmatprep.subr.bf16.mxu0 0
    %1874 = vmatpush1.bf16.msra.mxu0 0
    %1875 = vmatprep.subr.bf16.mxu0 0
    %1876 = vmatpush1.bf16.msra.mxu0 0
    %1877 = vmatprep.subr.bf16.mxu0 0
    %1878 = vmatpush1.bf16.msra.mxu0 0
    %1879 = vmatprep.mubr.bf16.mxu0 0
    %1880 = vmatmul.mubr.bf16.gmra.mrb[0].mxu0 %v1803
    %v1881 = vpop.f32.mrb[0].mxu0
    %v1882 = vadd.f32 0.0, %v1881
    %v1883 = vpop.f32.mrb[0].mxu0
    %v1884 = vpop.f32.mrb[0].mxu0
    %v1885 = vpop.f32.mrb[0].mxu0
    %1886 = vdwg.mxu0
    %v1887 = vadd.f32 %v1846, %v1882
    %v1888 = vxor.u32 %v1887, 2147483648
    %v1889 = vmul.f32 %v1888, 1.442695
    %v1890 = vpow.pop %v1889
    %v1891 = vadd.f32 %v1890, 1.0
    %v1892 = vrcp.pop %v1891
    %v1893 = vmul.f32 1.0, %v1892
    %v1894 = vtanh.pop %v1887
    %v1895 = vmul.f32 %v1893, %v1791
    %1897 = vrot.lane.b32.xlu0 %v1894, 32
    %v1898 = vpop.permute.xlu0 %1897
    %v1900 = vmul.f32 %v1893, %v1898
    %1902 = vrot.lane.b32.xlu0 %v1900, 32
    %v1903 = vpop.permute.xlu0 %1902
    %v1905 = vadd.f32 %v1895, %v1903
    %v1906 = vtanh.pop %v1905
    %1908 = vrot.lane.b32.xlu0 %v1906, 32
    %v1909 = vpop.permute.xlu0 %1908
    %v1911 = vmul.f32 %v1893, %v1909
    %v1912 = vpack.c.bf16 %v1911, %v1911
    %1914 = vrot.lane.b32.xlu0 %v1912, 64
    %v1915 = vpop.permute.xlu0 %1914
    %v1917 = vsel %vm304, %v1915, 0
    %1919 = vmatprep.subr.bf16.mxu0 0
    %1920 = vmatpush1.bf16.msra.mxu0 %v1342
    %1921 = vmatprep.subr.bf16.mxu0 0
    %1922 = vmatpush1.bf16.msra.mxu0 %v1343
    %1923 = vmatprep.subr.bf16.mxu0 0
    %1924 = vmatpush1.bf16.msra.mxu0 0
    %1925 = vmatprep.subr.bf16.mxu0 0
    %1926 = vmatpush1.bf16.msra.mxu0 0
    %1927 = vmatprep.subr.bf16.mxu0 0
    %1928 = vmatpush1.bf16.msra.mxu0 0
    %1929 = vmatprep.subr.bf16.mxu0 0
    %1930 = vmatpush1.bf16.msra.mxu0 0
    %1931 = vmatprep.subr.bf16.mxu0 0
    %1932 = vmatpush1.bf16.msra.mxu0 0
    %1933 = vmatprep.subr.bf16.mxu0 0
    %1934 = vmatpush1.bf16.msra.mxu0 0
    %1935 = vmatprep.subr.bf16.mxu0 0
    %1936 = vmatpush1.bf16.msra.mxu0 0
    %1937 = vmatprep.subr.bf16.mxu0 0
    %1938 = vmatpush1.bf16.msra.mxu0 0
    %1939 = vmatprep.subr.bf16.mxu0 0
    %1940 = vmatpush1.bf16.msra.mxu0 0
    %1941 = vmatprep.subr.bf16.mxu0 0
    %1942 = vmatpush1.bf16.msra.mxu0 0
    %1943 = vmatprep.subr.bf16.mxu0 0
    %1944 = vmatpush1.bf16.msra.mxu0 0
    %1945 = vmatprep.subr.bf16.mxu0 0
    %1946 = vmatpush1.bf16.msra.mxu0 0
    %1947 = vmatprep.subr.bf16.mxu0 0
    %1948 = vmatpush1.bf16.msra.mxu0 0
    %1949 = vmatprep.subr.bf16.mxu0 0
    %1950 = vmatpush1.bf16.msra.mxu0 0
    %1951 = vmatprep.mubr.bf16.mxu0 0
    %1952 = vmatmul.mubr.bf16.gmra.mrb[0].mxu0 %v1917
    %v1953 = vpop.f32.mrb[0].mxu0
    %v1954 = vadd.f32 %v1329, %v1953
    %v1955 = vpop.f32.mrb[0].mxu0
    %v1956 = vpop.f32.mrb[0].mxu0
    %v1957 = vpop.f32.mrb[0].mxu0
    %1958 = vdwg.mxu0
    %1959 = vst [vmem:[#allocation2 + $0x28] sm:$0xff] %v1954
    %v1960 = vld [vmem:[#allocation3 + $0x30] sm:$0xff]
    %1961 = vmatprep.subr.bf16.mxu0 0
    %1962 = vmatpush1.bf16.msra.mxu0 %v1255
    %1963 = vmatprep.subr.bf16.mxu0 0
    %1964 = vmatpush1.bf16.msra.mxu0 %v1256
    %1965 = vmatprep.subr.bf16.mxu0 0
    %1966 = vmatpush1.bf16.msra.mxu0 0
    %1967 = vmatprep.subr.bf16.mxu0 0
    %1968 = vmatpush1.bf16.msra.mxu0 0
    %1969 = vmatprep.subr.bf16.mxu0 0
    %1970 = vmatpush1.bf16.msra.mxu0 0
    %1971 = vmatprep.subr.bf16.mxu0 0
    %1972 = vmatpush1.bf16.msra.mxu0 0
    %1973 = vmatprep.subr.bf16.mxu0 0
    %1974 = vmatpush1.bf16.msra.mxu0 0
    %1975 = vmatprep.subr.bf16.mxu0 0
    %1976 = vmatpush1.bf16.msra.mxu0 0
    %1977 = vmatprep.subr.bf16.mxu0 0
    %1978 = vmatpush1.bf16.msra.mxu0 0
    %1979 = vmatprep.subr.bf16.mxu0 0
    %1980 = vmatpush1.bf16.msra.mxu0 0
    %1981 = vmatprep.subr.bf16.mxu0 0
    %1982 = vmatpush1.bf16.msra.mxu0 0
    %1983 = vmatprep.subr.bf16.mxu0 0
    %1984 = vmatpush1.bf16.msra.mxu0 0
    %1985 = vmatprep.subr.bf16.mxu0 0
    %1986 = vmatpush1.bf16.msra.mxu0 0
    %1987 = vmatprep.subr.bf16.mxu0 0
    %1988 = vmatpush1.bf16.msra.mxu0 0
    %1989 = vmatprep.subr.bf16.mxu0 0
    %1990 = vmatpush1.bf16.msra.mxu0 0
    %1991 = vmatprep.subr.bf16.mxu0 0
    %1992 = vmatpush1.bf16.msra.mxu0 0
    %1993 = vmatprep.mubr.bf16.mxu0 0
    %1994 = vmatmul.mubr.bf16.gmra.mrb[0].mxu0 %v1917
    %v1995 = vpop.f32.mrb[0].mxu0
    %v1996 = vadd.f32 0.0, %v1995
    %v1997 = vpop.f32.mrb[0].mxu0
    %v1998 = vpop.f32.mrb[0].mxu0
    %v1999 = vpop.f32.mrb[0].mxu0
    %2000 = vdwg.mxu0
    %v2001 = vadd.f32 %v1960, %v1996
    %v2002 = vxor.u32 %v2001, 2147483648
    %v2003 = vmul.f32 %v2002, 1.442695
    %v2004 = vpow.pop %v2003
    %v2005 = vadd.f32 %v2004, 1.0
    %v2006 = vrcp.pop %v2005
    %v2007 = vmul.f32 1.0, %v2006
    %v2008 = vtanh.pop %v2001
    %v2009 = vmul.f32 %v2007, %v1905
    %2011 = vrot.lane.b32.xlu0 %v2008, 32
    %v2012 = vpop.permute.xlu0 %2011
    %v2014 = vmul.f32 %v2007, %v2012
    %2016 = vrot.lane.b32.xlu0 %v2014, 32
    %v2017 = vpop.permute.xlu0 %2016
    %v2019 = vadd.f32 %v2009, %v2017
    %v2020 = vtanh.pop %v2019
    %2022 = vrot.lane.b32.xlu0 %v2020, 32
    %v2023 = vpop.permute.xlu0 %2022
    %v2025 = vmul.f32 %v2007, %v2023
    %v2026 = vpack.c.bf16 %v2025, %v2025
    %2028 = vrot.lane.b32.xlu0 %v2026, 64
    %v2029 = vpop.permute.xlu0 %2028
    %v2031 = vsel %vm304, %v2029, 0
    %2033 = vmatprep.subr.bf16.mxu0 0
    %2034 = vmatpush1.bf16.msra.mxu0 %v1342
    %2035 = vmatprep.subr.bf16.mxu0 0
    %2036 = vmatpush1.bf16.msra.mxu0 %v1343
    %2037 = vmatprep.subr.bf16.mxu0 0
    %2038 = vmatpush1.bf16.msra.mxu0 0
    %2039 = vmatprep.subr.bf16.mxu0 0
    %2040 = vmatpush1.bf16.msra.mxu0 0
    %2041 = vmatprep.subr.bf16.mxu0 0
    %2042 = vmatpush1.bf16.msra.mxu0 0
    %2043 = vmatprep.subr.bf16.mxu0 0
    %2044 = vmatpush1.bf16.msra.mxu0 0
    %2045 = vmatprep.subr.bf16.mxu0 0
    %2046 = vmatpush1.bf16.msra.mxu0 0
    %2047 = vmatprep.subr.bf16.mxu0 0
    %2048 = vmatpush1.bf16.msra.mxu0 0
    %2049 = vmatprep.subr.bf16.mxu0 0
    %2050 = vmatpush1.bf16.msra.mxu0 0
    %2051 = vmatprep.subr.bf16.mxu0 0
    %2052 = vmatpush1.bf16.msra.mxu0 0
    %2053 = vmatprep.subr.bf16.mxu0 0
    %2054 = vmatpush1.bf16.msra.mxu0 0
    %2055 = vmatprep.subr.bf16.mxu0 0
    %2056 = vmatpush1.bf16.msra.mxu0 0
    %2057 = vmatprep.subr.bf16.mxu0 0
    %2058 = vmatpush1.bf16.msra.mxu0 0
    %2059 = vmatprep.subr.bf16.mxu0 0
    %2060 = vmatpush1.bf16.msra.mxu0 0
    %2061 = vmatprep.subr.bf16.mxu0 0
    %2062 = vmatpush1.bf16.msra.mxu0 0
    %2063 = vmatprep.subr.bf16.mxu0 0
    %2064 = vmatpush1.bf16.msra.mxu0 0
    %2065 = vmatprep.mubr.bf16.mxu0 0
    %2066 = vmatmul.mubr.bf16.gmra.mrb[0].mxu0 %v2031
    %v2067 = vpop.f32.mrb[0].mxu0
    %v2068 = vadd.f32 %v1329, %v2067
    %v2069 = vpop.f32.mrb[0].mxu0
    %v2070 = vpop.f32.mrb[0].mxu0
    %v2071 = vpop.f32.mrb[0].mxu0
    %2072 = vdwg.mxu0
    %2073 = vst [vmem:[#allocation2 + $0x30] sm:$0xff] %v2068
    %v2074 = vld [vmem:[#allocation3 + $0x38] sm:$0xff]
    %2075 = vmatprep.subr.bf16.mxu0 0
    %2076 = vmatpush1.bf16.msra.mxu0 %v1255
    %2077 = vmatprep.subr.bf16.mxu0 0
    %2078 = vmatpush1.bf16.msra.mxu0 %v1256
    %2079 = vmatprep.subr.bf16.mxu0 0
    %2080 = vmatpush1.bf16.msra.mxu0 0
    %2081 = vmatprep.subr.bf16.mxu0 0
    %2082 = vmatpush1.bf16.msra.mxu0 0
    %2083 = vmatprep.subr.bf16.mxu0 0
    %2084 = vmatpush1.bf16.msra.mxu0 0
    %2085 = vmatprep.subr.bf16.mxu0 0
    %2086 = vmatpush1.bf16.msra.mxu0 0
    %2087 = vmatprep.subr.bf16.mxu0 0
    %2088 = vmatpush1.bf16.msra.mxu0 0
    %2089 = vmatprep.subr.bf16.mxu0 0
    %2090 = vmatpush1.bf16.msra.mxu0 0
    %2091 = vmatprep.subr.bf16.mxu0 0
    %2092 = vmatpush1.bf16.msra.mxu0 0
    %2093 = vmatprep.subr.bf16.mxu0 0
    %2094 = vmatpush1.bf16.msra.mxu0 0
    %2095 = vmatprep.subr.bf16.mxu0 0
    %2096 = vmatpush1.bf16.msra.mxu0 0
    %2097 = vmatprep.subr.bf16.mxu0 0
    %2098 = vmatpush1.bf16.msra.mxu0 0
    %2099 = vmatprep.subr.bf16.mxu0 0
    %2100 = vmatpush1.bf16.msra.mxu0 0
    %2101 = vmatprep.subr.bf16.mxu0 0
    %2102 = vmatpush1.bf16.msra.mxu0 0
    %2103 = vmatprep.subr.bf16.mxu0 0
    %2104 = vmatpush1.bf16.msra.mxu0 0
    %2105 = vmatprep.subr.bf16.mxu0 0
    %2106 = vmatpush1.bf16.msra.mxu0 0
    %2107 = vmatprep.mubr.bf16.mxu0 0
    %2108 = vmatmul.mubr.bf16.gmra.mrb[0].mxu0 %v2031
    %v2109 = vpop.f32.mrb[0].mxu0
    %v2110 = vadd.f32 0.0, %v2109
    %v2111 = vpop.f32.mrb[0].mxu0
    %v2112 = vpop.f32.mrb[0].mxu0
    %v2113 = vpop.f32.mrb[0].mxu0
    %2114 = vdwg.mxu0
    %v2115 = vadd.f32 %v2074, %v2110
    %v2116 = vxor.u32 %v2115, 2147483648
    %v2117 = vmul.f32 %v2116, 1.442695
    %v2118 = vpow.pop %v2117
    %v2119 = vadd.f32 %v2118, 1.0
    %v2120 = vrcp.pop %v2119
    %v2121 = vmul.f32 1.0, %v2120
    %v2122 = vtanh.pop %v2115
    %v2123 = vmul.f32 %v2121, %v2019
    %2125 = vrot.lane.b32.xlu0 %v2122, 32
    %v2126 = vpop.permute.xlu0 %2125
    %v2128 = vmul.f32 %v2121, %v2126
    %2130 = vrot.lane.b32.xlu0 %v2128, 32
    %v2131 = vpop.permute.xlu0 %2130
    %v2133 = vadd.f32 %v2123, %v2131
    %v2134 = vtanh.pop %v2133
    %2136 = vrot.lane.b32.xlu0 %v2134, 32
    %v2137 = vpop.permute.xlu0 %2136
    %v2139 = vmul.f32 %v2121, %v2137
    %v2140 = vpack.c.bf16 %v2139, %v2139
    %2142 = vrot.lane.b32.xlu0 %v2140, 64
    %v2143 = vpop.permute.xlu0 %2142
    %v2145 = vsel %vm304, %v2143, 0
    %2147 = vmatprep.subr.bf16.mxu0 0
    %2148 = vmatpush1.bf16.msra.mxu0 %v1342
    %2149 = vmatprep.subr.bf16.mxu0 0
    %2150 = vmatpush1.bf16.msra.mxu0 %v1343
    %2151 = vmatprep.subr.bf16.mxu0 0
    %2152 = vmatpush1.bf16.msra.mxu0 0
    %2153 = vmatprep.subr.bf16.mxu0 0
    %2154 = vmatpush1.bf16.msra.mxu0 0
    %2155 = vmatprep.subr.bf16.mxu0 0
    %2156 = vmatpush1.bf16.msra.mxu0 0
    %2157 = vmatprep.subr.bf16.mxu0 0
    %2158 = vmatpush1.bf16.msra.mxu0 0
    %2159 = vmatprep.subr.bf16.mxu0 0
    %2160 = vmatpush1.bf16.msra.mxu0 0
    %2161 = vmatprep.subr.bf16.mxu0 0
    %2162 = vmatpush1.bf16.msra.mxu0 0
    %2163 = vmatprep.subr.bf16.mxu0 0
    %2164 = vmatpush1.bf16.msra.mxu0 0
    %2165 = vmatprep.subr.bf16.mxu0 0
    %2166 = vmatpush1.bf16.msra.mxu0 0
    %2167 = vmatprep.subr.bf16.mxu0 0
    %2168 = vmatpush1.bf16.msra.mxu0 0
    %2169 = vmatprep.subr.bf16.mxu0 0
    %2170 = vmatpush1.bf16.msra.mxu0 0
    %2171 = vmatprep.subr.bf16.mxu0 0
    %2172 = vmatpush1.bf16.msra.mxu0 0
    %2173 = vmatprep.subr.bf16.mxu0 0
    %2174 = vmatpush1.bf16.msra.mxu0 0
    %2175 = vmatprep.subr.bf16.mxu0 0
    %2176 = vmatpush1.bf16.msra.mxu0 0
    %2177 = vmatprep.subr.bf16.mxu0 0
    %2178 = vmatpush1.bf16.msra.mxu0 0
    %2179 = vmatprep.mubr.bf16.mxu0 0
    %2180 = vmatmul.mubr.bf16.gmra.mrb[0].mxu0 %v2145
    %v2181 = vpop.f32.mrb[0].mxu0
    %v2182 = vadd.f32 %v1329, %v2181
    %v2183 = vpop.f32.mrb[0].mxu0
    %v2184 = vpop.f32.mrb[0].mxu0
    %v2185 = vpop.f32.mrb[0].mxu0
    %2186 = vdwg.mxu0
    %2187 = vst [vmem:[#allocation2 + $0x38] sm:$0xff] %v2182
    %v2188 = vld [vmem:[%s8] sm:$0xf]
    %v2189 = vld [vmem:[%s8 + $0x4] sm:$0xf]
    %v2190 = vld [vmem:[%s8 + $0x8] sm:$0xf]
    %v2191 = vld [vmem:[%s8 + $0xc] sm:$0xf]
    %v2192 = vld [vmem:[%s10] sm:$0xf]
    %v2193 = vld [vmem:[%s10 + $0x4] sm:$0xf]
    %v2194 = vld [vmem:[%s10 + $0x8] sm:$0xf]
    %v2195 = vld [vmem:[%s10 + $0xc] sm:$0xf]
    %v2196 = vld [vmem:[#allocation12] sm:$0x1]
    %v2197 = vld [vmem:[#allocation2] sm:$0xff]
    %v2202 = vunpack.c.l.b16 %v2188
    %v2203 = vunpack.c.l.b16 %v2189
    %v2204 = vunpack.c.l.b16 %v2190
    %v2205 = vunpack.c.l.b16 %v2191
    %v2206 = vpack.c.b16 %v2203, %v2202
    %v2207 = vpack.c.b16 %v2205, %v2204
    %2210 = vmatprep.subr.bf16.mxu0 0
    %2211 = vmatpush1.bf16.msra.mxu0 %v2206
    %2212 = vmatprep.subr.bf16.mxu0 0
    %2213 = vmatpush1.bf16.msra.mxu0 %v2207
    %2214 = vmatprep.subr.bf16.mxu0 0
    %2215 = vmatpush1.bf16.msra.mxu0 0
    %2216 = vmatprep.subr.bf16.mxu0 0
    %2217 = vmatpush1.bf16.msra.mxu0 0
    %2218 = vmatprep.subr.bf16.mxu0 0
    %2219 = vmatpush1.bf16.msra.mxu0 0
    %2220 = vmatprep.subr.bf16.mxu0 0
    %2221 = vmatpush1.bf16.msra.mxu0 0
    %2222 = vmatprep.subr.bf16.mxu0 0
    %2223 = vmatpush1.bf16.msra.mxu0 0
    %2224 = vmatprep.subr.bf16.mxu0 0
    %2225 = vmatpush1.bf16.msra.mxu0 0
    %2226 = vmatprep.subr.bf16.mxu0 0
    %2227 = vmatpush1.bf16.msra.mxu0 0
    %2228 = vmatprep.subr.bf16.mxu0 0
    %2229 = vmatpush1.bf16.msra.mxu0 0
    %2230 = vmatprep.subr.bf16.mxu0 0
    %2231 = vmatpush1.bf16.msra.mxu0 0
    %2232 = vmatprep.subr.bf16.mxu0 0
    %2233 = vmatpush1.bf16.msra.mxu0 0
    %2234 = vmatprep.subr.bf16.mxu0 0
    %2235 = vmatpush1.bf16.msra.mxu0 0
    %2236 = vmatprep.subr.bf16.mxu0 0
    %2237 = vmatpush1.bf16.msra.mxu0 0
    %2238 = vmatprep.subr.bf16.mxu0 0
    %2239 = vmatpush1.bf16.msra.mxu0 0
    %2240 = vmatprep.subr.bf16.mxu0 0
    %2241 = vmatpush1.bf16.msra.mxu0 0
    %2242 = vmatprep.mubr.bf16.mxu0 0
    %2243 = vmatmul.mubr.bf16.gmra.mrb[0].mxu0 %v306
    %v2244 = vpop.f32.mrb[0].mxu0
    %v2245 = vadd.f32 0.0, %v2244
    %v2246 = vpop.f32.mrb[0].mxu0
    %v2247 = vpop.f32.mrb[0].mxu0
    %v2248 = vpop.f32.mrb[0].mxu0
    %2249 = vdwg.mxu0
    %v2250 = vadd.f32 %v2197, %v2245
    %v2251 = vxor.u32 %v2250, 2147483648
    %v2252 = vmul.f32 %v2251, 1.442695
    %v2253 = vpow.pop %v2252
    %v2254 = vadd.f32 %v2253, 1.0
    %v2255 = vrcp.pop %v2254
    %v2256 = vmul.f32 1.0, %v2255
    %v2257 = vtanh.pop %v2250
    %v2258 = vmul.f32 %v2256, 0.0
    %2260 = vrot.lane.b32.xlu0 %v2257, 32
    %v2261 = vpop.permute.xlu0 %2260
    %v2263 = vmul.f32 %v2256, %v2261
    %2265 = vrot.lane.b32.xlu0 %v2263, 32
    %v2266 = vpop.permute.xlu0 %2265
    %v2268 = vadd.f32 %v2258, %v2266
    %v2269 = vtanh.pop %v2268
    %2271 = vrot.lane.b32.xlu0 %v2269, 32
    %v2272 = vpop.permute.xlu0 %2271
    %v2274 = vmul.f32 %v2256, %v2272
    %v2275 = vpack.c.bf16 %v2274, %v2274
    %v2277 = vlaneseq
    %v2278 = vshrl.u32 %v2277, 7
    %v2279 = vsub.s32 0, %v2278
    %v2280 = vrot.slane %v2196, %v2279
    %2283 = vrot.lane.b32.xlu0 %v2275, 64
    %v2284 = vpop.permute.xlu0 %2283
    %v2289 = vunpack.c.l.b16 %v2192
    %v2290 = vunpack.c.l.b16 %v2193
    %v2291 = vunpack.c.l.b16 %v2194
    %v2292 = vunpack.c.l.b16 %v2195
    %v2293 = vpack.c.b16 %v2290, %v2289
    %v2294 = vpack.c.b16 %v2292, %v2291
    %v2298 = vsel %vm304, %v2284, 0
    %2300 = vmatprep.subr.bf16.mxu0 0
    %2301 = vmatpush1.bf16.msra.mxu0 %v2293
    %2302 = vmatprep.subr.bf16.mxu0 0
    %2303 = vmatpush1.bf16.msra.mxu0 %v2294
    %2304 = vmatprep.subr.bf16.mxu0 0
    %2305 = vmatpush1.bf16.msra.mxu0 0
    %2306 = vmatprep.subr.bf16.mxu0 0
    %2307 = vmatpush1.bf16.msra.mxu0 0
    %2308 = vmatprep.subr.bf16.mxu0 0
    %2309 = vmatpush1.bf16.msra.mxu0 0
    %2310 = vmatprep.subr.bf16.mxu0 0
    %2311 = vmatpush1.bf16.msra.mxu0 0
    %2312 = vmatprep.subr.bf16.mxu0 0
    %2313 = vmatpush1.bf16.msra.mxu0 0
    %2314 = vmatprep.subr.bf16.mxu0 0
    %2315 = vmatpush1.bf16.msra.mxu0 0
    %2316 = vmatprep.subr.bf16.mxu0 0
    %2317 = vmatpush1.bf16.msra.mxu0 0
    %2318 = vmatprep.subr.bf16.mxu0 0
    %2319 = vmatpush1.bf16.msra.mxu0 0
    %2320 = vmatprep.subr.bf16.mxu0 0
    %2321 = vmatpush1.bf16.msra.mxu0 0
    %2322 = vmatprep.subr.bf16.mxu0 0
    %2323 = vmatpush1.bf16.msra.mxu0 0
    %2324 = vmatprep.subr.bf16.mxu0 0
    %2325 = vmatpush1.bf16.msra.mxu0 0
    %2326 = vmatprep.subr.bf16.mxu0 0
    %2327 = vmatpush1.bf16.msra.mxu0 0
    %2328 = vmatprep.subr.bf16.mxu0 0
    %2329 = vmatpush1.bf16.msra.mxu0 0
    %2330 = vmatprep.subr.bf16.mxu0 0
    %2331 = vmatpush1.bf16.msra.mxu0 0
    %2332 = vmatprep.mubr.bf16.mxu0 0
    %2333 = vmatmul.mubr.bf16.gmra.mrb[0].mxu0 %v2298
    %v2334 = vpop.f32.mrb[0].mxu0
    %v2335 = vadd.f32 %v2280, %v2334
    %v2336 = vpop.f32.mrb[0].mxu0
    %v2337 = vpop.f32.mrb[0].mxu0
    %v2338 = vpop.f32.mrb[0].mxu0
    %2339 = vdwg.mxu0
    %2340 = vst [vmem:[#allocation3] sm:$0xff] %v2335
    %v2341 = vld [vmem:[#allocation2 + $0x8] sm:$0xff]
    %2342 = vmatprep.subr.bf16.mxu0 0
    %2343 = vmatpush1.bf16.msra.mxu0 %v2206
    %2344 = vmatprep.subr.bf16.mxu0 0
    %2345 = vmatpush1.bf16.msra.mxu0 %v2207
    %2346 = vmatprep.subr.bf16.mxu0 0
    %2347 = vmatpush1.bf16.msra.mxu0 0
    %2348 = vmatprep.subr.bf16.mxu0 0
    %2349 = vmatpush1.bf16.msra.mxu0 0
    %2350 = vmatprep.subr.bf16.mxu0 0
    %2351 = vmatpush1.bf16.msra.mxu0 0
    %2352 = vmatprep.subr.bf16.mxu0 0
    %2353 = vmatpush1.bf16.msra.mxu0 0
    %2354 = vmatprep.subr.bf16.mxu0 0
    %2355 = vmatpush1.bf16.msra.mxu0 0
    %2356 = vmatprep.subr.bf16.mxu0 0
    %2357 = vmatpush1.bf16.msra.mxu0 0
    %2358 = vmatprep.subr.bf16.mxu0 0
    %2359 = vmatpush1.bf16.msra.mxu0 0
    %2360 = vmatprep.subr.bf16.mxu0 0
    %2361 = vmatpush1.bf16.msra.mxu0 0
    %2362 = vmatprep.subr.bf16.mxu0 0
    %2363 = vmatpush1.bf16.msra.mxu0 0
    %2364 = vmatprep.subr.bf16.mxu0 0
    %2365 = vmatpush1.bf16.msra.mxu0 0
    %2366 = vmatprep.subr.bf16.mxu0 0
    %2367 = vmatpush1.bf16.msra.mxu0 0
    %2368 = vmatprep.subr.bf16.mxu0 0
    %2369 = vmatpush1.bf16.msra.mxu0 0
    %2370 = vmatprep.subr.bf16.mxu0 0
    %2371 = vmatpush1.bf16.msra.mxu0 0
    %2372 = vmatprep.subr.bf16.mxu0 0
    %2373 = vmatpush1.bf16.msra.mxu0 0
    %2374 = vmatprep.mubr.bf16.mxu0 0
    %2375 = vmatmul.mubr.bf16.gmra.mrb[0].mxu0 %v2298
    %v2376 = vpop.f32.mrb[0].mxu0
    %v2377 = vadd.f32 0.0, %v2376
    %v2378 = vpop.f32.mrb[0].mxu0
    %v2379 = vpop.f32.mrb[0].mxu0
    %v2380 = vpop.f32.mrb[0].mxu0
    %2381 = vdwg.mxu0
    %v2382 = vadd.f32 %v2341, %v2377
    %v2383 = vxor.u32 %v2382, 2147483648
    %v2384 = vmul.f32 %v2383, 1.442695
    %v2385 = vpow.pop %v2384
    %v2386 = vadd.f32 %v2385, 1.0
    %v2387 = vrcp.pop %v2386
    %v2388 = vmul.f32 1.0, %v2387
    %v2389 = vtanh.pop %v2382
    %v2390 = vmul.f32 %v2388, %v2268
    %2392 = vrot.lane.b32.xlu0 %v2389, 32
    %v2393 = vpop.permute.xlu0 %2392
    %v2395 = vmul.f32 %v2388, %v2393
    %2397 = vrot.lane.b32.xlu0 %v2395, 32
    %v2398 = vpop.permute.xlu0 %2397
    %v2400 = vadd.f32 %v2390, %v2398
    %v2401 = vtanh.pop %v2400
    %2403 = vrot.lane.b32.xlu0 %v2401, 32
    %v2404 = vpop.permute.xlu0 %2403
    %v2406 = vmul.f32 %v2388, %v2404
    %v2407 = vpack.c.bf16 %v2406, %v2406
    %2409 = vrot.lane.b32.xlu0 %v2407, 64
    %v2410 = vpop.permute.xlu0 %2409
    %v2412 = vsel %vm304, %v2410, 0
    %2414 = vmatprep.subr.bf16.mxu0 0
    %2415 = vmatpush1.bf16.msra.mxu0 %v2293
    %2416 = vmatprep.subr.bf16.mxu0 0
    %2417 = vmatpush1.bf16.msra.mxu0 %v2294
    %2418 = vmatprep.subr.bf16.mxu0 0
    %2419 = vmatpush1.bf16.msra.mxu0 0
    %2420 = vmatprep.subr.bf16.mxu0 0
    %2421 = vmatpush1.bf16.msra.mxu0 0
    %2422 = vmatprep.subr.bf16.mxu0 0
    %2423 = vmatpush1.bf16.msra.mxu0 0
    %2424 = vmatprep.subr.bf16.mxu0 0
    %2425 = vmatpush1.bf16.msra.mxu0 0
    %2426 = vmatprep.subr.bf16.mxu0 0
    %2427 = vmatpush1.bf16.msra.mxu0 0
    %2428 = vmatprep.subr.bf16.mxu0 0
    %2429 = vmatpush1.bf16.msra.mxu0 0
    %2430 = vmatprep.subr.bf16.mxu0 0
    %2431 = vmatpush1.bf16.msra.mxu0 0
    %2432 = vmatprep.subr.bf16.mxu0 0
    %2433 = vmatpush1.bf16.msra.mxu0 0
    %2434 = vmatprep.subr.bf16.mxu0 0
    %2435 = vmatpush1.bf16.msra.mxu0 0
    %2436 = vmatprep.subr.bf16.mxu0 0
    %2437 = vmatpush1.bf16.msra.mxu0 0
    %2438 = vmatprep.subr.bf16.mxu0 0
    %2439 = vmatpush1.bf16.msra.mxu0 0
    %2440 = vmatprep.subr.bf16.mxu0 0
    %2441 = vmatpush1.bf16.msra.mxu0 0
    %2442 = vmatprep.subr.bf16.mxu0 0
    %2443 = vmatpush1.bf16.msra.mxu0 0
    %2444 = vmatprep.subr.bf16.mxu0 0
    %2445 = vmatpush1.bf16.msra.mxu0 0
    %2446 = vmatprep.mubr.bf16.mxu0 0
    %2447 = vmatmul.mubr.bf16.gmra.mrb[0].mxu0 %v2412
    %v2448 = vpop.f32.mrb[0].mxu0
    %v2449 = vadd.f32 %v2280, %v2448
    %v2450 = vpop.f32.mrb[0].mxu0
    %v2451 = vpop.f32.mrb[0].mxu0
    %v2452 = vpop.f32.mrb[0].mxu0
    %2453 = vdwg.mxu0
    %2454 = vst [vmem:[#allocation3 + $0x8] sm:$0xff] %v2449
    %v2455 = vld [vmem:[#allocation2 + $0x10] sm:$0xff]
    %2456 = vmatprep.subr.bf16.mxu0 0
    %2457 = vmatpush1.bf16.msra.mxu0 %v2206
    %2458 = vmatprep.subr.bf16.mxu0 0
    %2459 = vmatpush1.bf16.msra.mxu0 %v2207
    %2460 = vmatprep.subr.bf16.mxu0 0
    %2461 = vmatpush1.bf16.msra.mxu0 0
    %2462 = vmatprep.subr.bf16.mxu0 0
    %2463 = vmatpush1.bf16.msra.mxu0 0
    %2464 = vmatprep.subr.bf16.mxu0 0
    %2465 = vmatpush1.bf16.msra.mxu0 0
    %2466 = vmatprep.subr.bf16.mxu0 0
    %2467 = vmatpush1.bf16.msra.mxu0 0
    %2468 = vmatprep.subr.bf16.mxu0 0
    %2469 = vmatpush1.bf16.msra.mxu0 0
    %2470 = vmatprep.subr.bf16.mxu0 0
    %2471 = vmatpush1.bf16.msra.mxu0 0
    %2472 = vmatprep.subr.bf16.mxu0 0
    %2473 = vmatpush1.bf16.msra.mxu0 0
    %2474 = vmatprep.subr.bf16.mxu0 0
    %2475 = vmatpush1.bf16.msra.mxu0 0
    %2476 = vmatprep.subr.bf16.mxu0 0
    %2477 = vmatpush1.bf16.msra.mxu0 0
    %2478 = vmatprep.subr.bf16.mxu0 0
    %2479 = vmatpush1.bf16.msra.mxu0 0
    %2480 = vmatprep.subr.bf16.mxu0 0
    %2481 = vmatpush1.bf16.msra.mxu0 0
    %2482 = vmatprep.subr.bf16.mxu0 0
    %2483 = vmatpush1.bf16.msra.mxu0 0
    %2484 = vmatprep.subr.bf16.mxu0 0
    %2485 = vmatpush1.bf16.msra.mxu0 0
    %2486 = vmatprep.subr.bf16.mxu0 0
    %2487 = vmatpush1.bf16.msra.mxu0 0
    %2488 = vmatprep.mubr.bf16.mxu0 0
    %2489 = vmatmul.mubr.bf16.gmra.mrb[0].mxu0 %v2412
    %v2490 = vpop.f32.mrb[0].mxu0
    %v2491 = vadd.f32 0.0, %v2490
    %v2492 = vpop.f32.mrb[0].mxu0
    %v2493 = vpop.f32.mrb[0].mxu0
    %v2494 = vpop.f32.mrb[0].mxu0
    %2495 = vdwg.mxu0
    %v2496 = vadd.f32 %v2455, %v2491
    %v2497 = vxor.u32 %v2496, 2147483648
    %v2498 = vmul.f32 %v2497, 1.442695
    %v2499 = vpow.pop %v2498
    %v2500 = vadd.f32 %v2499, 1.0
    %v2501 = vrcp.pop %v2500
    %v2502 = vmul.f32 1.0, %v2501
    %v2503 = vtanh.pop %v2496
    %v2504 = vmul.f32 %v2502, %v2400
    %2506 = vrot.lane.b32.xlu0 %v2503, 32
    %v2507 = vpop.permute.xlu0 %2506
    %v2509 = vmul.f32 %v2502, %v2507
    %2511 = vrot.lane.b32.xlu0 %v2509, 32
    %v2512 = vpop.permute.xlu0 %2511
    %v2514 = vadd.f32 %v2504, %v2512
    %v2515 = vtanh.pop %v2514
    %2517 = vrot.lane.b32.xlu0 %v2515, 32
    %v2518 = vpop.permute.xlu0 %2517
    %v2520 = vmul.f32 %v2502, %v2518
    %v2521 = vpack.c.bf16 %v2520, %v2520
    %2523 = vrot.lane.b32.xlu0 %v2521, 64
    %v2524 = vpop.permute.xlu0 %2523
    %v2526 = vsel %vm304, %v2524, 0
    %2528 = vmatprep.subr.bf16.mxu0 0
    %2529 = vmatpush1.bf16.msra.mxu0 %v2293
    %2530 = vmatprep.subr.bf16.mxu0 0
    %2531 = vmatpush1.bf16.msra.mxu0 %v2294
    %2532 = vmatprep.subr.bf16.mxu0 0
    %2533 = vmatpush1.bf16.msra.mxu0 0
    %2534 = vmatprep.subr.bf16.mxu0 0
    %2535 = vmatpush1.bf16.msra.mxu0 0
    %2536 = vmatprep.subr.bf16.mxu0 0
    %2537 = vmatpush1.bf16.msra.mxu0 0
    %2538 = vmatprep.subr.bf16.mxu0 0
    %2539 = vmatpush1.bf16.msra.mxu0 0
    %2540 = vmatprep.subr.bf16.mxu0 0
    %2541 = vmatpush1.bf16.msra.mxu0 0
    %2542 = vmatprep.subr.bf16.mxu0 0
    %2543 = vmatpush1.bf16.msra.mxu0 0
    %2544 = vmatprep.subr.bf16.mxu0 0
    %2545 = vmatpush1.bf16.msra.mxu0 0
    %2546 = vmatprep.subr.bf16.mxu0 0
    %2547 = vmatpush1.bf16.msra.mxu0 0
    %2548 = vmatprep.subr.bf16.mxu0 0
    %2549 = vmatpush1.bf16.msra.mxu0 0
    %2550 = vmatprep.subr.bf16.mxu0 0
    %2551 = vmatpush1.bf16.msra.mxu0 0
    %2552 = vmatprep.subr.bf16.mxu0 0
    %2553 = vmatpush1.bf16.msra.mxu0 0
    %2554 = vmatprep.subr.bf16.mxu0 0
    %2555 = vmatpush1.bf16.msra.mxu0 0
    %2556 = vmatprep.subr.bf16.mxu0 0
    %2557 = vmatpush1.bf16.msra.mxu0 0
    %2558 = vmatprep.subr.bf16.mxu0 0
    %2559 = vmatpush1.bf16.msra.mxu0 0
    %2560 = vmatprep.mubr.bf16.mxu0 0
    %2561 = vmatmul.mubr.bf16.gmra.mrb[0].mxu0 %v2526
    %v2562 = vpop.f32.mrb[0].mxu0
    %v2563 = vadd.f32 %v2280, %v2562
    %v2564 = vpop.f32.mrb[0].mxu0
    %v2565 = vpop.f32.mrb[0].mxu0
    %v2566 = vpop.f32.mrb[0].mxu0
    %2567 = vdwg.mxu0
    %2568 = vst [vmem:[#allocation3 + $0x10] sm:$0xff] %v2563
    %v2569 = vld [vmem:[#allocation2 + $0x18] sm:$0xff]
    %2570 = vmatprep.subr.bf16.mxu0 0
    %2571 = vmatpush1.bf16.msra.mxu0 %v2206
    %2572 = vmatprep.subr.bf16.mxu0 0
    %2573 = vmatpush1.bf16.msra.mxu0 %v2207
    %2574 = vmatprep.subr.bf16.mxu0 0
    %2575 = vmatpush1.bf16.msra.mxu0 0
    %2576 = vmatprep.subr.bf16.mxu0 0
    %2577 = vmatpush1.bf16.msra.mxu0 0
    %2578 = vmatprep.subr.bf16.mxu0 0
    %2579 = vmatpush1.bf16.msra.mxu0 0
    %2580 = vmatprep.subr.bf16.mxu0 0
    %2581 = vmatpush1.bf16.msra.mxu0 0
    %2582 = vmatprep.subr.bf16.mxu0 0
    %2583 = vmatpush1.bf16.msra.mxu0 0
    %2584 = vmatprep.subr.bf16.mxu0 0
    %2585 = vmatpush1.bf16.msra.mxu0 0
    %2586 = vmatprep.subr.bf16.mxu0 0
    %2587 = vmatpush1.bf16.msra.mxu0 0
    %2588 = vmatprep.subr.bf16.mxu0 0
    %2589 = vmatpush1.bf16.msra.mxu0 0
    %2590 = vmatprep.subr.bf16.mxu0 0
    %2591 = vmatpush1.bf16.msra.mxu0 0
    %2592 = vmatprep.subr.bf16.mxu0 0
    %2593 = vmatpush1.bf16.msra.mxu0 0
    %2594 = vmatprep.subr.bf16.mxu0 0
    %2595 = vmatpush1.bf16.msra.mxu0 0
    %2596 = vmatprep.subr.bf16.mxu0 0
    %2597 = vmatpush1.bf16.msra.mxu0 0
    %2598 = vmatprep.subr.bf16.mxu0 0
    %2599 = vmatpush1.bf16.msra.mxu0 0
    %2600 = vmatprep.subr.bf16.mxu0 0
    %2601 = vmatpush1.bf16.msra.mxu0 0
    %2602 = vmatprep.mubr.bf16.mxu0 0
    %2603 = vmatmul.mubr.bf16.gmra.mrb[0].mxu0 %v2526
    %v2604 = vpop.f32.mrb[0].mxu0
    %v2605 = vadd.f32 0.0, %v2604
    %v2606 = vpop.f32.mrb[0].mxu0
    %v2607 = vpop.f32.mrb[0].mxu0
    %v2608 = vpop.f32.mrb[0].mxu0
    %2609 = vdwg.mxu0
    %v2610 = vadd.f32 %v2569, %v2605
    %v2611 = vxor.u32 %v2610, 2147483648
    %v2612 = vmul.f32 %v2611, 1.442695
    %v2613 = vpow.pop %v2612
    %v2614 = vadd.f32 %v2613, 1.0
    %v2615 = vrcp.pop %v2614
    %v2616 = vmul.f32 1.0, %v2615
    %v2617 = vtanh.pop %v2610
    %v2618 = vmul.f32 %v2616, %v2514
    %2620 = vrot.lane.b32.xlu0 %v2617, 32
    %v2621 = vpop.permute.xlu0 %2620
    %v2623 = vmul.f32 %v2616, %v2621
    %2625 = vrot.lane.b32.xlu0 %v2623, 32
    %v2626 = vpop.permute.xlu0 %2625
    %v2628 = vadd.f32 %v2618, %v2626
    %v2629 = vtanh.pop %v2628
    %2631 = vrot.lane.b32.xlu0 %v2629, 32
    %v2632 = vpop.permute.xlu0 %2631
    %v2634 = vmul.f32 %v2616, %v2632
    %v2635 = vpack.c.bf16 %v2634, %v2634
    %2637 = vrot.lane.b32.xlu0 %v2635, 64
    %v2638 = vpop.permute.xlu0 %2637
    %v2640 = vsel %vm304, %v2638, 0
    %2642 = vmatprep.subr.bf16.mxu0 0
    %2643 = vmatpush1.bf16.msra.mxu0 %v2293
    %2644 = vmatprep.subr.bf16.mxu0 0
    %2645 = vmatpush1.bf16.msra.mxu0 %v2294
    %2646 = vmatprep.subr.bf16.mxu0 0
    %2647 = vmatpush1.bf16.msra.mxu0 0
    %2648 = vmatprep.subr.bf16.mxu0 0
    %2649 = vmatpush1.bf16.msra.mxu0 0
    %2650 = vmatprep.subr.bf16.mxu0 0
    %2651 = vmatpush1.bf16.msra.mxu0 0
    %2652 = vmatprep.subr.bf16.mxu0 0
    %2653 = vmatpush1.bf16.msra.mxu0 0
    %2654 = vmatprep.subr.bf16.mxu0 0
    %2655 = vmatpush1.bf16.msra.mxu0 0
    %2656 = vmatprep.subr.bf16.mxu0 0
    %2657 = vmatpush1.bf16.msra.mxu0 0
    %2658 = vmatprep.subr.bf16.mxu0 0
    %2659 = vmatpush1.bf16.msra.mxu0 0
    %2660 = vmatprep.subr.bf16.mxu0 0
    %2661 = vmatpush1.bf16.msra.mxu0 0
    %2662 = vmatprep.subr.bf16.mxu0 0
    %2663 = vmatpush1.bf16.msra.mxu0 0
    %2664 = vmatprep.subr.bf16.mxu0 0
    %2665 = vmatpush1.bf16.msra.mxu0 0
    %2666 = vmatprep.subr.bf16.mxu0 0
    %2667 = vmatpush1.bf16.msra.mxu0 0
    %2668 = vmatprep.subr.bf16.mxu0 0
    %2669 = vmatpush1.bf16.msra.mxu0 0
    %2670 = vmatprep.subr.bf16.mxu0 0
    %2671 = vmatpush1.bf16.msra.mxu0 0
    %2672 = vmatprep.subr.bf16.mxu0 0
    %2673 = vmatpush1.bf16.msra.mxu0 0
    %2674 = vmatprep.mubr.bf16.mxu0 0
    %2675 = vmatmul.mubr.bf16.gmra.mrb[0].mxu0 %v2640
    %v2676 = vpop.f32.mrb[0].mxu0
    %v2677 = vadd.f32 %v2280, %v2676
    %v2678 = vpop.f32.mrb[0].mxu0
    %v2679 = vpop.f32.mrb[0].mxu0
    %v2680 = vpop.f32.mrb[0].mxu0
    %2681 = vdwg.mxu0
    %2682 = vst [vmem:[#allocation3 + $0x18] sm:$0xff] %v2677
    %v2683 = vld [vmem:[#allocation2 + $0x20] sm:$0xff]
    %2684 = vmatprep.subr.bf16.mxu0 0
    %2685 = vmatpush1.bf16.msra.mxu0 %v2206
    %2686 = vmatprep.subr.bf16.mxu0 0
    %2687 = vmatpush1.bf16.msra.mxu0 %v2207
    %2688 = vmatprep.subr.bf16.mxu0 0
    %2689 = vmatpush1.bf16.msra.mxu0 0
    %2690 = vmatprep.subr.bf16.mxu0 0
    %2691 = vmatpush1.bf16.msra.mxu0 0
    %2692 = vmatprep.subr.bf16.mxu0 0
    %2693 = vmatpush1.bf16.msra.mxu0 0
    %2694 = vmatprep.subr.bf16.mxu0 0
    %2695 = vmatpush1.bf16.msra.mxu0 0
    %2696 = vmatprep.subr.bf16.mxu0 0
    %2697 = vmatpush1.bf16.msra.mxu0 0
    %2698 = vmatprep.subr.bf16.mxu0 0
    %2699 = vmatpush1.bf16.msra.mxu0 0
    %2700 = vmatprep.subr.bf16.mxu0 0
    %2701 = vmatpush1.bf16.msra.mxu0 0
    %2702 = vmatprep.subr.bf16.mxu0 0
    %2703 = vmatpush1.bf16.msra.mxu0 0
    %2704 = vmatprep.subr.bf16.mxu0 0
    %2705 = vmatpush1.bf16.msra.mxu0 0
    %2706 = vmatprep.subr.bf16.mxu0 0
    %2707 = vmatpush1.bf16.msra.mxu0 0
    %2708 = vmatprep.subr.bf16.mxu0 0
    %2709 = vmatpush1.bf16.msra.mxu0 0
    %2710 = vmatprep.subr.bf16.mxu0 0
    %2711 = vmatpush1.bf16.msra.mxu0 0
    %2712 = vmatprep.subr.bf16.mxu0 0
    %2713 = vmatpush1.bf16.msra.mxu0 0
    %2714 = vmatprep.subr.bf16.mxu0 0
    %2715 = vmatpush1.bf16.msra.mxu0 0
    %2716 = vmatprep.mubr.bf16.mxu0 0
    %2717 = vmatmul.mubr.bf16.gmra.mrb[0].mxu0 %v2640
    %v2718 = vpop.f32.mrb[0].mxu0
    %v2719 = vadd.f32 0.0, %v2718
    %v2720 = vpop.f32.mrb[0].mxu0
    %v2721 = vpop.f32.mrb[0].mxu0
    %v2722 = vpop.f32.mrb[0].mxu0
    %2723 = vdwg.mxu0
    %v2724 = vadd.f32 %v2683, %v2719
    %v2725 = vxor.u32 %v2724, 2147483648
    %v2726 = vmul.f32 %v2725, 1.442695
    %v2727 = vpow.pop %v2726
    %v2728 = vadd.f32 %v2727, 1.0
    %v2729 = vrcp.pop %v2728
    %v2730 = vmul.f32 1.0, %v2729
    %v2731 = vtanh.pop %v2724
    %v2732 = vmul.f32 %v2730, %v2628
    %2734 = vrot.lane.b32.xlu0 %v2731, 32
    %v2735 = vpop.permute.xlu0 %2734
    %v2737 = vmul.f32 %v2730, %v2735
    %2739 = vrot.lane.b32.xlu0 %v2737, 32
    %v2740 = vpop.permute.xlu0 %2739
    %v2742 = vadd.f32 %v2732, %v2740
    %v2743 = vtanh.pop %v2742
    %2745 = vrot.lane.b32.xlu0 %v2743, 32
    %v2746 = vpop.permute.xlu0 %2745
    %v2748 = vmul.f32 %v2730, %v2746
    %v2749 = vpack.c.bf16 %v2748, %v2748
    %2751 = vrot.lane.b32.xlu0 %v2749, 64
    %v2752 = vpop.permute.xlu0 %2751
    %v2754 = vsel %vm304, %v2752, 0
    %2756 = vmatprep.subr.bf16.mxu0 0
    %2757 = vmatpush1.bf16.msra.mxu0 %v2293
    %2758 = vmatprep.subr.bf16.mxu0 0
    %2759 = vmatpush1.bf16.msra.mxu0 %v2294
    %2760 = vmatprep.subr.bf16.mxu0 0
    %2761 = vmatpush1.bf16.msra.mxu0 0
    %2762 = vmatprep.subr.bf16.mxu0 0
    %2763 = vmatpush1.bf16.msra.mxu0 0
    %2764 = vmatprep.subr.bf16.mxu0 0
    %2765 = vmatpush1.bf16.msra.mxu0 0
    %2766 = vmatprep.subr.bf16.mxu0 0
    %2767 = vmatpush1.bf16.msra.mxu0 0
    %2768 = vmatprep.subr.bf16.mxu0 0
    %2769 = vmatpush1.bf16.msra.mxu0 0
    %2770 = vmatprep.subr.bf16.mxu0 0
    %2771 = vmatpush1.bf16.msra.mxu0 0
    %2772 = vmatprep.subr.bf16.mxu0 0
    %2773 = vmatpush1.bf16.msra.mxu0 0
    %2774 = vmatprep.subr.bf16.mxu0 0
    %2775 = vmatpush1.bf16.msra.mxu0 0
    %2776 = vmatprep.subr.bf16.mxu0 0
    %2777 = vmatpush1.bf16.msra.mxu0 0
    %2778 = vmatprep.subr.bf16.mxu0 0
    %2779 = vmatpush1.bf16.msra.mxu0 0
    %2780 = vmatprep.subr.bf16.mxu0 0
    %2781 = vmatpush1.bf16.msra.mxu0 0
    %2782 = vmatprep.subr.bf16.mxu0 0
    %2783 = vmatpush1.bf16.msra.mxu0 0
    %2784 = vmatprep.subr.bf16.mxu0 0
    %2785 = vmatpush1.bf16.msra.mxu0 0
    %2786 = vmatprep.subr.bf16.mxu0 0
    %2787 = vmatpush1.bf16.msra.mxu0 0
    %2788 = vmatprep.mubr.bf16.mxu0 0
    %2789 = vmatmul.mubr.bf16.gmra.mrb[0].mxu0 %v2754
    %v2790 = vpop.f32.mrb[0].mxu0
    %v2791 = vadd.f32 %v2280, %v2790
    %v2792 = vpop.f32.mrb[0].mxu0
    %v2793 = vpop.f32.mrb[0].mxu0
    %v2794 = vpop.f32.mrb[0].mxu0
    %2795 = vdwg.mxu0
    %2796 = vst [vmem:[#allocation3 + $0x20] sm:$0xff] %v2791
    %v2797 = vld [vmem:[#allocation2 + $0x28] sm:$0xff]
    %2798 = vmatprep.subr.bf16.mxu0 0
    %2799 = vmatpush1.bf16.msra.mxu0 %v2206
    %2800 = vmatprep.subr.bf16.mxu0 0
    %2801 = vmatpush1.bf16.msra.mxu0 %v2207
    %2802 = vmatprep.subr.bf16.mxu0 0
    %2803 = vmatpush1.bf16.msra.mxu0 0
    %2804 = vmatprep.subr.bf16.mxu0 0
    %2805 = vmatpush1.bf16.msra.mxu0 0
    %2806 = vmatprep.subr.bf16.mxu0 0
    %2807 = vmatpush1.bf16.msra.mxu0 0
    %2808 = vmatprep.subr.bf16.mxu0 0
    %2809 = vmatpush1.bf16.msra.mxu0 0
    %2810 = vmatprep.subr.bf16.mxu0 0
    %2811 = vmatpush1.bf16.msra.mxu0 0
    %2812 = vmatprep.subr.bf16.mxu0 0
    %2813 = vmatpush1.bf16.msra.mxu0 0
    %2814 = vmatprep.subr.bf16.mxu0 0
    %2815 = vmatpush1.bf16.msra.mxu0 0
    %2816 = vmatprep.subr.bf16.mxu0 0
    %2817 = vmatpush1.bf16.msra.mxu0 0
    %2818 = vmatprep.subr.bf16.mxu0 0
    %2819 = vmatpush1.bf16.msra.mxu0 0
    %2820 = vmatprep.subr.bf16.mxu0 0
    %2821 = vmatpush1.bf16.msra.mxu0 0
    %2822 = vmatprep.subr.bf16.mxu0 0
    %2823 = vmatpush1.bf16.msra.mxu0 0
    %2824 = vmatprep.subr.bf16.mxu0 0
    %2825 = vmatpush1.bf16.msra.mxu0 0
    %2826 = vmatprep.subr.bf16.mxu0 0
    %2827 = vmatpush1.bf16.msra.mxu0 0
    %2828 = vmatprep.subr.bf16.mxu0 0
    %2829 = vmatpush1.bf16.msra.mxu0 0
    %2830 = vmatprep.mubr.bf16.mxu0 0
    %2831 = vmatmul.mubr.bf16.gmra.mrb[0].mxu0 %v2754
    %v2832 = vpop.f32.mrb[0].mxu0
    %v2833 = vadd.f32 0.0, %v2832
    %v2834 = vpop.f32.mrb[0].mxu0
    %v2835 = vpop.f32.mrb[0].mxu0
    %v2836 = vpop.f32.mrb[0].mxu0
    %2837 = vdwg.mxu0
    %v2838 = vadd.f32 %v2797, %v2833
    %v2839 = vxor.u32 %v2838, 2147483648
    %v2840 = vmul.f32 %v2839, 1.442695
    %v2841 = vpow.pop %v2840
    %v2842 = vadd.f32 %v2841, 1.0
    %v2843 = vrcp.pop %v2842
    %v2844 = vmul.f32 1.0, %v2843
    %v2845 = vtanh.pop %v2838
    %v2846 = vmul.f32 %v2844, %v2742
    %2848 = vrot.lane.b32.xlu0 %v2845, 32
    %v2849 = vpop.permute.xlu0 %2848
    %v2851 = vmul.f32 %v2844, %v2849
    %2853 = vrot.lane.b32.xlu0 %v2851, 32
    %v2854 = vpop.permute.xlu0 %2853
    %v2856 = vadd.f32 %v2846, %v2854
    %v2857 = vtanh.pop %v2856
    %2859 = vrot.lane.b32.xlu0 %v2857, 32
    %v2860 = vpop.permute.xlu0 %2859
    %v2862 = vmul.f32 %v2844, %v2860
    %v2863 = vpack.c.bf16 %v2862, %v2862
    %2865 = vrot.lane.b32.xlu0 %v2863, 64
    %v2866 = vpop.permute.xlu0 %2865
    %v2868 = vsel %vm304, %v2866, 0
    %2870 = vmatprep.subr.bf16.mxu0 0
    %2871 = vmatpush1.bf16.msra.mxu0 %v2293
    %2872 = vmatprep.subr.bf16.mxu0 0
    %2873 = vmatpush1.bf16.msra.mxu0 %v2294
    %2874 = vmatprep.subr.bf16.mxu0 0
    %2875 = vmatpush1.bf16.msra.mxu0 0
    %2876 = vmatprep.subr.bf16.mxu0 0
    %2877 = vmatpush1.bf16.msra.mxu0 0
    %2878 = vmatprep.subr.bf16.mxu0 0
    %2879 = vmatpush1.bf16.msra.mxu0 0
    %2880 = vmatprep.subr.bf16.mxu0 0
    %2881 = vmatpush1.bf16.msra.mxu0 0
    %2882 = vmatprep.subr.bf16.mxu0 0
    %2883 = vmatpush1.bf16.msra.mxu0 0
    %2884 = vmatprep.subr.bf16.mxu0 0
    %2885 = vmatpush1.bf16.msra.mxu0 0
    %2886 = vmatprep.subr.bf16.mxu0 0
    %2887 = vmatpush1.bf16.msra.mxu0 0
    %2888 = vmatprep.subr.bf16.mxu0 0
    %2889 = vmatpush1.bf16.msra.mxu0 0
    %2890 = vmatprep.subr.bf16.mxu0 0
    %2891 = vmatpush1.bf16.msra.mxu0 0
    %2892 = vmatprep.subr.bf16.mxu0 0
    %2893 = vmatpush1.bf16.msra.mxu0 0
    %2894 = vmatprep.subr.bf16.mxu0 0
    %2895 = vmatpush1.bf16.msra.mxu0 0
    %2896 = vmatprep.subr.bf16.mxu0 0
    %2897 = vmatpush1.bf16.msra.mxu0 0
    %2898 = vmatprep.subr.bf16.mxu0 0
    %2899 = vmatpush1.bf16.msra.mxu0 0
    %2900 = vmatprep.subr.bf16.mxu0 0
    %2901 = vmatpush1.bf16.msra.mxu0 0
    %2902 = vmatprep.mubr.bf16.mxu0 0
    %2903 = vmatmul.mubr.bf16.gmra.mrb[0].mxu0 %v2868
    %v2904 = vpop.f32.mrb[0].mxu0
    %v2905 = vadd.f32 %v2280, %v2904
    %v2906 = vpop.f32.mrb[0].mxu0
    %v2907 = vpop.f32.mrb[0].mxu0
    %v2908 = vpop.f32.mrb[0].mxu0
    %2909 = vdwg.mxu0
    %2910 = vst [vmem:[#allocation3 + $0x28] sm:$0xff] %v2905
    %v2911 = vld [vmem:[#allocation2 + $0x30] sm:$0xff]
    %2912 = vmatprep.subr.bf16.mxu0 0
    %2913 = vmatpush1.bf16.msra.mxu0 %v2206
    %2914 = vmatprep.subr.bf16.mxu0 0
    %2915 = vmatpush1.bf16.msra.mxu0 %v2207
    %2916 = vmatprep.subr.bf16.mxu0 0
    %2917 = vmatpush1.bf16.msra.mxu0 0
    %2918 = vmatprep.subr.bf16.mxu0 0
    %2919 = vmatpush1.bf16.msra.mxu0 0
    %2920 = vmatprep.subr.bf16.mxu0 0
    %2921 = vmatpush1.bf16.msra.mxu0 0
    %2922 = vmatprep.subr.bf16.mxu0 0
    %2923 = vmatpush1.bf16.msra.mxu0 0
    %2924 = vmatprep.subr.bf16.mxu0 0
    %2925 = vmatpush1.bf16.msra.mxu0 0
    %2926 = vmatprep.subr.bf16.mxu0 0
    %2927 = vmatpush1.bf16.msra.mxu0 0
    %2928 = vmatprep.subr.bf16.mxu0 0
    %2929 = vmatpush1.bf16.msra.mxu0 0
    %2930 = vmatprep.subr.bf16.mxu0 0
    %2931 = vmatpush1.bf16.msra.mxu0 0
    %2932 = vmatprep.subr.bf16.mxu0 0
    %2933 = vmatpush1.bf16.msra.mxu0 0
    %2934 = vmatprep.subr.bf16.mxu0 0
    %2935 = vmatpush1.bf16.msra.mxu0 0
    %2936 = vmatprep.subr.bf16.mxu0 0
    %2937 = vmatpush1.bf16.msra.mxu0 0
    %2938 = vmatprep.subr.bf16.mxu0 0
    %2939 = vmatpush1.bf16.msra.mxu0 0
    %2940 = vmatprep.subr.bf16.mxu0 0
    %2941 = vmatpush1.bf16.msra.mxu0 0
    %2942 = vmatprep.subr.bf16.mxu0 0
    %2943 = vmatpush1.bf16.msra.mxu0 0
    %2944 = vmatprep.mubr.bf16.mxu0 0
    %2945 = vmatmul.mubr.bf16.gmra.mrb[0].mxu0 %v2868
    %v2946 = vpop.f32.mrb[0].mxu0
    %v2947 = vadd.f32 0.0, %v2946
    %v2948 = vpop.f32.mrb[0].mxu0
    %v2949 = vpop.f32.mrb[0].mxu0
    %v2950 = vpop.f32.mrb[0].mxu0
    %2951 = vdwg.mxu0
    %v2952 = vadd.f32 %v2911, %v2947
    %v2953 = vxor.u32 %v2952, 2147483648
    %v2954 = vmul.f32 %v2953, 1.442695
    %v2955 = vpow.pop %v2954
    %v2956 = vadd.f32 %v2955, 1.0
    %v2957 = vrcp.pop %v2956
    %v2958 = vmul.f32 1.0, %v2957
    %v2959 = vtanh.pop %v2952
    %v2960 = vmul.f32 %v2958, %v2856
    %2962 = vrot.lane.b32.xlu0 %v2959, 32
    %v2963 = vpop.permute.xlu0 %2962
    %v2965 = vmul.f32 %v2958, %v2963
    %2967 = vrot.lane.b32.xlu0 %v2965, 32
    %v2968 = vpop.permute.xlu0 %2967
    %v2970 = vadd.f32 %v2960, %v2968
    %v2971 = vtanh.pop %v2970
    %2973 = vrot.lane.b32.xlu0 %v2971, 32
    %v2974 = vpop.permute.xlu0 %2973
    %v2976 = vmul.f32 %v2958, %v2974
    %v2977 = vpack.c.bf16 %v2976, %v2976
    %2979 = vrot.lane.b32.xlu0 %v2977, 64
    %v2980 = vpop.permute.xlu0 %2979
    %v2982 = vsel %vm304, %v2980, 0
    %2984 = vmatprep.subr.bf16.mxu0 0
    %2985 = vmatpush1.bf16.msra.mxu0 %v2293
    %2986 = vmatprep.subr.bf16.mxu0 0
    %2987 = vmatpush1.bf16.msra.mxu0 %v2294
    %2988 = vmatprep.subr.bf16.mxu0 0
    %2989 = vmatpush1.bf16.msra.mxu0 0
    %2990 = vmatprep.subr.bf16.mxu0 0
    %2991 = vmatpush1.bf16.msra.mxu0 0
    %2992 = vmatprep.subr.bf16.mxu0 0
    %2993 = vmatpush1.bf16.msra.mxu0 0
    %2994 = vmatprep.subr.bf16.mxu0 0
    %2995 = vmatpush1.bf16.msra.mxu0 0
    %2996 = vmatprep.subr.bf16.mxu0 0
    %2997 = vmatpush1.bf16.msra.mxu0 0
    %2998 = vmatprep.subr.bf16.mxu0 0
    %2999 = vmatpush1.bf16.msra.mxu0 0
    %3000 = vmatprep.subr.bf16.mxu0 0
    %3001 = vmatpush1.bf16.msra.mxu0 0
    %3002 = vmatprep.subr.bf16.mxu0 0
    %3003 = vmatpush1.bf16.msra.mxu0 0
    %3004 = vmatprep.subr.bf16.mxu0 0
    %3005 = vmatpush1.bf16.msra.mxu0 0
    %3006 = vmatprep.subr.bf16.mxu0 0
    %3007 = vmatpush1.bf16.msra.mxu0 0
    %3008 = vmatprep.subr.bf16.mxu0 0
    %3009 = vmatpush1.bf16.msra.mxu0 0
    %3010 = vmatprep.subr.bf16.mxu0 0
    %3011 = vmatpush1.bf16.msra.mxu0 0
    %3012 = vmatprep.subr.bf16.mxu0 0
    %3013 = vmatpush1.bf16.msra.mxu0 0
    %3014 = vmatprep.subr.bf16.mxu0 0
    %3015 = vmatpush1.bf16.msra.mxu0 0
    %3016 = vmatprep.mubr.bf16.mxu0 0
    %3017 = vmatmul.mubr.bf16.gmra.mrb[0].mxu0 %v2982
    %v3018 = vpop.f32.mrb[0].mxu0
    %v3019 = vadd.f32 %v2280, %v3018
    %v3020 = vpop.f32.mrb[0].mxu0
    %v3021 = vpop.f32.mrb[0].mxu0
    %v3022 = vpop.f32.mrb[0].mxu0
    %3023 = vdwg.mxu0
    %3024 = vst [vmem:[#allocation3 + $0x30] sm:$0xff] %v3019
    %v3025 = vld [vmem:[#allocation2 + $0x38] sm:$0xff]
    %3026 = vmatprep.subr.bf16.mxu0 0
    %3027 = vmatpush1.bf16.msra.mxu0 %v2206
    %3028 = vmatprep.subr.bf16.mxu0 0
    %3029 = vmatpush1.bf16.msra.mxu0 %v2207
    %3030 = vmatprep.subr.bf16.mxu0 0
    %3031 = vmatpush1.bf16.msra.mxu0 0
    %3032 = vmatprep.subr.bf16.mxu0 0
    %3033 = vmatpush1.bf16.msra.mxu0 0
    %3034 = vmatprep.subr.bf16.mxu0 0
    %3035 = vmatpush1.bf16.msra.mxu0 0
    %3036 = vmatprep.subr.bf16.mxu0 0
    %3037 = vmatpush1.bf16.msra.mxu0 0
    %3038 = vmatprep.subr.bf16.mxu0 0
    %3039 = vmatpush1.bf16.msra.mxu0 0
    %3040 = vmatprep.subr.bf16.mxu0 0
    %3041 = vmatpush1.bf16.msra.mxu0 0
    %3042 = vmatprep.subr.bf16.mxu0 0
    %3043 = vmatpush1.bf16.msra.mxu0 0
    %3044 = vmatprep.subr.bf16.mxu0 0
    %3045 = vmatpush1.bf16.msra.mxu0 0
    %3046 = vmatprep.subr.bf16.mxu0 0
    %3047 = vmatpush1.bf16.msra.mxu0 0
    %3048 = vmatprep.subr.bf16.mxu0 0
    %3049 = vmatpush1.bf16.msra.mxu0 0
    %3050 = vmatprep.subr.bf16.mxu0 0
    %3051 = vmatpush1.bf16.msra.mxu0 0
    %3052 = vmatprep.subr.bf16.mxu0 0
    %3053 = vmatpush1.bf16.msra.mxu0 0
    %3054 = vmatprep.subr.bf16.mxu0 0
    %3055 = vmatpush1.bf16.msra.mxu0 0
    %3056 = vmatprep.subr.bf16.mxu0 0
    %3057 = vmatpush1.bf16.msra.mxu0 0
    %3058 = vmatprep.mubr.bf16.mxu0 0
    %3059 = vmatmul.mubr.bf16.gmra.mrb[0].mxu0 %v2982
    %v3060 = vpop.f32.mrb[0].mxu0
    %v3061 = vadd.f32 0.0, %v3060
    %v3062 = vpop.f32.mrb[0].mxu0
    %v3063 = vpop.f32.mrb[0].mxu0
    %v3064 = vpop.f32.mrb[0].mxu0
    %3065 = vdwg.mxu0
    %v3066 = vadd.f32 %v3025, %v3061
    %v3067 = vxor.u32 %v3066, 2147483648
    %v3068 = vmul.f32 %v3067, 1.442695
    %v3069 = vpow.pop %v3068
    %v3070 = vadd.f32 %v3069, 1.0
    %v3071 = vrcp.pop %v3070
    %v3072 = vmul.f32 1.0, %v3071
    %v3073 = vtanh.pop %v3066
    %v3074 = vmul.f32 %v3072, %v2970
    %3076 = vrot.lane.b32.xlu0 %v3073, 32
    %v3077 = vpop.permute.xlu0 %3076
    %v3079 = vmul.f32 %v3072, %v3077
    %3081 = vrot.lane.b32.xlu0 %v3079, 32
    %v3082 = vpop.permute.xlu0 %3081
    %v3084 = vadd.f32 %v3074, %v3082
    %v3085 = vtanh.pop %v3084
    %3087 = vrot.lane.b32.xlu0 %v3085, 32
    %v3088 = vpop.permute.xlu0 %3087
    %v3090 = vmul.f32 %v3072, %v3088
    %v3091 = vpack.c.bf16 %v3090, %v3090
    %3093 = vrot.lane.b32.xlu0 %v3091, 64
    %v3094 = vpop.permute.xlu0 %3093
    %v3096 = vsel %vm304, %v3094, 0
    %3098 = vmatprep.subr.bf16.mxu0 0
    %3099 = vmatpush1.bf16.msra.mxu0 %v2293
    %3100 = vmatprep.subr.bf16.mxu0 0
    %3101 = vmatpush1.bf16.msra.mxu0 %v2294
    %3102 = vmatprep.subr.bf16.mxu0 0
    %3103 = vmatpush1.bf16.msra.mxu0 0
    %3104 = vmatprep.subr.bf16.mxu0 0
    %3105 = vmatpush1.bf16.msra.mxu0 0
    %3106 = vmatprep.subr.bf16.mxu0 0
    %3107 = vmatpush1.bf16.msra.mxu0 0
    %3108 = vmatprep.subr.bf16.mxu0 0
    %3109 = vmatpush1.bf16.msra.mxu0 0
    %3110 = vmatprep.subr.bf16.mxu0 0
    %3111 = vmatpush1.bf16.msra.mxu0 0
    %3112 = vmatprep.subr.bf16.mxu0 0
    %3113 = vmatpush1.bf16.msra.mxu0 0
    %3114 = vmatprep.subr.bf16.mxu0 0
    %3115 = vmatpush1.bf16.msra.mxu0 0
    %3116 = vmatprep.subr.bf16.mxu0 0
    %3117 = vmatpush1.bf16.msra.mxu0 0
    %3118 = vmatprep.subr.bf16.mxu0 0
    %3119 = vmatpush1.bf16.msra.mxu0 0
    %3120 = vmatprep.subr.bf16.mxu0 0
    %3121 = vmatpush1.bf16.msra.mxu0 0
    %3122 = vmatprep.subr.bf16.mxu0 0
    %3123 = vmatpush1.bf16.msra.mxu0 0
    %3124 = vmatprep.subr.bf16.mxu0 0
    %3125 = vmatpush1.bf16.msra.mxu0 0
    %3126 = vmatprep.subr.bf16.mxu0 0
    %3127 = vmatpush1.bf16.msra.mxu0 0
    %3128 = vmatprep.subr.bf16.mxu0 0
    %3129 = vmatpush1.bf16.msra.mxu0 0
    %3130 = vmatprep.mubr.bf16.mxu0 0
    %3131 = vmatmul.mubr.bf16.gmra.mrb[0].mxu0 %v3096
    %v3132 = vpop.f32.mrb[0].mxu0
    %v3133 = vadd.f32 %v2280, %v3132
    %v3134 = vpop.f32.mrb[0].mxu0
    %v3135 = vpop.f32.mrb[0].mxu0
    %v3136 = vpop.f32.mrb[0].mxu0
    %3137 = vdwg.mxu0
    %3138 = vst [vmem:[#allocation3 + $0x38] sm:$0xff] %v3133
    %v3139 = vld [vmem:[%s11] sm:$0xf]
    %v3140 = vld [vmem:[%s11 + $0x4] sm:$0xf]
    %v3141 = vld [vmem:[%s11 + $0x8] sm:$0xf]
    %v3142 = vld [vmem:[%s11 + $0xc] sm:$0xf]
    %v3143 = vld [vmem:[%s13] sm:$0xf]
    %v3144 = vld [vmem:[%s13 + $0x4] sm:$0xf]
    %v3145 = vld [vmem:[%s13 + $0x8] sm:$0xf]
    %v3146 = vld [vmem:[%s13 + $0xc] sm:$0xf]
    %v3147 = vld [vmem:[#allocation13] sm:$0x1]
    %v3148 = vld [vmem:[#allocation3] sm:$0xff]
    %v3153 = vunpack.c.l.b16 %v3139
    %v3154 = vunpack.c.l.b16 %v3140
    %v3155 = vunpack.c.l.b16 %v3141
    %v3156 = vunpack.c.l.b16 %v3142
    %v3157 = vpack.c.b16 %v3154, %v3153
    %v3158 = vpack.c.b16 %v3156, %v3155
    %3161 = vmatprep.subr.bf16.mxu0 0
    %3162 = vmatpush1.bf16.msra.mxu0 %v3157
    %3163 = vmatprep.subr.bf16.mxu0 0
    %3164 = vmatpush1.bf16.msra.mxu0 %v3158
    %3165 = vmatprep.subr.bf16.mxu0 0
    %3166 = vmatpush1.bf16.msra.mxu0 0
    %3167 = vmatprep.subr.bf16.mxu0 0
    %3168 = vmatpush1.bf16.msra.mxu0 0
    %3169 = vmatprep.subr.bf16.mxu0 0
    %3170 = vmatpush1.bf16.msra.mxu0 0
    %3171 = vmatprep.subr.bf16.mxu0 0
    %3172 = vmatpush1.bf16.msra.mxu0 0
    %3173 = vmatprep.subr.bf16.mxu0 0
    %3174 = vmatpush1.bf16.msra.mxu0 0
    %3175 = vmatprep.subr.bf16.mxu0 0
    %3176 = vmatpush1.bf16.msra.mxu0 0
    %3177 = vmatprep.subr.bf16.mxu0 0
    %3178 = vmatpush1.bf16.msra.mxu0 0
    %3179 = vmatprep.subr.bf16.mxu0 0
    %3180 = vmatpush1.bf16.msra.mxu0 0
    %3181 = vmatprep.subr.bf16.mxu0 0
    %3182 = vmatpush1.bf16.msra.mxu0 0
    %3183 = vmatprep.subr.bf16.mxu0 0
    %3184 = vmatpush1.bf16.msra.mxu0 0
    %3185 = vmatprep.subr.bf16.mxu0 0
    %3186 = vmatpush1.bf16.msra.mxu0 0
    %3187 = vmatprep.subr.bf16.mxu0 0
    %3188 = vmatpush1.bf16.msra.mxu0 0
    %3189 = vmatprep.subr.bf16.mxu0 0
    %3190 = vmatpush1.bf16.msra.mxu0 0
    %3191 = vmatprep.subr.bf16.mxu0 0
    %3192 = vmatpush1.bf16.msra.mxu0 0
    %3193 = vmatprep.mubr.bf16.mxu0 0
    %3194 = vmatmul.mubr.bf16.gmra.mrb[0].mxu0 %v306
    %v3195 = vpop.f32.mrb[0].mxu0
    %v3196 = vadd.f32 0.0, %v3195
    %v3197 = vpop.f32.mrb[0].mxu0
    %v3198 = vpop.f32.mrb[0].mxu0
    %v3199 = vpop.f32.mrb[0].mxu0
    %3200 = vdwg.mxu0
    %v3201 = vadd.f32 %v3148, %v3196
    %v3202 = vxor.u32 %v3201, 2147483648
    %v3203 = vmul.f32 %v3202, 1.442695
    %v3204 = vpow.pop %v3203
    %v3205 = vadd.f32 %v3204, 1.0
    %v3206 = vrcp.pop %v3205
    %v3207 = vmul.f32 1.0, %v3206
    %v3208 = vtanh.pop %v3201
    %v3209 = vmul.f32 %v3207, 0.0
    %3211 = vrot.lane.b32.xlu0 %v3208, 32
    %v3212 = vpop.permute.xlu0 %3211
    %v3214 = vmul.f32 %v3207, %v3212
    %3216 = vrot.lane.b32.xlu0 %v3214, 32
    %v3217 = vpop.permute.xlu0 %3216
    %v3219 = vadd.f32 %v3209, %v3217
    %v3220 = vtanh.pop %v3219
    %3222 = vrot.lane.b32.xlu0 %v3220, 32
    %v3223 = vpop.permute.xlu0 %3222
    %v3225 = vmul.f32 %v3207, %v3223
    %v3226 = vpack.c.bf16 %v3225, %v3225
    %v3228 = vlaneseq
    %v3229 = vshrl.u32 %v3228, 7
    %v3230 = vsub.s32 0, %v3229
    %v3231 = vrot.slane %v3147, %v3230
    %3234 = vrot.lane.b32.xlu0 %v3226, 64
    %v3235 = vpop.permute.xlu0 %3234
    %v3240 = vunpack.c.l.b16 %v3143
    %v3241 = vunpack.c.l.b16 %v3144
    %v3242 = vunpack.c.l.b16 %v3145
    %v3243 = vunpack.c.l.b16 %v3146
    %v3244 = vpack.c.b16 %v3241, %v3240
    %v3245 = vpack.c.b16 %v3243, %v3242
    %v3249 = vsel %vm304, %v3235, 0
    %3251 = vmatprep.subr.bf16.mxu0 0
    %3252 = vmatpush1.bf16.msra.mxu0 %v3244
    %3253 = vmatprep.subr.bf16.mxu0 0
    %3254 = vmatpush1.bf16.msra.mxu0 %v3245
    %3255 = vmatprep.subr.bf16.mxu0 0
    %3256 = vmatpush1.bf16.msra.mxu0 0
    %3257 = vmatprep.subr.bf16.mxu0 0
    %3258 = vmatpush1.bf16.msra.mxu0 0
    %3259 = vmatprep.subr.bf16.mxu0 0
    %3260 = vmatpush1.bf16.msra.mxu0 0
    %3261 = vmatprep.subr.bf16.mxu0 0
    %3262 = vmatpush1.bf16.msra.mxu0 0
    %3263 = vmatprep.subr.bf16.mxu0 0
    %3264 = vmatpush1.bf16.msra.mxu0 0
    %3265 = vmatprep.subr.bf16.mxu0 0
    %3266 = vmatpush1.bf16.msra.mxu0 0
    %3267 = vmatprep.subr.bf16.mxu0 0
    %3268 = vmatpush1.bf16.msra.mxu0 0
    %3269 = vmatprep.subr.bf16.mxu0 0
    %3270 = vmatpush1.bf16.msra.mxu0 0
    %3271 = vmatprep.subr.bf16.mxu0 0
    %3272 = vmatpush1.bf16.msra.mxu0 0
    %3273 = vmatprep.subr.bf16.mxu0 0
    %3274 = vmatpush1.bf16.msra.mxu0 0
    %3275 = vmatprep.subr.bf16.mxu0 0
    %3276 = vmatpush1.bf16.msra.mxu0 0
    %3277 = vmatprep.subr.bf16.mxu0 0
    %3278 = vmatpush1.bf16.msra.mxu0 0
    %3279 = vmatprep.subr.bf16.mxu0 0
    %3280 = vmatpush1.bf16.msra.mxu0 0
    %3281 = vmatprep.subr.bf16.mxu0 0
    %3282 = vmatpush1.bf16.msra.mxu0 0
    %3283 = vmatprep.mubr.bf16.mxu0 0
    %3284 = vmatmul.mubr.bf16.gmra.mrb[0].mxu0 %v3249
    %v3285 = vpop.f32.mrb[0].mxu0
    %v3286 = vadd.f32 %v3231, %v3285
    %v3287 = vpop.f32.mrb[0].mxu0
    %v3288 = vpop.f32.mrb[0].mxu0
    %v3289 = vpop.f32.mrb[0].mxu0
    %3290 = vdwg.mxu0
    %3291 = vst [vmem:[#allocation2] sm:$0xff] %v3286
    %v3292 = vld [vmem:[#allocation3 + $0x8] sm:$0xff]
    %3293 = vmatprep.subr.bf16.mxu0 0
    %3294 = vmatpush1.bf16.msra.mxu0 %v3157
    %3295 = vmatprep.subr.bf16.mxu0 0
    %3296 = vmatpush1.bf16.msra.mxu0 %v3158
    %3297 = vmatprep.subr.bf16.mxu0 0
    %3298 = vmatpush1.bf16.msra.mxu0 0
    %3299 = vmatprep.subr.bf16.mxu0 0
    %3300 = vmatpush1.bf16.msra.mxu0 0
    %3301 = vmatprep.subr.bf16.mxu0 0
    %3302 = vmatpush1.bf16.msra.mxu0 0
    %3303 = vmatprep.subr.bf16.mxu0 0
    %3304 = vmatpush1.bf16.msra.mxu0 0
    %3305 = vmatprep.subr.bf16.mxu0 0
    %3306 = vmatpush1.bf16.msra.mxu0 0
    %3307 = vmatprep.subr.bf16.mxu0 0
    %3308 = vmatpush1.bf16.msra.mxu0 0
    %3309 = vmatprep.subr.bf16.mxu0 0
    %3310 = vmatpush1.bf16.msra.mxu0 0
    %3311 = vmatprep.subr.bf16.mxu0 0
    %3312 = vmatpush1.bf16.msra.mxu0 0
    %3313 = vmatprep.subr.bf16.mxu0 0
    %3314 = vmatpush1.bf16.msra.mxu0 0
    %3315 = vmatprep.subr.bf16.mxu0 0
    %3316 = vmatpush1.bf16.msra.mxu0 0
    %3317 = vmatprep.subr.bf16.mxu0 0
    %3318 = vmatpush1.bf16.msra.mxu0 0
    %3319 = vmatprep.subr.bf16.mxu0 0
    %3320 = vmatpush1.bf16.msra.mxu0 0
    %3321 = vmatprep.subr.bf16.mxu0 0
    %3322 = vmatpush1.bf16.msra.mxu0 0
    %3323 = vmatprep.subr.bf16.mxu0 0
    %3324 = vmatpush1.bf16.msra.mxu0 0
    %3325 = vmatprep.mubr.bf16.mxu0 0
    %3326 = vmatmul.mubr.bf16.gmra.mrb[0].mxu0 %v3249
    %v3327 = vpop.f32.mrb[0].mxu0
    %v3328 = vadd.f32 0.0, %v3327
    %v3329 = vpop.f32.mrb[0].mxu0
    %v3330 = vpop.f32.mrb[0].mxu0
    %v3331 = vpop.f32.mrb[0].mxu0
    %3332 = vdwg.mxu0
    %v3333 = vadd.f32 %v3292, %v3328
    %v3334 = vxor.u32 %v3333, 2147483648
    %v3335 = vmul.f32 %v3334, 1.442695
    %v3336 = vpow.pop %v3335
    %v3337 = vadd.f32 %v3336, 1.0
    %v3338 = vrcp.pop %v3337
    %v3339 = vmul.f32 1.0, %v3338
    %v3340 = vtanh.pop %v3333
    %v3341 = vmul.f32 %v3339, %v3219
    %3343 = vrot.lane.b32.xlu0 %v3340, 32
    %v3344 = vpop.permute.xlu0 %3343
    %v3346 = vmul.f32 %v3339, %v3344
    %3348 = vrot.lane.b32.xlu0 %v3346, 32
    %v3349 = vpop.permute.xlu0 %3348
    %v3351 = vadd.f32 %v3341, %v3349
    %v3352 = vtanh.pop %v3351
    %3354 = vrot.lane.b32.xlu0 %v3352, 32
    %v3355 = vpop.permute.xlu0 %3354
    %v3357 = vmul.f32 %v3339, %v3355
    %v3358 = vpack.c.bf16 %v3357, %v3357
    %3360 = vrot.lane.b32.xlu0 %v3358, 64
    %v3361 = vpop.permute.xlu0 %3360
    %v3363 = vsel %vm304, %v3361, 0
    %3365 = vmatprep.subr.bf16.mxu0 0
    %3366 = vmatpush1.bf16.msra.mxu0 %v3244
    %3367 = vmatprep.subr.bf16.mxu0 0
    %3368 = vmatpush1.bf16.msra.mxu0 %v3245
    %3369 = vmatprep.subr.bf16.mxu0 0
    %3370 = vmatpush1.bf16.msra.mxu0 0
    %3371 = vmatprep.subr.bf16.mxu0 0
    %3372 = vmatpush1.bf16.msra.mxu0 0
    %3373 = vmatprep.subr.bf16.mxu0 0
    %3374 = vmatpush1.bf16.msra.mxu0 0
    %3375 = vmatprep.subr.bf16.mxu0 0
    %3376 = vmatpush1.bf16.msra.mxu0 0
    %3377 = vmatprep.subr.bf16.mxu0 0
    %3378 = vmatpush1.bf16.msra.mxu0 0
    %3379 = vmatprep.subr.bf16.mxu0 0
    %3380 = vmatpush1.bf16.msra.mxu0 0
    %3381 = vmatprep.subr.bf16.mxu0 0
    %3382 = vmatpush1.bf16.msra.mxu0 0
    %3383 = vmatprep.subr.bf16.mxu0 0
    %3384 = vmatpush1.bf16.msra.mxu0 0
    %3385 = vmatprep.subr.bf16.mxu0 0
    %3386 = vmatpush1.bf16.msra.mxu0 0
    %3387 = vmatprep.subr.bf16.mxu0 0
    %3388 = vmatpush1.bf16.msra.mxu0 0
    %3389 = vmatprep.subr.bf16.mxu0 0
    %3390 = vmatpush1.bf16.msra.mxu0 0
    %3391 = vmatprep.subr.bf16.mxu0 0
    %3392 = vmatpush1.bf16.msra.mxu0 0
    %3393 = vmatprep.subr.bf16.mxu0 0
    %3394 = vmatpush1.bf16.msra.mxu0 0
    %3395 = vmatprep.subr.bf16.mxu0 0
    %3396 = vmatpush1.bf16.msra.mxu0 0
    %3397 = vmatprep.mubr.bf16.mxu0 0
    %3398 = vmatmul.mubr.bf16.gmra.mrb[0].mxu0 %v3363
    %v3399 = vpop.f32.mrb[0].mxu0
    %v3400 = vadd.f32 %v3231, %v3399
    %v3401 = vpop.f32.mrb[0].mxu0
    %v3402 = vpop.f32.mrb[0].mxu0
    %v3403 = vpop.f32.mrb[0].mxu0
    %3404 = vdwg.mxu0
    %3405 = vst [vmem:[#allocation2 + $0x8] sm:$0xff] %v3400
    %v3406 = vld [vmem:[#allocation3 + $0x10] sm:$0xff]
    %3407 = vmatprep.subr.bf16.mxu0 0
    %3408 = vmatpush1.bf16.msra.mxu0 %v3157
    %3409 = vmatprep.subr.bf16.mxu0 0
    %3410 = vmatpush1.bf16.msra.mxu0 %v3158
    %3411 = vmatprep.subr.bf16.mxu0 0
    %3412 = vmatpush1.bf16.msra.mxu0 0
    %3413 = vmatprep.subr.bf16.mxu0 0
    %3414 = vmatpush1.bf16.msra.mxu0 0
    %3415 = vmatprep.subr.bf16.mxu0 0
    %3416 = vmatpush1.bf16.msra.mxu0 0
    %3417 = vmatprep.subr.bf16.mxu0 0
    %3418 = vmatpush1.bf16.msra.mxu0 0
    %3419 = vmatprep.subr.bf16.mxu0 0
    %3420 = vmatpush1.bf16.msra.mxu0 0
    %3421 = vmatprep.subr.bf16.mxu0 0
    %3422 = vmatpush1.bf16.msra.mxu0 0
    %3423 = vmatprep.subr.bf16.mxu0 0
    %3424 = vmatpush1.bf16.msra.mxu0 0
    %3425 = vmatprep.subr.bf16.mxu0 0
    %3426 = vmatpush1.bf16.msra.mxu0 0
    %3427 = vmatprep.subr.bf16.mxu0 0
    %3428 = vmatpush1.bf16.msra.mxu0 0
    %3429 = vmatprep.subr.bf16.mxu0 0
    %3430 = vmatpush1.bf16.msra.mxu0 0
    %3431 = vmatprep.subr.bf16.mxu0 0
    %3432 = vmatpush1.bf16.msra.mxu0 0
    %3433 = vmatprep.subr.bf16.mxu0 0
    %3434 = vmatpush1.bf16.msra.mxu0 0
    %3435 = vmatprep.subr.bf16.mxu0 0
    %3436 = vmatpush1.bf16.msra.mxu0 0
    %3437 = vmatprep.subr.bf16.mxu0 0
    %3438 = vmatpush1.bf16.msra.mxu0 0
    %3439 = vmatprep.mubr.bf16.mxu0 0
    %3440 = vmatmul.mubr.bf16.gmra.mrb[0].mxu0 %v3363
    %v3441 = vpop.f32.mrb[0].mxu0
    %v3442 = vadd.f32 0.0, %v3441
    %v3443 = vpop.f32.mrb[0].mxu0
    %v3444 = vpop.f32.mrb[0].mxu0
    %v3445 = vpop.f32.mrb[0].mxu0
    %3446 = vdwg.mxu0
    %v3447 = vadd.f32 %v3406, %v3442
    %v3448 = vxor.u32 %v3447, 2147483648
    %v3449 = vmul.f32 %v3448, 1.442695
    %v3450 = vpow.pop %v3449
    %v3451 = vadd.f32 %v3450, 1.0
    %v3452 = vrcp.pop %v3451
    %v3453 = vmul.f32 1.0, %v3452
    %v3454 = vtanh.pop %v3447
    %v3455 = vmul.f32 %v3453, %v3351
    %3457 = vrot.lane.b32.xlu0 %v3454, 32
    %v3458 = vpop.permute.xlu0 %3457
    %v3460 = vmul.f32 %v3453, %v3458
    %3462 = vrot.lane.b32.xlu0 %v3460, 32
    %v3463 = vpop.permute.xlu0 %3462
    %v3465 = vadd.f32 %v3455, %v3463
    %v3466 = vtanh.pop %v3465
    %3468 = vrot.lane.b32.xlu0 %v3466, 32
    %v3469 = vpop.permute.xlu0 %3468
    %v3471 = vmul.f32 %v3453, %v3469
    %v3472 = vpack.c.bf16 %v3471, %v3471
    %3474 = vrot.lane.b32.xlu0 %v3472, 64
    %v3475 = vpop.permute.xlu0 %3474
    %v3477 = vsel %vm304, %v3475, 0
    %3479 = vmatprep.subr.bf16.mxu0 0
    %3480 = vmatpush1.bf16.msra.mxu0 %v3244
    %3481 = vmatprep.subr.bf16.mxu0 0
    %3482 = vmatpush1.bf16.msra.mxu0 %v3245
    %3483 = vmatprep.subr.bf16.mxu0 0
    %3484 = vmatpush1.bf16.msra.mxu0 0
    %3485 = vmatprep.subr.bf16.mxu0 0
    %3486 = vmatpush1.bf16.msra.mxu0 0
    %3487 = vmatprep.subr.bf16.mxu0 0
    %3488 = vmatpush1.bf16.msra.mxu0 0
    %3489 = vmatprep.subr.bf16.mxu0 0
    %3490 = vmatpush1.bf16.msra.mxu0 0
    %3491 = vmatprep.subr.bf16.mxu0 0
    %3492 = vmatpush1.bf16.msra.mxu0 0
    %3493 = vmatprep.subr.bf16.mxu0 0
    %3494 = vmatpush1.bf16.msra.mxu0 0
    %3495 = vmatprep.subr.bf16.mxu0 0
    %3496 = vmatpush1.bf16.msra.mxu0 0
    %3497 = vmatprep.subr.bf16.mxu0 0
    %3498 = vmatpush1.bf16.msra.mxu0 0
    %3499 = vmatprep.subr.bf16.mxu0 0
    %3500 = vmatpush1.bf16.msra.mxu0 0
    %3501 = vmatprep.subr.bf16.mxu0 0
    %3502 = vmatpush1.bf16.msra.mxu0 0
    %3503 = vmatprep.subr.bf16.mxu0 0
    %3504 = vmatpush1.bf16.msra.mxu0 0
    %3505 = vmatprep.subr.bf16.mxu0 0
    %3506 = vmatpush1.bf16.msra.mxu0 0
    %3507 = vmatprep.subr.bf16.mxu0 0
    %3508 = vmatpush1.bf16.msra.mxu0 0
    %3509 = vmatprep.subr.bf16.mxu0 0
    %3510 = vmatpush1.bf16.msra.mxu0 0
    %3511 = vmatprep.mubr.bf16.mxu0 0
    %3512 = vmatmul.mubr.bf16.gmra.mrb[0].mxu0 %v3477
    %v3513 = vpop.f32.mrb[0].mxu0
    %v3514 = vadd.f32 %v3231, %v3513
    %v3515 = vpop.f32.mrb[0].mxu0
    %v3516 = vpop.f32.mrb[0].mxu0
    %v3517 = vpop.f32.mrb[0].mxu0
    %3518 = vdwg.mxu0
    %3519 = vst [vmem:[#allocation2 + $0x10] sm:$0xff] %v3514
    %v3520 = vld [vmem:[#allocation3 + $0x18] sm:$0xff]
    %3521 = vmatprep.subr.bf16.mxu0 0
    %3522 = vmatpush1.bf16.msra.mxu0 %v3157
    %3523 = vmatprep.subr.bf16.mxu0 0
    %3524 = vmatpush1.bf16.msra.mxu0 %v3158
    %3525 = vmatprep.subr.bf16.mxu0 0
    %3526 = vmatpush1.bf16.msra.mxu0 0
    %3527 = vmatprep.subr.bf16.mxu0 0
    %3528 = vmatpush1.bf16.msra.mxu0 0
    %3529 = vmatprep.subr.bf16.mxu0 0
    %3530 = vmatpush1.bf16.msra.mxu0 0
    %3531 = vmatprep.subr.bf16.mxu0 0
    %3532 = vmatpush1.bf16.msra.mxu0 0
    %3533 = vmatprep.subr.bf16.mxu0 0
    %3534 = vmatpush1.bf16.msra.mxu0 0
    %3535 = vmatprep.subr.bf16.mxu0 0
    %3536 = vmatpush1.bf16.msra.mxu0 0
    %3537 = vmatprep.subr.bf16.mxu0 0
    %3538 = vmatpush1.bf16.msra.mxu0 0
    %3539 = vmatprep.subr.bf16.mxu0 0
    %3540 = vmatpush1.bf16.msra.mxu0 0
    %3541 = vmatprep.subr.bf16.mxu0 0
    %3542 = vmatpush1.bf16.msra.mxu0 0
    %3543 = vmatprep.subr.bf16.mxu0 0
    %3544 = vmatpush1.bf16.msra.mxu0 0
    %3545 = vmatprep.subr.bf16.mxu0 0
    %3546 = vmatpush1.bf16.msra.mxu0 0
    %3547 = vmatprep.subr.bf16.mxu0 0
    %3548 = vmatpush1.bf16.msra.mxu0 0
    %3549 = vmatprep.subr.bf16.mxu0 0
    %3550 = vmatpush1.bf16.msra.mxu0 0
    %3551 = vmatprep.subr.bf16.mxu0 0
    %3552 = vmatpush1.bf16.msra.mxu0 0
    %3553 = vmatprep.mubr.bf16.mxu0 0
    %3554 = vmatmul.mubr.bf16.gmra.mrb[0].mxu0 %v3477
    %v3555 = vpop.f32.mrb[0].mxu0
    %v3556 = vadd.f32 0.0, %v3555
    %v3557 = vpop.f32.mrb[0].mxu0
    %v3558 = vpop.f32.mrb[0].mxu0
    %v3559 = vpop.f32.mrb[0].mxu0
    %3560 = vdwg.mxu0
    %v3561 = vadd.f32 %v3520, %v3556
    %v3562 = vxor.u32 %v3561, 2147483648
    %v3563 = vmul.f32 %v3562, 1.442695
    %v3564 = vpow.pop %v3563
    %v3565 = vadd.f32 %v3564, 1.0
    %v3566 = vrcp.pop %v3565
    %v3567 = vmul.f32 1.0, %v3566
    %v3568 = vtanh.pop %v3561
    %v3569 = vmul.f32 %v3567, %v3465
    %3571 = vrot.lane.b32.xlu0 %v3568, 32
    %v3572 = vpop.permute.xlu0 %3571
    %v3574 = vmul.f32 %v3567, %v3572
    %3576 = vrot.lane.b32.xlu0 %v3574, 32
    %v3577 = vpop.permute.xlu0 %3576
    %v3579 = vadd.f32 %v3569, %v3577
    %v3580 = vtanh.pop %v3579
    %3582 = vrot.lane.b32.xlu0 %v3580, 32
    %v3583 = vpop.permute.xlu0 %3582
    %v3585 = vmul.f32 %v3567, %v3583
    %v3586 = vpack.c.bf16 %v3585, %v3585
    %3588 = vrot.lane.b32.xlu0 %v3586, 64
    %v3589 = vpop.permute.xlu0 %3588
    %v3591 = vsel %vm304, %v3589, 0
    %3593 = vmatprep.subr.bf16.mxu0 0
    %3594 = vmatpush1.bf16.msra.mxu0 %v3244
    %3595 = vmatprep.subr.bf16.mxu0 0
    %3596 = vmatpush1.bf16.msra.mxu0 %v3245
    %3597 = vmatprep.subr.bf16.mxu0 0
    %3598 = vmatpush1.bf16.msra.mxu0 0
    %3599 = vmatprep.subr.bf16.mxu0 0
    %3600 = vmatpush1.bf16.msra.mxu0 0
    %3601 = vmatprep.subr.bf16.mxu0 0
    %3602 = vmatpush1.bf16.msra.mxu0 0
    %3603 = vmatprep.subr.bf16.mxu0 0
    %3604 = vmatpush1.bf16.msra.mxu0 0
    %3605 = vmatprep.subr.bf16.mxu0 0
    %3606 = vmatpush1.bf16.msra.mxu0 0
    %3607 = vmatprep.subr.bf16.mxu0 0
    %3608 = vmatpush1.bf16.msra.mxu0 0
    %3609 = vmatprep.subr.bf16.mxu0 0
    %3610 = vmatpush1.bf16.msra.mxu0 0
    %3611 = vmatprep.subr.bf16.mxu0 0
    %3612 = vmatpush1.bf16.msra.mxu0 0
    %3613 = vmatprep.subr.bf16.mxu0 0
    %3614 = vmatpush1.bf16.msra.mxu0 0
    %3615 = vmatprep.subr.bf16.mxu0 0
    %3616 = vmatpush1.bf16.msra.mxu0 0
    %3617 = vmatprep.subr.bf16.mxu0 0
    %3618 = vmatpush1.bf16.msra.mxu0 0
    %3619 = vmatprep.subr.bf16.mxu0 0
    %3620 = vmatpush1.bf16.msra.mxu0 0
    %3621 = vmatprep.subr.bf16.mxu0 0
    %3622 = vmatpush1.bf16.msra.mxu0 0
    %3623 = vmatprep.subr.bf16.mxu0 0
    %3624 = vmatpush1.bf16.msra.mxu0 0
    %3625 = vmatprep.mubr.bf16.mxu0 0
    %3626 = vmatmul.mubr.bf16.gmra.mrb[0].mxu0 %v3591
    %v3627 = vpop.f32.mrb[0].mxu0
    %v3628 = vadd.f32 %v3231, %v3627
    %v3629 = vpop.f32.mrb[0].mxu0
    %v3630 = vpop.f32.mrb[0].mxu0
    %v3631 = vpop.f32.mrb[0].mxu0
    %3632 = vdwg.mxu0
    %3633 = vst [vmem:[#allocation2 + $0x18] sm:$0xff] %v3628
    %v3634 = vld [vmem:[#allocation3 + $0x20] sm:$0xff]
    %3635 = vmatprep.subr.bf16.mxu0 0
    %3636 = vmatpush1.bf16.msra.mxu0 %v3157
    %3637 = vmatprep.subr.bf16.mxu0 0
    %3638 = vmatpush1.bf16.msra.mxu0 %v3158
    %3639 = vmatprep.subr.bf16.mxu0 0
    %3640 = vmatpush1.bf16.msra.mxu0 0
    %3641 = vmatprep.subr.bf16.mxu0 0
    %3642 = vmatpush1.bf16.msra.mxu0 0
    %3643 = vmatprep.subr.bf16.mxu0 0
    %3644 = vmatpush1.bf16.msra.mxu0 0
    %3645 = vmatprep.subr.bf16.mxu0 0
    %3646 = vmatpush1.bf16.msra.mxu0 0
    %3647 = vmatprep.subr.bf16.mxu0 0
    %3648 = vmatpush1.bf16.msra.mxu0 0
    %3649 = vmatprep.subr.bf16.mxu0 0
    %3650 = vmatpush1.bf16.msra.mxu0 0
    %3651 = vmatprep.subr.bf16.mxu0 0
    %3652 = vmatpush1.bf16.msra.mxu0 0
    %3653 = vmatprep.subr.bf16.mxu0 0
    %3654 = vmatpush1.bf16.msra.mxu0 0
    %3655 = vmatprep.subr.bf16.mxu0 0
    %3656 = vmatpush1.bf16.msra.mxu0 0
    %3657 = vmatprep.subr.bf16.mxu0 0
    %3658 = vmatpush1.bf16.msra.mxu0 0
    %3659 = vmatprep.subr.bf16.mxu0 0
    %3660 = vmatpush1.bf16.msra.mxu0 0
    %3661 = vmatprep.subr.bf16.mxu0 0
    %3662 = vmatpush1.bf16.msra.mxu0 0
    %3663 = vmatprep.subr.bf16.mxu0 0
    %3664 = vmatpush1.bf16.msra.mxu0 0
    %3665 = vmatprep.subr.bf16.mxu0 0
    %3666 = vmatpush1.bf16.msra.mxu0 0
    %3667 = vmatprep.mubr.bf16.mxu0 0
    %3668 = vmatmul.mubr.bf16.gmra.mrb[0].mxu0 %v3591
    %v3669 = vpop.f32.mrb[0].mxu0
    %v3670 = vadd.f32 0.0, %v3669
    %v3671 = vpop.f32.mrb[0].mxu0
    %v3672 = vpop.f32.mrb[0].mxu0
    %v3673 = vpop.f32.mrb[0].mxu0
    %3674 = vdwg.mxu0
    %v3675 = vadd.f32 %v3634, %v3670
    %v3676 = vxor.u32 %v3675, 2147483648
    %v3677 = vmul.f32 %v3676, 1.442695
    %v3678 = vpow.pop %v3677
    %v3679 = vadd.f32 %v3678, 1.0
    %v3680 = vrcp.pop %v3679
    %v3681 = vmul.f32 1.0, %v3680
    %v3682 = vtanh.pop %v3675
    %v3683 = vmul.f32 %v3681, %v3579
    %3685 = vrot.lane.b32.xlu0 %v3682, 32
    %v3686 = vpop.permute.xlu0 %3685
    %v3688 = vmul.f32 %v3681, %v3686
    %3690 = vrot.lane.b32.xlu0 %v3688, 32
    %v3691 = vpop.permute.xlu0 %3690
    %v3693 = vadd.f32 %v3683, %v3691
    %v3694 = vtanh.pop %v3693
    %3696 = vrot.lane.b32.xlu0 %v3694, 32
    %v3697 = vpop.permute.xlu0 %3696
    %v3699 = vmul.f32 %v3681, %v3697
    %v3700 = vpack.c.bf16 %v3699, %v3699
    %3702 = vrot.lane.b32.xlu0 %v3700, 64
    %v3703 = vpop.permute.xlu0 %3702
    %v3705 = vsel %vm304, %v3703, 0
    %3707 = vmatprep.subr.bf16.mxu0 0
    %3708 = vmatpush1.bf16.msra.mxu0 %v3244
    %3709 = vmatprep.subr.bf16.mxu0 0
    %3710 = vmatpush1.bf16.msra.mxu0 %v3245
    %3711 = vmatprep.subr.bf16.mxu0 0
    %3712 = vmatpush1.bf16.msra.mxu0 0
    %3713 = vmatprep.subr.bf16.mxu0 0
    %3714 = vmatpush1.bf16.msra.mxu0 0
    %3715 = vmatprep.subr.bf16.mxu0 0
    %3716 = vmatpush1.bf16.msra.mxu0 0
    %3717 = vmatprep.subr.bf16.mxu0 0
    %3718 = vmatpush1.bf16.msra.mxu0 0
    %3719 = vmatprep.subr.bf16.mxu0 0
    %3720 = vmatpush1.bf16.msra.mxu0 0
    %3721 = vmatprep.subr.bf16.mxu0 0
    %3722 = vmatpush1.bf16.msra.mxu0 0
    %3723 = vmatprep.subr.bf16.mxu0 0
    %3724 = vmatpush1.bf16.msra.mxu0 0
    %3725 = vmatprep.subr.bf16.mxu0 0
    %3726 = vmatpush1.bf16.msra.mxu0 0
    %3727 = vmatprep.subr.bf16.mxu0 0
    %3728 = vmatpush1.bf16.msra.mxu0 0
    %3729 = vmatprep.subr.bf16.mxu0 0
    %3730 = vmatpush1.bf16.msra.mxu0 0
    %3731 = vmatprep.subr.bf16.mxu0 0
    %3732 = vmatpush1.bf16.msra.mxu0 0
    %3733 = vmatprep.subr.bf16.mxu0 0
    %3734 = vmatpush1.bf16.msra.mxu0 0
    %3735 = vmatprep.subr.bf16.mxu0 0
    %3736 = vmatpush1.bf16.msra.mxu0 0
    %3737 = vmatprep.subr.bf16.mxu0 0
    %3738 = vmatpush1.bf16.msra.mxu0 0
    %3739 = vmatprep.mubr.bf16.mxu0 0
    %3740 = vmatmul.mubr.bf16.gmra.mrb[0].mxu0 %v3705
    %v3741 = vpop.f32.mrb[0].mxu0
    %v3742 = vadd.f32 %v3231, %v3741
    %v3743 = vpop.f32.mrb[0].mxu0
    %v3744 = vpop.f32.mrb[0].mxu0
    %v3745 = vpop.f32.mrb[0].mxu0
    %3746 = vdwg.mxu0
    %3747 = vst [vmem:[#allocation2 + $0x20] sm:$0xff] %v3742
    %v3748 = vld [vmem:[#allocation3 + $0x28] sm:$0xff]
    %3749 = vmatprep.subr.bf16.mxu0 0
    %3750 = vmatpush1.bf16.msra.mxu0 %v3157
    %3751 = vmatprep.subr.bf16.mxu0 0
    %3752 = vmatpush1.bf16.msra.mxu0 %v3158
    %3753 = vmatprep.subr.bf16.mxu0 0
    %3754 = vmatpush1.bf16.msra.mxu0 0
    %3755 = vmatprep.subr.bf16.mxu0 0
    %3756 = vmatpush1.bf16.msra.mxu0 0
    %3757 = vmatprep.subr.bf16.mxu0 0
    %3758 = vmatpush1.bf16.msra.mxu0 0
    %3759 = vmatprep.subr.bf16.mxu0 0
    %3760 = vmatpush1.bf16.msra.mxu0 0
    %3761 = vmatprep.subr.bf16.mxu0 0
    %3762 = vmatpush1.bf16.msra.mxu0 0
    %3763 = vmatprep.subr.bf16.mxu0 0
    %3764 = vmatpush1.bf16.msra.mxu0 0
    %3765 = vmatprep.subr.bf16.mxu0 0
    %3766 = vmatpush1.bf16.msra.mxu0 0
    %3767 = vmatprep.subr.bf16.mxu0 0
    %3768 = vmatpush1.bf16.msra.mxu0 0
    %3769 = vmatprep.subr.bf16.mxu0 0
    %3770 = vmatpush1.bf16.msra.mxu0 0
    %3771 = vmatprep.subr.bf16.mxu0 0
    %3772 = vmatpush1.bf16.msra.mxu0 0
    %3773 = vmatprep.subr.bf16.mxu0 0
    %3774 = vmatpush1.bf16.msra.mxu0 0
    %3775 = vmatprep.subr.bf16.mxu0 0
    %3776 = vmatpush1.bf16.msra.mxu0 0
    %3777 = vmatprep.subr.bf16.mxu0 0
    %3778 = vmatpush1.bf16.msra.mxu0 0
    %3779 = vmatprep.subr.bf16.mxu0 0
    %3780 = vmatpush1.bf16.msra.mxu0 0
    %3781 = vmatprep.mubr.bf16.mxu0 0
    %3782 = vmatmul.mubr.bf16.gmra.mrb[0].mxu0 %v3705
    %v3783 = vpop.f32.mrb[0].mxu0
    %v3784 = vadd.f32 0.0, %v3783
    %v3785 = vpop.f32.mrb[0].mxu0
    %v3786 = vpop.f32.mrb[0].mxu0
    %v3787 = vpop.f32.mrb[0].mxu0
    %3788 = vdwg.mxu0
    %v3789 = vadd.f32 %v3748, %v3784
    %v3790 = vxor.u32 %v3789, 2147483648
    %v3791 = vmul.f32 %v3790, 1.442695
    %v3792 = vpow.pop %v3791
    %v3793 = vadd.f32 %v3792, 1.0
    %v3794 = vrcp.pop %v3793
    %v3795 = vmul.f32 1.0, %v3794
    %v3796 = vtanh.pop %v3789
    %v3797 = vmul.f32 %v3795, %v3693
    %3799 = vrot.lane.b32.xlu0 %v3796, 32
    %v3800 = vpop.permute.xlu0 %3799
    %v3802 = vmul.f32 %v3795, %v3800
    %3804 = vrot.lane.b32.xlu0 %v3802, 32
    %v3805 = vpop.permute.xlu0 %3804
    %v3807 = vadd.f32 %v3797, %v3805
    %v3808 = vtanh.pop %v3807
    %3810 = vrot.lane.b32.xlu0 %v3808, 32
    %v3811 = vpop.permute.xlu0 %3810
    %v3813 = vmul.f32 %v3795, %v3811
    %v3814 = vpack.c.bf16 %v3813, %v3813
    %3816 = vrot.lane.b32.xlu0 %v3814, 64
    %v3817 = vpop.permute.xlu0 %3816
    %v3819 = vsel %vm304, %v3817, 0
    %3821 = vmatprep.subr.bf16.mxu0 0
    %3822 = vmatpush1.bf16.msra.mxu0 %v3244
    %3823 = vmatprep.subr.bf16.mxu0 0
    %3824 = vmatpush1.bf16.msra.mxu0 %v3245
    %3825 = vmatprep.subr.bf16.mxu0 0
    %3826 = vmatpush1.bf16.msra.mxu0 0
    %3827 = vmatprep.subr.bf16.mxu0 0
    %3828 = vmatpush1.bf16.msra.mxu0 0
    %3829 = vmatprep.subr.bf16.mxu0 0
    %3830 = vmatpush1.bf16.msra.mxu0 0
    %3831 = vmatprep.subr.bf16.mxu0 0
    %3832 = vmatpush1.bf16.msra.mxu0 0
    %3833 = vmatprep.subr.bf16.mxu0 0
    %3834 = vmatpush1.bf16.msra.mxu0 0
    %3835 = vmatprep.subr.bf16.mxu0 0
    %3836 = vmatpush1.bf16.msra.mxu0 0
    %3837 = vmatprep.subr.bf16.mxu0 0
    %3838 = vmatpush1.bf16.msra.mxu0 0
    %3839 = vmatprep.subr.bf16.mxu0 0
    %3840 = vmatpush1.bf16.msra.mxu0 0
    %3841 = vmatprep.subr.bf16.mxu0 0
    %3842 = vmatpush1.bf16.msra.mxu0 0
    %3843 = vmatprep.subr.bf16.mxu0 0
    %3844 = vmatpush1.bf16.msra.mxu0 0
    %3845 = vmatprep.subr.bf16.mxu0 0
    %3846 = vmatpush1.bf16.msra.mxu0 0
    %3847 = vmatprep.subr.bf16.mxu0 0
    %3848 = vmatpush1.bf16.msra.mxu0 0
    %3849 = vmatprep.subr.bf16.mxu0 0
    %3850 = vmatpush1.bf16.msra.mxu0 0
    %3851 = vmatprep.subr.bf16.mxu0 0
    %3852 = vmatpush1.bf16.msra.mxu0 0
    %3853 = vmatprep.mubr.bf16.mxu0 0
    %3854 = vmatmul.mubr.bf16.gmra.mrb[0].mxu0 %v3819
    %v3855 = vpop.f32.mrb[0].mxu0
    %v3856 = vadd.f32 %v3231, %v3855
    %v3857 = vpop.f32.mrb[0].mxu0
    %v3858 = vpop.f32.mrb[0].mxu0
    %v3859 = vpop.f32.mrb[0].mxu0
    %3860 = vdwg.mxu0
    %3861 = vst [vmem:[#allocation2 + $0x28] sm:$0xff] %v3856
    %v3862 = vld [vmem:[#allocation3 + $0x30] sm:$0xff]
    %3863 = vmatprep.subr.bf16.mxu0 0
    %3864 = vmatpush1.bf16.msra.mxu0 %v3157
    %3865 = vmatprep.subr.bf16.mxu0 0
    %3866 = vmatpush1.bf16.msra.mxu0 %v3158
    %3867 = vmatprep.subr.bf16.mxu0 0
    %3868 = vmatpush1.bf16.msra.mxu0 0
    %3869 = vmatprep.subr.bf16.mxu0 0
    %3870 = vmatpush1.bf16.msra.mxu0 0
    %3871 = vmatprep.subr.bf16.mxu0 0
    %3872 = vmatpush1.bf16.msra.mxu0 0
    %3873 = vmatprep.subr.bf16.mxu0 0
    %3874 = vmatpush1.bf16.msra.mxu0 0
    %3875 = vmatprep.subr.bf16.mxu0 0
    %3876 = vmatpush1.bf16.msra.mxu0 0
    %3877 = vmatprep.subr.bf16.mxu0 0
    %3878 = vmatpush1.bf16.msra.mxu0 0
    %3879 = vmatprep.subr.bf16.mxu0 0
    %3880 = vmatpush1.bf16.msra.mxu0 0
    %3881 = vmatprep.subr.bf16.mxu0 0
    %3882 = vmatpush1.bf16.msra.mxu0 0
    %3883 = vmatprep.subr.bf16.mxu0 0
    %3884 = vmatpush1.bf16.msra.mxu0 0
    %3885 = vmatprep.subr.bf16.mxu0 0
    %3886 = vmatpush1.bf16.msra.mxu0 0
    %3887 = vmatprep.subr.bf16.mxu0 0
    %3888 = vmatpush1.bf16.msra.mxu0 0
    %3889 = vmatprep.subr.bf16.mxu0 0
    %3890 = vmatpush1.bf16.msra.mxu0 0
    %3891 = vmatprep.subr.bf16.mxu0 0
    %3892 = vmatpush1.bf16.msra.mxu0 0
    %3893 = vmatprep.subr.bf16.mxu0 0
    %3894 = vmatpush1.bf16.msra.mxu0 0
    %3895 = vmatprep.mubr.bf16.mxu0 0
    %3896 = vmatmul.mubr.bf16.gmra.mrb[0].mxu0 %v3819
    %v3897 = vpop.f32.mrb[0].mxu0
    %v3898 = vadd.f32 0.0, %v3897
    %v3899 = vpop.f32.mrb[0].mxu0
    %v3900 = vpop.f32.mrb[0].mxu0
    %v3901 = vpop.f32.mrb[0].mxu0
    %3902 = vdwg.mxu0
    %v3903 = vadd.f32 %v3862, %v3898
    %v3904 = vxor.u32 %v3903, 2147483648
    %v3905 = vmul.f32 %v3904, 1.442695
    %v3906 = vpow.pop %v3905
    %v3907 = vadd.f32 %v3906, 1.0
    %v3908 = vrcp.pop %v3907
    %v3909 = vmul.f32 1.0, %v3908
    %v3910 = vtanh.pop %v3903
    %v3911 = vmul.f32 %v3909, %v3807
    %3913 = vrot.lane.b32.xlu0 %v3910, 32
    %v3914 = vpop.permute.xlu0 %3913
    %v3916 = vmul.f32 %v3909, %v3914
    %3918 = vrot.lane.b32.xlu0 %v3916, 32
    %v3919 = vpop.permute.xlu0 %3918
    %v3921 = vadd.f32 %v3911, %v3919
    %v3922 = vtanh.pop %v3921
    %3924 = vrot.lane.b32.xlu0 %v3922, 32
    %v3925 = vpop.permute.xlu0 %3924
    %v3927 = vmul.f32 %v3909, %v3925
    %v3928 = vpack.c.bf16 %v3927, %v3927
    %3930 = vrot.lane.b32.xlu0 %v3928, 64
    %v3931 = vpop.permute.xlu0 %3930
    %v3933 = vsel %vm304, %v3931, 0
    %3935 = vmatprep.subr.bf16.mxu0 0
    %3936 = vmatpush1.bf16.msra.mxu0 %v3244
    %3937 = vmatprep.subr.bf16.mxu0 0
    %3938 = vmatpush1.bf16.msra.mxu0 %v3245
    %3939 = vmatprep.subr.bf16.mxu0 0
    %3940 = vmatpush1.bf16.msra.mxu0 0
    %3941 = vmatprep.subr.bf16.mxu0 0
    %3942 = vmatpush1.bf16.msra.mxu0 0
    %3943 = vmatprep.subr.bf16.mxu0 0
    %3944 = vmatpush1.bf16.msra.mxu0 0
    %3945 = vmatprep.subr.bf16.mxu0 0
    %3946 = vmatpush1.bf16.msra.mxu0 0
    %3947 = vmatprep.subr.bf16.mxu0 0
    %3948 = vmatpush1.bf16.msra.mxu0 0
    %3949 = vmatprep.subr.bf16.mxu0 0
    %3950 = vmatpush1.bf16.msra.mxu0 0
    %3951 = vmatprep.subr.bf16.mxu0 0
    %3952 = vmatpush1.bf16.msra.mxu0 0
    %3953 = vmatprep.subr.bf16.mxu0 0
    %3954 = vmatpush1.bf16.msra.mxu0 0
    %3955 = vmatprep.subr.bf16.mxu0 0
    %3956 = vmatpush1.bf16.msra.mxu0 0
    %3957 = vmatprep.subr.bf16.mxu0 0
    %3958 = vmatpush1.bf16.msra.mxu0 0
    %3959 = vmatprep.subr.bf16.mxu0 0
    %3960 = vmatpush1.bf16.msra.mxu0 0
    %3961 = vmatprep.subr.bf16.mxu0 0
    %3962 = vmatpush1.bf16.msra.mxu0 0
    %3963 = vmatprep.subr.bf16.mxu0 0
    %3964 = vmatpush1.bf16.msra.mxu0 0
    %3965 = vmatprep.subr.bf16.mxu0 0
    %3966 = vmatpush1.bf16.msra.mxu0 0
    %3967 = vmatprep.mubr.bf16.mxu0 0
    %3968 = vmatmul.mubr.bf16.gmra.mrb[0].mxu0 %v3933
    %v3969 = vpop.f32.mrb[0].mxu0
    %v3970 = vadd.f32 %v3231, %v3969
    %v3971 = vpop.f32.mrb[0].mxu0
    %v3972 = vpop.f32.mrb[0].mxu0
    %v3973 = vpop.f32.mrb[0].mxu0
    %3974 = vdwg.mxu0
    %3975 = vst [vmem:[#allocation2 + $0x30] sm:$0xff] %v3970
    %v3976 = vld [vmem:[#allocation3 + $0x38] sm:$0xff]
    %3977 = vmatprep.subr.bf16.mxu0 0
    %3978 = vmatpush1.bf16.msra.mxu0 %v3157
    %3979 = vmatprep.subr.bf16.mxu0 0
    %3980 = vmatpush1.bf16.msra.mxu0 %v3158
    %3981 = vmatprep.subr.bf16.mxu0 0
    %3982 = vmatpush1.bf16.msra.mxu0 0
    %3983 = vmatprep.subr.bf16.mxu0 0
    %3984 = vmatpush1.bf16.msra.mxu0 0
    %3985 = vmatprep.subr.bf16.mxu0 0
    %3986 = vmatpush1.bf16.msra.mxu0 0
    %3987 = vmatprep.subr.bf16.mxu0 0
    %3988 = vmatpush1.bf16.msra.mxu0 0
    %3989 = vmatprep.subr.bf16.mxu0 0
    %3990 = vmatpush1.bf16.msra.mxu0 0
    %3991 = vmatprep.subr.bf16.mxu0 0
    %3992 = vmatpush1.bf16.msra.mxu0 0
    %3993 = vmatprep.subr.bf16.mxu0 0
    %3994 = vmatpush1.bf16.msra.mxu0 0
    %3995 = vmatprep.subr.bf16.mxu0 0
    %3996 = vmatpush1.bf16.msra.mxu0 0
    %3997 = vmatprep.subr.bf16.mxu0 0
    %3998 = vmatpush1.bf16.msra.mxu0 0
    %3999 = vmatprep.subr.bf16.mxu0 0
    %4000 = vmatpush1.bf16.msra.mxu0 0
    %4001 = vmatprep.subr.bf16.mxu0 0
    %4002 = vmatpush1.bf16.msra.mxu0 0
    %4003 = vmatprep.subr.bf16.mxu0 0
    %4004 = vmatpush1.bf16.msra.mxu0 0
    %4005 = vmatprep.subr.bf16.mxu0 0
    %4006 = vmatpush1.bf16.msra.mxu0 0
    %4007 = vmatprep.subr.bf16.mxu0 0
    %4008 = vmatpush1.bf16.msra.mxu0 0
    %4009 = vmatprep.mubr.bf16.mxu0 0
    %4010 = vmatmul.mubr.bf16.gmra.mrb[0].mxu0 %v3933
    %v4011 = vpop.f32.mrb[0].mxu0
    %v4012 = vadd.f32 0.0, %v4011
    %v4013 = vpop.f32.mrb[0].mxu0
    %v4014 = vpop.f32.mrb[0].mxu0
    %v4015 = vpop.f32.mrb[0].mxu0
    %4016 = vdwg.mxu0
    %v4017 = vadd.f32 %v3976, %v4012
    %v4018 = vxor.u32 %v4017, 2147483648
    %v4019 = vmul.f32 %v4018, 1.442695
    %v4020 = vpow.pop %v4019
    %v4021 = vadd.f32 %v4020, 1.0
    %v4022 = vrcp.pop %v4021
    %v4023 = vmul.f32 1.0, %v4022
    %v4024 = vtanh.pop %v4017
    %v4025 = vmul.f32 %v4023, %v3921
    %4027 = vrot.lane.b32.xlu0 %v4024, 32
    %v4028 = vpop.permute.xlu0 %4027
    %v4030 = vmul.f32 %v4023, %v4028
    %4032 = vrot.lane.b32.xlu0 %v4030, 32
    %v4033 = vpop.permute.xlu0 %4032
    %v4035 = vadd.f32 %v4025, %v4033
    %v4036 = vtanh.pop %v4035
    %4038 = vrot.lane.b32.xlu0 %v4036, 32
    %v4039 = vpop.permute.xlu0 %4038
    %v4041 = vmul.f32 %v4023, %v4039
    %v4042 = vpack.c.bf16 %v4041, %v4041
    %4044 = vrot.lane.b32.xlu0 %v4042, 64
    %v4045 = vpop.permute.xlu0 %4044
    %v4047 = vsel %vm304, %v4045, 0
    %4049 = vmatprep.subr.bf16.mxu0 0
    %4050 = vmatpush1.bf16.msra.mxu0 %v3244
    %4051 = vmatprep.subr.bf16.mxu0 0
    %4052 = vmatpush1.bf16.msra.mxu0 %v3245
    %4053 = vmatprep.subr.bf16.mxu0 0
    %4054 = vmatpush1.bf16.msra.mxu0 0
    %4055 = vmatprep.subr.bf16.mxu0 0
    %4056 = vmatpush1.bf16.msra.mxu0 0
    %4057 = vmatprep.subr.bf16.mxu0 0
    %4058 = vmatpush1.bf16.msra.mxu0 0
    %4059 = vmatprep.subr.bf16.mxu0 0
    %4060 = vmatpush1.bf16.msra.mxu0 0
    %4061 = vmatprep.subr.bf16.mxu0 0
    %4062 = vmatpush1.bf16.msra.mxu0 0
    %4063 = vmatprep.subr.bf16.mxu0 0
    %4064 = vmatpush1.bf16.msra.mxu0 0
    %4065 = vmatprep.subr.bf16.mxu0 0
    %4066 = vmatpush1.bf16.msra.mxu0 0
    %4067 = vmatprep.subr.bf16.mxu0 0
    %4068 = vmatpush1.bf16.msra.mxu0 0
    %4069 = vmatprep.subr.bf16.mxu0 0
    %4070 = vmatpush1.bf16.msra.mxu0 0
    %4071 = vmatprep.subr.bf16.mxu0 0
    %4072 = vmatpush1.bf16.msra.mxu0 0
    %4073 = vmatprep.subr.bf16.mxu0 0
    %4074 = vmatpush1.bf16.msra.mxu0 0
    %4075 = vmatprep.subr.bf16.mxu0 0
    %4076 = vmatpush1.bf16.msra.mxu0 0
    %4077 = vmatprep.subr.bf16.mxu0 0
    %4078 = vmatpush1.bf16.msra.mxu0 0
    %4079 = vmatprep.subr.bf16.mxu0 0
    %4080 = vmatpush1.bf16.msra.mxu0 0
    %4081 = vmatprep.mubr.bf16.mxu0 0
    %4082 = vmatmul.mubr.bf16.gmra.mrb[0].mxu0 %v4047
    %v4083 = vpop.f32.mrb[0].mxu0
    %v4084 = vadd.f32 %v3231, %v4083
    %v4085 = vpop.f32.mrb[0].mxu0
    %v4086 = vpop.f32.mrb[0].mxu0
    %v4087 = vpop.f32.mrb[0].mxu0
    %4088 = vdwg.mxu0
    %4089 = vst [vmem:[#allocation2 + $0x38] sm:$0xff] %v4084
    %v4090 = vld [vmem:[%s14] sm:$0xf]
    %v4091 = vld [vmem:[%s14 + $0x4] sm:$0xf]
    %v4092 = vld [vmem:[%s14 + $0x8] sm:$0xf]
    %v4093 = vld [vmem:[%s14 + $0xc] sm:$0xf]
    %v4094 = vld [vmem:[%s16] sm:$0xf]
    %v4095 = vld [vmem:[%s16 + $0x4] sm:$0xf]
    %v4096 = vld [vmem:[%s16 + $0x8] sm:$0xf]
    %v4097 = vld [vmem:[%s16 + $0xc] sm:$0xf]
    %v4098 = vld [vmem:[%s18] sm:$0x1]
    %v4099 = vld [vmem:[#allocation2] sm:$0xff]
    %v4104 = vunpack.c.l.b16 %v4090
    %v4105 = vunpack.c.l.b16 %v4091
    %v4106 = vunpack.c.l.b16 %v4092
    %v4107 = vunpack.c.l.b16 %v4093
    %v4108 = vpack.c.b16 %v4105, %v4104
    %v4109 = vpack.c.b16 %v4107, %v4106
    %4112 = vmatprep.subr.bf16.mxu0 0
    %4113 = vmatpush1.bf16.msra.mxu0 %v4108
    %4114 = vmatprep.subr.bf16.mxu0 0
    %4115 = vmatpush1.bf16.msra.mxu0 %v4109
    %4116 = vmatprep.subr.bf16.mxu0 0
    %4117 = vmatpush1.bf16.msra.mxu0 0
    %4118 = vmatprep.subr.bf16.mxu0 0
    %4119 = vmatpush1.bf16.msra.mxu0 0
    %4120 = vmatprep.subr.bf16.mxu0 0
    %4121 = vmatpush1.bf16.msra.mxu0 0
    %4122 = vmatprep.subr.bf16.mxu0 0
    %4123 = vmatpush1.bf16.msra.mxu0 0
    %4124 = vmatprep.subr.bf16.mxu0 0
    %4125 = vmatpush1.bf16.msra.mxu0 0
    %4126 = vmatprep.subr.bf16.mxu0 0
    %4127 = vmatpush1.bf16.msra.mxu0 0
    %4128 = vmatprep.subr.bf16.mxu0 0
    %4129 = vmatpush1.bf16.msra.mxu0 0
    %4130 = vmatprep.subr.bf16.mxu0 0
    %4131 = vmatpush1.bf16.msra.mxu0 0
    %4132 = vmatprep.subr.bf16.mxu0 0
    %4133 = vmatpush1.bf16.msra.mxu0 0
    %4134 = vmatprep.subr.bf16.mxu0 0
    %4135 = vmatpush1.bf16.msra.mxu0 0
    %4136 = vmatprep.subr.bf16.mxu0 0
    %4137 = vmatpush1.bf16.msra.mxu0 0
    %4138 = vmatprep.subr.bf16.mxu0 0
    %4139 = vmatpush1.bf16.msra.mxu0 0
    %4140 = vmatprep.subr.bf16.mxu0 0
    %4141 = vmatpush1.bf16.msra.mxu0 0
    %4142 = vmatprep.subr.bf16.mxu0 0
    %4143 = vmatpush1.bf16.msra.mxu0 0
    %4144 = vmatprep.mubr.bf16.mxu0 0
    %4145 = vmatmul.mubr.bf16.gmra.mrb[0].mxu0 %v306
    %v4146 = vpop.f32.mrb[0].mxu0
    %v4147 = vadd.f32 0.0, %v4146
    %v4148 = vpop.f32.mrb[0].mxu0
    %v4149 = vpop.f32.mrb[0].mxu0
    %v4150 = vpop.f32.mrb[0].mxu0
    %4151 = vdwg.mxu0
    %v4152 = vadd.f32 %v4099, %v4147
    %v4153 = vxor.u32 %v4152, 2147483648
    %v4154 = vmul.f32 %v4153, 1.442695
    %v4155 = vpow.pop %v4154
    %v4156 = vadd.f32 %v4155, 1.0
    %v4157 = vrcp.pop %v4156
    %v4158 = vmul.f32 1.0, %v4157
    %v4159 = vtanh.pop %v4152
    %v4160 = vmul.f32 %v4158, 0.0
    %4162 = vrot.lane.b32.xlu0 %v4159, 32
    %v4163 = vpop.permute.xlu0 %4162
    %v4165 = vmul.f32 %v4158, %v4163
    %4167 = vrot.lane.b32.xlu0 %v4165, 32
    %v4168 = vpop.permute.xlu0 %4167
    %v4170 = vadd.f32 %v4160, %v4168
    %v4171 = vtanh.pop %v4170
    %4173 = vrot.lane.b32.xlu0 %v4171, 32
    %v4174 = vpop.permute.xlu0 %4173
    %v4176 = vmul.f32 %v4158, %v4174
    %v4177 = vpack.c.bf16 %v4176, %v4176
    %v4179 = vlaneseq
    %v4180 = vshrl.u32 %v4179, 7
    %v4181 = vsub.s32 0, %v4180
    %v4182 = vrot.slane %v4098, %v4181
    %4185 = vrot.lane.b32.xlu0 %v4177, 64
    %v4186 = vpop.permute.xlu0 %4185
    %v4191 = vunpack.c.l.b16 %v4094
    %v4192 = vunpack.c.l.b16 %v4095
    %v4193 = vunpack.c.l.b16 %v4096
    %v4194 = vunpack.c.l.b16 %v4097
    %v4195 = vpack.c.b16 %v4192, %v4191
    %v4196 = vpack.c.b16 %v4194, %v4193
    %v4200 = vsel %vm304, %v4186, 0
    %4202 = vmatprep.subr.bf16.mxu0 0
    %4203 = vmatpush1.bf16.msra.mxu0 %v4195
    %4204 = vmatprep.subr.bf16.mxu0 0
    %4205 = vmatpush1.bf16.msra.mxu0 %v4196
    %4206 = vmatprep.subr.bf16.mxu0 0
    %4207 = vmatpush1.bf16.msra.mxu0 0
    %4208 = vmatprep.subr.bf16.mxu0 0
    %4209 = vmatpush1.bf16.msra.mxu0 0
    %4210 = vmatprep.subr.bf16.mxu0 0
    %4211 = vmatpush1.bf16.msra.mxu0 0
    %4212 = vmatprep.subr.bf16.mxu0 0
    %4213 = vmatpush1.bf16.msra.mxu0 0
    %4214 = vmatprep.subr.bf16.mxu0 0
    %4215 = vmatpush1.bf16.msra.mxu0 0
    %4216 = vmatprep.subr.bf16.mxu0 0
    %4217 = vmatpush1.bf16.msra.mxu0 0
    %4218 = vmatprep.subr.bf16.mxu0 0
    %4219 = vmatpush1.bf16.msra.mxu0 0
    %4220 = vmatprep.subr.bf16.mxu0 0
    %4221 = vmatpush1.bf16.msra.mxu0 0
    %4222 = vmatprep.subr.bf16.mxu0 0
    %4223 = vmatpush1.bf16.msra.mxu0 0
    %4224 = vmatprep.subr.bf16.mxu0 0
    %4225 = vmatpush1.bf16.msra.mxu0 0
    %4226 = vmatprep.subr.bf16.mxu0 0
    %4227 = vmatpush1.bf16.msra.mxu0 0
    %4228 = vmatprep.subr.bf16.mxu0 0
    %4229 = vmatpush1.bf16.msra.mxu0 0
    %4230 = vmatprep.subr.bf16.mxu0 0
    %4231 = vmatpush1.bf16.msra.mxu0 0
    %4232 = vmatprep.subr.bf16.mxu0 0
    %4233 = vmatpush1.bf16.msra.mxu0 0
    %4234 = vmatprep.mubr.bf16.mxu0 0
    %4235 = vmatmul.mubr.bf16.gmra.mrb[0].mxu0 %v4200
    %v4236 = vpop.f32.mrb[0].mxu0
    %v4237 = vadd.f32 %v4182, %v4236
    %v4238 = vpop.f32.mrb[0].mxu0
    %v4239 = vpop.f32.mrb[0].mxu0
    %v4240 = vpop.f32.mrb[0].mxu0
    %4241 = vdwg.mxu0
    %4242 = vst [vmem:[#allocation3] sm:$0xff] %v4237
    %v4243 = vld [vmem:[#allocation2 + $0x8] sm:$0xff]
    %4244 = vmatprep.subr.bf16.mxu0 0
    %4245 = vmatpush1.bf16.msra.mxu0 %v4108
    %4246 = vmatprep.subr.bf16.mxu0 0
    %4247 = vmatpush1.bf16.msra.mxu0 %v4109
    %4248 = vmatprep.subr.bf16.mxu0 0
    %4249 = vmatpush1.bf16.msra.mxu0 0
    %4250 = vmatprep.subr.bf16.mxu0 0
    %4251 = vmatpush1.bf16.msra.mxu0 0
    %4252 = vmatprep.subr.bf16.mxu0 0
    %4253 = vmatpush1.bf16.msra.mxu0 0
    %4254 = vmatprep.subr.bf16.mxu0 0
    %4255 = vmatpush1.bf16.msra.mxu0 0
    %4256 = vmatprep.subr.bf16.mxu0 0
    %4257 = vmatpush1.bf16.msra.mxu0 0
    %4258 = vmatprep.subr.bf16.mxu0 0
    %4259 = vmatpush1.bf16.msra.mxu0 0
    %4260 = vmatprep.subr.bf16.mxu0 0
    %4261 = vmatpush1.bf16.msra.mxu0 0
    %4262 = vmatprep.subr.bf16.mxu0 0
    %4263 = vmatpush1.bf16.msra.mxu0 0
    %4264 = vmatprep.subr.bf16.mxu0 0
    %4265 = vmatpush1.bf16.msra.mxu0 0
    %4266 = vmatprep.subr.bf16.mxu0 0
    %4267 = vmatpush1.bf16.msra.mxu0 0
    %4268 = vmatprep.subr.bf16.mxu0 0
    %4269 = vmatpush1.bf16.msra.mxu0 0
    %4270 = vmatprep.subr.bf16.mxu0 0
    %4271 = vmatpush1.bf16.msra.mxu0 0
    %4272 = vmatprep.subr.bf16.mxu0 0
    %4273 = vmatpush1.bf16.msra.mxu0 0
    %4274 = vmatprep.subr.bf16.mxu0 0
    %4275 = vmatpush1.bf16.msra.mxu0 0
    %4276 = vmatprep.mubr.bf16.mxu0 0
    %4277 = vmatmul.mubr.bf16.gmra.mrb[0].mxu0 %v4200
    %v4278 = vpop.f32.mrb[0].mxu0
    %v4279 = vadd.f32 0.0, %v4278
    %v4280 = vpop.f32.mrb[0].mxu0
    %v4281 = vpop.f32.mrb[0].mxu0
    %v4282 = vpop.f32.mrb[0].mxu0
    %4283 = vdwg.mxu0
    %v4284 = vadd.f32 %v4243, %v4279
    %v4285 = vxor.u32 %v4284, 2147483648
    %v4286 = vmul.f32 %v4285, 1.442695
    %v4287 = vpow.pop %v4286
    %v4288 = vadd.f32 %v4287, 1.0
    %v4289 = vrcp.pop %v4288
    %v4290 = vmul.f32 1.0, %v4289
    %v4291 = vtanh.pop %v4284
    %v4292 = vmul.f32 %v4290, %v4170
    %4294 = vrot.lane.b32.xlu0 %v4291, 32
    %v4295 = vpop.permute.xlu0 %4294
    %v4297 = vmul.f32 %v4290, %v4295
    %4299 = vrot.lane.b32.xlu0 %v4297, 32
    %v4300 = vpop.permute.xlu0 %4299
    %v4302 = vadd.f32 %v4292, %v4300
    %v4303 = vtanh.pop %v4302
    %4305 = vrot.lane.b32.xlu0 %v4303, 32
    %v4306 = vpop.permute.xlu0 %4305
    %v4308 = vmul.f32 %v4290, %v4306
    %v4309 = vpack.c.bf16 %v4308, %v4308
    %4311 = vrot.lane.b32.xlu0 %v4309, 64
    %v4312 = vpop.permute.xlu0 %4311
    %v4314 = vsel %vm304, %v4312, 0
    %4316 = vmatprep.subr.bf16.mxu0 0
    %4317 = vmatpush1.bf16.msra.mxu0 %v4195
    %4318 = vmatprep.subr.bf16.mxu0 0
    %4319 = vmatpush1.bf16.msra.mxu0 %v4196
    %4320 = vmatprep.subr.bf16.mxu0 0
    %4321 = vmatpush1.bf16.msra.mxu0 0
    %4322 = vmatprep.subr.bf16.mxu0 0
    %4323 = vmatpush1.bf16.msra.mxu0 0
    %4324 = vmatprep.subr.bf16.mxu0 0
    %4325 = vmatpush1.bf16.msra.mxu0 0
    %4326 = vmatprep.subr.bf16.mxu0 0
    %4327 = vmatpush1.bf16.msra.mxu0 0
    %4328 = vmatprep.subr.bf16.mxu0 0
    %4329 = vmatpush1.bf16.msra.mxu0 0
    %4330 = vmatprep.subr.bf16.mxu0 0
    %4331 = vmatpush1.bf16.msra.mxu0 0
    %4332 = vmatprep.subr.bf16.mxu0 0
    %4333 = vmatpush1.bf16.msra.mxu0 0
    %4334 = vmatprep.subr.bf16.mxu0 0
    %4335 = vmatpush1.bf16.msra.mxu0 0
    %4336 = vmatprep.subr.bf16.mxu0 0
    %4337 = vmatpush1.bf16.msra.mxu0 0
    %4338 = vmatprep.subr.bf16.mxu0 0
    %4339 = vmatpush1.bf16.msra.mxu0 0
    %4340 = vmatprep.subr.bf16.mxu0 0
    %4341 = vmatpush1.bf16.msra.mxu0 0
    %4342 = vmatprep.subr.bf16.mxu0 0
    %4343 = vmatpush1.bf16.msra.mxu0 0
    %4344 = vmatprep.subr.bf16.mxu0 0
    %4345 = vmatpush1.bf16.msra.mxu0 0
    %4346 = vmatprep.subr.bf16.mxu0 0
    %4347 = vmatpush1.bf16.msra.mxu0 0
    %4348 = vmatprep.mubr.bf16.mxu0 0
    %4349 = vmatmul.mubr.bf16.gmra.mrb[0].mxu0 %v4314
    %v4350 = vpop.f32.mrb[0].mxu0
    %v4351 = vadd.f32 %v4182, %v4350
    %v4352 = vpop.f32.mrb[0].mxu0
    %v4353 = vpop.f32.mrb[0].mxu0
    %v4354 = vpop.f32.mrb[0].mxu0
    %4355 = vdwg.mxu0
    %4356 = vst [vmem:[#allocation3 + $0x8] sm:$0xff] %v4351
    %v4357 = vld [vmem:[#allocation2 + $0x10] sm:$0xff]
    %4358 = vmatprep.subr.bf16.mxu0 0
    %4359 = vmatpush1.bf16.msra.mxu0 %v4108
    %4360 = vmatprep.subr.bf16.mxu0 0
    %4361 = vmatpush1.bf16.msra.mxu0 %v4109
    %4362 = vmatprep.subr.bf16.mxu0 0
    %4363 = vmatpush1.bf16.msra.mxu0 0
    %4364 = vmatprep.subr.bf16.mxu0 0
    %4365 = vmatpush1.bf16.msra.mxu0 0
    %4366 = vmatprep.subr.bf16.mxu0 0
    %4367 = vmatpush1.bf16.msra.mxu0 0
    %4368 = vmatprep.subr.bf16.mxu0 0
    %4369 = vmatpush1.bf16.msra.mxu0 0
    %4370 = vmatprep.subr.bf16.mxu0 0
    %4371 = vmatpush1.bf16.msra.mxu0 0
    %4372 = vmatprep.subr.bf16.mxu0 0
    %4373 = vmatpush1.bf16.msra.mxu0 0
    %4374 = vmatprep.subr.bf16.mxu0 0
    %4375 = vmatpush1.bf16.msra.mxu0 0
    %4376 = vmatprep.subr.bf16.mxu0 0
    %4377 = vmatpush1.bf16.msra.mxu0 0
    %4378 = vmatprep.subr.bf16.mxu0 0
    %4379 = vmatpush1.bf16.msra.mxu0 0
    %4380 = vmatprep.subr.bf16.mxu0 0
    %4381 = vmatpush1.bf16.msra.mxu0 0
    %4382 = vmatprep.subr.bf16.mxu0 0
    %4383 = vmatpush1.bf16.msra.mxu0 0
    %4384 = vmatprep.subr.bf16.mxu0 0
    %4385 = vmatpush1.bf16.msra.mxu0 0
    %4386 = vmatprep.subr.bf16.mxu0 0
    %4387 = vmatpush1.bf16.msra.mxu0 0
    %4388 = vmatprep.subr.bf16.mxu0 0
    %4389 = vmatpush1.bf16.msra.mxu0 0
    %4390 = vmatprep.mubr.bf16.mxu0 0
    %4391 = vmatmul.mubr.bf16.gmra.mrb[0].mxu0 %v4314
    %v4392 = vpop.f32.mrb[0].mxu0
    %v4393 = vadd.f32 0.0, %v4392
    %v4394 = vpop.f32.mrb[0].mxu0
    %v4395 = vpop.f32.mrb[0].mxu0
    %v4396 = vpop.f32.mrb[0].mxu0
    %4397 = vdwg.mxu0
    %v4398 = vadd.f32 %v4357, %v4393
    %v4399 = vxor.u32 %v4398, 2147483648
    %v4400 = vmul.f32 %v4399, 1.442695
    %v4401 = vpow.pop %v4400
    %v4402 = vadd.f32 %v4401, 1.0
    %v4403 = vrcp.pop %v4402
    %v4404 = vmul.f32 1.0, %v4403
    %v4405 = vtanh.pop %v4398
    %v4406 = vmul.f32 %v4404, %v4302
    %4408 = vrot.lane.b32.xlu0 %v4405, 32
    %v4409 = vpop.permute.xlu0 %4408
    %v4411 = vmul.f32 %v4404, %v4409
    %4413 = vrot.lane.b32.xlu0 %v4411, 32
    %v4414 = vpop.permute.xlu0 %4413
    %v4416 = vadd.f32 %v4406, %v4414
    %v4417 = vtanh.pop %v4416
    %4419 = vrot.lane.b32.xlu0 %v4417, 32
    %v4420 = vpop.permute.xlu0 %4419
    %v4422 = vmul.f32 %v4404, %v4420
    %v4423 = vpack.c.bf16 %v4422, %v4422
    %4425 = vrot.lane.b32.xlu0 %v4423, 64
    %v4426 = vpop.permute.xlu0 %4425
    %v4428 = vsel %vm304, %v4426, 0
    %4430 = vmatprep.subr.bf16.mxu0 0
    %4431 = vmatpush1.bf16.msra.mxu0 %v4195
    %4432 = vmatprep.subr.bf16.mxu0 0
    %4433 = vmatpush1.bf16.msra.mxu0 %v4196
    %4434 = vmatprep.subr.bf16.mxu0 0
    %4435 = vmatpush1.bf16.msra.mxu0 0
    %4436 = vmatprep.subr.bf16.mxu0 0
    %4437 = vmatpush1.bf16.msra.mxu0 0
    %4438 = vmatprep.subr.bf16.mxu0 0
    %4439 = vmatpush1.bf16.msra.mxu0 0
    %4440 = vmatprep.subr.bf16.mxu0 0
    %4441 = vmatpush1.bf16.msra.mxu0 0
    %4442 = vmatprep.subr.bf16.mxu0 0
    %4443 = vmatpush1.bf16.msra.mxu0 0
    %4444 = vmatprep.subr.bf16.mxu0 0
    %4445 = vmatpush1.bf16.msra.mxu0 0
    %4446 = vmatprep.subr.bf16.mxu0 0
    %4447 = vmatpush1.bf16.msra.mxu0 0
    %4448 = vmatprep.subr.bf16.mxu0 0
    %4449 = vmatpush1.bf16.msra.mxu0 0
    %4450 = vmatprep.subr.bf16.mxu0 0
    %4451 = vmatpush1.bf16.msra.mxu0 0
    %4452 = vmatprep.subr.bf16.mxu0 0
    %4453 = vmatpush1.bf16.msra.mxu0 0
    %4454 = vmatprep.subr.bf16.mxu0 0
    %4455 = vmatpush1.bf16.msra.mxu0 0
    %4456 = vmatprep.subr.bf16.mxu0 0
    %4457 = vmatpush1.bf16.msra.mxu0 0
    %4458 = vmatprep.subr.bf16.mxu0 0
    %4459 = vmatpush1.bf16.msra.mxu0 0
    %4460 = vmatprep.subr.bf16.mxu0 0
    %4461 = vmatpush1.bf16.msra.mxu0 0
    %4462 = vmatprep.mubr.bf16.mxu0 0
    %4463 = vmatmul.mubr.bf16.gmra.mrb[0].mxu0 %v4428
    %v4464 = vpop.f32.mrb[0].mxu0
    %v4465 = vadd.f32 %v4182, %v4464
    %v4466 = vpop.f32.mrb[0].mxu0
    %v4467 = vpop.f32.mrb[0].mxu0
    %v4468 = vpop.f32.mrb[0].mxu0
    %4469 = vdwg.mxu0
    %4470 = vst [vmem:[#allocation3 + $0x10] sm:$0xff] %v4465
    %v4471 = vld [vmem:[#allocation2 + $0x18] sm:$0xff]
    %4472 = vmatprep.subr.bf16.mxu0 0
    %4473 = vmatpush1.bf16.msra.mxu0 %v4108
    %4474 = vmatprep.subr.bf16.mxu0 0
    %4475 = vmatpush1.bf16.msra.mxu0 %v4109
    %4476 = vmatprep.subr.bf16.mxu0 0
    %4477 = vmatpush1.bf16.msra.mxu0 0
    %4478 = vmatprep.subr.bf16.mxu0 0
    %4479 = vmatpush1.bf16.msra.mxu0 0
    %4480 = vmatprep.subr.bf16.mxu0 0
    %4481 = vmatpush1.bf16.msra.mxu0 0
    %4482 = vmatprep.subr.bf16.mxu0 0
    %4483 = vmatpush1.bf16.msra.mxu0 0
    %4484 = vmatprep.subr.bf16.mxu0 0
    %4485 = vmatpush1.bf16.msra.mxu0 0
    %4486 = vmatprep.subr.bf16.mxu0 0
    %4487 = vmatpush1.bf16.msra.mxu0 0
    %4488 = vmatprep.subr.bf16.mxu0 0
    %4489 = vmatpush1.bf16.msra.mxu0 0
    %4490 = vmatprep.subr.bf16.mxu0 0
    %4491 = vmatpush1.bf16.msra.mxu0 0
    %4492 = vmatprep.subr.bf16.mxu0 0
    %4493 = vmatpush1.bf16.msra.mxu0 0
    %4494 = vmatprep.subr.bf16.mxu0 0
    %4495 = vmatpush1.bf16.msra.mxu0 0
    %4496 = vmatprep.subr.bf16.mxu0 0
    %4497 = vmatpush1.bf16.msra.mxu0 0
    %4498 = vmatprep.subr.bf16.mxu0 0
    %4499 = vmatpush1.bf16.msra.mxu0 0
    %4500 = vmatprep.subr.bf16.mxu0 0
    %4501 = vmatpush1.bf16.msra.mxu0 0
    %4502 = vmatprep.subr.bf16.mxu0 0
    %4503 = vmatpush1.bf16.msra.mxu0 0
    %4504 = vmatprep.mubr.bf16.mxu0 0
    %4505 = vmatmul.mubr.bf16.gmra.mrb[0].mxu0 %v4428
    %v4506 = vpop.f32.mrb[0].mxu0
    %v4507 = vadd.f32 0.0, %v4506
    %v4508 = vpop.f32.mrb[0].mxu0
    %v4509 = vpop.f32.mrb[0].mxu0
    %v4510 = vpop.f32.mrb[0].mxu0
    %4511 = vdwg.mxu0
    %v4512 = vadd.f32 %v4471, %v4507
    %v4513 = vxor.u32 %v4512, 2147483648
    %v4514 = vmul.f32 %v4513, 1.442695
    %v4515 = vpow.pop %v4514
    %v4516 = vadd.f32 %v4515, 1.0
    %v4517 = vrcp.pop %v4516
    %v4518 = vmul.f32 1.0, %v4517
    %v4519 = vtanh.pop %v4512
    %v4520 = vmul.f32 %v4518, %v4416
    %4522 = vrot.lane.b32.xlu0 %v4519, 32
    %v4523 = vpop.permute.xlu0 %4522
    %v4525 = vmul.f32 %v4518, %v4523
    %4527 = vrot.lane.b32.xlu0 %v4525, 32
    %v4528 = vpop.permute.xlu0 %4527
    %v4530 = vadd.f32 %v4520, %v4528
    %v4531 = vtanh.pop %v4530
    %4533 = vrot.lane.b32.xlu0 %v4531, 32
    %v4534 = vpop.permute.xlu0 %4533
    %v4536 = vmul.f32 %v4518, %v4534
    %v4537 = vpack.c.bf16 %v4536, %v4536
    %4539 = vrot.lane.b32.xlu0 %v4537, 64
    %v4540 = vpop.permute.xlu0 %4539
    %v4542 = vsel %vm304, %v4540, 0
    %4544 = vmatprep.subr.bf16.mxu0 0
    %4545 = vmatpush1.bf16.msra.mxu0 %v4195
    %4546 = vmatprep.subr.bf16.mxu0 0
    %4547 = vmatpush1.bf16.msra.mxu0 %v4196
    %4548 = vmatprep.subr.bf16.mxu0 0
    %4549 = vmatpush1.bf16.msra.mxu0 0
    %4550 = vmatprep.subr.bf16.mxu0 0
    %4551 = vmatpush1.bf16.msra.mxu0 0
    %4552 = vmatprep.subr.bf16.mxu0 0
    %4553 = vmatpush1.bf16.msra.mxu0 0
    %4554 = vmatprep.subr.bf16.mxu0 0
    %4555 = vmatpush1.bf16.msra.mxu0 0
    %4556 = vmatprep.subr.bf16.mxu0 0
    %4557 = vmatpush1.bf16.msra.mxu0 0
    %4558 = vmatprep.subr.bf16.mxu0 0
    %4559 = vmatpush1.bf16.msra.mxu0 0
    %4560 = vmatprep.subr.bf16.mxu0 0
    %4561 = vmatpush1.bf16.msra.mxu0 0
    %4562 = vmatprep.subr.bf16.mxu0 0
    %4563 = vmatpush1.bf16.msra.mxu0 0
    %4564 = vmatprep.subr.bf16.mxu0 0
    %4565 = vmatpush1.bf16.msra.mxu0 0
    %4566 = vmatprep.subr.bf16.mxu0 0
    %4567 = vmatpush1.bf16.msra.mxu0 0
    %4568 = vmatprep.subr.bf16.mxu0 0
    %4569 = vmatpush1.bf16.msra.mxu0 0
    %4570 = vmatprep.subr.bf16.mxu0 0
    %4571 = vmatpush1.bf16.msra.mxu0 0
    %4572 = vmatprep.subr.bf16.mxu0 0
    %4573 = vmatpush1.bf16.msra.mxu0 0
    %4574 = vmatprep.subr.bf16.mxu0 0
    %4575 = vmatpush1.bf16.msra.mxu0 0
    %4576 = vmatprep.mubr.bf16.mxu0 0
    %4577 = vmatmul.mubr.bf16.gmra.mrb[0].mxu0 %v4542
    %v4578 = vpop.f32.mrb[0].mxu0
    %v4579 = vadd.f32 %v4182, %v4578
    %v4580 = vpop.f32.mrb[0].mxu0
    %v4581 = vpop.f32.mrb[0].mxu0
    %v4582 = vpop.f32.mrb[0].mxu0
    %4583 = vdwg.mxu0
    %4584 = vst [vmem:[#allocation3 + $0x18] sm:$0xff] %v4579
    %v4585 = vld [vmem:[#allocation2 + $0x20] sm:$0xff]
    %4586 = vmatprep.subr.bf16.mxu0 0
    %4587 = vmatpush1.bf16.msra.mxu0 %v4108
    %4588 = vmatprep.subr.bf16.mxu0 0
    %4589 = vmatpush1.bf16.msra.mxu0 %v4109
    %4590 = vmatprep.subr.bf16.mxu0 0
    %4591 = vmatpush1.bf16.msra.mxu0 0
    %4592 = vmatprep.subr.bf16.mxu0 0
    %4593 = vmatpush1.bf16.msra.mxu0 0
    %4594 = vmatprep.subr.bf16.mxu0 0
    %4595 = vmatpush1.bf16.msra.mxu0 0
    %4596 = vmatprep.subr.bf16.mxu0 0
    %4597 = vmatpush1.bf16.msra.mxu0 0
    %4598 = vmatprep.subr.bf16.mxu0 0
    %4599 = vmatpush1.bf16.msra.mxu0 0
    %4600 = vmatprep.subr.bf16.mxu0 0
    %4601 = vmatpush1.bf16.msra.mxu0 0
    %4602 = vmatprep.subr.bf16.mxu0 0
    %4603 = vmatpush1.bf16.msra.mxu0 0
    %4604 = vmatprep.subr.bf16.mxu0 0
    %4605 = vmatpush1.bf16.msra.mxu0 0
    %4606 = vmatprep.subr.bf16.mxu0 0
    %4607 = vmatpush1.bf16.msra.mxu0 0
    %4608 = vmatprep.subr.bf16.mxu0 0
    %4609 = vmatpush1.bf16.msra.mxu0 0
    %4610 = vmatprep.subr.bf16.mxu0 0
    %4611 = vmatpush1.bf16.msra.mxu0 0
    %4612 = vmatprep.subr.bf16.mxu0 0
    %4613 = vmatpush1.bf16.msra.mxu0 0
    %4614 = vmatprep.subr.bf16.mxu0 0
    %4615 = vmatpush1.bf16.msra.mxu0 0
    %4616 = vmatprep.subr.bf16.mxu0 0
    %4617 = vmatpush1.bf16.msra.mxu0 0
    %4618 = vmatprep.mubr.bf16.mxu0 0
    %4619 = vmatmul.mubr.bf16.gmra.mrb[0].mxu0 %v4542
    %v4620 = vpop.f32.mrb[0].mxu0
    %v4621 = vadd.f32 0.0, %v4620
    %v4622 = vpop.f32.mrb[0].mxu0
    %v4623 = vpop.f32.mrb[0].mxu0
    %v4624 = vpop.f32.mrb[0].mxu0
    %4625 = vdwg.mxu0
    %v4626 = vadd.f32 %v4585, %v4621
    %v4627 = vxor.u32 %v4626, 2147483648
    %v4628 = vmul.f32 %v4627, 1.442695
    %v4629 = vpow.pop %v4628
    %v4630 = vadd.f32 %v4629, 1.0
    %v4631 = vrcp.pop %v4630
    %v4632 = vmul.f32 1.0, %v4631
    %v4633 = vtanh.pop %v4626
    %v4634 = vmul.f32 %v4632, %v4530
    %4636 = vrot.lane.b32.xlu0 %v4633, 32
    %v4637 = vpop.permute.xlu0 %4636
    %v4639 = vmul.f32 %v4632, %v4637
    %4641 = vrot.lane.b32.xlu0 %v4639, 32
    %v4642 = vpop.permute.xlu0 %4641
    %v4644 = vadd.f32 %v4634, %v4642
    %v4645 = vtanh.pop %v4644
    %4647 = vrot.lane.b32.xlu0 %v4645, 32
    %v4648 = vpop.permute.xlu0 %4647
    %v4650 = vmul.f32 %v4632, %v4648
    %v4651 = vpack.c.bf16 %v4650, %v4650
    %4653 = vrot.lane.b32.xlu0 %v4651, 64
    %v4654 = vpop.permute.xlu0 %4653
    %v4656 = vsel %vm304, %v4654, 0
    %4658 = vmatprep.subr.bf16.mxu0 0
    %4659 = vmatpush1.bf16.msra.mxu0 %v4195
    %4660 = vmatprep.subr.bf16.mxu0 0
    %4661 = vmatpush1.bf16.msra.mxu0 %v4196
    %4662 = vmatprep.subr.bf16.mxu0 0
    %4663 = vmatpush1.bf16.msra.mxu0 0
    %4664 = vmatprep.subr.bf16.mxu0 0
    %4665 = vmatpush1.bf16.msra.mxu0 0
    %4666 = vmatprep.subr.bf16.mxu0 0
    %4667 = vmatpush1.bf16.msra.mxu0 0
    %4668 = vmatprep.subr.bf16.mxu0 0
    %4669 = vmatpush1.bf16.msra.mxu0 0
    %4670 = vmatprep.subr.bf16.mxu0 0
    %4671 = vmatpush1.bf16.msra.mxu0 0
    %4672 = vmatprep.subr.bf16.mxu0 0
    %4673 = vmatpush1.bf16.msra.mxu0 0
    %4674 = vmatprep.subr.bf16.mxu0 0
    %4675 = vmatpush1.bf16.msra.mxu0 0
    %4676 = vmatprep.subr.bf16.mxu0 0
    %4677 = vmatpush1.bf16.msra.mxu0 0
    %4678 = vmatprep.subr.bf16.mxu0 0
    %4679 = vmatpush1.bf16.msra.mxu0 0
    %4680 = vmatprep.subr.bf16.mxu0 0
    %4681 = vmatpush1.bf16.msra.mxu0 0
    %4682 = vmatprep.subr.bf16.mxu0 0
    %4683 = vmatpush1.bf16.msra.mxu0 0
    %4684 = vmatprep.subr.bf16.mxu0 0
    %4685 = vmatpush1.bf16.msra.mxu0 0
    %4686 = vmatprep.subr.bf16.mxu0 0
    %4687 = vmatpush1.bf16.msra.mxu0 0
    %4688 = vmatprep.subr.bf16.mxu0 0
    %4689 = vmatpush1.bf16.msra.mxu0 0
    %4690 = vmatprep.mubr.bf16.mxu0 0
    %4691 = vmatmul.mubr.bf16.gmra.mrb[0].mxu0 %v4656
    %v4692 = vpop.f32.mrb[0].mxu0
    %v4693 = vadd.f32 %v4182, %v4692
    %v4694 = vpop.f32.mrb[0].mxu0
    %v4695 = vpop.f32.mrb[0].mxu0
    %v4696 = vpop.f32.mrb[0].mxu0
    %4697 = vdwg.mxu0
    %4698 = vst [vmem:[#allocation3 + $0x20] sm:$0xff] %v4693
    %v4699 = vld [vmem:[#allocation2 + $0x28] sm:$0xff]
    %4700 = vmatprep.subr.bf16.mxu0 0
    %4701 = vmatpush1.bf16.msra.mxu0 %v4108
    %4702 = vmatprep.subr.bf16.mxu0 0
    %4703 = vmatpush1.bf16.msra.mxu0 %v4109
    %4704 = vmatprep.subr.bf16.mxu0 0
    %4705 = vmatpush1.bf16.msra.mxu0 0
    %4706 = vmatprep.subr.bf16.mxu0 0
    %4707 = vmatpush1.bf16.msra.mxu0 0
    %4708 = vmatprep.subr.bf16.mxu0 0
    %4709 = vmatpush1.bf16.msra.mxu0 0
    %4710 = vmatprep.subr.bf16.mxu0 0
    %4711 = vmatpush1.bf16.msra.mxu0 0
    %4712 = vmatprep.subr.bf16.mxu0 0
    %4713 = vmatpush1.bf16.msra.mxu0 0
    %4714 = vmatprep.subr.bf16.mxu0 0
    %4715 = vmatpush1.bf16.msra.mxu0 0
    %4716 = vmatprep.subr.bf16.mxu0 0
    %4717 = vmatpush1.bf16.msra.mxu0 0
    %4718 = vmatprep.subr.bf16.mxu0 0
    %4719 = vmatpush1.bf16.msra.mxu0 0
    %4720 = vmatprep.subr.bf16.mxu0 0
    %4721 = vmatpush1.bf16.msra.mxu0 0
    %4722 = vmatprep.subr.bf16.mxu0 0
    %4723 = vmatpush1.bf16.msra.mxu0 0
    %4724 = vmatprep.subr.bf16.mxu0 0
    %4725 = vmatpush1.bf16.msra.mxu0 0
    %4726 = vmatprep.subr.bf16.mxu0 0
    %4727 = vmatpush1.bf16.msra.mxu0 0
    %4728 = vmatprep.subr.bf16.mxu0 0
    %4729 = vmatpush1.bf16.msra.mxu0 0
    %4730 = vmatprep.subr.bf16.mxu0 0
    %4731 = vmatpush1.bf16.msra.mxu0 0
    %4732 = vmatprep.mubr.bf16.mxu0 0
    %4733 = vmatmul.mubr.bf16.gmra.mrb[0].mxu0 %v4656
    %v4734 = vpop.f32.mrb[0].mxu0
    %v4735 = vadd.f32 0.0, %v4734
    %v4736 = vpop.f32.mrb[0].mxu0
    %v4737 = vpop.f32.mrb[0].mxu0
    %v4738 = vpop.f32.mrb[0].mxu0
    %4739 = vdwg.mxu0
    %v4740 = vadd.f32 %v4699, %v4735
    %v4741 = vxor.u32 %v4740, 2147483648
    %v4742 = vmul.f32 %v4741, 1.442695
    %v4743 = vpow.pop %v4742
    %v4744 = vadd.f32 %v4743, 1.0
    %v4745 = vrcp.pop %v4744
    %v4746 = vmul.f32 1.0, %v4745
    %v4747 = vtanh.pop %v4740
    %v4748 = vmul.f32 %v4746, %v4644
    %4750 = vrot.lane.b32.xlu0 %v4747, 32
    %v4751 = vpop.permute.xlu0 %4750
    %v4753 = vmul.f32 %v4746, %v4751
    %4755 = vrot.lane.b32.xlu0 %v4753, 32
    %v4756 = vpop.permute.xlu0 %4755
    %v4758 = vadd.f32 %v4748, %v4756
    %v4759 = vtanh.pop %v4758
    %4761 = vrot.lane.b32.xlu0 %v4759, 32
    %v4762 = vpop.permute.xlu0 %4761
    %v4764 = vmul.f32 %v4746, %v4762
    %v4765 = vpack.c.bf16 %v4764, %v4764
    %4767 = vrot.lane.b32.xlu0 %v4765, 64
    %v4768 = vpop.permute.xlu0 %4767
    %v4770 = vsel %vm304, %v4768, 0
    %4772 = vmatprep.subr.bf16.mxu0 0
    %4773 = vmatpush1.bf16.msra.mxu0 %v4195
    %4774 = vmatprep.subr.bf16.mxu0 0
    %4775 = vmatpush1.bf16.msra.mxu0 %v4196
    %4776 = vmatprep.subr.bf16.mxu0 0
    %4777 = vmatpush1.bf16.msra.mxu0 0
    %4778 = vmatprep.subr.bf16.mxu0 0
    %4779 = vmatpush1.bf16.msra.mxu0 0
    %4780 = vmatprep.subr.bf16.mxu0 0
    %4781 = vmatpush1.bf16.msra.mxu0 0
    %4782 = vmatprep.subr.bf16.mxu0 0
    %4783 = vmatpush1.bf16.msra.mxu0 0
    %4784 = vmatprep.subr.bf16.mxu0 0
    %4785 = vmatpush1.bf16.msra.mxu0 0
    %4786 = vmatprep.subr.bf16.mxu0 0
    %4787 = vmatpush1.bf16.msra.mxu0 0
    %4788 = vmatprep.subr.bf16.mxu0 0
    %4789 = vmatpush1.bf16.msra.mxu0 0
    %4790 = vmatprep.subr.bf16.mxu0 0
    %4791 = vmatpush1.bf16.msra.mxu0 0
    %4792 = vmatprep.subr.bf16.mxu0 0
    %4793 = vmatpush1.bf16.msra.mxu0 0
    %4794 = vmatprep.subr.bf16.mxu0 0
    %4795 = vmatpush1.bf16.msra.mxu0 0
    %4796 = vmatprep.subr.bf16.mxu0 0
    %4797 = vmatpush1.bf16.msra.mxu0 0
    %4798 = vmatprep.subr.bf16.mxu0 0
    %4799 = vmatpush1.bf16.msra.mxu0 0
    %4800 = vmatprep.subr.bf16.mxu0 0
    %4801 = vmatpush1.bf16.msra.mxu0 0
    %4802 = vmatprep.subr.bf16.mxu0 0
    %4803 = vmatpush1.bf16.msra.mxu0 0
    %4804 = vmatprep.mubr.bf16.mxu0 0
    %4805 = vmatmul.mubr.bf16.gmra.mrb[0].mxu0 %v4770
    %v4806 = vpop.f32.mrb[0].mxu0
    %v4807 = vadd.f32 %v4182, %v4806
    %v4808 = vpop.f32.mrb[0].mxu0
    %v4809 = vpop.f32.mrb[0].mxu0
    %v4810 = vpop.f32.mrb[0].mxu0
    %4811 = vdwg.mxu0
    %4812 = vst [vmem:[#allocation3 + $0x28] sm:$0xff] %v4807
    %v4813 = vld [vmem:[#allocation2 + $0x30] sm:$0xff]
    %4814 = vmatprep.subr.bf16.mxu0 0
    %4815 = vmatpush1.bf16.msra.mxu0 %v4108
    %4816 = vmatprep.subr.bf16.mxu0 0
    %4817 = vmatpush1.bf16.msra.mxu0 %v4109
    %4818 = vmatprep.subr.bf16.mxu0 0
    %4819 = vmatpush1.bf16.msra.mxu0 0
    %4820 = vmatprep.subr.bf16.mxu0 0
    %4821 = vmatpush1.bf16.msra.mxu0 0
    %4822 = vmatprep.subr.bf16.mxu0 0
    %4823 = vmatpush1.bf16.msra.mxu0 0
    %4824 = vmatprep.subr.bf16.mxu0 0
    %4825 = vmatpush1.bf16.msra.mxu0 0
    %4826 = vmatprep.subr.bf16.mxu0 0
    %4827 = vmatpush1.bf16.msra.mxu0 0
    %4828 = vmatprep.subr.bf16.mxu0 0
    %4829 = vmatpush1.bf16.msra.mxu0 0
    %4830 = vmatprep.subr.bf16.mxu0 0
    %4831 = vmatpush1.bf16.msra.mxu0 0
    %4832 = vmatprep.subr.bf16.mxu0 0
    %4833 = vmatpush1.bf16.msra.mxu0 0
    %4834 = vmatprep.subr.bf16.mxu0 0
    %4835 = vmatpush1.bf16.msra.mxu0 0
    %4836 = vmatprep.subr.bf16.mxu0 0
    %4837 = vmatpush1.bf16.msra.mxu0 0
    %4838 = vmatprep.subr.bf16.mxu0 0
    %4839 = vmatpush1.bf16.msra.mxu0 0
    %4840 = vmatprep.subr.bf16.mxu0 0
    %4841 = vmatpush1.bf16.msra.mxu0 0
    %4842 = vmatprep.subr.bf16.mxu0 0
    %4843 = vmatpush1.bf16.msra.mxu0 0
    %4844 = vmatprep.subr.bf16.mxu0 0
    %4845 = vmatpush1.bf16.msra.mxu0 0
    %4846 = vmatprep.mubr.bf16.mxu0 0
    %4847 = vmatmul.mubr.bf16.gmra.mrb[0].mxu0 %v4770
    %v4848 = vpop.f32.mrb[0].mxu0
    %v4849 = vadd.f32 0.0, %v4848
    %v4850 = vpop.f32.mrb[0].mxu0
    %v4851 = vpop.f32.mrb[0].mxu0
    %v4852 = vpop.f32.mrb[0].mxu0
    %4853 = vdwg.mxu0
    %v4854 = vadd.f32 %v4813, %v4849
    %v4855 = vxor.u32 %v4854, 2147483648
    %v4856 = vmul.f32 %v4855, 1.442695
    %v4857 = vpow.pop %v4856
    %v4858 = vadd.f32 %v4857, 1.0
    %v4859 = vrcp.pop %v4858
    %v4860 = vmul.f32 1.0, %v4859
    %v4861 = vtanh.pop %v4854
    %v4862 = vmul.f32 %v4860, %v4758
    %4864 = vrot.lane.b32.xlu0 %v4861, 32
    %v4865 = vpop.permute.xlu0 %4864
    %v4867 = vmul.f32 %v4860, %v4865
    %4869 = vrot.lane.b32.xlu0 %v4867, 32
    %v4870 = vpop.permute.xlu0 %4869
    %v4872 = vadd.f32 %v4862, %v4870
    %v4873 = vtanh.pop %v4872
    %4875 = vrot.lane.b32.xlu0 %v4873, 32
    %v4876 = vpop.permute.xlu0 %4875
    %v4878 = vmul.f32 %v4860, %v4876
    %v4879 = vpack.c.bf16 %v4878, %v4878
    %4881 = vrot.lane.b32.xlu0 %v4879, 64
    %v4882 = vpop.permute.xlu0 %4881
    %v4884 = vsel %vm304, %v4882, 0
    %4886 = vmatprep.subr.bf16.mxu0 0
    %4887 = vmatpush1.bf16.msra.mxu0 %v4195
    %4888 = vmatprep.subr.bf16.mxu0 0
    %4889 = vmatpush1.bf16.msra.mxu0 %v4196
    %4890 = vmatprep.subr.bf16.mxu0 0
    %4891 = vmatpush1.bf16.msra.mxu0 0
    %4892 = vmatprep.subr.bf16.mxu0 0
    %4893 = vmatpush1.bf16.msra.mxu0 0
    %4894 = vmatprep.subr.bf16.mxu0 0
    %4895 = vmatpush1.bf16.msra.mxu0 0
    %4896 = vmatprep.subr.bf16.mxu0 0
    %4897 = vmatpush1.bf16.msra.mxu0 0
    %4898 = vmatprep.subr.bf16.mxu0 0
    %4899 = vmatpush1.bf16.msra.mxu0 0
    %4900 = vmatprep.subr.bf16.mxu0 0
    %4901 = vmatpush1.bf16.msra.mxu0 0
    %4902 = vmatprep.subr.bf16.mxu0 0
    %4903 = vmatpush1.bf16.msra.mxu0 0
    %4904 = vmatprep.subr.bf16.mxu0 0
    %4905 = vmatpush1.bf16.msra.mxu0 0
    %4906 = vmatprep.subr.bf16.mxu0 0
    %4907 = vmatpush1.bf16.msra.mxu0 0
    %4908 = vmatprep.subr.bf16.mxu0 0
    %4909 = vmatpush1.bf16.msra.mxu0 0
    %4910 = vmatprep.subr.bf16.mxu0 0
    %4911 = vmatpush1.bf16.msra.mxu0 0
    %4912 = vmatprep.subr.bf16.mxu0 0
    %4913 = vmatpush1.bf16.msra.mxu0 0
    %4914 = vmatprep.subr.bf16.mxu0 0
    %4915 = vmatpush1.bf16.msra.mxu0 0
    %4916 = vmatprep.subr.bf16.mxu0 0
    %4917 = vmatpush1.bf16.msra.mxu0 0
    %4918 = vmatprep.mubr.bf16.mxu0 0
    %4919 = vmatmul.mubr.bf16.gmra.mrb[0].mxu0 %v4884
    %v4920 = vpop.f32.mrb[0].mxu0
    %v4921 = vadd.f32 %v4182, %v4920
    %v4922 = vpop.f32.mrb[0].mxu0
    %v4923 = vpop.f32.mrb[0].mxu0
    %v4924 = vpop.f32.mrb[0].mxu0
    %4925 = vdwg.mxu0
    %4926 = vst [vmem:[#allocation3 + $0x30] sm:$0xff] %v4921
    %v4927 = vld [vmem:[#allocation2 + $0x38] sm:$0xff]
    %4928 = vmatprep.subr.bf16.mxu0 0
    %4929 = vmatpush1.bf16.msra.mxu0 %v4108
    %4930 = vmatprep.subr.bf16.mxu0 0
    %4931 = vmatpush1.bf16.msra.mxu0 %v4109
    %4932 = vmatprep.subr.bf16.mxu0 0
    %4933 = vmatpush1.bf16.msra.mxu0 0
    %4934 = vmatprep.subr.bf16.mxu0 0
    %4935 = vmatpush1.bf16.msra.mxu0 0
    %4936 = vmatprep.subr.bf16.mxu0 0
    %4937 = vmatpush1.bf16.msra.mxu0 0
    %4938 = vmatprep.subr.bf16.mxu0 0
    %4939 = vmatpush1.bf16.msra.mxu0 0
    %4940 = vmatprep.subr.bf16.mxu0 0
    %4941 = vmatpush1.bf16.msra.mxu0 0
    %4942 = vmatprep.subr.bf16.mxu0 0
    %4943 = vmatpush1.bf16.msra.mxu0 0
    %4944 = vmatprep.subr.bf16.mxu0 0
    %4945 = vmatpush1.bf16.msra.mxu0 0
    %4946 = vmatprep.subr.bf16.mxu0 0
    %4947 = vmatpush1.bf16.msra.mxu0 0
    %4948 = vmatprep.subr.bf16.mxu0 0
    %4949 = vmatpush1.bf16.msra.mxu0 0
    %4950 = vmatprep.subr.bf16.mxu0 0
    %4951 = vmatpush1.bf16.msra.mxu0 0
    %4952 = vmatprep.subr.bf16.mxu0 0
    %4953 = vmatpush1.bf16.msra.mxu0 0
    %4954 = vmatprep.subr.bf16.mxu0 0
    %4955 = vmatpush1.bf16.msra.mxu0 0
    %4956 = vmatprep.subr.bf16.mxu0 0
    %4957 = vmatpush1.bf16.msra.mxu0 0
    %4958 = vmatprep.subr.bf16.mxu0 0
    %4959 = vmatpush1.bf16.msra.mxu0 0
    %4960 = vmatprep.mubr.bf16.mxu0 0
    %4961 = vmatmul.mubr.bf16.gmra.mrb[0].mxu0 %v4884
    %v4962 = vpop.f32.mrb[0].mxu0
    %v4963 = vadd.f32 0.0, %v4962
    %v4964 = vpop.f32.mrb[0].mxu0
    %v4965 = vpop.f32.mrb[0].mxu0
    %v4966 = vpop.f32.mrb[0].mxu0
    %4967 = vdwg.mxu0
    %v4968 = vadd.f32 %v4927, %v4963
    %v4969 = vxor.u32 %v4968, 2147483648
    %v4970 = vmul.f32 %v4969, 1.442695
    %v4971 = vpow.pop %v4970
    %v4972 = vadd.f32 %v4971, 1.0
    %v4973 = vrcp.pop %v4972
    %v4974 = vmul.f32 1.0, %v4973
    %v4975 = vtanh.pop %v4968
    %v4976 = vmul.f32 %v4974, %v4872
    %4978 = vrot.lane.b32.xlu0 %v4975, 32
    %v4979 = vpop.permute.xlu0 %4978
    %v4981 = vmul.f32 %v4974, %v4979
    %4983 = vrot.lane.b32.xlu0 %v4981, 32
    %v4984 = vpop.permute.xlu0 %4983
    %v4986 = vadd.f32 %v4976, %v4984
    %v4987 = vtanh.pop %v4986
    %4989 = vrot.lane.b32.xlu0 %v4987, 32
    %v4990 = vpop.permute.xlu0 %4989
    %v4992 = vmul.f32 %v4974, %v4990
    %v4993 = vpack.c.bf16 %v4992, %v4992
    %4995 = vrot.lane.b32.xlu0 %v4993, 64
    %v4996 = vpop.permute.xlu0 %4995
    %v4998 = vsel %vm304, %v4996, 0
    %5000 = vmatprep.subr.bf16.mxu0 0
    %5001 = vmatpush1.bf16.msra.mxu0 %v4195
    %5002 = vmatprep.subr.bf16.mxu0 0
    %5003 = vmatpush1.bf16.msra.mxu0 %v4196
    %5004 = vmatprep.subr.bf16.mxu0 0
    %5005 = vmatpush1.bf16.msra.mxu0 0
    %5006 = vmatprep.subr.bf16.mxu0 0
    %5007 = vmatpush1.bf16.msra.mxu0 0
    %5008 = vmatprep.subr.bf16.mxu0 0
    %5009 = vmatpush1.bf16.msra.mxu0 0
    %5010 = vmatprep.subr.bf16.mxu0 0
    %5011 = vmatpush1.bf16.msra.mxu0 0
    %5012 = vmatprep.subr.bf16.mxu0 0
    %5013 = vmatpush1.bf16.msra.mxu0 0
    %5014 = vmatprep.subr.bf16.mxu0 0
    %5015 = vmatpush1.bf16.msra.mxu0 0
    %5016 = vmatprep.subr.bf16.mxu0 0
    %5017 = vmatpush1.bf16.msra.mxu0 0
    %5018 = vmatprep.subr.bf16.mxu0 0
    %5019 = vmatpush1.bf16.msra.mxu0 0
    %5020 = vmatprep.subr.bf16.mxu0 0
    %5021 = vmatpush1.bf16.msra.mxu0 0
    %5022 = vmatprep.subr.bf16.mxu0 0
    %5023 = vmatpush1.bf16.msra.mxu0 0
    %5024 = vmatprep.subr.bf16.mxu0 0
    %5025 = vmatpush1.bf16.msra.mxu0 0
    %5026 = vmatprep.subr.bf16.mxu0 0
    %5027 = vmatpush1.bf16.msra.mxu0 0
    %5028 = vmatprep.subr.bf16.mxu0 0
    %5029 = vmatpush1.bf16.msra.mxu0 0
    %5030 = vmatprep.subr.bf16.mxu0 0
    %5031 = vmatpush1.bf16.msra.mxu0 0
    %5032 = vmatprep.mubr.bf16.mxu0 0
    %5033 = vmatmul.mubr.bf16.gmra.mrb[0].mxu0 %v4998
    %v5034 = vpop.f32.mrb[0].mxu0
    %v5035 = vadd.f32 %v4182, %v5034
    %v5036 = vpop.f32.mrb[0].mxu0
    %v5037 = vpop.f32.mrb[0].mxu0
    %v5038 = vpop.f32.mrb[0].mxu0
    %5039 = vdwg.mxu0
    %5040 = vst [vmem:[#allocation3 + $0x38] sm:$0xff] %v5035
    %v5041 = vld [vmem:[%s17] sm:$0xf]
    %v5042 = vld [vmem:[%s17 + $0x4] sm:$0xf]
    %v5043 = vld [vmem:[%s17 + $0x8] sm:$0xf]
    %v5044 = vld [vmem:[%s17 + $0xc] sm:$0xf]
    %v5045 = vld [vmem:[#allocation3] sm:$0xff]
    %v5050 = vunpack.c.l.b16 %v5041
    %v5051 = vunpack.c.l.b16 %v5042
    %v5052 = vunpack.c.l.b16 %v5043
    %v5053 = vunpack.c.l.b16 %v5044
    %v5054 = vpack.c.b16 %v5051, %v5050
    %v5055 = vpack.c.b16 %v5053, %v5052
    %5058 = vmatprep.subr.bf16.mxu0 0
    %5059 = vmatpush1.bf16.msra.mxu0 %v5054
    %5060 = vmatprep.subr.bf16.mxu0 0
    %5061 = vmatpush1.bf16.msra.mxu0 %v5055
    %5062 = vmatprep.subr.bf16.mxu0 0
    %5063 = vmatpush1.bf16.msra.mxu0 0
    %5064 = vmatprep.subr.bf16.mxu0 0
    %5065 = vmatpush1.bf16.msra.mxu0 0
    %5066 = vmatprep.subr.bf16.mxu0 0
    %5067 = vmatpush1.bf16.msra.mxu0 0
    %5068 = vmatprep.subr.bf16.mxu0 0
    %5069 = vmatpush1.bf16.msra.mxu0 0
    %5070 = vmatprep.subr.bf16.mxu0 0
    %5071 = vmatpush1.bf16.msra.mxu0 0
    %5072 = vmatprep.subr.bf16.mxu0 0
    %5073 = vmatpush1.bf16.msra.mxu0 0
    %5074 = vmatprep.subr.bf16.mxu0 0
    %5075 = vmatpush1.bf16.msra.mxu0 0
    %5076 = vmatprep.subr.bf16.mxu0 0
    %5077 = vmatpush1.bf16.msra.mxu0 0
    %5078 = vmatprep.subr.bf16.mxu0 0
    %5079 = vmatpush1.bf16.msra.mxu0 0
    %5080 = vmatprep.subr.bf16.mxu0 0
    %5081 = vmatpush1.bf16.msra.mxu0 0
    %5082 = vmatprep.subr.bf16.mxu0 0
    %5083 = vmatpush1.bf16.msra.mxu0 0
    %5084 = vmatprep.subr.bf16.mxu0 0
    %5085 = vmatpush1.bf16.msra.mxu0 0
    %5086 = vmatprep.subr.bf16.mxu0 0
    %5087 = vmatpush1.bf16.msra.mxu0 0
    %5088 = vmatprep.subr.bf16.mxu0 0
    %5089 = vmatpush1.bf16.msra.mxu0 0
    %5090 = vmatprep.mubr.bf16.mxu0 0
    %5091 = vmatmul.mubr.bf16.gmra.mrb[0].mxu0 %v306
    %v5092 = vpop.f32.mrb[0].mxu0
    %v5093 = vadd.f32 0.0, %v5092
    %v5094 = vpop.f32.mrb[0].mxu0
    %v5095 = vpop.f32.mrb[0].mxu0
    %v5096 = vpop.f32.mrb[0].mxu0
    %5097 = vdwg.mxu0
    %v5098 = vadd.f32 %v5045, %v5093
    %v5099 = vxor.u32 %v5098, 2147483648
    %v5100 = vmul.f32 %v5099, 1.442695
    %v5101 = vpow.pop %v5100
    %v5102 = vadd.f32 %v5101, 1.0
    %v5103 = vrcp.pop %v5102
    %v5104 = vmul.f32 1.0, %v5103
    %v5105 = vtanh.pop %v5098
    %v5106 = vmul.f32 %v5104, 0.0
    %5108 = vrot.lane.b32.xlu0 %v5105, 32
    %v5109 = vpop.permute.xlu0 %5108
    %v5111 = vmul.f32 %v5104, %v5109
    %5113 = vrot.lane.b32.xlu0 %v5111, 32
    %v5114 = vpop.permute.xlu0 %5113
    %v5116 = vadd.f32 %v5106, %v5114
    %v5117 = vtanh.pop %v5116
    %5119 = vrot.lane.b32.xlu0 %v5117, 32
    %v5120 = vpop.permute.xlu0 %5119
    %v5122 = vmul.f32 %v5104, %v5120
    %v5123 = vpack.c.bf16 %v5122, %v5122
    %v5124 = vld [vmem:[#allocation3 + $0x8] sm:$0xff]
    %5126 = vrot.lane.b32.xlu0 %v5123, 64
    %v5127 = vpop.permute.xlu0 %5126
    %v5129 = vsel %vm304, %v5127, 0
    %5131 = vmatprep.subr.bf16.mxu0 0
    %5132 = vmatpush1.bf16.msra.mxu0 %v5054
    %5133 = vmatprep.subr.bf16.mxu0 0
    %5134 = vmatpush1.bf16.msra.mxu0 %v5055
    %5135 = vmatprep.subr.bf16.mxu0 0
    %5136 = vmatpush1.bf16.msra.mxu0 0
    %5137 = vmatprep.subr.bf16.mxu0 0
    %5138 = vmatpush1.bf16.msra.mxu0 0
    %5139 = vmatprep.subr.bf16.mxu0 0
    %5140 = vmatpush1.bf16.msra.mxu0 0
    %5141 = vmatprep.subr.bf16.mxu0 0
    %5142 = vmatpush1.bf16.msra.mxu0 0
    %5143 = vmatprep.subr.bf16.mxu0 0
    %5144 = vmatpush1.bf16.msra.mxu0 0
    %5145 = vmatprep.subr.bf16.mxu0 0
    %5146 = vmatpush1.bf16.msra.mxu0 0
    %5147 = vmatprep.subr.bf16.mxu0 0
    %5148 = vmatpush1.bf16.msra.mxu0 0
    %5149 = vmatprep.subr.bf16.mxu0 0
    %5150 = vmatpush1.bf16.msra.mxu0 0
    %5151 = vmatprep.subr.bf16.mxu0 0
    %5152 = vmatpush1.bf16.msra.mxu0 0
    %5153 = vmatprep.subr.bf16.mxu0 0
    %5154 = vmatpush1.bf16.msra.mxu0 0
    %5155 = vmatprep.subr.bf16.mxu0 0
    %5156 = vmatpush1.bf16.msra.mxu0 0
    %5157 = vmatprep.subr.bf16.mxu0 0
    %5158 = vmatpush1.bf16.msra.mxu0 0
    %5159 = vmatprep.subr.bf16.mxu0 0
    %5160 = vmatpush1.bf16.msra.mxu0 0
    %5161 = vmatprep.subr.bf16.mxu0 0
    %5162 = vmatpush1.bf16.msra.mxu0 0
    %5163 = vmatprep.mubr.bf16.mxu0 0
    %5164 = vmatmul.mubr.bf16.gmra.mrb[0].mxu0 %v5129
    %v5165 = vpop.f32.mrb[0].mxu0
    %v5166 = vadd.f32 0.0, %v5165
    %v5167 = vpop.f32.mrb[0].mxu0
    %v5168 = vpop.f32.mrb[0].mxu0
    %v5169 = vpop.f32.mrb[0].mxu0
    %5170 = vdwg.mxu0
    %v5171 = vadd.f32 %v5124, %v5166
    %v5172 = vxor.u32 %v5171, 2147483648
    %v5173 = vmul.f32 %v5172, 1.442695
    %v5174 = vpow.pop %v5173
    %v5175 = vadd.f32 %v5174, 1.0
    %v5176 = vrcp.pop %v5175
    %v5177 = vmul.f32 1.0, %v5176
    %v5178 = vtanh.pop %v5171
    %v5179 = vmul.f32 %v5177, %v5116
    %5181 = vrot.lane.b32.xlu0 %v5178, 32
    %v5182 = vpop.permute.xlu0 %5181
    %v5184 = vmul.f32 %v5177, %v5182
    %5186 = vrot.lane.b32.xlu0 %v5184, 32
    %v5187 = vpop.permute.xlu0 %5186
    %v5189 = vadd.f32 %v5179, %v5187
    %v5190 = vtanh.pop %v5189
    %5192 = vrot.lane.b32.xlu0 %v5190, 32
    %v5193 = vpop.permute.xlu0 %5192
    %v5195 = vmul.f32 %v5177, %v5193
    %v5196 = vpack.c.bf16 %v5195, %v5195
    %v5197 = vld [vmem:[#allocation3 + $0x10] sm:$0xff]
    %5199 = vrot.lane.b32.xlu0 %v5196, 64
    %v5200 = vpop.permute.xlu0 %5199
    %v5202 = vsel %vm304, %v5200, 0
    %5204 = vmatprep.subr.bf16.mxu0 0
    %5205 = vmatpush1.bf16.msra.mxu0 %v5054
    %5206 = vmatprep.subr.bf16.mxu0 0
    %5207 = vmatpush1.bf16.msra.mxu0 %v5055
    %5208 = vmatprep.subr.bf16.mxu0 0
    %5209 = vmatpush1.bf16.msra.mxu0 0
    %5210 = vmatprep.subr.bf16.mxu0 0
    %5211 = vmatpush1.bf16.msra.mxu0 0
    %5212 = vmatprep.subr.bf16.mxu0 0
    %5213 = vmatpush1.bf16.msra.mxu0 0
    %5214 = vmatprep.subr.bf16.mxu0 0
    %5215 = vmatpush1.bf16.msra.mxu0 0
    %5216 = vmatprep.subr.bf16.mxu0 0
    %5217 = vmatpush1.bf16.msra.mxu0 0
    %5218 = vmatprep.subr.bf16.mxu0 0
    %5219 = vmatpush1.bf16.msra.mxu0 0
    %5220 = vmatprep.subr.bf16.mxu0 0
    %5221 = vmatpush1.bf16.msra.mxu0 0
    %5222 = vmatprep.subr.bf16.mxu0 0
    %5223 = vmatpush1.bf16.msra.mxu0 0
    %5224 = vmatprep.subr.bf16.mxu0 0
    %5225 = vmatpush1.bf16.msra.mxu0 0
    %5226 = vmatprep.subr.bf16.mxu0 0
    %5227 = vmatpush1.bf16.msra.mxu0 0
    %5228 = vmatprep.subr.bf16.mxu0 0
    %5229 = vmatpush1.bf16.msra.mxu0 0
    %5230 = vmatprep.subr.bf16.mxu0 0
    %5231 = vmatpush1.bf16.msra.mxu0 0
    %5232 = vmatprep.subr.bf16.mxu0 0
    %5233 = vmatpush1.bf16.msra.mxu0 0
    %5234 = vmatprep.subr.bf16.mxu0 0
    %5235 = vmatpush1.bf16.msra.mxu0 0
    %5236 = vmatprep.mubr.bf16.mxu0 0
    %5237 = vmatmul.mubr.bf16.gmra.mrb[0].mxu0 %v5202
    %v5238 = vpop.f32.mrb[0].mxu0
    %v5239 = vadd.f32 0.0, %v5238
    %v5240 = vpop.f32.mrb[0].mxu0
    %v5241 = vpop.f32.mrb[0].mxu0
    %v5242 = vpop.f32.mrb[0].mxu0
    %5243 = vdwg.mxu0
    %v5244 = vadd.f32 %v5197, %v5239
    %v5245 = vxor.u32 %v5244, 2147483648
    %v5246 = vmul.f32 %v5245, 1.442695
    %v5247 = vpow.pop %v5246
    %v5248 = vadd.f32 %v5247, 1.0
    %v5249 = vrcp.pop %v5248
    %v5250 = vmul.f32 1.0, %v5249
    %v5251 = vtanh.pop %v5244
    %v5252 = vmul.f32 %v5250, %v5189
    %5254 = vrot.lane.b32.xlu0 %v5251, 32
    %v5255 = vpop.permute.xlu0 %5254
    %v5257 = vmul.f32 %v5250, %v5255
    %5259 = vrot.lane.b32.xlu0 %v5257, 32
    %v5260 = vpop.permute.xlu0 %5259
    %v5262 = vadd.f32 %v5252, %v5260
    %v5263 = vtanh.pop %v5262
    %5265 = vrot.lane.b32.xlu0 %v5263, 32
    %v5266 = vpop.permute.xlu0 %5265
    %v5268 = vmul.f32 %v5250, %v5266
    %v5269 = vpack.c.bf16 %v5268, %v5268
    %v5270 = vld [vmem:[#allocation3 + $0x18] sm:$0xff]
    %5272 = vrot.lane.b32.xlu0 %v5269, 64
    %v5273 = vpop.permute.xlu0 %5272
    %v5275 = vsel %vm304, %v5273, 0
    %5277 = vmatprep.subr.bf16.mxu0 0
    %5278 = vmatpush1.bf16.msra.mxu0 %v5054
    %5279 = vmatprep.subr.bf16.mxu0 0
    %5280 = vmatpush1.bf16.msra.mxu0 %v5055
    %5281 = vmatprep.subr.bf16.mxu0 0
    %5282 = vmatpush1.bf16.msra.mxu0 0
    %5283 = vmatprep.subr.bf16.mxu0 0
    %5284 = vmatpush1.bf16.msra.mxu0 0
    %5285 = vmatprep.subr.bf16.mxu0 0
    %5286 = vmatpush1.bf16.msra.mxu0 0
    %5287 = vmatprep.subr.bf16.mxu0 0
    %5288 = vmatpush1.bf16.msra.mxu0 0
    %5289 = vmatprep.subr.bf16.mxu0 0
    %5290 = vmatpush1.bf16.msra.mxu0 0
    %5291 = vmatprep.subr.bf16.mxu0 0
    %5292 = vmatpush1.bf16.msra.mxu0 0
    %5293 = vmatprep.subr.bf16.mxu0 0
    %5294 = vmatpush1.bf16.msra.mxu0 0
    %5295 = vmatprep.subr.bf16.mxu0 0
    %5296 = vmatpush1.bf16.msra.mxu0 0
    %5297 = vmatprep.subr.bf16.mxu0 0
    %5298 = vmatpush1.bf16.msra.mxu0 0
    %5299 = vmatprep.subr.bf16.mxu0 0
    %5300 = vmatpush1.bf16.msra.mxu0 0
    %5301 = vmatprep.subr.bf16.mxu0 0
    %5302 = vmatpush1.bf16.msra.mxu0 0
    %5303 = vmatprep.subr.bf16.mxu0 0
    %5304 = vmatpush1.bf16.msra.mxu0 0
    %5305 = vmatprep.subr.bf16.mxu0 0
    %5306 = vmatpush1.bf16.msra.mxu0 0
    %5307 = vmatprep.subr.bf16.mxu0 0
    %5308 = vmatpush1.bf16.msra.mxu0 0
    %5309 = vmatprep.mubr.bf16.mxu0 0
    %5310 = vmatmul.mubr.bf16.gmra.mrb[0].mxu0 %v5275
    %v5311 = vpop.f32.mrb[0].mxu0
    %v5312 = vadd.f32 0.0, %v5311
    %v5313 = vpop.f32.mrb[0].mxu0
    %v5314 = vpop.f32.mrb[0].mxu0
    %v5315 = vpop.f32.mrb[0].mxu0
    %5316 = vdwg.mxu0
    %v5317 = vadd.f32 %v5270, %v5312
    %v5318 = vxor.u32 %v5317, 2147483648
    %v5319 = vmul.f32 %v5318, 1.442695
    %v5320 = vpow.pop %v5319
    %v5321 = vadd.f32 %v5320, 1.0
    %v5322 = vrcp.pop %v5321
    %v5323 = vmul.f32 1.0, %v5322
    %v5324 = vtanh.pop %v5317
    %v5325 = vmul.f32 %v5323, %v5262
    %5327 = vrot.lane.b32.xlu0 %v5324, 32
    %v5328 = vpop.permute.xlu0 %5327
    %v5330 = vmul.f32 %v5323, %v5328
    %5332 = vrot.lane.b32.xlu0 %v5330, 32
    %v5333 = vpop.permute.xlu0 %5332
    %v5335 = vadd.f32 %v5325, %v5333
    %v5336 = vtanh.pop %v5335
    %5338 = vrot.lane.b32.xlu0 %v5336, 32
    %v5339 = vpop.permute.xlu0 %5338
    %v5341 = vmul.f32 %v5323, %v5339
    %v5342 = vpack.c.bf16 %v5341, %v5341
    %v5343 = vld [vmem:[#allocation3 + $0x20] sm:$0xff]
    %5345 = vrot.lane.b32.xlu0 %v5342, 64
    %v5346 = vpop.permute.xlu0 %5345
    %v5348 = vsel %vm304, %v5346, 0
    %5350 = vmatprep.subr.bf16.mxu0 0
    %5351 = vmatpush1.bf16.msra.mxu0 %v5054
    %5352 = vmatprep.subr.bf16.mxu0 0
    %5353 = vmatpush1.bf16.msra.mxu0 %v5055
    %5354 = vmatprep.subr.bf16.mxu0 0
    %5355 = vmatpush1.bf16.msra.mxu0 0
    %5356 = vmatprep.subr.bf16.mxu0 0
    %5357 = vmatpush1.bf16.msra.mxu0 0
    %5358 = vmatprep.subr.bf16.mxu0 0
    %5359 = vmatpush1.bf16.msra.mxu0 0
    %5360 = vmatprep.subr.bf16.mxu0 0
    %5361 = vmatpush1.bf16.msra.mxu0 0
    %5362 = vmatprep.subr.bf16.mxu0 0
    %5363 = vmatpush1.bf16.msra.mxu0 0
    %5364 = vmatprep.subr.bf16.mxu0 0
    %5365 = vmatpush1.bf16.msra.mxu0 0
    %5366 = vmatprep.subr.bf16.mxu0 0
    %5367 = vmatpush1.bf16.msra.mxu0 0
    %5368 = vmatprep.subr.bf16.mxu0 0
    %5369 = vmatpush1.bf16.msra.mxu0 0
    %5370 = vmatprep.subr.bf16.mxu0 0
    %5371 = vmatpush1.bf16.msra.mxu0 0
    %5372 = vmatprep.subr.bf16.mxu0 0
    %5373 = vmatpush1.bf16.msra.mxu0 0
    %5374 = vmatprep.subr.bf16.mxu0 0
    %5375 = vmatpush1.bf16.msra.mxu0 0
    %5376 = vmatprep.subr.bf16.mxu0 0
    %5377 = vmatpush1.bf16.msra.mxu0 0
    %5378 = vmatprep.subr.bf16.mxu0 0
    %5379 = vmatpush1.bf16.msra.mxu0 0
    %5380 = vmatprep.subr.bf16.mxu0 0
    %5381 = vmatpush1.bf16.msra.mxu0 0
    %5382 = vmatprep.mubr.bf16.mxu0 0
    %5383 = vmatmul.mubr.bf16.gmra.mrb[0].mxu0 %v5348
    %v5384 = vpop.f32.mrb[0].mxu0
    %v5385 = vadd.f32 0.0, %v5384
    %v5386 = vpop.f32.mrb[0].mxu0
    %v5387 = vpop.f32.mrb[0].mxu0
    %v5388 = vpop.f32.mrb[0].mxu0
    %5389 = vdwg.mxu0
    %v5390 = vadd.f32 %v5343, %v5385
    %v5391 = vxor.u32 %v5390, 2147483648
    %v5392 = vmul.f32 %v5391, 1.442695
    %v5393 = vpow.pop %v5392
    %v5394 = vadd.f32 %v5393, 1.0
    %v5395 = vrcp.pop %v5394
    %v5396 = vmul.f32 1.0, %v5395
    %v5397 = vtanh.pop %v5390
    %v5398 = vmul.f32 %v5396, %v5335
    %5400 = vrot.lane.b32.xlu0 %v5397, 32
    %v5401 = vpop.permute.xlu0 %5400
    %v5403 = vmul.f32 %v5396, %v5401
    %5405 = vrot.lane.b32.xlu0 %v5403, 32
    %v5406 = vpop.permute.xlu0 %5405
    %v5408 = vadd.f32 %v5398, %v5406
    %v5409 = vtanh.pop %v5408
    %5411 = vrot.lane.b32.xlu0 %v5409, 32
    %v5412 = vpop.permute.xlu0 %5411
    %v5414 = vmul.f32 %v5396, %v5412
    %v5415 = vpack.c.bf16 %v5414, %v5414
    %v5416 = vld [vmem:[#allocation3 + $0x28] sm:$0xff]
    %5418 = vrot.lane.b32.xlu0 %v5415, 64
    %v5419 = vpop.permute.xlu0 %5418
    %v5421 = vsel %vm304, %v5419, 0
    %5423 = vmatprep.subr.bf16.mxu0 0
    %5424 = vmatpush1.bf16.msra.mxu0 %v5054
    %5425 = vmatprep.subr.bf16.mxu0 0
    %5426 = vmatpush1.bf16.msra.mxu0 %v5055
    %5427 = vmatprep.subr.bf16.mxu0 0
    %5428 = vmatpush1.bf16.msra.mxu0 0
    %5429 = vmatprep.subr.bf16.mxu0 0
    %5430 = vmatpush1.bf16.msra.mxu0 0
    %5431 = vmatprep.subr.bf16.mxu0 0
    %5432 = vmatpush1.bf16.msra.mxu0 0
    %5433 = vmatprep.subr.bf16.mxu0 0
    %5434 = vmatpush1.bf16.msra.mxu0 0
    %5435 = vmatprep.subr.bf16.mxu0 0
    %5436 = vmatpush1.bf16.msra.mxu0 0
    %5437 = vmatprep.subr.bf16.mxu0 0
    %5438 = vmatpush1.bf16.msra.mxu0 0
    %5439 = vmatprep.subr.bf16.mxu0 0
    %5440 = vmatpush1.bf16.msra.mxu0 0
    %5441 = vmatprep.subr.bf16.mxu0 0
    %5442 = vmatpush1.bf16.msra.mxu0 0
    %5443 = vmatprep.subr.bf16.mxu0 0
    %5444 = vmatpush1.bf16.msra.mxu0 0
    %5445 = vmatprep.subr.bf16.mxu0 0
    %5446 = vmatpush1.bf16.msra.mxu0 0
    %5447 = vmatprep.subr.bf16.mxu0 0
    %5448 = vmatpush1.bf16.msra.mxu0 0
    %5449 = vmatprep.subr.bf16.mxu0 0
    %5450 = vmatpush1.bf16.msra.mxu0 0
    %5451 = vmatprep.subr.bf16.mxu0 0
    %5452 = vmatpush1.bf16.msra.mxu0 0
    %5453 = vmatprep.subr.bf16.mxu0 0
    %5454 = vmatpush1.bf16.msra.mxu0 0
    %5455 = vmatprep.mubr.bf16.mxu0 0
    %5456 = vmatmul.mubr.bf16.gmra.mrb[0].mxu0 %v5421
    %v5457 = vpop.f32.mrb[0].mxu0
    %v5458 = vadd.f32 0.0, %v5457
    %v5459 = vpop.f32.mrb[0].mxu0
    %v5460 = vpop.f32.mrb[0].mxu0
    %v5461 = vpop.f32.mrb[0].mxu0
    %5462 = vdwg.mxu0
    %v5463 = vadd.f32 %v5416, %v5458
    %v5464 = vxor.u32 %v5463, 2147483648
    %v5465 = vmul.f32 %v5464, 1.442695
    %v5466 = vpow.pop %v5465
    %v5467 = vadd.f32 %v5466, 1.0
    %v5468 = vrcp.pop %v5467
    %v5469 = vmul.f32 1.0, %v5468
    %v5470 = vtanh.pop %v5463
    %v5471 = vmul.f32 %v5469, %v5408
    %5473 = vrot.lane.b32.xlu0 %v5470, 32
    %v5474 = vpop.permute.xlu0 %5473
    %v5476 = vmul.f32 %v5469, %v5474
    %5478 = vrot.lane.b32.xlu0 %v5476, 32
    %v5479 = vpop.permute.xlu0 %5478
    %v5481 = vadd.f32 %v5471, %v5479
    %v5482 = vtanh.pop %v5481
    %5484 = vrot.lane.b32.xlu0 %v5482, 32
    %v5485 = vpop.permute.xlu0 %5484
    %v5487 = vmul.f32 %v5469, %v5485
    %v5488 = vpack.c.bf16 %v5487, %v5487
    %v5489 = vld [vmem:[#allocation3 + $0x30] sm:$0xff]
    %5491 = vrot.lane.b32.xlu0 %v5488, 64
    %v5492 = vpop.permute.xlu0 %5491
    %v5494 = vsel %vm304, %v5492, 0
    %5496 = vmatprep.subr.bf16.mxu0 0
    %5497 = vmatpush1.bf16.msra.mxu0 %v5054
    %5498 = vmatprep.subr.bf16.mxu0 0
    %5499 = vmatpush1.bf16.msra.mxu0 %v5055
    %5500 = vmatprep.subr.bf16.mxu0 0
    %5501 = vmatpush1.bf16.msra.mxu0 0
    %5502 = vmatprep.subr.bf16.mxu0 0
    %5503 = vmatpush1.bf16.msra.mxu0 0
    %5504 = vmatprep.subr.bf16.mxu0 0
    %5505 = vmatpush1.bf16.msra.mxu0 0
    %5506 = vmatprep.subr.bf16.mxu0 0
    %5507 = vmatpush1.bf16.msra.mxu0 0
    %5508 = vmatprep.subr.bf16.mxu0 0
    %5509 = vmatpush1.bf16.msra.mxu0 0
    %5510 = vmatprep.subr.bf16.mxu0 0
    %5511 = vmatpush1.bf16.msra.mxu0 0
    %5512 = vmatprep.subr.bf16.mxu0 0
    %5513 = vmatpush1.bf16.msra.mxu0 0
    %5514 = vmatprep.subr.bf16.mxu0 0
    %5515 = vmatpush1.bf16.msra.mxu0 0
    %5516 = vmatprep.subr.bf16.mxu0 0
    %5517 = vmatpush1.bf16.msra.mxu0 0
    %5518 = vmatprep.subr.bf16.mxu0 0
    %5519 = vmatpush1.bf16.msra.mxu0 0
    %5520 = vmatprep.subr.bf16.mxu0 0
    %5521 = vmatpush1.bf16.msra.mxu0 0
    %5522 = vmatprep.subr.bf16.mxu0 0
    %5523 = vmatpush1.bf16.msra.mxu0 0
    %5524 = vmatprep.subr.bf16.mxu0 0
    %5525 = vmatpush1.bf16.msra.mxu0 0
    %5526 = vmatprep.subr.bf16.mxu0 0
    %5527 = vmatpush1.bf16.msra.mxu0 0
    %5528 = vmatprep.mubr.bf16.mxu0 0
    %5529 = vmatmul.mubr.bf16.gmra.mrb[0].mxu0 %v5494
    %v5530 = vpop.f32.mrb[0].mxu0
    %v5531 = vadd.f32 0.0, %v5530
    %v5532 = vpop.f32.mrb[0].mxu0
    %v5533 = vpop.f32.mrb[0].mxu0
    %v5534 = vpop.f32.mrb[0].mxu0
    %5535 = vdwg.mxu0
    %v5536 = vadd.f32 %v5489, %v5531
    %v5537 = vxor.u32 %v5536, 2147483648
    %v5538 = vmul.f32 %v5537, 1.442695
    %v5539 = vpow.pop %v5538
    %v5540 = vadd.f32 %v5539, 1.0
    %v5541 = vrcp.pop %v5540
    %v5542 = vmul.f32 1.0, %v5541
    %v5543 = vtanh.pop %v5536
    %v5544 = vmul.f32 %v5542, %v5481
    %5546 = vrot.lane.b32.xlu0 %v5543, 32
    %v5547 = vpop.permute.xlu0 %5546
    %v5549 = vmul.f32 %v5542, %v5547
    %5551 = vrot.lane.b32.xlu0 %v5549, 32
    %v5552 = vpop.permute.xlu0 %5551
    %v5554 = vadd.f32 %v5544, %v5552
    %v5555 = vtanh.pop %v5554
    %5557 = vrot.lane.b32.xlu0 %v5555, 32
    %v5558 = vpop.permute.xlu0 %5557
    %v5560 = vmul.f32 %v5542, %v5558
    %v5561 = vpack.c.bf16 %v5560, %v5560
    %v5562 = vld [vmem:[#allocation3 + $0x38] sm:$0xff]
    %5564 = vrot.lane.b32.xlu0 %v5561, 64
    %v5565 = vpop.permute.xlu0 %5564
    %v5567 = vsel %vm304, %v5565, 0
    %5569 = vmatprep.subr.bf16.mxu0 0
    %5570 = vmatpush1.bf16.msra.mxu0 %v5054
    %5571 = vmatprep.subr.bf16.mxu0 0
    %5572 = vmatpush1.bf16.msra.mxu0 %v5055
    %5573 = vmatprep.subr.bf16.mxu0 0
    %5574 = vmatpush1.bf16.msra.mxu0 0
    %5575 = vmatprep.subr.bf16.mxu0 0
    %5576 = vmatpush1.bf16.msra.mxu0 0
    %5577 = vmatprep.subr.bf16.mxu0 0
    %5578 = vmatpush1.bf16.msra.mxu0 0
    %5579 = vmatprep.subr.bf16.mxu0 0
    %5580 = vmatpush1.bf16.msra.mxu0 0
    %5581 = vmatprep.subr.bf16.mxu0 0
    %5582 = vmatpush1.bf16.msra.mxu0 0
    %5583 = vmatprep.subr.bf16.mxu0 0
    %5584 = vmatpush1.bf16.msra.mxu0 0
    %5585 = vmatprep.subr.bf16.mxu0 0
    %5586 = vmatpush1.bf16.msra.mxu0 0
    %5587 = vmatprep.subr.bf16.mxu0 0
    %5588 = vmatpush1.bf16.msra.mxu0 0
    %5589 = vmatprep.subr.bf16.mxu0 0
    %5590 = vmatpush1.bf16.msra.mxu0 0
    %5591 = vmatprep.subr.bf16.mxu0 0
    %5592 = vmatpush1.bf16.msra.mxu0 0
    %5593 = vmatprep.subr.bf16.mxu0 0
    %5594 = vmatpush1.bf16.msra.mxu0 0
    %5595 = vmatprep.subr.bf16.mxu0 0
    %5596 = vmatpush1.bf16.msra.mxu0 0
    %5597 = vmatprep.subr.bf16.mxu0 0
    %5598 = vmatpush1.bf16.msra.mxu0 0
    %5599 = vmatprep.subr.bf16.mxu0 0
    %5600 = vmatpush1.bf16.msra.mxu0 0
    %5601 = vmatprep.mubr.bf16.mxu0 0
    %5602 = vmatmul.mubr.bf16.gmra.mrb[0].mxu0 %v5567
    %v5603 = vpop.f32.mrb[0].mxu0
    %v5604 = vadd.f32 0.0, %v5603
    %v5605 = vpop.f32.mrb[0].mxu0
    %v5606 = vpop.f32.mrb[0].mxu0
    %v5607 = vpop.f32.mrb[0].mxu0
    %5608 = vdwg.mxu0
    %v5609 = vadd.f32 %v5562, %v5604
    %v5610 = vxor.u32 %v5609, 2147483648
    %v5611 = vmul.f32 %v5610, 1.442695
    %v5612 = vpow.pop %v5611
    %v5613 = vadd.f32 %v5612, 1.0
    %v5614 = vrcp.pop %v5613
    %v5615 = vmul.f32 1.0, %v5614
    %v5616 = vtanh.pop %v5609
    %v5617 = vmul.f32 %v5615, %v5554
    %5619 = vrot.lane.b32.xlu0 %v5616, 32
    %v5620 = vpop.permute.xlu0 %5619
    %v5622 = vmul.f32 %v5615, %v5620
    %5624 = vrot.lane.b32.xlu0 %v5622, 32
    %v5625 = vpop.permute.xlu0 %5624
    %v5627 = vadd.f32 %v5617, %v5625
    %v5628 = vtanh.pop %v5627
    %5630 = vrot.lane.b32.xlu0 %v5628, 32
    %v5631 = vpop.permute.xlu0 %5630
    %v5633 = vmul.f32 %v5615, %v5631
    %v5634 = vpack.c.bf16 %v5633, %v5633
    %v5635 = vld [vmem:[%s19] sm:$0xf]
    %v5636 = vld [vmem:[%s19 + $0x4] sm:$0xf]
    %v5637 = vld [vmem:[%s19 + $0x8] sm:$0xf]
    %v5638 = vld [vmem:[%s19 + $0xc] sm:$0xf]
    %v5639 = vld [vmem:[#allocation15] sm:$0x1]
    %v5641 = vlaneseq
    %v5642 = vshrl.u32 %v5641, 7
    %v5643 = vsub.s32 0, %v5642
    %v5644 = vrot.slane %v5639, %v5643
    %5647 = vrot.lane.b32.xlu0 %v5634, 64
    %v5648 = vpop.permute.xlu0 %5647
    %v5653 = vunpack.c.l.b16 %v5635
    %v5654 = vunpack.c.l.b16 %v5636
    %v5655 = vunpack.c.l.b16 %v5637
    %v5656 = vunpack.c.l.b16 %v5638
    %v5657 = vpack.c.b16 %v5654, %v5653
    %v5658 = vpack.c.b16 %v5656, %v5655
    %v5662 = vsel %vm304, %v5648, 0
    %5664 = vmatprep.subr.bf16.mxu0 0
    %5665 = vmatpush1.bf16.msra.mxu0 %v5657
    %5666 = vmatprep.subr.bf16.mxu0 0
    %5667 = vmatpush1.bf16.msra.mxu0 %v5658
    %5668 = vmatprep.subr.bf16.mxu0 0
    %5669 = vmatpush1.bf16.msra.mxu0 0
    %5670 = vmatprep.subr.bf16.mxu0 0
    %5671 = vmatpush1.bf16.msra.mxu0 0
    %5672 = vmatprep.subr.bf16.mxu0 0
    %5673 = vmatpush1.bf16.msra.mxu0 0
    %5674 = vmatprep.subr.bf16.mxu0 0
    %5675 = vmatpush1.bf16.msra.mxu0 0
    %5676 = vmatprep.subr.bf16.mxu0 0
    %5677 = vmatpush1.bf16.msra.mxu0 0
    %5678 = vmatprep.subr.bf16.mxu0 0
    %5679 = vmatpush1.bf16.msra.mxu0 0
    %5680 = vmatprep.subr.bf16.mxu0 0
    %5681 = vmatpush1.bf16.msra.mxu0 0
    %5682 = vmatprep.subr.bf16.mxu0 0
    %5683 = vmatpush1.bf16.msra.mxu0 0
    %5684 = vmatprep.subr.bf16.mxu0 0
    %5685 = vmatpush1.bf16.msra.mxu0 0
    %5686 = vmatprep.subr.bf16.mxu0 0
    %5687 = vmatpush1.bf16.msra.mxu0 0
    %5688 = vmatprep.subr.bf16.mxu0 0
    %5689 = vmatpush1.bf16.msra.mxu0 0
    %5690 = vmatprep.subr.bf16.mxu0 0
    %5691 = vmatpush1.bf16.msra.mxu0 0
    %5692 = vmatprep.subr.bf16.mxu0 0
    %5693 = vmatpush1.bf16.msra.mxu0 0
    %5694 = vmatprep.subr.bf16.mxu0 0
    %5695 = vmatpush1.bf16.msra.mxu0 0
    %5696 = vmatprep.mubr.bf16.mxu0 0
    %5697 = vmatmul.mubr.bf16.gmra.mrb[0].mxu0 %v5662
    %v5698 = vpop.f32.mrb[0].mxu0
    %v5699 = vadd.f32 %v5644, %v5698
    %v5700 = vpop.f32.mrb[0].mxu0
    %v5701 = vpop.f32.mrb[0].mxu0
    %v5702 = vpop.f32.mrb[0].mxu0
    %5703 = vdwg.mxu0
    %5704 = vst [vmem:[#allocation16] sm:$0xff] %v5699
    // Predicated region
    $region114: #{gemini_lstm_forward.1} parent=1 // pred_check
      _
    $region115: #{gemini_lstm_forward.1} parent=1 // pred_check_branch
      %5706 = sbr.rel (0) target = $region117
    $region116: #{gemini_lstm_forward.1} parent=1 // pred_region
      %s5708 = ssub.s32 128, 128
      %5709 = vsyncadd [#allocation6], %s5708
      %s5711 = sshll.u32 [#allocation16], 4
      %s5712 = int_to_ptr.vmem [resolvable:$true] %s5711
      %5714 = dma.vmem_to_hbm [thread:$0]  %s5712, 128, %s21, [#allocation6]
    $region117: #{gemini_lstm_forward.1} parent=1 // pred_fallthru
      _
    // Predicated region
    $region118: #{gemini_lstm_forward.1} parent=1 // pred_check
      _
    $region119: #{gemini_lstm_forward.1} parent=1 // pred_check_branch
      %5716 = sbr.rel (0) target = $region121
    $region120: #{gemini_lstm_forward.1} parent=1 // pred_region
      %5717 = dma.done [#allocation6], 128
    $region121: #{gemini_lstm_forward.1} parent=1 // pred_fallthru
      _
    %5718 = vsyncpa [#allocation5], 1
    %5719 = vsyncpa [#allocation8], 1
    %5720 = vsyncpa [#allocation11], 1
    %5721 = vsyncpa [#allocation14], 1
    %5722 = vsyncpa [#allocation6], 1

</llo_original>
